<compile_context>
chip_gen: v5e
topology: v5e:2x2
jax: 0.10.0
libtpu: 0.0.40
codegen_flags: <defaults>
</compile_context>

<pallas_src>
import jax
import jax.numpy as jnp
from jax import lax
from jax.experimental import pallas as pl
from jax.experimental.pallas import tpu as pltpu


def _build_fused_kernel(n_layers, out_channels, extract_flags, H, W, c_max):
    """Fused per-image kernel body.

    Scratch layout: act[(hp * Wp + wp), c] holds the spatially zero-padded
    activation (Hp = H + 2, Wp = W + 2) plus two zero slack rows, so the tap
    (di, dj) for all output pixels is the contiguous slice
    act[di * Wp + dj : di * Wp + dj + Q, :] with Q = H * Wp.
    """
    Hp, Wp = H + 2, W + 2
    P = Hp * Wp          # padded image rows
    Q = H * Wp           # conv-output rows computed per tap slice

    def kernel(*refs):
        x_ref = refs[0]                            # (1, P, C0) padded + flattened input
        mask_ref = refs[1]                         # (Q, 1) 1.0 on valid columns, else 0.0
        wb = refs[2:2 + 2 * n_layers]              # per layer: (3,3,c_max,c_max), (1,c_max)
        n_out = sum(extract_flags)
        out_refs = refs[2 + 2 * n_layers:2 + 2 * n_layers + n_out]
        act = refs[2 + 2 * n_layers + n_out]       # VMEM scratch (P + 2, c_max)

        # Zero once per image: spatial halo + unused channels read as 0.
        act[...] = jnp.zeros_like(act)
        c0 = x_ref.shape[-1]
        act[0:P, :c0] = x_ref[0]

        mask = mask_ref[...]                       # broadcasts over channels
        out_idx = 0
        for li in range(n_layers):
            w_ref = wb[2 * li]                     # (3, 3, c_max, c_max), zero-padded
            b_ref = wb[2 * li + 1]                 # (1, c_max), zero-padded
            acc = jnp.zeros((Q, c_max), jnp.float32)
            for di in range(3):
                for dj in range(3):
                    off = di * Wp + dj
                    patch = act[off:off + Q, :]    # shifted VMEM view (no HBM im2col)
                    acc = acc + jnp.dot(patch, w_ref[di, dj],
                                        preferred_element_type=jnp.float32)
            # conv + bias + ReLU; zero the (interleaved) padding columns so the
            # write-back keeps the padded-image invariant for the next layer.
            y = jnp.maximum(acc + b_ref[...], 0.0) * mask
            # Output pixel q = i*Wp + j lands at padded row (i+1)*Wp + (j+1) = q + Wp + 1.
            act[Wp + 1:Wp + 1 + Q, :] = y
            if extract_flags[li]:
                c_out = out_channels[li]
                out_refs[out_idx][0] = y[:, :c_out]
                out_idx += 1

    return kernel


class FeatureExtractor:
    """JAX/Pallas equivalent of data.FeatureExtractor.

    `model_layers` plays the role of `pretrained_model.named_children()`: an
    ordered list of (name, (weight, bias)) 3x3-conv+ReLU stages with PyTorch
    OIHW weights.  forward() semantics are preserved exactly (sequential
    application, ordered list of features for names in `layers_to_extract`),
    but the whole chain runs as one fused pallas_call with all intermediate
    activations held in VMEM.
    """

    def __init__(self, model_layers, layers_to_extract):
        self._layers = list(model_layers)
        self._layers_to_extract = set(layers_to_extract)
        names = [name for name, _ in self._layers]
        self._extract_flags = tuple(n in self._layers_to_extract for n in names)

        c_ins = [int(w.shape[1]) for _, (w, _b) in self._layers]
        c_outs = [int(w.shape[0]) for _, (w, _b) in self._layers]
        self._c_in0 = c_ins[0]
        self._out_channels = tuple(c_outs)
        self._c_max = max(c_ins + c_outs)

        # One-time layout plumbing (at init, not per call): OIHW -> (kh,kw,Cin,Cout),
        # zero-padded on both channel axes to c_max so every in-kernel dot is
        # (Q, c_max) x (c_max, c_max) with full-width lane loads/stores.
        ws, bs = [], []
        for _, (w, b) in self._layers:
            w_t = jnp.transpose(w, (2, 3, 1, 0)).astype(jnp.float32)
            w_p = jnp.zeros((3, 3, self._c_max, self._c_max), jnp.float32)
            w_p = w_p.at[:, :, :w_t.shape[2], :w_t.shape[3]].set(w_t)
            b_p = jnp.zeros((1, self._c_max), jnp.float32)
            b_p = b_p.at[:, :b.shape[0]].set(b.reshape(1, -1).astype(jnp.float32))
            ws.append(w_p)
            bs.append(b_p)
        self._weights = tuple(ws)
        self._biases = tuple(bs)

        self._forward = jax.jit(self._forward_impl)

    def __call__(self, x):
        return self._forward(x, self._weights, self._biases)

    def _forward_impl(self, x_nchw, weights, biases):
        if not any(self._extract_flags):
            return []

        N, C0, H, W = x_nchw.shape
        assert C0 == self._c_in0, (C0, self._c_in0)
        Hp, Wp = H + 2, W + 2
        P, Q = Hp * Wp, H * Wp
        c_max = self._c_max
        n_layers = len(self._out_channels)

        # Single tiny boundary transform: NCHW -> zero-padded, row-flattened NHWC.
        x_nhwc = jnp.transpose(x_nchw, (0, 2, 3, 1))
        x_flat = jnp.pad(x_nhwc, ((0, 0), (1, 1), (1, 1), (0, 0))).reshape(N, P, C0)

        # 0/1 validity mask for the flattened conv-output rows (padding columns -> 0).
        col = jnp.arange(Q, dtype=jnp.int32) % Wp
        mask = (col < W).astype(jnp.float32).reshape(Q, 1)

        kernel = _build_fused_kernel(n_layers, self._out_channels,
                                     self._extract_flags, H, W, c_max)

        in_specs = [
            pl.BlockSpec((1, P, C0), lambda n: (n, 0, 0)),
            pl.BlockSpec((Q, 1), lambda n: (0, 0)),
        ]
        args = [x_flat, mask]
        for w_p, b_p in zip(weights, biases):
            in_specs.append(pl.BlockSpec((3, 3, c_max, c_max), lambda n: (0, 0, 0, 0)))
            in_specs.append(pl.BlockSpec((1, c_max), lambda n: (0, 0)))
            args.append(w_p)
            args.append(b_p)

        out_shapes, out_specs, out_ch = [], [], []
        for c_out, flag in zip(self._out_channels, self._extract_flags):
            if flag:
                out_shapes.append(jax.ShapeDtypeStruct((N, Q, c_out), jnp.float32))
                out_specs.append(pl.BlockSpec((1, Q, c_out), lambda n: (n, 0, 0)))
                out_ch.append(c_out)

        feats_flat = pl.pallas_call(
            kernel,
            out_shape=tuple(out_shapes),
            grid=(N,),                      # one image per grid step; v7x's two TCs
            in_specs=in_specs,              # each take one, v5e/v6e just loop.
            out_specs=tuple(out_specs),
            scratch_shapes=[pltpu.VMEM((P + 2, c_max), jnp.float32)],
            compiler_params=pltpu.CompilerParams(
                dimension_semantics=("parallel",)),
        )(*args)

        if not isinstance(feats_flat, (list, tuple)):
            feats_flat = (feats_flat,)

        # Un-flatten each extracted feature and return NCHW (PyTorch layout).
        feats = []
        for f, c_out in zip(feats_flat, out_ch):
            f = f.reshape(N, H, Wp, c_out)[:, :, :W, :]
            feats.append(jnp.transpose(f, (0, 3, 1, 2)))
        return feats


def _conv_relu_ref(x_nchw, weight, bias):
    # Pure-JAX reference (XLA conv) for correctness check of the kernel path.
    y = lax.conv_general_dilated(
        x_nchw, weight, window_strides=(1, 1), padding="SAME",
        dimension_numbers=("NCHW", "OIHW", "NCHW"))
    y = y + bias.reshape(1, -1, 1, 1)
    return jnp.maximum(y, 0.0)


def _make_model(key):
    # Synthetic "pretrained" backbone: conv1 4->8, layer1 8->16,
    # layer2 16->32, layer3 32->32 (each 3x3, stride 1, pad 1, + ReLU).
    cfgs = [("conv1", 4, 8), ("layer1", 8, 16), ("layer2", 16, 32), ("layer3", 32, 32)]
    layers = []
    for name, cin, cout in cfgs:
        key, kw, kb = jax.random.split(key, 3)
        fan_in = cin * 9
        w = jax.random.normal(kw, (cout, cin, 3, 3), jnp.float32) * (2.0 / fan_in) ** 0.5
        b = jax.random.normal(kb, (cout,), jnp.float32) * 0.01
        layers.append((name, (w, b)))
    return layers


if __name__ == "__main__":
    key = jax.random.PRNGKey(0)
    key, kx = jax.random.split(key)
    x = jax.random.normal(kx, (2, 4, 16, 16), jnp.float32)  # NCHW, like PyTorch

    model_layers = _make_model(key)
    extractor = FeatureExtractor(model_layers,
                                 layers_to_extract={"layer1", "layer2", "layer3"})

    feats = extractor(x)
    feats = [jax.block_until_ready(f) for f in feats]

    # Sanity-check the fused Pallas path against the XLA reference.
    x_ref = x
    ref_feats = []
    for name, (w, b) in model_layers:
        x_ref = _conv_relu_ref(x_ref, w, b)
        if name in {"layer1", "layer2", "layer3"}:
            ref_feats.append(x_ref)

    assert len(feats) == 3
    assert [f.shape for f in feats] == [(2, 16, 16, 16), (2, 32, 16, 16), (2, 32, 16, 16)]
    for got, ref in zip(feats, ref_feats):
        assert jnp.allclose(got, ref, atol=1e-4, rtol=1e-4)

    print("KERNEL_OK")
</pallas_src>

<mosaic_0001>
module attributes {stable_mosaic.version = 11 : i64} {
  func.func @kernel(%arg0: i32, %arg1: memref<1x324x4xf32, #tpu.memory_space<vmem>>, %arg2: memref<288x1xf32, #tpu.memory_space<vmem>>, %arg3: memref<3x3x32x32xf32, #tpu.memory_space<vmem>>, %arg4: memref<1x32xf32, #tpu.memory_space<vmem>>, %arg5: memref<3x3x32x32xf32, #tpu.memory_space<vmem>>, %arg6: memref<1x32xf32, #tpu.memory_space<vmem>>, %arg7: memref<3x3x32x32xf32, #tpu.memory_space<vmem>>, %arg8: memref<1x32xf32, #tpu.memory_space<vmem>>, %arg9: memref<3x3x32x32xf32, #tpu.memory_space<vmem>>, %arg10: memref<1x32xf32, #tpu.memory_space<vmem>>, %arg11: memref<1x288x16xf32, #tpu.memory_space<vmem>>, %arg12: memref<1x288x32xf32, #tpu.memory_space<vmem>>, %arg13: memref<1x288x32xf32, #tpu.memory_space<vmem>>, %arg14: memref<326x32xf32, #tpu.memory_space<vmem>>) attributes {dimension_semantics = [#tpu.dimension_semantics<parallel>], iteration_bounds = array<i64: 2>, scalar_prefetch = 0 : i64, scratch_operands = 1 : i64, tpu.core_type = #tpu.core_type<tc>, window_params = [{transform_indices = @transform_0, window_bounds = array<i64: 1, 324, 4>}, {pipeline_mode = #tpu.pipeline_mode<synchronous>, transform_indices = @transform_1, window_bounds = array<i64: 288, 1>}, {pipeline_mode = #tpu.pipeline_mode<synchronous>, transform_indices = @transform_2, window_bounds = array<i64: 3, 3, 32, 32>}, {pipeline_mode = #tpu.pipeline_mode<synchronous>, transform_indices = @transform_3, window_bounds = array<i64: 1, 32>}, {pipeline_mode = #tpu.pipeline_mode<synchronous>, transform_indices = @transform_4, window_bounds = array<i64: 3, 3, 32, 32>}, {pipeline_mode = #tpu.pipeline_mode<synchronous>, transform_indices = @transform_5, window_bounds = array<i64: 1, 32>}, {pipeline_mode = #tpu.pipeline_mode<synchronous>, transform_indices = @transform_6, window_bounds = array<i64: 3, 3, 32, 32>}, {pipeline_mode = #tpu.pipeline_mode<synchronous>, transform_indices = @transform_7, window_bounds = array<i64: 1, 32>}, {pipeline_mode = #tpu.pipeline_mode<synchronous>, transform_indices = @transform_8, window_bounds = array<i64: 3, 3, 32, 32>}, {pipeline_mode = #tpu.pipeline_mode<synchronous>, transform_indices = @transform_9, window_bounds = array<i64: 1, 32>}, {transform_indices = @transform_10, window_bounds = array<i64: 1, 288, 16>}, {transform_indices = @transform_11, window_bounds = array<i64: 1, 288, 32>}, {transform_indices = @transform_12, window_bounds = array<i64: 1, 288, 32>}]} {
    %cst = arith.constant 0.000000e+00 : f32
    %0 = vector.broadcast %cst : f32 to vector<326x32xf32>
    %c0 = arith.constant 0 : index
    %c0_0 = arith.constant 0 : index
    %1 = vector.load %arg14[%c0, %c0_0] : memref<326x32xf32, #tpu.memory_space<vmem>>, vector<326x32xf32>
    tpu.vector_store %arg14[%c0, %c0_0], %0 {strides = array<i32>} : memref<326x32xf32, #tpu.memory_space<vmem>>, vector<326x32xf32>,
    %c0_1 = arith.constant 0 : index
    %c0_2 = arith.constant 0 : index
    %c0_3 = arith.constant 0 : index
    %2 = vector.load %arg1[%c0_1, %c0_2, %c0_3] : memref<1x324x4xf32, #tpu.memory_space<vmem>>, vector<1x324x4xf32>
    %3 = vector.shape_cast %2 : vector<1x324x4xf32> to vector<324x4xf32>
    %c0_4 = arith.constant 0 : index
    %c0_5 = arith.constant 0 : index
    %4 = vector.load %arg14[%c0_4, %c0_5] : memref<326x32xf32, #tpu.memory_space<vmem>>, vector<324x4xf32>
    tpu.vector_store %arg14[%c0_4, %c0_5], %3 {strides = array<i32>} : memref<326x32xf32, #tpu.memory_space<vmem>>, vector<324x4xf32>,
    %c0_6 = arith.constant 0 : index
    %c0_7 = arith.constant 0 : index
    %5 = vector.load %arg2[%c0_6, %c0_7] : memref<288x1xf32, #tpu.memory_space<vmem>>, vector<288x1xf32>
    %cst_8 = arith.constant 0.000000e+00 : f32
    %6 = vector.broadcast %cst_8 : f32 to vector<288x32xf32>
    %c0_9 = arith.constant 0 : index
    %c0_10 = arith.constant 0 : index
    %7 = vector.load %arg14[%c0_9, %c0_10] : memref<326x32xf32, #tpu.memory_space<vmem>>, vector<288x32xf32>
    %c0_11 = arith.constant 0 : index
    %c0_12 = arith.constant 0 : index
    %c0_13 = arith.constant 0 : index
    %c0_14 = arith.constant 0 : index
    %8 = vector.load %arg3[%c0_11, %c0_12, %c0_13, %c0_14] : memref<3x3x32x32xf32, #tpu.memory_space<vmem>>, vector<1x1x32x32xf32>
    %9 = vector.shape_cast %8 : vector<1x1x32x32xf32> to vector<32x32xf32>
    %cst_15 = arith.constant dense<0.000000e+00> : vector<288x32xf32>
    %10 = tpu.matmul %7, %9, %cst_15 {dimension_numbers = #tpu.dot_dimension_numbers<[1], [0], [0], [1], [0, 0, 1, 1], [], []>} : vector<288x32xf32>, vector<32x32xf32>, vector<288x32xf32> -> vector<288x32xf32>
    %11 = arith.addf %6, %10 : vector<288x32xf32>
    %c1 = arith.constant 1 : index
    %c0_16 = arith.constant 0 : index
    %12 = vector.load %arg14[%c1, %c0_16] : memref<326x32xf32, #tpu.memory_space<vmem>>, vector<288x32xf32>
    %c0_17 = arith.constant 0 : index
    %c1_18 = arith.constant 1 : index
    %c0_19 = arith.constant 0 : index
    %c0_20 = arith.constant 0 : index
    %13 = vector.load %arg3[%c0_17, %c1_18, %c0_19, %c0_20] : memref<3x3x32x32xf32, #tpu.memory_space<vmem>>, vector<1x1x32x32xf32>
    %14 = vector.shape_cast %13 : vector<1x1x32x32xf32> to vector<32x32xf32>
    %cst_21 = arith.constant dense<0.000000e+00> : vector<288x32xf32>
    %15 = tpu.matmul %12, %14, %cst_21 {dimension_numbers = #tpu.dot_dimension_numbers<[1], [0], [0], [1], [0, 0, 1, 1], [], []>} : vector<288x32xf32>, vector<32x32xf32>, vector<288x32xf32> -> vector<288x32xf32>
    %16 = arith.addf %11, %15 : vector<288x32xf32>
    %c2 = arith.constant 2 : index
    %c0_22 = arith.constant 0 : index
    %17 = vector.load %arg14[%c2, %c0_22] : memref<326x32xf32, #tpu.memory_space<vmem>>, vector<288x32xf32>
    %c0_23 = arith.constant 0 : index
    %c2_24 = arith.constant 2 : index
    %c0_25 = arith.constant 0 : index
    %c0_26 = arith.constant 0 : index
    %18 = vector.load %arg3[%c0_23, %c2_24, %c0_25, %c0_26] : memref<3x3x32x32xf32, #tpu.memory_space<vmem>>, vector<1x1x32x32xf32>
    %19 = vector.shape_cast %18 : vector<1x1x32x32xf32> to vector<32x32xf32>
    %cst_27 = arith.constant dense<0.000000e+00> : vector<288x32xf32>
    %20 = tpu.matmul %17, %19, %cst_27 {dimension_numbers = #tpu.dot_dimension_numbers<[1], [0], [0], [1], [0, 0, 1, 1], [], []>} : vector<288x32xf32>, vector<32x32xf32>, vector<288x32xf32> -> vector<288x32xf32>
    %21 = arith.addf %16, %20 : vector<288x32xf32>
    %c18 = arith.constant 18 : index
    %c0_28 = arith.constant 0 : index
    %22 = vector.load %arg14[%c18, %c0_28] : memref<326x32xf32, #tpu.memory_space<vmem>>, vector<288x32xf32>
    %c1_29 = arith.constant 1 : index
    %c0_30 = arith.constant 0 : index
    %c0_31 = arith.constant 0 : index
    %c0_32 = arith.constant 0 : index
    %23 = vector.load %arg3[%c1_29, %c0_30, %c0_31, %c0_32] : memref<3x3x32x32xf32, #tpu.memory_space<vmem>>, vector<1x1x32x32xf32>
    %24 = vector.shape_cast %23 : vector<1x1x32x32xf32> to vector<32x32xf32>
    %cst_33 = arith.constant dense<0.000000e+00> : vector<288x32xf32>
    %25 = tpu.matmul %22, %24, %cst_33 {dimension_numbers = #tpu.dot_dimension_numbers<[1], [0], [0], [1], [0, 0, 1, 1], [], []>} : vector<288x32xf32>, vector<32x32xf32>, vector<288x32xf32> -> vector<288x32xf32>
    %26 = arith.addf %21, %25 : vector<288x32xf32>
    %c19 = arith.constant 19 : index
    %c0_34 = arith.constant 0 : index
    %27 = vector.load %arg14[%c19, %c0_34] : memref<326x32xf32, #tpu.memory_space<vmem>>, vector<288x32xf32>
    %c1_35 = arith.constant 1 : index
    %c1_36 = arith.constant 1 : index
    %c0_37 = arith.constant 0 : index
    %c0_38 = arith.constant 0 : index
    %28 = vector.load %arg3[%c1_35, %c1_36, %c0_37, %c0_38] : memref<3x3x32x32xf32, #tpu.memory_space<vmem>>, vector<1x1x32x32xf32>
    %29 = vector.shape_cast %28 : vector<1x1x32x32xf32> to vector<32x32xf32>
    %cst_39 = arith.constant dense<0.000000e+00> : vector<288x32xf32>
    %30 = tpu.matmul %27, %29, %cst_39 {dimension_numbers = #tpu.dot_dimension_numbers<[1], [0], [0], [1], [0, 0, 1, 1], [], []>} : vector<288x32xf32>, vector<32x32xf32>, vector<288x32xf32> -> vector<288x32xf32>
    %31 = arith.addf %26, %30 : vector<288x32xf32>
    %c20 = arith.constant 20 : index
    %c0_40 = arith.constant 0 : index
    %32 = vector.load %arg14[%c20, %c0_40] : memref<326x32xf32, #tpu.memory_space<vmem>>, vector<288x32xf32>
    %c1_41 = arith.constant 1 : index
    %c2_42 = arith.constant 2 : index
    %c0_43 = arith.constant 0 : index
    %c0_44 = arith.constant 0 : index
    %33 = vector.load %arg3[%c1_41, %c2_42, %c0_43, %c0_44] : memref<3x3x32x32xf32, #tpu.memory_space<vmem>>, vector<1x1x32x32xf32>
    %34 = vector.shape_cast %33 : vector<1x1x32x32xf32> to vector<32x32xf32>
    %cst_45 = arith.constant dense<0.000000e+00> : vector<288x32xf32>
    %35 = tpu.matmul %32, %34, %cst_45 {dimension_numbers = #tpu.dot_dimension_numbers<[1], [0], [0], [1], [0, 0, 1, 1], [], []>} : vector<288x32xf32>, vector<32x32xf32>, vector<288x32xf32> -> vector<288x32xf32>
    %36 = arith.addf %31, %35 : vector<288x32xf32>
    %c36 = arith.constant 36 : index
    %c0_46 = arith.constant 0 : index
    %37 = vector.load %arg14[%c36, %c0_46] : memref<326x32xf32, #tpu.memory_space<vmem>>, vector<288x32xf32>
    %c2_47 = arith.constant 2 : index
    %c0_48 = arith.constant 0 : index
    %c0_49 = arith.constant 0 : index
    %c0_50 = arith.constant 0 : index
    %38 = vector.load %arg3[%c2_47, %c0_48, %c0_49, %c0_50] : memref<3x3x32x32xf32, #tpu.memory_space<vmem>>, vector<1x1x32x32xf32>
    %39 = vector.shape_cast %38 : vector<1x1x32x32xf32> to vector<32x32xf32>
    %cst_51 = arith.constant dense<0.000000e+00> : vector<288x32xf32>
    %40 = tpu.matmul %37, %39, %cst_51 {dimension_numbers = #tpu.dot_dimension_numbers<[1], [0], [0], [1], [0, 0, 1, 1], [], []>} : vector<288x32xf32>, vector<32x32xf32>, vector<288x32xf32> -> vector<288x32xf32>
    %41 = arith.addf %36, %40 : vector<288x32xf32>
    %c37 = arith.constant 37 : index
    %c0_52 = arith.constant 0 : index
    %42 = vector.load %arg14[%c37, %c0_52] : memref<326x32xf32, #tpu.memory_space<vmem>>, vector<288x32xf32>
    %c2_53 = arith.constant 2 : index
    %c1_54 = arith.constant 1 : index
    %c0_55 = arith.constant 0 : index
    %c0_56 = arith.constant 0 : index
    %43 = vector.load %arg3[%c2_53, %c1_54, %c0_55, %c0_56] : memref<3x3x32x32xf32, #tpu.memory_space<vmem>>, vector<1x1x32x32xf32>
    %44 = vector.shape_cast %43 : vector<1x1x32x32xf32> to vector<32x32xf32>
    %cst_57 = arith.constant dense<0.000000e+00> : vector<288x32xf32>
    %45 = tpu.matmul %42, %44, %cst_57 {dimension_numbers = #tpu.dot_dimension_numbers<[1], [0], [0], [1], [0, 0, 1, 1], [], []>} : vector<288x32xf32>, vector<32x32xf32>, vector<288x32xf32> -> vector<288x32xf32>
    %46 = arith.addf %41, %45 : vector<288x32xf32>
    %c38 = arith.constant 38 : index
    %c0_58 = arith.constant 0 : index
    %47 = vector.load %arg14[%c38, %c0_58] : memref<326x32xf32, #tpu.memory_space<vmem>>, vector<288x32xf32>
    %c2_59 = arith.constant 2 : index
    %c2_60 = arith.constant 2 : index
    %c0_61 = arith.constant 0 : index
    %c0_62 = arith.constant 0 : index
    %48 = vector.load %arg3[%c2_59, %c2_60, %c0_61, %c0_62] : memref<3x3x32x32xf32, #tpu.memory_space<vmem>>, vector<1x1x32x32xf32>
    %49 = vector.shape_cast %48 : vector<1x1x32x32xf32> to vector<32x32xf32>
    %cst_63 = arith.constant dense<0.000000e+00> : vector<288x32xf32>
    %50 = tpu.matmul %47, %49, %cst_63 {dimension_numbers = #tpu.dot_dimension_numbers<[1], [0], [0], [1], [0, 0, 1, 1], [], []>} : vector<288x32xf32>, vector<32x32xf32>, vector<288x32xf32> -> vector<288x32xf32>
    %51 = arith.addf %46, %50 : vector<288x32xf32>
    %c0_64 = arith.constant 0 : index
    %c0_65 = arith.constant 0 : index
    %52 = vector.load %arg4[%c0_64, %c0_65] : memref<1x32xf32, #tpu.memory_space<vmem>>, vector<1x32xf32>
    %53 = vector.broadcast %52 : vector<1x32xf32> to vector<288x32xf32>
    %54 = arith.addf %51, %53 : vector<288x32xf32>
    %cst_66 = arith.constant 0.000000e+00 : f32
    %55 = vector.broadcast %cst_66 : f32 to vector<288x32xf32>
    %56 = arith.maximumf %54, %55 : vector<288x32xf32>
    %57 = vector.broadcast %5 : vector<288x1xf32> to vector<288x32xf32>
    %58 = arith.mulf %56, %57 : vector<288x32xf32>
    %c19_67 = arith.constant 19 : index
    %c0_68 = arith.constant 0 : index
    %59 = vector.load %arg14[%c19_67, %c0_68] : memref<326x32xf32, #tpu.memory_space<vmem>>, vector<288x32xf32>
    tpu.vector_store %arg14[%c19_67, %c0_68], %58 {strides = array<i32>} : memref<326x32xf32, #tpu.memory_space<vmem>>, vector<288x32xf32>,
    %cst_69 = arith.constant 0.000000e+00 : f32
    %60 = vector.broadcast %cst_69 : f32 to vector<288x32xf32>
    %c0_70 = arith.constant 0 : index
    %c0_71 = arith.constant 0 : index
    %61 = vector.load %arg14[%c0_70, %c0_71] : memref<326x32xf32, #tpu.memory_space<vmem>>, vector<288x32xf32>
    %c0_72 = arith.constant 0 : index
    %c0_73 = arith.constant 0 : index
    %c0_74 = arith.constant 0 : index
    %c0_75 = arith.constant 0 : index
    %62 = vector.load %arg5[%c0_72, %c0_73, %c0_74, %c0_75] : memref<3x3x32x32xf32, #tpu.memory_space<vmem>>, vector<1x1x32x32xf32>
    %63 = vector.shape_cast %62 : vector<1x1x32x32xf32> to vector<32x32xf32>
    %cst_76 = arith.constant dense<0.000000e+00> : vector<288x32xf32>
    %64 = tpu.matmul %61, %63, %cst_76 {dimension_numbers = #tpu.dot_dimension_numbers<[1], [0], [0], [1], [0, 0, 1, 1], [], []>} : vector<288x32xf32>, vector<32x32xf32>, vector<288x32xf32> -> vector<288x32xf32>
    %65 = arith.addf %60, %64 : vector<288x32xf32>
    %c1_77 = arith.constant 1 : index
    %c0_78 = arith.constant 0 : index
    %66 = vector.load %arg14[%c1_77, %c0_78] : memref<326x32xf32, #tpu.memory_space<vmem>>, vector<288x32xf32>
    %c0_79 = arith.constant 0 : index
    %c1_80 = arith.constant 1 : index
    %c0_81 = arith.constant 0 : index
    %c0_82 = arith.constant 0 : index
    %67 = vector.load %arg5[%c0_79, %c1_80, %c0_81, %c0_82] : memref<3x3x32x32xf32, #tpu.memory_space<vmem>>, vector<1x1x32x32xf32>
    %68 = vector.shape_cast %67 : vector<1x1x32x32xf32> to vector<32x32xf32>
    %cst_83 = arith.constant dense<0.000000e+00> : vector<288x32xf32>
    %69 = tpu.matmul %66, %68, %cst_83 {dimension_numbers = #tpu.dot_dimension_numbers<[1], [0], [0], [1], [0, 0, 1, 1], [], []>} : vector<288x32xf32>, vector<32x32xf32>, vector<288x32xf32> -> vector<288x32xf32>
    %70 = arith.addf %65, %69 : vector<288x32xf32>
    %c2_84 = arith.constant 2 : index
    %c0_85 = arith.constant 0 : index
    %71 = vector.load %arg14[%c2_84, %c0_85] : memref<326x32xf32, #tpu.memory_space<vmem>>, vector<288x32xf32>
    %c0_86 = arith.constant 0 : index
    %c2_87 = arith.constant 2 : index
    %c0_88 = arith.constant 0 : index
    %c0_89 = arith.constant 0 : index
    %72 = vector.load %arg5[%c0_86, %c2_87, %c0_88, %c0_89] : memref<3x3x32x32xf32, #tpu.memory_space<vmem>>, vector<1x1x32x32xf32>
    %73 = vector.shape_cast %72 : vector<1x1x32x32xf32> to vector<32x32xf32>
    %cst_90 = arith.constant dense<0.000000e+00> : vector<288x32xf32>
    %74 = tpu.matmul %71, %73, %cst_90 {dimension_numbers = #tpu.dot_dimension_numbers<[1], [0], [0], [1], [0, 0, 1, 1], [], []>} : vector<288x32xf32>, vector<32x32xf32>, vector<288x32xf32> -> vector<288x32xf32>
    %75 = arith.addf %70, %74 : vector<288x32xf32>
    %c18_91 = arith.constant 18 : index
    %c0_92 = arith.constant 0 : index
    %76 = vector.load %arg14[%c18_91, %c0_92] : memref<326x32xf32, #tpu.memory_space<vmem>>, vector<288x32xf32>
    %c1_93 = arith.constant 1 : index
    %c0_94 = arith.constant 0 : index
    %c0_95 = arith.constant 0 : index
    %c0_96 = arith.constant 0 : index
    %77 = vector.load %arg5[%c1_93, %c0_94, %c0_95, %c0_96] : memref<3x3x32x32xf32, #tpu.memory_space<vmem>>, vector<1x1x32x32xf32>
    %78 = vector.shape_cast %77 : vector<1x1x32x32xf32> to vector<32x32xf32>
    %cst_97 = arith.constant dense<0.000000e+00> : vector<288x32xf32>
    %79 = tpu.matmul %76, %78, %cst_97 {dimension_numbers = #tpu.dot_dimension_numbers<[1], [0], [0], [1], [0, 0, 1, 1], [], []>} : vector<288x32xf32>, vector<32x32xf32>, vector<288x32xf32> -> vector<288x32xf32>
    %80 = arith.addf %75, %79 : vector<288x32xf32>
    %c19_98 = arith.constant 19 : index
    %c0_99 = arith.constant 0 : index
    %81 = vector.load %arg14[%c19_98, %c0_99] : memref<326x32xf32, #tpu.memory_space<vmem>>, vector<288x32xf32>
    %c1_100 = arith.constant 1 : index
    %c1_101 = arith.constant 1 : index
    %c0_102 = arith.constant 0 : index
    %c0_103 = arith.constant 0 : index
    %82 = vector.load %arg5[%c1_100, %c1_101, %c0_102, %c0_103] : memref<3x3x32x32xf32, #tpu.memory_space<vmem>>, vector<1x1x32x32xf32>
    %83 = vector.shape_cast %82 : vector<1x1x32x32xf32> to vector<32x32xf32>
    %cst_104 = arith.constant dense<0.000000e+00> : vector<288x32xf32>
    %84 = tpu.matmul %81, %83, %cst_104 {dimension_numbers = #tpu.dot_dimension_numbers<[1], [0], [0], [1], [0, 0, 1, 1], [], []>} : vector<288x32xf32>, vector<32x32xf32>, vector<288x32xf32> -> vector<288x32xf32>
    %85 = arith.addf %80, %84 : vector<288x32xf32>
    %c20_105 = arith.constant 20 : index
    %c0_106 = arith.constant 0 : index
    %86 = vector.load %arg14[%c20_105, %c0_106] : memref<326x32xf32, #tpu.memory_space<vmem>>, vector<288x32xf32>
    %c1_107 = arith.constant 1 : index
    %c2_108 = arith.constant 2 : index
    %c0_109 = arith.constant 0 : index
    %c0_110 = arith.constant 0 : index
    %87 = vector.load %arg5[%c1_107, %c2_108, %c0_109, %c0_110] : memref<3x3x32x32xf32, #tpu.memory_space<vmem>>, vector<1x1x32x32xf32>
    %88 = vector.shape_cast %87 : vector<1x1x32x32xf32> to vector<32x32xf32>
    %cst_111 = arith.constant dense<0.000000e+00> : vector<288x32xf32>
    %89 = tpu.matmul %86, %88, %cst_111 {dimension_numbers = #tpu.dot_dimension_numbers<[1], [0], [0], [1], [0, 0, 1, 1], [], []>} : vector<288x32xf32>, vector<32x32xf32>, vector<288x32xf32> -> vector<288x32xf32>
    %90 = arith.addf %85, %89 : vector<288x32xf32>
    %c36_112 = arith.constant 36 : index
    %c0_113 = arith.constant 0 : index
    %91 = vector.load %arg14[%c36_112, %c0_113] : memref<326x32xf32, #tpu.memory_space<vmem>>, vector<288x32xf32>
    %c2_114 = arith.constant 2 : index
    %c0_115 = arith.constant 0 : index
    %c0_116 = arith.constant 0 : index
    %c0_117 = arith.constant 0 : index
    %92 = vector.load %arg5[%c2_114, %c0_115, %c0_116, %c0_117] : memref<3x3x32x32xf32, #tpu.memory_space<vmem>>, vector<1x1x32x32xf32>
    %93 = vector.shape_cast %92 : vector<1x1x32x32xf32> to vector<32x32xf32>
    %cst_118 = arith.constant dense<0.000000e+00> : vector<288x32xf32>
    %94 = tpu.matmul %91, %93, %cst_118 {dimension_numbers = #tpu.dot_dimension_numbers<[1], [0], [0], [1], [0, 0, 1, 1], [], []>} : vector<288x32xf32>, vector<32x32xf32>, vector<288x32xf32> -> vector<288x32xf32>
    %95 = arith.addf %90, %94 : vector<288x32xf32>
    %c37_119 = arith.constant 37 : index
    %c0_120 = arith.constant 0 : index
    %96 = vector.load %arg14[%c37_119, %c0_120] : memref<326x32xf32, #tpu.memory_space<vmem>>, vector<288x32xf32>
    %c2_121 = arith.constant 2 : index
    %c1_122 = arith.constant 1 : index
    %c0_123 = arith.constant 0 : index
    %c0_124 = arith.constant 0 : index
    %97 = vector.load %arg5[%c2_121, %c1_122, %c0_123, %c0_124] : memref<3x3x32x32xf32, #tpu.memory_space<vmem>>, vector<1x1x32x32xf32>
    %98 = vector.shape_cast %97 : vector<1x1x32x32xf32> to vector<32x32xf32>
    %cst_125 = arith.constant dense<0.000000e+00> : vector<288x32xf32>
    %99 = tpu.matmul %96, %98, %cst_125 {dimension_numbers = #tpu.dot_dimension_numbers<[1], [0], [0], [1], [0, 0, 1, 1], [], []>} : vector<288x32xf32>, vector<32x32xf32>, vector<288x32xf32> -> vector<288x32xf32>
    %100 = arith.addf %95, %99 : vector<288x32xf32>
    %c38_126 = arith.constant 38 : index
    %c0_127 = arith.constant 0 : index
    %101 = vector.load %arg14[%c38_126, %c0_127] : memref<326x32xf32, #tpu.memory_space<vmem>>, vector<288x32xf32>
    %c2_128 = arith.constant 2 : index
    %c2_129 = arith.constant 2 : index
    %c0_130 = arith.constant 0 : index
    %c0_131 = arith.constant 0 : index
    %102 = vector.load %arg5[%c2_128, %c2_129, %c0_130, %c0_131] : memref<3x3x32x32xf32, #tpu.memory_space<vmem>>, vector<1x1x32x32xf32>
    %103 = vector.shape_cast %102 : vector<1x1x32x32xf32> to vector<32x32xf32>
    %cst_132 = arith.constant dense<0.000000e+00> : vector<288x32xf32>
    %104 = tpu.matmul %101, %103, %cst_132 {dimension_numbers = #tpu.dot_dimension_numbers<[1], [0], [0], [1], [0, 0, 1, 1], [], []>} : vector<288x32xf32>, vector<32x32xf32>, vector<288x32xf32> -> vector<288x32xf32>
    %105 = arith.addf %100, %104 : vector<288x32xf32>
    %c0_133 = arith.constant 0 : index
    %c0_134 = arith.constant 0 : index
    %106 = vector.load %arg6[%c0_133, %c0_134] : memref<1x32xf32, #tpu.memory_space<vmem>>, vector<1x32xf32>
    %107 = vector.broadcast %106 : vector<1x32xf32> to vector<288x32xf32>
    %108 = arith.addf %105, %107 : vector<288x32xf32>
    %cst_135 = arith.constant 0.000000e+00 : f32
    %109 = vector.broadcast %cst_135 : f32 to vector<288x32xf32>
    %110 = arith.maximumf %108, %109 : vector<288x32xf32>
    %111 = vector.broadcast %5 : vector<288x1xf32> to vector<288x32xf32>
    %112 = arith.mulf %110, %111 : vector<288x32xf32>
    %c19_136 = arith.constant 19 : index
    %c0_137 = arith.constant 0 : index
    %113 = vector.load %arg14[%c19_136, %c0_137] : memref<326x32xf32, #tpu.memory_space<vmem>>, vector<288x32xf32>
    tpu.vector_store %arg14[%c19_136, %c0_137], %112 {strides = array<i32>} : memref<326x32xf32, #tpu.memory_space<vmem>>, vector<288x32xf32>,
    %114 = vector.extract_strided_slice %112 {offsets = [0, 0], sizes = [288, 16], strides = [1, 1]} : vector<288x32xf32> to vector<288x16xf32>
    %c0_138 = arith.constant 0 : index
    %c0_139 = arith.constant 0 : index
    %c0_140 = arith.constant 0 : index
    %115 = vector.load %arg11[%c0_138, %c0_139, %c0_140] : memref<1x288x16xf32, #tpu.memory_space<vmem>>, vector<1x288x16xf32>
    %116 = vector.shape_cast %115 : vector<1x288x16xf32> to vector<288x16xf32>
    %117 = vector.shape_cast %114 : vector<288x16xf32> to vector<1x288x16xf32>
    tpu.vector_store %arg11[%c0_138, %c0_139, %c0_140], %117 {strides = array<i32>} : memref<1x288x16xf32, #tpu.memory_space<vmem>>, vector<1x288x16xf32>,
    %cst_141 = arith.constant 0.000000e+00 : f32
    %118 = vector.broadcast %cst_141 : f32 to vector<288x32xf32>
    %c0_142 = arith.constant 0 : index
    %c0_143 = arith.constant 0 : index
    %119 = vector.load %arg14[%c0_142, %c0_143] : memref<326x32xf32, #tpu.memory_space<vmem>>, vector<288x32xf32>
    %c0_144 = arith.constant 0 : index
    %c0_145 = arith.constant 0 : index
    %c0_146 = arith.constant 0 : index
    %c0_147 = arith.constant 0 : index
    %120 = vector.load %arg7[%c0_144, %c0_145, %c0_146, %c0_147] : memref<3x3x32x32xf32, #tpu.memory_space<vmem>>, vector<1x1x32x32xf32>
    %121 = vector.shape_cast %120 : vector<1x1x32x32xf32> to vector<32x32xf32>
    %cst_148 = arith.constant dense<0.000000e+00> : vector<288x32xf32>
    %122 = tpu.matmul %119, %121, %cst_148 {dimension_numbers = #tpu.dot_dimension_numbers<[1], [0], [0], [1], [0, 0, 1, 1], [], []>} : vector<288x32xf32>, vector<32x32xf32>, vector<288x32xf32> -> vector<288x32xf32>
    %123 = arith.addf %118, %122 : vector<288x32xf32>
    %c1_149 = arith.constant 1 : index
    %c0_150 = arith.constant 0 : index
    %124 = vector.load %arg14[%c1_149, %c0_150] : memref<326x32xf32, #tpu.memory_space<vmem>>, vector<288x32xf32>
    %c0_151 = arith.constant 0 : index
    %c1_152 = arith.constant 1 : index
    %c0_153 = arith.constant 0 : index
    %c0_154 = arith.constant 0 : index
    %125 = vector.load %arg7[%c0_151, %c1_152, %c0_153, %c0_154] : memref<3x3x32x32xf32, #tpu.memory_space<vmem>>, vector<1x1x32x32xf32>
    %126 = vector.shape_cast %125 : vector<1x1x32x32xf32> to vector<32x32xf32>
    %cst_155 = arith.constant dense<0.000000e+00> : vector<288x32xf32>
    %127 = tpu.matmul %124, %126, %cst_155 {dimension_numbers = #tpu.dot_dimension_numbers<[1], [0], [0], [1], [0, 0, 1, 1], [], []>} : vector<288x32xf32>, vector<32x32xf32>, vector<288x32xf32> -> vector<288x32xf32>
    %128 = arith.addf %123, %127 : vector<288x32xf32>
    %c2_156 = arith.constant 2 : index
    %c0_157 = arith.constant 0 : index
    %129 = vector.load %arg14[%c2_156, %c0_157] : memref<326x32xf32, #tpu.memory_space<vmem>>, vector<288x32xf32>
    %c0_158 = arith.constant 0 : index
    %c2_159 = arith.constant 2 : index
    %c0_160 = arith.constant 0 : index
    %c0_161 = arith.constant 0 : index
    %130 = vector.load %arg7[%c0_158, %c2_159, %c0_160, %c0_161] : memref<3x3x32x32xf32, #tpu.memory_space<vmem>>, vector<1x1x32x32xf32>
    %131 = vector.shape_cast %130 : vector<1x1x32x32xf32> to vector<32x32xf32>
    %cst_162 = arith.constant dense<0.000000e+00> : vector<288x32xf32>
    %132 = tpu.matmul %129, %131, %cst_162 {dimension_numbers = #tpu.dot_dimension_numbers<[1], [0], [0], [1], [0, 0, 1, 1], [], []>} : vector<288x32xf32>, vector<32x32xf32>, vector<288x32xf32> -> vector<288x32xf32>
    %133 = arith.addf %128, %132 : vector<288x32xf32>
    %c18_163 = arith.constant 18 : index
    %c0_164 = arith.constant 0 : index
    %134 = vector.load %arg14[%c18_163, %c0_164] : memref<326x32xf32, #tpu.memory_space<vmem>>, vector<288x32xf32>
    %c1_165 = arith.constant 1 : index
    %c0_166 = arith.constant 0 : index
    %c0_167 = arith.constant 0 : index
    %c0_168 = arith.constant 0 : index
    %135 = vector.load %arg7[%c1_165, %c0_166, %c0_167, %c0_168] : memref<3x3x32x32xf32, #tpu.memory_space<vmem>>, vector<1x1x32x32xf32>
    %136 = vector.shape_cast %135 : vector<1x1x32x32xf32> to vector<32x32xf32>
    %cst_169 = arith.constant dense<0.000000e+00> : vector<288x32xf32>
    %137 = tpu.matmul %134, %136, %cst_169 {dimension_numbers = #tpu.dot_dimension_numbers<[1], [0], [0], [1], [0, 0, 1, 1], [], []>} : vector<288x32xf32>, vector<32x32xf32>, vector<288x32xf32> -> vector<288x32xf32>
    %138 = arith.addf %133, %137 : vector<288x32xf32>
    %c19_170 = arith.constant 19 : index
    %c0_171 = arith.constant 0 : index
    %139 = vector.load %arg14[%c19_170, %c0_171] : memref<326x32xf32, #tpu.memory_space<vmem>>, vector<288x32xf32>
    %c1_172 = arith.constant 1 : index
    %c1_173 = arith.constant 1 : index
    %c0_174 = arith.constant 0 : index
    %c0_175 = arith.constant 0 : index
    %140 = vector.load %arg7[%c1_172, %c1_173, %c0_174, %c0_175] : memref<3x3x32x32xf32, #tpu.memory_space<vmem>>, vector<1x1x32x32xf32>
    %141 = vector.shape_cast %140 : vector<1x1x32x32xf32> to vector<32x32xf32>
    %cst_176 = arith.constant dense<0.000000e+00> : vector<288x32xf32>
    %142 = tpu.matmul %139, %141, %cst_176 {dimension_numbers = #tpu.dot_dimension_numbers<[1], [0], [0], [1], [0, 0, 1, 1], [], []>} : vector<288x32xf32>, vector<32x32xf32>, vector<288x32xf32> -> vector<288x32xf32>
    %143 = arith.addf %138, %142 : vector<288x32xf32>
    %c20_177 = arith.constant 20 : index
    %c0_178 = arith.constant 0 : index
    %144 = vector.load %arg14[%c20_177, %c0_178] : memref<326x32xf32, #tpu.memory_space<vmem>>, vector<288x32xf32>
    %c1_179 = arith.constant 1 : index
    %c2_180 = arith.constant 2 : index
    %c0_181 = arith.constant 0 : index
    %c0_182 = arith.constant 0 : index
    %145 = vector.load %arg7[%c1_179, %c2_180, %c0_181, %c0_182] : memref<3x3x32x32xf32, #tpu.memory_space<vmem>>, vector<1x1x32x32xf32>
    %146 = vector.shape_cast %145 : vector<1x1x32x32xf32> to vector<32x32xf32>
    %cst_183 = arith.constant dense<0.000000e+00> : vector<288x32xf32>
    %147 = tpu.matmul %144, %146, %cst_183 {dimension_numbers = #tpu.dot_dimension_numbers<[1], [0], [0], [1], [0, 0, 1, 1], [], []>} : vector<288x32xf32>, vector<32x32xf32>, vector<288x32xf32> -> vector<288x32xf32>
    %148 = arith.addf %143, %147 : vector<288x32xf32>
    %c36_184 = arith.constant 36 : index
    %c0_185 = arith.constant 0 : index
    %149 = vector.load %arg14[%c36_184, %c0_185] : memref<326x32xf32, #tpu.memory_space<vmem>>, vector<288x32xf32>
    %c2_186 = arith.constant 2 : index
    %c0_187 = arith.constant 0 : index
    %c0_188 = arith.constant 0 : index
    %c0_189 = arith.constant 0 : index
    %150 = vector.load %arg7[%c2_186, %c0_187, %c0_188, %c0_189] : memref<3x3x32x32xf32, #tpu.memory_space<vmem>>, vector<1x1x32x32xf32>
    %151 = vector.shape_cast %150 : vector<1x1x32x32xf32> to vector<32x32xf32>
    %cst_190 = arith.constant dense<0.000000e+00> : vector<288x32xf32>
    %152 = tpu.matmul %149, %151, %cst_190 {dimension_numbers = #tpu.dot_dimension_numbers<[1], [0], [0], [1], [0, 0, 1, 1], [], []>} : vector<288x32xf32>, vector<32x32xf32>, vector<288x32xf32> -> vector<288x32xf32>
    %153 = arith.addf %148, %152 : vector<288x32xf32>
    %c37_191 = arith.constant 37 : index
    %c0_192 = arith.constant 0 : index
    %154 = vector.load %arg14[%c37_191, %c0_192] : memref<326x32xf32, #tpu.memory_space<vmem>>, vector<288x32xf32>
    %c2_193 = arith.constant 2 : index
    %c1_194 = arith.constant 1 : index
    %c0_195 = arith.constant 0 : index
    %c0_196 = arith.constant 0 : index
    %155 = vector.load %arg7[%c2_193, %c1_194, %c0_195, %c0_196] : memref<3x3x32x32xf32, #tpu.memory_space<vmem>>, vector<1x1x32x32xf32>
    %156 = vector.shape_cast %155 : vector<1x1x32x32xf32> to vector<32x32xf32>
    %cst_197 = arith.constant dense<0.000000e+00> : vector<288x32xf32>
    %157 = tpu.matmul %154, %156, %cst_197 {dimension_numbers = #tpu.dot_dimension_numbers<[1], [0], [0], [1], [0, 0, 1, 1], [], []>} : vector<288x32xf32>, vector<32x32xf32>, vector<288x32xf32> -> vector<288x32xf32>
    %158 = arith.addf %153, %157 : vector<288x32xf32>
    %c38_198 = arith.constant 38 : index
    %c0_199 = arith.constant 0 : index
    %159 = vector.load %arg14[%c38_198, %c0_199] : memref<326x32xf32, #tpu.memory_space<vmem>>, vector<288x32xf32>
    %c2_200 = arith.constant 2 : index
    %c2_201 = arith.constant 2 : index
    %c0_202 = arith.constant 0 : index
    %c0_203 = arith.constant 0 : index
    %160 = vector.load %arg7[%c2_200, %c2_201, %c0_202, %c0_203] : memref<3x3x32x32xf32, #tpu.memory_space<vmem>>, vector<1x1x32x32xf32>
    %161 = vector.shape_cast %160 : vector<1x1x32x32xf32> to vector<32x32xf32>
    %cst_204 = arith.constant dense<0.000000e+00> : vector<288x32xf32>
    %162 = tpu.matmul %159, %161, %cst_204 {dimension_numbers = #tpu.dot_dimension_numbers<[1], [0], [0], [1], [0, 0, 1, 1], [], []>} : vector<288x32xf32>, vector<32x32xf32>, vector<288x32xf32> -> vector<288x32xf32>
    %163 = arith.addf %158, %162 : vector<288x32xf32>
    %c0_205 = arith.constant 0 : index
    %c0_206 = arith.constant 0 : index
    %164 = vector.load %arg8[%c0_205, %c0_206] : memref<1x32xf32, #tpu.memory_space<vmem>>, vector<1x32xf32>
    %165 = vector.broadcast %164 : vector<1x32xf32> to vector<288x32xf32>
    %166 = arith.addf %163, %165 : vector<288x32xf32>
    %cst_207 = arith.constant 0.000000e+00 : f32
    %167 = vector.broadcast %cst_207 : f32 to vector<288x32xf32>
    %168 = arith.maximumf %166, %167 : vector<288x32xf32>
    %169 = vector.broadcast %5 : vector<288x1xf32> to vector<288x32xf32>
    %170 = arith.mulf %168, %169 : vector<288x32xf32>
    %c19_208 = arith.constant 19 : index
    %c0_209 = arith.constant 0 : index
    %171 = vector.load %arg14[%c19_208, %c0_209] : memref<326x32xf32, #tpu.memory_space<vmem>>, vector<288x32xf32>
    tpu.vector_store %arg14[%c19_208, %c0_209], %170 {strides = array<i32>} : memref<326x32xf32, #tpu.memory_space<vmem>>, vector<288x32xf32>,
    %c0_210 = arith.constant 0 : index
    %c0_211 = arith.constant 0 : index
    %c0_212 = arith.constant 0 : index
    %172 = vector.load %arg12[%c0_210, %c0_211, %c0_212] : memref<1x288x32xf32, #tpu.memory_space<vmem>>, vector<1x288x32xf32>
    %173 = vector.shape_cast %172 : vector<1x288x32xf32> to vector<288x32xf32>
    %174 = vector.shape_cast %170 : vector<288x32xf32> to vector<1x288x32xf32>
    tpu.vector_store %arg12[%c0_210, %c0_211, %c0_212], %174 {strides = array<i32>} : memref<1x288x32xf32, #tpu.memory_space<vmem>>, vector<1x288x32xf32>,
    %cst_213 = arith.constant 0.000000e+00 : f32
    %175 = vector.broadcast %cst_213 : f32 to vector<288x32xf32>
    %c0_214 = arith.constant 0 : index
    %c0_215 = arith.constant 0 : index
    %176 = vector.load %arg14[%c0_214, %c0_215] : memref<326x32xf32, #tpu.memory_space<vmem>>, vector<288x32xf32>
    %c0_216 = arith.constant 0 : index
    %c0_217 = arith.constant 0 : index
    %c0_218 = arith.constant 0 : index
    %c0_219 = arith.constant 0 : index
    %177 = vector.load %arg9[%c0_216, %c0_217, %c0_218, %c0_219] : memref<3x3x32x32xf32, #tpu.memory_space<vmem>>, vector<1x1x32x32xf32>
    %178 = vector.shape_cast %177 : vector<1x1x32x32xf32> to vector<32x32xf32>
    %cst_220 = arith.constant dense<0.000000e+00> : vector<288x32xf32>
    %179 = tpu.matmul %176, %178, %cst_220 {dimension_numbers = #tpu.dot_dimension_numbers<[1], [0], [0], [1], [0, 0, 1, 1], [], []>} : vector<288x32xf32>, vector<32x32xf32>, vector<288x32xf32> -> vector<288x32xf32>
    %180 = arith.addf %175, %179 : vector<288x32xf32>
    %c1_221 = arith.constant 1 : index
    %c0_222 = arith.constant 0 : index
    %181 = vector.load %arg14[%c1_221, %c0_222] : memref<326x32xf32, #tpu.memory_space<vmem>>, vector<288x32xf32>
    %c0_223 = arith.constant 0 : index
    %c1_224 = arith.constant 1 : index
    %c0_225 = arith.constant 0 : index
    %c0_226 = arith.constant 0 : index
    %182 = vector.load %arg9[%c0_223, %c1_224, %c0_225, %c0_226] : memref<3x3x32x32xf32, #tpu.memory_space<vmem>>, vector<1x1x32x32xf32>
    %183 = vector.shape_cast %182 : vector<1x1x32x32xf32> to vector<32x32xf32>
    %cst_227 = arith.constant dense<0.000000e+00> : vector<288x32xf32>
    %184 = tpu.matmul %181, %183, %cst_227 {dimension_numbers = #tpu.dot_dimension_numbers<[1], [0], [0], [1], [0, 0, 1, 1], [], []>} : vector<288x32xf32>, vector<32x32xf32>, vector<288x32xf32> -> vector<288x32xf32>
    %185 = arith.addf %180, %184 : vector<288x32xf32>
    %c2_228 = arith.constant 2 : index
    %c0_229 = arith.constant 0 : index
    %186 = vector.load %arg14[%c2_228, %c0_229] : memref<326x32xf32, #tpu.memory_space<vmem>>, vector<288x32xf32>
    %c0_230 = arith.constant 0 : index
    %c2_231 = arith.constant 2 : index
    %c0_232 = arith.constant 0 : index
    %c0_233 = arith.constant 0 : index
    %187 = vector.load %arg9[%c0_230, %c2_231, %c0_232, %c0_233] : memref<3x3x32x32xf32, #tpu.memory_space<vmem>>, vector<1x1x32x32xf32>
    %188 = vector.shape_cast %187 : vector<1x1x32x32xf32> to vector<32x32xf32>
    %cst_234 = arith.constant dense<0.000000e+00> : vector<288x32xf32>
    %189 = tpu.matmul %186, %188, %cst_234 {dimension_numbers = #tpu.dot_dimension_numbers<[1], [0], [0], [1], [0, 0, 1, 1], [], []>} : vector<288x32xf32>, vector<32x32xf32>, vector<288x32xf32> -> vector<288x32xf32>
    %190 = arith.addf %185, %189 : vector<288x32xf32>
    %c18_235 = arith.constant 18 : index
    %c0_236 = arith.constant 0 : index
    %191 = vector.load %arg14[%c18_235, %c0_236] : memref<326x32xf32, #tpu.memory_space<vmem>>, vector<288x32xf32>
    %c1_237 = arith.constant 1 : index
    %c0_238 = arith.constant 0 : index
    %c0_239 = arith.constant 0 : index
    %c0_240 = arith.constant 0 : index
    %192 = vector.load %arg9[%c1_237, %c0_238, %c0_239, %c0_240] : memref<3x3x32x32xf32, #tpu.memory_space<vmem>>, vector<1x1x32x32xf32>
    %193 = vector.shape_cast %192 : vector<1x1x32x32xf32> to vector<32x32xf32>
    %cst_241 = arith.constant dense<0.000000e+00> : vector<288x32xf32>
    %194 = tpu.matmul %191, %193, %cst_241 {dimension_numbers = #tpu.dot_dimension_numbers<[1], [0], [0], [1], [0, 0, 1, 1], [], []>} : vector<288x32xf32>, vector<32x32xf32>, vector<288x32xf32> -> vector<288x32xf32>
    %195 = arith.addf %190, %194 : vector<288x32xf32>
    %c19_242 = arith.constant 19 : index
    %c0_243 = arith.constant 0 : index
    %196 = vector.load %arg14[%c19_242, %c0_243] : memref<326x32xf32, #tpu.memory_space<vmem>>, vector<288x32xf32>
    %c1_244 = arith.constant 1 : index
    %c1_245 = arith.constant 1 : index
    %c0_246 = arith.constant 0 : index
    %c0_247 = arith.constant 0 : index
    %197 = vector.load %arg9[%c1_244, %c1_245, %c0_246, %c0_247] : memref<3x3x32x32xf32, #tpu.memory_space<vmem>>, vector<1x1x32x32xf32>
    %198 = vector.shape_cast %197 : vector<1x1x32x32xf32> to vector<32x32xf32>
    %cst_248 = arith.constant dense<0.000000e+00> : vector<288x32xf32>
    %199 = tpu.matmul %196, %198, %cst_248 {dimension_numbers = #tpu.dot_dimension_numbers<[1], [0], [0], [1], [0, 0, 1, 1], [], []>} : vector<288x32xf32>, vector<32x32xf32>, vector<288x32xf32> -> vector<288x32xf32>
    %200 = arith.addf %195, %199 : vector<288x32xf32>
    %c20_249 = arith.constant 20 : index
    %c0_250 = arith.constant 0 : index
    %201 = vector.load %arg14[%c20_249, %c0_250] : memref<326x32xf32, #tpu.memory_space<vmem>>, vector<288x32xf32>
    %c1_251 = arith.constant 1 : index
    %c2_252 = arith.constant 2 : index
    %c0_253 = arith.constant 0 : index
    %c0_254 = arith.constant 0 : index
    %202 = vector.load %arg9[%c1_251, %c2_252, %c0_253, %c0_254] : memref<3x3x32x32xf32, #tpu.memory_space<vmem>>, vector<1x1x32x32xf32>
    %203 = vector.shape_cast %202 : vector<1x1x32x32xf32> to vector<32x32xf32>
    %cst_255 = arith.constant dense<0.000000e+00> : vector<288x32xf32>
    %204 = tpu.matmul %201, %203, %cst_255 {dimension_numbers = #tpu.dot_dimension_numbers<[1], [0], [0], [1], [0, 0, 1, 1], [], []>} : vector<288x32xf32>, vector<32x32xf32>, vector<288x32xf32> -> vector<288x32xf32>
    %205 = arith.addf %200, %204 : vector<288x32xf32>
    %c36_256 = arith.constant 36 : index
    %c0_257 = arith.constant 0 : index
    %206 = vector.load %arg14[%c36_256, %c0_257] : memref<326x32xf32, #tpu.memory_space<vmem>>, vector<288x32xf32>
    %c2_258 = arith.constant 2 : index
    %c0_259 = arith.constant 0 : index
    %c0_260 = arith.constant 0 : index
    %c0_261 = arith.constant 0 : index
    %207 = vector.load %arg9[%c2_258, %c0_259, %c0_260, %c0_261] : memref<3x3x32x32xf32, #tpu.memory_space<vmem>>, vector<1x1x32x32xf32>
    %208 = vector.shape_cast %207 : vector<1x1x32x32xf32> to vector<32x32xf32>
    %cst_262 = arith.constant dense<0.000000e+00> : vector<288x32xf32>
    %209 = tpu.matmul %206, %208, %cst_262 {dimension_numbers = #tpu.dot_dimension_numbers<[1], [0], [0], [1], [0, 0, 1, 1], [], []>} : vector<288x32xf32>, vector<32x32xf32>, vector<288x32xf32> -> vector<288x32xf32>
    %210 = arith.addf %205, %209 : vector<288x32xf32>
    %c37_263 = arith.constant 37 : index
    %c0_264 = arith.constant 0 : index
    %211 = vector.load %arg14[%c37_263, %c0_264] : memref<326x32xf32, #tpu.memory_space<vmem>>, vector<288x32xf32>
    %c2_265 = arith.constant 2 : index
    %c1_266 = arith.constant 1 : index
    %c0_267 = arith.constant 0 : index
    %c0_268 = arith.constant 0 : index
    %212 = vector.load %arg9[%c2_265, %c1_266, %c0_267, %c0_268] : memref<3x3x32x32xf32, #tpu.memory_space<vmem>>, vector<1x1x32x32xf32>
    %213 = vector.shape_cast %212 : vector<1x1x32x32xf32> to vector<32x32xf32>
    %cst_269 = arith.constant dense<0.000000e+00> : vector<288x32xf32>
    %214 = tpu.matmul %211, %213, %cst_269 {dimension_numbers = #tpu.dot_dimension_numbers<[1], [0], [0], [1], [0, 0, 1, 1], [], []>} : vector<288x32xf32>, vector<32x32xf32>, vector<288x32xf32> -> vector<288x32xf32>
    %215 = arith.addf %210, %214 : vector<288x32xf32>
    %c38_270 = arith.constant 38 : index
    %c0_271 = arith.constant 0 : index
    %216 = vector.load %arg14[%c38_270, %c0_271] : memref<326x32xf32, #tpu.memory_space<vmem>>, vector<288x32xf32>
    %c2_272 = arith.constant 2 : index
    %c2_273 = arith.constant 2 : index
    %c0_274 = arith.constant 0 : index
    %c0_275 = arith.constant 0 : index
    %217 = vector.load %arg9[%c2_272, %c2_273, %c0_274, %c0_275] : memref<3x3x32x32xf32, #tpu.memory_space<vmem>>, vector<1x1x32x32xf32>
    %218 = vector.shape_cast %217 : vector<1x1x32x32xf32> to vector<32x32xf32>
    %cst_276 = arith.constant dense<0.000000e+00> : vector<288x32xf32>
    %219 = tpu.matmul %216, %218, %cst_276 {dimension_numbers = #tpu.dot_dimension_numbers<[1], [0], [0], [1], [0, 0, 1, 1], [], []>} : vector<288x32xf32>, vector<32x32xf32>, vector<288x32xf32> -> vector<288x32xf32>
    %220 = arith.addf %215, %219 : vector<288x32xf32>
    %c0_277 = arith.constant 0 : index
    %c0_278 = arith.constant 0 : index
    %221 = vector.load %arg10[%c0_277, %c0_278] : memref<1x32xf32, #tpu.memory_space<vmem>>, vector<1x32xf32>
    %222 = vector.broadcast %221 : vector<1x32xf32> to vector<288x32xf32>
    %223 = arith.addf %220, %222 : vector<288x32xf32>
    %cst_279 = arith.constant 0.000000e+00 : f32
    %224 = vector.broadcast %cst_279 : f32 to vector<288x32xf32>
    %225 = arith.maximumf %223, %224 : vector<288x32xf32>
    %226 = vector.broadcast %5 : vector<288x1xf32> to vector<288x32xf32>
    %227 = arith.mulf %225, %226 : vector<288x32xf32>
    %c19_280 = arith.constant 19 : index
    %c0_281 = arith.constant 0 : index
    %228 = vector.load %arg14[%c19_280, %c0_281] : memref<326x32xf32, #tpu.memory_space<vmem>>, vector<288x32xf32>
    tpu.vector_store %arg14[%c19_280, %c0_281], %227 {strides = array<i32>} : memref<326x32xf32, #tpu.memory_space<vmem>>, vector<288x32xf32>,
    %c0_282 = arith.constant 0 : index
    %c0_283 = arith.constant 0 : index
    %c0_284 = arith.constant 0 : index
    %229 = vector.load %arg13[%c0_282, %c0_283, %c0_284] : memref<1x288x32xf32, #tpu.memory_space<vmem>>, vector<1x288x32xf32>
    %230 = vector.shape_cast %229 : vector<1x288x32xf32> to vector<288x32xf32>
    %231 = vector.shape_cast %227 : vector<288x32xf32> to vector<1x288x32xf32>
    tpu.vector_store %arg13[%c0_282, %c0_283, %c0_284], %231 {strides = array<i32>} : memref<1x288x32xf32, #tpu.memory_space<vmem>>, vector<1x288x32xf32>,
    return
  }
  func.func @transform_0(%arg0: i32) -> (i32, i32, i32) {
    %c0_i32 = arith.constant 0 : i32
    %c0_i32_0 = arith.constant 0 : i32
    %c0_i32_1 = arith.constant 0 : i32
    return %arg0, %c0_i32, %c0_i32_0 : i32, i32, i32
  }
  func.func @transform_1(%arg0: i32) -> (i32, i32) {
    %c0_i32 = arith.constant 0 : i32
    %c0_i32_0 = arith.constant 0 : i32
    %c0_i32_1 = arith.constant 0 : i32
    return %c0_i32, %c0_i32_0 : i32, i32
  }
  func.func @transform_2(%arg0: i32) -> (i32, i32, i32, i32) {
    %c0_i32 = arith.constant 0 : i32
    %c0_i32_0 = arith.constant 0 : i32
    %c0_i32_1 = arith.constant 0 : i32
    %c0_i32_2 = arith.constant 0 : i32
    %c0_i32_3 = arith.constant 0 : i32
    return %c0_i32, %c0_i32_0, %c0_i32_1, %c0_i32_2 : i32, i32, i32, i32
  }
  func.func @transform_3(%arg0: i32) -> (i32, i32) {
    %c0_i32 = arith.constant 0 : i32
    %c0_i32_0 = arith.constant 0 : i32
    %c0_i32_1 = arith.constant 0 : i32
    return %c0_i32, %c0_i32_0 : i32, i32
  }
  func.func @transform_4(%arg0: i32) -> (i32, i32, i32, i32) {
    %c0_i32 = arith.constant 0 : i32
    %c0_i32_0 = arith.constant 0 : i32
    %c0_i32_1 = arith.constant 0 : i32
    %c0_i32_2 = arith.constant 0 : i32
    %c0_i32_3 = arith.constant 0 : i32
    return %c0_i32, %c0_i32_0, %c0_i32_1, %c0_i32_2 : i32, i32, i32, i32
  }
  func.func @transform_5(%arg0: i32) -> (i32, i32) {
    %c0_i32 = arith.constant 0 : i32
    %c0_i32_0 = arith.constant 0 : i32
    %c0_i32_1 = arith.constant 0 : i32
    return %c0_i32, %c0_i32_0 : i32, i32
  }
  func.func @transform_6(%arg0: i32) -> (i32, i32, i32, i32) {
    %c0_i32 = arith.constant 0 : i32
    %c0_i32_0 = arith.constant 0 : i32
    %c0_i32_1 = arith.constant 0 : i32
    %c0_i32_2 = arith.constant 0 : i32
    %c0_i32_3 = arith.constant 0 : i32
    return %c0_i32, %c0_i32_0, %c0_i32_1, %c0_i32_2 : i32, i32, i32, i32
  }
  func.func @transform_7(%arg0: i32) -> (i32, i32) {
    %c0_i32 = arith.constant 0 : i32
    %c0_i32_0 = arith.constant 0 : i32
    %c0_i32_1 = arith.constant 0 : i32
    return %c0_i32, %c0_i32_0 : i32, i32
  }
  func.func @transform_8(%arg0: i32) -> (i32, i32, i32, i32) {
    %c0_i32 = arith.constant 0 : i32
    %c0_i32_0 = arith.constant 0 : i32
    %c0_i32_1 = arith.constant 0 : i32
    %c0_i32_2 = arith.constant 0 : i32
    %c0_i32_3 = arith.constant 0 : i32
    return %c0_i32, %c0_i32_0, %c0_i32_1, %c0_i32_2 : i32, i32, i32, i32
  }
  func.func @transform_9(%arg0: i32) -> (i32, i32) {
    %c0_i32 = arith.constant 0 : i32
    %c0_i32_0 = arith.constant 0 : i32
    %c0_i32_1 = arith.constant 0 : i32
    return %c0_i32, %c0_i32_0 : i32, i32
  }
  func.func @transform_10(%arg0: i32) -> (i32, i32, i32) {
    %c0_i32 = arith.constant 0 : i32
    %c0_i32_0 = arith.constant 0 : i32
    %c0_i32_1 = arith.constant 0 : i32
    return %arg0, %c0_i32, %c0_i32_0 : i32, i32, i32
  }
  func.func @transform_11(%arg0: i32) -> (i32, i32, i32) {
    %c0_i32 = arith.constant 0 : i32
    %c0_i32_0 = arith.constant 0 : i32
    %c0_i32_1 = arith.constant 0 : i32
    return %arg0, %c0_i32, %c0_i32_0 : i32, i32, i32
  }
  func.func @transform_12(%arg0: i32) -> (i32, i32, i32) {
    %c0_i32 = arith.constant 0 : i32
    %c0_i32_0 = arith.constant 0 : i32
    %c0_i32_1 = arith.constant 0 : i32
    return %arg0, %c0_i32, %c0_i32_0 : i32, i32, i32
  }
}

</mosaic_0001>

<llo_original>
// kernel: _forward_impl.1
$region0: #{_forward_impl.1}
  #allocation0 [shape = 'u32[]', space=smem, size = 0x4, offset = 0x4, fixed_abs, tag = 'smem constant byte address 0x4 - core index']
  #allocation1 [shape = 'u32[72,128]{1,0:T(1,128)}', space=vmem, size = 0x9000, scoped, tag = 'internal scratch']
  #allocation2 [shape = 'f32[326,32]{1,0:T(8,128)}', space=vmem, size = 0x29000, scoped, tag = 'scratch operand']
  %s0 = inlined_call_operand.vmem [shape: f32[2,324,4], index: 0, kind: input, shape index: {}]
  %s1 = inlined_call_operand.vmem [shape: f32[288,1], index: 1, kind: input, shape index: {}]
  %s2 = inlined_call_operand.vmem [shape: f32[3,3,32,32], index: 2, kind: input, shape index: {}]
  %s3 = inlined_call_operand.vmem [shape: f32[1,32], index: 3, kind: input, shape index: {}]
  %s4 = inlined_call_operand.vmem [shape: f32[3,3,32,32], index: 4, kind: input, shape index: {}]
  %s5 = inlined_call_operand.vmem [shape: f32[1,32], index: 5, kind: input, shape index: {}]
  %s6 = inlined_call_operand.vmem [shape: f32[3,3,32,32], index: 6, kind: input, shape index: {}]
  %s7 = inlined_call_operand.vmem [shape: f32[1,32], index: 7, kind: input, shape index: {}]
  %s8 = inlined_call_operand.vmem [shape: f32[3,3,32,32], index: 8, kind: input, shape index: {}]
  %s9 = inlined_call_operand.vmem [shape: f32[1,32], index: 9, kind: input, shape index: {}]
  %s10 = inlined_call_operand.vmem [shape: f32[2,288,16], index: 10, kind: output, shape index: {0}]
  %s11 = inlined_call_operand.vmem [shape: f32[2,288,32], index: 11, kind: output, shape index: {1}]
  %s12 = inlined_call_operand.vmem [shape: f32[2,288,32], index: 12, kind: output, shape index: {2}]
  %13 = xla_tuple %s10, %s11, %s12
  %s14 = sld [smem:[#allocation0]]
  $region89: #{_forward_impl.1} parent=0
    _
  %s16 = ssub.s32 1, %s14
  %s17 = scalar_select 0, %s16, %s14
  loop: start=0, step=1, limit=4
  $region2: #{_forward_impl.1} parent=0 // loop_pre_header
    _
  $region3: #{_forward_impl.1} parent=0 // loop_header
    %s19 = sphi 0, %s23
    %p20 = scmp.ge.s32.totalorder %s19, 4
    %s29 = sphi 0, %s31
    %s32 = sphi 0, %s29
    %s33 = sphi 0, %s32
    %s49 = sphi 0, %s33
    %s53 = sphi 0, %s53
    %s55 = sphi 0, %s53
    %s56 = sphi 0, %s55
    %s70 = sphi 0, %s56
    %s74 = sphi 0, %s74
    %s76 = sphi 0, %s74
    %s77 = sphi 0, %s76
    %s91 = sphi 0, %s77
    %s95 = sphi 0, %s95
    %s97 = sphi 0, %s95
    %s98 = sphi 0, %s97
    %s112 = sphi 0, %s98
    %s116 = sphi 0, %s116
    %s118 = sphi 0, %s116
    %s119 = sphi 0, %s118
    %s133 = sphi 0, %s119
    %s137 = sphi 0, %s137
    %s139 = sphi 0, %s137
    %s140 = sphi 0, %s139
    %s154 = sphi 0, %s140
    %s158 = sphi 0, %s158
    %s160 = sphi 0, %s158
    %s161 = sphi 0, %s160
    %s175 = sphi 0, %s161
    %s179 = sphi 0, %s179
    %s181 = sphi 0, %s179
    %s182 = sphi 0, %s181
    %s196 = sphi 0, %s182
    %s200 = sphi 0, %s200
    %s202 = sphi 0, %s200
    %s203 = sphi 0, %s202
    %s217 = sphi 0, %s203
    %s221 = sphi 0, %s221
    %s223 = sphi 0, %s221
    %s224 = sphi 0, %s223
    %s238 = sphi 0, %s224
    %s244 = sphi 0, %s246
    %s247 = sphi 0, %s244
    %s248 = sphi 0, %s247
    %s264 = sphi 0, %s248
    %s270 = sphi 0, %s272
    %s273 = sphi 0, %s270
    %s274 = sphi 0, %s273
    %s290 = sphi 0, %s274
    %s296 = sphi 0, %s298
    %s299 = sphi 0, %s296
    %s300 = sphi 0, %s299
    %s316 = sphi 0, %s300
  $region4: #{_forward_impl.1} parent=0 // loop_header_branch
    %22 = sbr.rel (%p20) target = $region8
  $region5: #{_forward_impl.1} parent=0 // loop_body
    %s24 = ssub.s32 %s19, 1
    %s25 = ssub.s32 %s19, 2
    %s26 = sadd.s32 %s19, 1
    %s27 = ssub.s32 %s19, %s26
    %p28 = scmp.eq.s32.totalorder %s27, 0
    %s30 = sadd.s32 %s29, 1
    %s31 = scalar_select %p28, %s29, %s30
    %p34 = pneg %p28
    %p35 = scmp.eq.s32.totalorder %s19, 1
    %p36 = por %p34, %p35
    %p37 = scmp.ne.s32.totalorder %s29, %s32
    %p38 = scmp.eq.s32.totalorder %s19, 0
    %p39 = por %p37, %p38
    %p40 = scmp.ne.s32.totalorder %s29, %s32
    %p41 = scmp.eq.s32.totalorder %s24, 1
    %p42 = por %p40, %p41
    %p43 = scmp.ne.s32.totalorder %s32, %s33
    %p44 = scmp.eq.s32.totalorder %s24, 0
    %p45 = por %p43, %p44
    %p46 = scmp.ne.s32.totalorder %s32, %s33
    %p47 = scmp.eq.s32.totalorder %s25, 1
    %p48 = por %p46, %p47
    %p50 = scmp.ne.s32.totalorder %s33, %s49
    %p51 = scmp.eq.s32.totalorder %s25, 0
    %p52 = por %p50, %p51
    %s54 = sadd.s32 %s53, 1
    %p57 = scmp.eq.s32.totalorder %s19, 1
    %p58 = scmp.ne.s32.totalorder %s53, %s55
    %p59 = scmp.eq.s32.totalorder %s19, 0
    %p60 = por %p58, %p59
    %p61 = scmp.ne.s32.totalorder %s53, %s55
    %p62 = scmp.eq.s32.totalorder %s24, 1
    %p63 = por %p61, %p62
    %p64 = scmp.ne.s32.totalorder %s55, %s56
    %p65 = scmp.eq.s32.totalorder %s24, 0
    %p66 = por %p64, %p65
    %p67 = scmp.ne.s32.totalorder %s55, %s56
    %p68 = scmp.eq.s32.totalorder %s25, 1
    %p69 = por %p67, %p68
    %p71 = scmp.ne.s32.totalorder %s56, %s70
    %p72 = scmp.eq.s32.totalorder %s25, 0
    %p73 = por %p71, %p72
    %s75 = sadd.s32 %s74, 1
    %p78 = scmp.eq.s32.totalorder %s19, 1
    %p79 = scmp.ne.s32.totalorder %s74, %s76
    %p80 = scmp.eq.s32.totalorder %s19, 0
    %p81 = por %p79, %p80
    %p82 = scmp.ne.s32.totalorder %s74, %s76
    %p83 = scmp.eq.s32.totalorder %s24, 1
    %p84 = por %p82, %p83
    %p85 = scmp.ne.s32.totalorder %s76, %s77
    %p86 = scmp.eq.s32.totalorder %s24, 0
    %p87 = por %p85, %p86
    %p88 = scmp.ne.s32.totalorder %s76, %s77
    %p89 = scmp.eq.s32.totalorder %s25, 1
    %p90 = por %p88, %p89
    %p92 = scmp.ne.s32.totalorder %s77, %s91
    %p93 = scmp.eq.s32.totalorder %s25, 0
    %p94 = por %p92, %p93
    %s96 = sadd.s32 %s95, 1
    %p99 = scmp.eq.s32.totalorder %s19, 1
    %p100 = scmp.ne.s32.totalorder %s95, %s97
    %p101 = scmp.eq.s32.totalorder %s19, 0
    %p102 = por %p100, %p101
    %p103 = scmp.ne.s32.totalorder %s95, %s97
    %p104 = scmp.eq.s32.totalorder %s24, 1
    %p105 = por %p103, %p104
    %p106 = scmp.ne.s32.totalorder %s97, %s98
    %p107 = scmp.eq.s32.totalorder %s24, 0
    %p108 = por %p106, %p107
    %p109 = scmp.ne.s32.totalorder %s97, %s98
    %p110 = scmp.eq.s32.totalorder %s25, 1
    %p111 = por %p109, %p110
    %p113 = scmp.ne.s32.totalorder %s98, %s112
    %p114 = scmp.eq.s32.totalorder %s25, 0
    %p115 = por %p113, %p114
    %s117 = sadd.s32 %s116, 1
    %p120 = scmp.eq.s32.totalorder %s19, 1
    %p121 = scmp.ne.s32.totalorder %s116, %s118
    %p122 = scmp.eq.s32.totalorder %s19, 0
    %p123 = por %p121, %p122
    %p124 = scmp.ne.s32.totalorder %s116, %s118
    %p125 = scmp.eq.s32.totalorder %s24, 1
    %p126 = por %p124, %p125
    %p127 = scmp.ne.s32.totalorder %s118, %s119
    %p128 = scmp.eq.s32.totalorder %s24, 0
    %p129 = por %p127, %p128
    %p130 = scmp.ne.s32.totalorder %s118, %s119
    %p131 = scmp.eq.s32.totalorder %s25, 1
    %p132 = por %p130, %p131
    %p134 = scmp.ne.s32.totalorder %s119, %s133
    %p135 = scmp.eq.s32.totalorder %s25, 0
    %p136 = por %p134, %p135
    %s138 = sadd.s32 %s137, 1
    %p141 = scmp.eq.s32.totalorder %s19, 1
    %p142 = scmp.ne.s32.totalorder %s137, %s139
    %p143 = scmp.eq.s32.totalorder %s19, 0
    %p144 = por %p142, %p143
    %p145 = scmp.ne.s32.totalorder %s137, %s139
    %p146 = scmp.eq.s32.totalorder %s24, 1
    %p147 = por %p145, %p146
    %p148 = scmp.ne.s32.totalorder %s139, %s140
    %p149 = scmp.eq.s32.totalorder %s24, 0
    %p150 = por %p148, %p149
    %p151 = scmp.ne.s32.totalorder %s139, %s140
    %p152 = scmp.eq.s32.totalorder %s25, 1
    %p153 = por %p151, %p152
    %p155 = scmp.ne.s32.totalorder %s140, %s154
    %p156 = scmp.eq.s32.totalorder %s25, 0
    %p157 = por %p155, %p156
    %s159 = sadd.s32 %s158, 1
    %p162 = scmp.eq.s32.totalorder %s19, 1
    %p163 = scmp.ne.s32.totalorder %s158, %s160
    %p164 = scmp.eq.s32.totalorder %s19, 0
    %p165 = por %p163, %p164
    %p166 = scmp.ne.s32.totalorder %s158, %s160
    %p167 = scmp.eq.s32.totalorder %s24, 1
    %p168 = por %p166, %p167
    %p169 = scmp.ne.s32.totalorder %s160, %s161
    %p170 = scmp.eq.s32.totalorder %s24, 0
    %p171 = por %p169, %p170
    %p172 = scmp.ne.s32.totalorder %s160, %s161
    %p173 = scmp.eq.s32.totalorder %s25, 1
    %p174 = por %p172, %p173
    %p176 = scmp.ne.s32.totalorder %s161, %s175
    %p177 = scmp.eq.s32.totalorder %s25, 0
    %p178 = por %p176, %p177
    %s180 = sadd.s32 %s179, 1
    %p183 = scmp.eq.s32.totalorder %s19, 1
    %p184 = scmp.ne.s32.totalorder %s179, %s181
    %p185 = scmp.eq.s32.totalorder %s19, 0
    %p186 = por %p184, %p185
    %p187 = scmp.ne.s32.totalorder %s179, %s181
    %p188 = scmp.eq.s32.totalorder %s24, 1
    %p189 = por %p187, %p188
    %p190 = scmp.ne.s32.totalorder %s181, %s182
    %p191 = scmp.eq.s32.totalorder %s24, 0
    %p192 = por %p190, %p191
    %p193 = scmp.ne.s32.totalorder %s181, %s182
    %p194 = scmp.eq.s32.totalorder %s25, 1
    %p195 = por %p193, %p194
    %p197 = scmp.ne.s32.totalorder %s182, %s196
    %p198 = scmp.eq.s32.totalorder %s25, 0
    %p199 = por %p197, %p198
    %s201 = sadd.s32 %s200, 1
    %p204 = scmp.eq.s32.totalorder %s19, 1
    %p205 = scmp.ne.s32.totalorder %s200, %s202
    %p206 = scmp.eq.s32.totalorder %s19, 0
    %p207 = por %p205, %p206
    %p208 = scmp.ne.s32.totalorder %s200, %s202
    %p209 = scmp.eq.s32.totalorder %s24, 1
    %p210 = por %p208, %p209
    %p211 = scmp.ne.s32.totalorder %s202, %s203
    %p212 = scmp.eq.s32.totalorder %s24, 0
    %p213 = por %p211, %p212
    %p214 = scmp.ne.s32.totalorder %s202, %s203
    %p215 = scmp.eq.s32.totalorder %s25, 1
    %p216 = por %p214, %p215
    %p218 = scmp.ne.s32.totalorder %s203, %s217
    %p219 = scmp.eq.s32.totalorder %s25, 0
    %p220 = por %p218, %p219
    %s222 = sadd.s32 %s221, 1
    %p225 = scmp.eq.s32.totalorder %s19, 1
    %p226 = scmp.ne.s32.totalorder %s221, %s223
    %p227 = scmp.eq.s32.totalorder %s19, 0
    %p228 = por %p226, %p227
    %p229 = scmp.ne.s32.totalorder %s221, %s223
    %p230 = scmp.eq.s32.totalorder %s24, 1
    %p231 = por %p229, %p230
    %p232 = scmp.ne.s32.totalorder %s223, %s224
    %p233 = scmp.eq.s32.totalorder %s24, 0
    %p234 = por %p232, %p233
    %p235 = scmp.ne.s32.totalorder %s223, %s224
    %p236 = scmp.eq.s32.totalorder %s25, 1
    %p237 = por %p235, %p236
    %p239 = scmp.ne.s32.totalorder %s224, %s238
    %p240 = scmp.eq.s32.totalorder %s25, 0
    %p241 = por %p239, %p240
    %s242 = ssub.s32 %s19, %s26
    %p243 = scmp.eq.s32.totalorder %s242, 0
    %s245 = sadd.s32 %s244, 1
    %s246 = scalar_select %p243, %s244, %s245
    %p249 = pneg %p243
    %p250 = scmp.eq.s32.totalorder %s19, 1
    %p251 = por %p249, %p250
    %p252 = scmp.ne.s32.totalorder %s244, %s247
    %p253 = scmp.eq.s32.totalorder %s19, 0
    %p254 = por %p252, %p253
    %p255 = scmp.ne.s32.totalorder %s244, %s247
    %p256 = scmp.eq.s32.totalorder %s24, 1
    %p257 = por %p255, %p256
    %p258 = scmp.ne.s32.totalorder %s247, %s248
    %p259 = scmp.eq.s32.totalorder %s24, 0
    %p260 = por %p258, %p259
    %p261 = scmp.ne.s32.totalorder %s247, %s248
    %p262 = scmp.eq.s32.totalorder %s25, 1
    %p263 = por %p261, %p262
    %p265 = scmp.ne.s32.totalorder %s248, %s264
    %p266 = scmp.eq.s32.totalorder %s25, 0
    %p267 = por %p265, %p266
    %s268 = ssub.s32 %s19, %s26
    %p269 = scmp.eq.s32.totalorder %s268, 0
    %s271 = sadd.s32 %s270, 1
    %s272 = scalar_select %p269, %s270, %s271
    %p275 = pneg %p269
    %p276 = scmp.eq.s32.totalorder %s19, 1
    %p277 = por %p275, %p276
    %p278 = scmp.ne.s32.totalorder %s270, %s273
    %p279 = scmp.eq.s32.totalorder %s19, 0
    %p280 = por %p278, %p279
    %p281 = scmp.ne.s32.totalorder %s270, %s273
    %p282 = scmp.eq.s32.totalorder %s24, 1
    %p283 = por %p281, %p282
    %p284 = scmp.ne.s32.totalorder %s273, %s274
    %p285 = scmp.eq.s32.totalorder %s24, 0
    %p286 = por %p284, %p285
    %p287 = scmp.ne.s32.totalorder %s273, %s274
    %p288 = scmp.eq.s32.totalorder %s25, 1
    %p289 = por %p287, %p288
    %p291 = scmp.ne.s32.totalorder %s274, %s290
    %p292 = scmp.eq.s32.totalorder %s25, 0
    %p293 = por %p291, %p292
    %s294 = ssub.s32 %s19, %s26
    %p295 = scmp.eq.s32.totalorder %s294, 0
    %s297 = sadd.s32 %s296, 1
    %s298 = scalar_select %p295, %s296, %s297
    %p301 = pneg %p295
    %p302 = scmp.eq.s32.totalorder %s19, 1
    %p303 = por %p301, %p302
    %p304 = scmp.ne.s32.totalorder %s296, %s299
    %p305 = scmp.eq.s32.totalorder %s19, 0
    %p306 = por %p304, %p305
    %p307 = scmp.ne.s32.totalorder %s296, %s299
    %p308 = scmp.eq.s32.totalorder %s24, 1
    %p309 = por %p307, %p308
    %p310 = scmp.ne.s32.totalorder %s299, %s300
    %p311 = scmp.eq.s32.totalorder %s24, 0
    %p312 = por %p310, %p311
    %p313 = scmp.ne.s32.totalorder %s299, %s300
    %p314 = scmp.eq.s32.totalorder %s25, 1
    %p315 = por %p313, %p314
    %p317 = scmp.ne.s32.totalorder %s300, %s316
    %p318 = scmp.eq.s32.totalorder %s25, 0
    %p319 = por %p317, %p318
    %p320 = scmp.le.s32.totalorder 1, %s19
    %p321 = scmp.lt.s32.totalorder %s19, 3
    %p322 = pnand %p320, %p321
    %p323 = pneg %p322
    // Predicated region
    $region9: #{_forward_impl.1} parent=5 // pred_check
      _
    $region10: #{_forward_impl.1} parent=5 // pred_check_branch
      %325 = sbr.rel (%p322) target = $region12
    $region11: #{_forward_impl.1} parent=5 // pred_region
      %s326 = ssub.s32 %s19, 1
      // Predicated region
      $region13: #{_forward_impl.1} parent=11 // pred_check
        %p327 = pneg %p66
      $region14: #{_forward_impl.1} parent=11 // pred_check_branch
        %329 = sbr.rel (%p327) target = $region16
      $region15: #{_forward_impl.1} parent=11 // pred_region
        _
      $region16: #{_forward_impl.1} parent=11 // pred_fallthru
        _
      // Predicated region
      $region17: #{_forward_impl.1} parent=11 // pred_check
        %p330 = pneg %p87
      $region18: #{_forward_impl.1} parent=11 // pred_check_branch
        %332 = sbr.rel (%p330) target = $region20
      $region19: #{_forward_impl.1} parent=11 // pred_region
        _
      $region20: #{_forward_impl.1} parent=11 // pred_fallthru
        _
      // Predicated region
      $region21: #{_forward_impl.1} parent=11 // pred_check
        %p333 = pneg %p108
      $region22: #{_forward_impl.1} parent=11 // pred_check_branch
        %335 = sbr.rel (%p333) target = $region24
      $region23: #{_forward_impl.1} parent=11 // pred_region
        _
      $region24: #{_forward_impl.1} parent=11 // pred_fallthru
        _
      // Predicated region
      $region25: #{_forward_impl.1} parent=11 // pred_check
        %p336 = pneg %p129
      $region26: #{_forward_impl.1} parent=11 // pred_check_branch
        %338 = sbr.rel (%p336) target = $region28
      $region27: #{_forward_impl.1} parent=11 // pred_region
        _
      $region28: #{_forward_impl.1} parent=11 // pred_fallthru
        _
      // Predicated region
      $region29: #{_forward_impl.1} parent=11 // pred_check
        %p339 = pneg %p150
      $region30: #{_forward_impl.1} parent=11 // pred_check_branch
        %341 = sbr.rel (%p339) target = $region32
      $region31: #{_forward_impl.1} parent=11 // pred_region
        _
      $region32: #{_forward_impl.1} parent=11 // pred_fallthru
        _
      // Predicated region
      $region33: #{_forward_impl.1} parent=11 // pred_check
        %p342 = pneg %p171
      $region34: #{_forward_impl.1} parent=11 // pred_check_branch
        %344 = sbr.rel (%p342) target = $region36
      $region35: #{_forward_impl.1} parent=11 // pred_region
        _
      $region36: #{_forward_impl.1} parent=11 // pred_fallthru
        _
      // Predicated region
      $region37: #{_forward_impl.1} parent=11 // pred_check
        %p345 = pneg %p192
      $region38: #{_forward_impl.1} parent=11 // pred_check_branch
        %347 = sbr.rel (%p345) target = $region40
      $region39: #{_forward_impl.1} parent=11 // pred_region
        _
      $region40: #{_forward_impl.1} parent=11 // pred_fallthru
        _
      // Predicated region
      $region41: #{_forward_impl.1} parent=11 // pred_check
        %p348 = pneg %p213
      $region42: #{_forward_impl.1} parent=11 // pred_check_branch
        %350 = sbr.rel (%p348) target = $region44
      $region43: #{_forward_impl.1} parent=11 // pred_region
        _
      $region44: #{_forward_impl.1} parent=11 // pred_fallthru
        _
      // Predicated region
      $region45: #{_forward_impl.1} parent=11 // pred_check
        %p351 = pneg %p234
      $region46: #{_forward_impl.1} parent=11 // pred_check_branch
        %353 = sbr.rel (%p351) target = $region48
      $region47: #{_forward_impl.1} parent=11 // pred_region
        _
      $region48: #{_forward_impl.1} parent=11 // pred_fallthru
        _
    $region12: #{_forward_impl.1} parent=5 // pred_fallthru
      _
    %p354 = scmp.lt.s32.totalorder %s19, 2
    // Predicated region
    $region49: #{_forward_impl.1} parent=5 // pred_check
      %p355 = pneg %p354
    $region50: #{_forward_impl.1} parent=5 // pred_check_branch
      %357 = sbr.rel (%p355) target = $region52
    $region51: #{_forward_impl.1} parent=5 // pred_region
      // Predicated region
      $region53: #{_forward_impl.1} parent=51 // pred_check
        %p358 = pneg %p39
      $region54: #{_forward_impl.1} parent=51 // pred_check_branch
        %360 = sbr.rel (%p358) target = $region56
      $region55: #{_forward_impl.1} parent=51 // pred_region
        %p361 = scmp.lt.s32.totalorder %s19, 1
        %s362 = scalar_select %p361, %s19, 1
        %s363 = smul.addr %s362, 41
        %s364 = smul.addr %s363, 8
        %s365 = scalar_lea.vmem %s0, %s364
      $region56: #{_forward_impl.1} parent=51 // pred_fallthru
        _
    $region52: #{_forward_impl.1} parent=5 // pred_fallthru
      _
    %p366 = scmp.le.s32.totalorder 1, %s19
    %p367 = scmp.lt.s32.totalorder %s19, 3
    %p368 = pnand %p366, %p367
    %p369 = pneg %p368
    // Predicated region
    $region57: #{_forward_impl.1} parent=5 // pred_check
      _
    $region58: #{_forward_impl.1} parent=5 // pred_check_branch
      %371 = sbr.rel (%p368) target = $region60
    $region59: #{_forward_impl.1} parent=5 // pred_region
      %s372 = ssub.s32 %s19, 1
      %p373 = scmp.lt.s32.totalorder %s24, 1
      %s374 = scalar_select %p373, %s24, 1
      %s375 = smul.addr %s374, 41
      %s376 = smul.addr %s375, 8
      %s377 = scalar_lea.vmem %s0, %s376
      %p378 = pneg %p45
      %p379 = pneg %p42
      %p380 = pneg %p66
      %p381 = pneg %p63
      %p382 = pneg %p87
      %p383 = pneg %p84
      %p384 = pneg %p108
      %p385 = pneg %p105
      %p386 = pneg %p129
      %p387 = pneg %p126
      %p388 = pneg %p150
      %p389 = pneg %p147
      %p390 = pneg %p171
      %p391 = pneg %p168
      %p392 = pneg %p192
      %p393 = pneg %p189
      %p394 = pneg %p213
      %p395 = pneg %p210
      %p396 = pneg %p234
      %p397 = pneg %p231
      %p398 = pneg %p260
      %p399 = pneg %p257
      %p400 = scmp.lt.s32.totalorder %s24, 1
      %s401 = scalar_select %p400, %s24, 1
      %s402 = smul.addr %s401, 36
      %s403 = smul.addr %s402, 8
      %s404 = scalar_lea.vmem %s10, %s403
      %p405 = pneg %p286
      %p406 = pneg %p283
      %p407 = scmp.lt.s32.totalorder %s24, 1
      %s408 = scalar_select %p407, %s24, 1
      %s409 = smul.addr %s408, 36
      %s410 = smul.addr %s409, 8
      %s411 = scalar_lea.vmem %s11, %s410
      %p412 = pneg %p312
      %p413 = pneg %p309
      %p414 = scmp.lt.s32.totalorder %s24, 1
      %s415 = scalar_select %p414, %s24, 1
      %s416 = smul.addr %s415, 36
      %s417 = smul.addr %s416, 8
      %s418 = scalar_lea.vmem %s12, %s417
      %p419 = scmp.lt.s32.totalorder %s24, 1
      %s420 = scalar_select %p419, %s24, 1
      %s421 = smul.addr %s420, 41
      %s422 = smul.addr %s421, 8
      %s423 = scalar_lea.vmem %s0, %s422
      %p424 = scmp.lt.s32.totalorder %s24, 1
      %s425 = scalar_select %p424, %s24, 1
      %s426 = smul.addr %s425, 36
      %s427 = smul.addr %s426, 8
      %s428 = scalar_lea.vmem %s10, %s427
      %p429 = scmp.lt.s32.totalorder %s24, 1
      %s430 = scalar_select %p429, %s24, 1
      %s431 = smul.addr %s430, 36
      %s432 = smul.addr %s431, 8
      %s433 = scalar_lea.vmem %s11, %s432
      %p434 = scmp.lt.s32.totalorder %s24, 1
      %s435 = scalar_select %p434, %s24, 1
      %s436 = smul.addr %s435, 36
      %s437 = smul.addr %s436, 8
      %s438 = scalar_lea.vmem %s12, %s437
      %vm439 = vcmask 261120
      %440 = vst.msk [vmem:[#allocation2] sm:$0xff] %vm439, 0.0
      %441 = vst.msk [vmem:[#allocation2 + $0x8] sm:$0xff] %vm439, 0.0
      %442 = vst.msk [vmem:[#allocation2 + $0x10] sm:$0xff] %vm439, 0.0
      %443 = vst.msk [vmem:[#allocation2 + $0x18] sm:$0xff] %vm439, 0.0
      %444 = vst.msk [vmem:[#allocation2 + $0x20] sm:$0xff] %vm439, 0.0
      %445 = vst.msk [vmem:[#allocation2 + $0x28] sm:$0xff] %vm439, 0.0
      %446 = vst.msk [vmem:[#allocation2 + $0x30] sm:$0xff] %vm439, 0.0
      %447 = vst.msk [vmem:[#allocation2 + $0x38] sm:$0xff] %vm439, 0.0
      %448 = vst.msk [vmem:[#allocation2 + $0x40] sm:$0xff] %vm439, 0.0
      %449 = vst.msk [vmem:[#allocation2 + $0x48] sm:$0xff] %vm439, 0.0
      %450 = vst.msk [vmem:[#allocation2 + $0x50] sm:$0xff] %vm439, 0.0
      %451 = vst.msk [vmem:[#allocation2 + $0x58] sm:$0xff] %vm439, 0.0
      %452 = vst.msk [vmem:[#allocation2 + $0x60] sm:$0xff] %vm439, 0.0
      %453 = vst.msk [vmem:[#allocation2 + $0x68] sm:$0xff] %vm439, 0.0
      %454 = vst.msk [vmem:[#allocation2 + $0x70] sm:$0xff] %vm439, 0.0
      %455 = vst.msk [vmem:[#allocation2 + $0x78] sm:$0xff] %vm439, 0.0
      %456 = vst.msk [vmem:[#allocation2 + $0x80] sm:$0xff] %vm439, 0.0
      %457 = vst.msk [vmem:[#allocation2 + $0x88] sm:$0xff] %vm439, 0.0
      %458 = vst.msk [vmem:[#allocation2 + $0x90] sm:$0xff] %vm439, 0.0
      %459 = vst.msk [vmem:[#allocation2 + $0x98] sm:$0xff] %vm439, 0.0
      %460 = vst.msk [vmem:[#allocation2 + $0xa0] sm:$0xff] %vm439, 0.0
      %461 = vst.msk [vmem:[#allocation2 + $0xa8] sm:$0xff] %vm439, 0.0
      %462 = vst.msk [vmem:[#allocation2 + $0xb0] sm:$0xff] %vm439, 0.0
      %463 = vst.msk [vmem:[#allocation2 + $0xb8] sm:$0xff] %vm439, 0.0
      %464 = vst.msk [vmem:[#allocation2 + $0xc0] sm:$0xff] %vm439, 0.0
      %465 = vst.msk [vmem:[#allocation2 + $0xc8] sm:$0xff] %vm439, 0.0
      %466 = vst.msk [vmem:[#allocation2 + $0xd0] sm:$0xff] %vm439, 0.0
      %467 = vst.msk [vmem:[#allocation2 + $0xd8] sm:$0xff] %vm439, 0.0
      %468 = vst.msk [vmem:[#allocation2 + $0xe0] sm:$0xff] %vm439, 0.0
      %469 = vst.msk [vmem:[#allocation2 + $0xe8] sm:$0xff] %vm439, 0.0
      %470 = vst.msk [vmem:[#allocation2 + $0xf0] sm:$0xff] %vm439, 0.0
      %471 = vst.msk [vmem:[#allocation2 + $0xf8] sm:$0xff] %vm439, 0.0
      %472 = vst.msk [vmem:[#allocation2 + $0x100] sm:$0xff] %vm439, 0.0
      %473 = vst.msk [vmem:[#allocation2 + $0x108] sm:$0xff] %vm439, 0.0
      %474 = vst.msk [vmem:[#allocation2 + $0x110] sm:$0xff] %vm439, 0.0
      %475 = vst.msk [vmem:[#allocation2 + $0x118] sm:$0xff] %vm439, 0.0
      %476 = vst.msk [vmem:[#allocation2 + $0x120] sm:$0xff] %vm439, 0.0
      %477 = vst.msk [vmem:[#allocation2 + $0x128] sm:$0xff] %vm439, 0.0
      %478 = vst.msk [vmem:[#allocation2 + $0x130] sm:$0xff] %vm439, 0.0
      %479 = vst.msk [vmem:[#allocation2 + $0x138] sm:$0xff] %vm439, 0.0
      %vm480 = vcmask 259072
      %481 = vst.msk [vmem:[#allocation2 + $0x140] sm:$0x3f] %vm480, 0.0
      %v482 = vld [vmem:[%s423] sm:$0xff]
      %v483 = vld [vmem:[%s423 + $0x8] sm:$0xff]
      %v484 = vld [vmem:[%s423 + $0x10] sm:$0xff]
      %v485 = vld [vmem:[%s423 + $0x18] sm:$0xff]
      %v486 = vld [vmem:[%s423 + $0x20] sm:$0xff]
      %v487 = vld [vmem:[%s423 + $0x28] sm:$0xff]
      %v488 = vld [vmem:[%s423 + $0x30] sm:$0xff]
      %v489 = vld [vmem:[%s423 + $0x38] sm:$0xff]
      %v490 = vld [vmem:[%s423 + $0x40] sm:$0xff]
      %v491 = vld [vmem:[%s423 + $0x48] sm:$0xff]
      %v492 = vld [vmem:[%s423 + $0x50] sm:$0xff]
      %v493 = vld [vmem:[%s423 + $0x58] sm:$0xff]
      %v494 = vld [vmem:[%s423 + $0x60] sm:$0xff]
      %v495 = vld [vmem:[%s423 + $0x68] sm:$0xff]
      %v496 = vld [vmem:[%s423 + $0x70] sm:$0xff]
      %v497 = vld [vmem:[%s423 + $0x78] sm:$0xff]
      %v498 = vld [vmem:[%s423 + $0x80] sm:$0xff]
      %v499 = vld [vmem:[%s423 + $0x88] sm:$0xff]
      %v500 = vld [vmem:[%s423 + $0x90] sm:$0xff]
      %v501 = vld [vmem:[%s423 + $0x98] sm:$0xff]
      %v502 = vld [vmem:[%s423 + $0xa0] sm:$0xff]
      %v503 = vld [vmem:[%s423 + $0xa8] sm:$0xff]
      %v504 = vld [vmem:[%s423 + $0xb0] sm:$0xff]
      %v505 = vld [vmem:[%s423 + $0xb8] sm:$0xff]
      %v506 = vld [vmem:[%s423 + $0xc0] sm:$0xff]
      %v507 = vld [vmem:[%s423 + $0xc8] sm:$0xff]
      %v508 = vld [vmem:[%s423 + $0xd0] sm:$0xff]
      %v509 = vld [vmem:[%s423 + $0xd8] sm:$0xff]
      %v510 = vld [vmem:[%s423 + $0xe0] sm:$0xff]
      %v511 = vld [vmem:[%s423 + $0xe8] sm:$0xff]
      %v512 = vld [vmem:[%s423 + $0xf0] sm:$0xff]
      %v513 = vld [vmem:[%s423 + $0xf8] sm:$0xff]
      %v514 = vld [vmem:[%s423 + $0x100] sm:$0xff]
      %v515 = vld [vmem:[%s423 + $0x108] sm:$0xff]
      %v516 = vld [vmem:[%s423 + $0x110] sm:$0xff]
      %v517 = vld [vmem:[%s423 + $0x118] sm:$0xff]
      %v518 = vld [vmem:[%s423 + $0x120] sm:$0xff]
      %v519 = vld [vmem:[%s423 + $0x128] sm:$0xff]
      %v520 = vld [vmem:[%s423 + $0x130] sm:$0xff]
      %v521 = vld [vmem:[%s423 + $0x138] sm:$0xff]
      %v522 = vld [vmem:[%s423 + $0x140] sm:$0xf]
      %vm523 = vcmask 31744
      %524 = vst.msk [vmem:[#allocation2] sm:$0xff] %vm523, %v482
      %525 = vst.msk [vmem:[#allocation2 + $0x8] sm:$0xff] %vm523, %v483
      %526 = vst.msk [vmem:[#allocation2 + $0x10] sm:$0xff] %vm523, %v484
      %527 = vst.msk [vmem:[#allocation2 + $0x18] sm:$0xff] %vm523, %v485
      %528 = vst.msk [vmem:[#allocation2 + $0x20] sm:$0xff] %vm523, %v486
      %529 = vst.msk [vmem:[#allocation2 + $0x28] sm:$0xff] %vm523, %v487
      %530 = vst.msk [vmem:[#allocation2 + $0x30] sm:$0xff] %vm523, %v488
      %531 = vst.msk [vmem:[#allocation2 + $0x38] sm:$0xff] %vm523, %v489
      %532 = vst.msk [vmem:[#allocation2 + $0x40] sm:$0xff] %vm523, %v490
      %533 = vst.msk [vmem:[#allocation2 + $0x48] sm:$0xff] %vm523, %v491
      %534 = vst.msk [vmem:[#allocation2 + $0x50] sm:$0xff] %vm523, %v492
      %535 = vst.msk [vmem:[#allocation2 + $0x58] sm:$0xff] %vm523, %v493
      %536 = vst.msk [vmem:[#allocation2 + $0x60] sm:$0xff] %vm523, %v494
      %537 = vst.msk [vmem:[#allocation2 + $0x68] sm:$0xff] %vm523, %v495
      %538 = vst.msk [vmem:[#allocation2 + $0x70] sm:$0xff] %vm523, %v496
      %539 = vst.msk [vmem:[#allocation2 + $0x78] sm:$0xff] %vm523, %v497
      %540 = vst.msk [vmem:[#allocation2 + $0x80] sm:$0xff] %vm523, %v498
      %541 = vst.msk [vmem:[#allocation2 + $0x88] sm:$0xff] %vm523, %v499
      %542 = vst.msk [vmem:[#allocation2 + $0x90] sm:$0xff] %vm523, %v500
      %543 = vst.msk [vmem:[#allocation2 + $0x98] sm:$0xff] %vm523, %v501
      %544 = vst.msk [vmem:[#allocation2 + $0xa0] sm:$0xff] %vm523, %v502
      %545 = vst.msk [vmem:[#allocation2 + $0xa8] sm:$0xff] %vm523, %v503
      %546 = vst.msk [vmem:[#allocation2 + $0xb0] sm:$0xff] %vm523, %v504
      %547 = vst.msk [vmem:[#allocation2 + $0xb8] sm:$0xff] %vm523, %v505
      %548 = vst.msk [vmem:[#allocation2 + $0xc0] sm:$0xff] %vm523, %v506
      %549 = vst.msk [vmem:[#allocation2 + $0xc8] sm:$0xff] %vm523, %v507
      %550 = vst.msk [vmem:[#allocation2 + $0xd0] sm:$0xff] %vm523, %v508
      %551 = vst.msk [vmem:[#allocation2 + $0xd8] sm:$0xff] %vm523, %v509
      %552 = vst.msk [vmem:[#allocation2 + $0xe0] sm:$0xff] %vm523, %v510
      %553 = vst.msk [vmem:[#allocation2 + $0xe8] sm:$0xff] %vm523, %v511
      %554 = vst.msk [vmem:[#allocation2 + $0xf0] sm:$0xff] %vm523, %v512
      %555 = vst.msk [vmem:[#allocation2 + $0xf8] sm:$0xff] %vm523, %v513
      %556 = vst.msk [vmem:[#allocation2 + $0x100] sm:$0xff] %vm523, %v514
      %557 = vst.msk [vmem:[#allocation2 + $0x108] sm:$0xff] %vm523, %v515
      %558 = vst.msk [vmem:[#allocation2 + $0x110] sm:$0xff] %vm523, %v516
      %559 = vst.msk [vmem:[#allocation2 + $0x118] sm:$0xff] %vm523, %v517
      %560 = vst.msk [vmem:[#allocation2 + $0x120] sm:$0xff] %vm523, %v518
      %561 = vst.msk [vmem:[#allocation2 + $0x128] sm:$0xff] %vm523, %v519
      %562 = vst.msk [vmem:[#allocation2 + $0x130] sm:$0xff] %vm523, %v520
      %563 = vst.msk [vmem:[#allocation2 + $0x138] sm:$0xff] %vm523, %v521
      %vm564 = vcmask 27648
      %565 = vst.msk [vmem:[#allocation2 + $0x140] sm:$0xf] %vm564, %v522
      %v566 = vld [vmem:[%s1] sm:$0xff]
      %v567 = vld [vmem:[%s1 + $0x8] sm:$0xff]
      %v568 = vld [vmem:[%s1 + $0x10] sm:$0xff]
      %v569 = vld [vmem:[%s1 + $0x18] sm:$0xff]
      %v570 = vld [vmem:[%s1 + $0x20] sm:$0xff]
      %v571 = vld [vmem:[%s1 + $0x28] sm:$0xff]
      %v572 = vld [vmem:[%s1 + $0x30] sm:$0xff]
      %v573 = vld [vmem:[%s1 + $0x38] sm:$0xff]
      %v574 = vld [vmem:[%s1 + $0x40] sm:$0xff]
      %v575 = vld [vmem:[%s1 + $0x48] sm:$0xff]
      %v576 = vld [vmem:[%s1 + $0x50] sm:$0xff]
      %v577 = vld [vmem:[%s1 + $0x58] sm:$0xff]
      %v578 = vld [vmem:[%s1 + $0x60] sm:$0xff]
      %v579 = vld [vmem:[%s1 + $0x68] sm:$0xff]
      %v580 = vld [vmem:[%s1 + $0x70] sm:$0xff]
      %v581 = vld [vmem:[%s1 + $0x78] sm:$0xff]
      %v582 = vld [vmem:[%s1 + $0x80] sm:$0xff]
      %v583 = vld [vmem:[%s1 + $0x88] sm:$0xff]
      %v584 = vld [vmem:[%s1 + $0x90] sm:$0xff]
      %v585 = vld [vmem:[%s1 + $0x98] sm:$0xff]
      %v586 = vld [vmem:[%s1 + $0xa0] sm:$0xff]
      %v587 = vld [vmem:[%s1 + $0xa8] sm:$0xff]
      %v588 = vld [vmem:[%s1 + $0xb0] sm:$0xff]
      %v589 = vld [vmem:[%s1 + $0xb8] sm:$0xff]
      %v590 = vld [vmem:[%s1 + $0xc0] sm:$0xff]
      %v591 = vld [vmem:[%s1 + $0xc8] sm:$0xff]
      %v592 = vld [vmem:[%s1 + $0xd0] sm:$0xff]
      %v593 = vld [vmem:[%s1 + $0xd8] sm:$0xff]
      %v594 = vld [vmem:[%s1 + $0xe0] sm:$0xff]
      %v595 = vld [vmem:[%s1 + $0xe8] sm:$0xff]
      %v596 = vld [vmem:[%s1 + $0xf0] sm:$0xff]
      %v597 = vld [vmem:[%s1 + $0xf8] sm:$0xff]
      %v598 = vld [vmem:[%s1 + $0x100] sm:$0xff]
      %v599 = vld [vmem:[%s1 + $0x108] sm:$0xff]
      %v600 = vld [vmem:[%s1 + $0x110] sm:$0xff]
      %v601 = vld [vmem:[%s1 + $0x118] sm:$0xff]
      %v602 = vld [vmem:[#allocation2] sm:$0xff]
      %v603 = vld [vmem:[#allocation2 + $0x8] sm:$0xff]
      %v604 = vld [vmem:[#allocation2 + $0x10] sm:$0xff]
      %v605 = vld [vmem:[#allocation2 + $0x18] sm:$0xff]
      %v606 = vld [vmem:[#allocation2 + $0x20] sm:$0xff]
      %v607 = vld [vmem:[#allocation2 + $0x28] sm:$0xff]
      %v608 = vld [vmem:[#allocation2 + $0x30] sm:$0xff]
      %v609 = vld [vmem:[#allocation2 + $0x38] sm:$0xff]
      %v610 = vld [vmem:[#allocation2 + $0x40] sm:$0xff]
      %v611 = vld [vmem:[#allocation2 + $0x48] sm:$0xff]
      %v612 = vld [vmem:[#allocation2 + $0x50] sm:$0xff]
      %v613 = vld [vmem:[#allocation2 + $0x58] sm:$0xff]
      %v614 = vld [vmem:[#allocation2 + $0x60] sm:$0xff]
      %v615 = vld [vmem:[#allocation2 + $0x68] sm:$0xff]
      %v616 = vld [vmem:[#allocation2 + $0x70] sm:$0xff]
      %v617 = vld [vmem:[#allocation2 + $0x78] sm:$0xff]
      %v618 = vld [vmem:[#allocation2 + $0x80] sm:$0xff]
      %v619 = vld [vmem:[#allocation2 + $0x88] sm:$0xff]
      %v620 = vld [vmem:[#allocation2 + $0x90] sm:$0xff]
      %v621 = vld [vmem:[#allocation2 + $0x98] sm:$0xff]
      %v622 = vld [vmem:[#allocation2 + $0xa0] sm:$0xff]
      %v623 = vld [vmem:[#allocation2 + $0xa8] sm:$0xff]
      %v624 = vld [vmem:[#allocation2 + $0xb0] sm:$0xff]
      %v625 = vld [vmem:[#allocation2 + $0xb8] sm:$0xff]
      %v626 = vld [vmem:[#allocation2 + $0xc0] sm:$0xff]
      %v627 = vld [vmem:[#allocation2 + $0xc8] sm:$0xff]
      %v628 = vld [vmem:[#allocation2 + $0xd0] sm:$0xff]
      %v629 = vld [vmem:[#allocation2 + $0xd8] sm:$0xff]
      %v630 = vld [vmem:[#allocation2 + $0xe0] sm:$0xff]
      %v631 = vld [vmem:[#allocation2 + $0xe8] sm:$0xff]
      %v632 = vld [vmem:[#allocation2 + $0xf0] sm:$0xff]
      %v633 = vld [vmem:[#allocation2 + $0xf8] sm:$0xff]
      %v634 = vld [vmem:[#allocation2 + $0x100] sm:$0xff]
      %v635 = vld [vmem:[#allocation2 + $0x108] sm:$0xff]
      %v636 = vld [vmem:[#allocation2 + $0x110] sm:$0xff]
      %v637 = vld [vmem:[#allocation2 + $0x118] sm:$0xff]
      %v638 = vld [vmem:[%s2] sm:$0xff]
      %v639 = vld [vmem:[%s2 + $0x8] sm:$0xff]
      %v640 = vld [vmem:[%s2 + $0x10] sm:$0xff]
      %v641 = vld [vmem:[%s2 + $0x18] sm:$0xff]
      %v642 = vld [vmem:[#allocation2 + $0x1] sm:$0xff]
      %v643 = vld [vmem:[#allocation2 + $0x9] sm:$0xff]
      %v644 = vld [vmem:[#allocation2 + $0x11] sm:$0xff]
      %v645 = vld [vmem:[#allocation2 + $0x19] sm:$0xff]
      %v646 = vld [vmem:[#allocation2 + $0x21] sm:$0xff]
      %v647 = vld [vmem:[#allocation2 + $0x29] sm:$0xff]
      %v648 = vld [vmem:[#allocation2 + $0x31] sm:$0xff]
      %v649 = vld [vmem:[#allocation2 + $0x39] sm:$0xff]
      %v650 = vld [vmem:[#allocation2 + $0x41] sm:$0xff]
      %v651 = vld [vmem:[#allocation2 + $0x49] sm:$0xff]
      %v652 = vld [vmem:[#allocation2 + $0x51] sm:$0xff]
      %v653 = vld [vmem:[#allocation2 + $0x59] sm:$0xff]
      %v654 = vld [vmem:[#allocation2 + $0x61] sm:$0xff]
      %v655 = vld [vmem:[#allocation2 + $0x69] sm:$0xff]
      %v656 = vld [vmem:[#allocation2 + $0x71] sm:$0xff]
      %v657 = vld [vmem:[#allocation2 + $0x79] sm:$0xff]
      %v658 = vld [vmem:[#allocation2 + $0x81] sm:$0xff]
      %v659 = vld [vmem:[#allocation2 + $0x89] sm:$0xff]
      %v660 = vld [vmem:[#allocation2 + $0x91] sm:$0xff]
      %v661 = vld [vmem:[#allocation2 + $0x99] sm:$0xff]
      %v662 = vld [vmem:[#allocation2 + $0xa1] sm:$0xff]
      %v663 = vld [vmem:[#allocation2 + $0xa9] sm:$0xff]
      %v664 = vld [vmem:[#allocation2 + $0xb1] sm:$0xff]
      %v665 = vld [vmem:[#allocation2 + $0xb9] sm:$0xff]
      %v666 = vld [vmem:[#allocation2 + $0xc1] sm:$0xff]
      %v667 = vld [vmem:[#allocation2 + $0xc9] sm:$0xff]
      %v668 = vld [vmem:[#allocation2 + $0xd1] sm:$0xff]
      %v669 = vld [vmem:[#allocation2 + $0xd9] sm:$0xff]
      %v670 = vld [vmem:[#allocation2 + $0xe1] sm:$0xff]
      %v671 = vld [vmem:[#allocation2 + $0xe9] sm:$0xff]
      %v672 = vld [vmem:[#allocation2 + $0xf1] sm:$0xff]
      %v673 = vld [vmem:[#allocation2 + $0xf9] sm:$0xff]
      %v674 = vld [vmem:[#allocation2 + $0x101] sm:$0xff]
      %v675 = vld [vmem:[#allocation2 + $0x109] sm:$0xff]
      %v676 = vld [vmem:[#allocation2 + $0x111] sm:$0xff]
      %v677 = vld [vmem:[#allocation2 + $0x119] sm:$0xff]
      %s678 = scalar_lea.vmem %s2, 32
      %v679 = vld [vmem:[%s678] sm:$0xff]
      %v680 = vld [vmem:[%s678 + $0x8] sm:$0xff]
      %v681 = vld [vmem:[%s678 + $0x10] sm:$0xff]
      %v682 = vld [vmem:[%s678 + $0x18] sm:$0xff]
      %v684 = vsel %vm439, %v642, 0
      %v687 = vsel %vm439, %v643, 0
      %v690 = vsel %vm439, %v644, 0
      %v693 = vsel %vm439, %v645, 0
      %v696 = vsel %vm439, %v646, 0
      %v699 = vsel %vm439, %v647, 0
      %v702 = vsel %vm439, %v648, 0
      %v705 = vsel %vm439, %v649, 0
      %v708 = vsel %vm439, %v650, 0
      %v711 = vsel %vm439, %v651, 0
      %v714 = vsel %vm439, %v652, 0
      %v717 = vsel %vm439, %v653, 0
      %v720 = vsel %vm439, %v654, 0
      %v723 = vsel %vm439, %v655, 0
      %v726 = vsel %vm439, %v656, 0
      %v729 = vsel %vm439, %v657, 0
      %v732 = vsel %vm439, %v658, 0
      %v735 = vsel %vm439, %v659, 0
      %v738 = vsel %vm439, %v660, 0
      %v741 = vsel %vm439, %v661, 0
      %v744 = vsel %vm439, %v662, 0
      %v747 = vsel %vm439, %v663, 0
      %v750 = vsel %vm439, %v664, 0
      %v753 = vsel %vm439, %v665, 0
      %v756 = vsel %vm439, %v666, 0
      %v759 = vsel %vm439, %v667, 0
      %v762 = vsel %vm439, %v668, 0
      %v765 = vsel %vm439, %v669, 0
      %v768 = vsel %vm439, %v670, 0
      %v771 = vsel %vm439, %v671, 0
      %v774 = vsel %vm439, %v672, 0
      %v777 = vsel %vm439, %v673, 0
      %v780 = vsel %vm439, %v674, 0
      %v783 = vsel %vm439, %v675, 0
      %v786 = vsel %vm439, %v676, 0
      %v789 = vsel %vm439, %v677, 0
      %791 = vmatpush.msra.mxu0 0.0
      %792 = vmatpush.msra.mxu0 0.0
      %793 = vmatpush.msra.mxu0 0.0
      %794 = vmatpush.msra.mxu0 0.0
      %795 = vmatpush.msra.mxu0 0.0
      %796 = vmatpush.msra.mxu0 0.0
      %797 = vmatpush.msra.mxu0 0.0
      %798 = vmatpush.msra.mxu0 0.0
      %799 = vmatpush.msra.mxu0 0.0
      %800 = vmatpush.msra.mxu0 0.0
      %801 = vmatpush.msra.mxu0 0.0
      %802 = vmatpush.msra.mxu0 0.0
      %803 = vmatpush.msra.mxu0 %v682
      %804 = vmatpush.msra.mxu0 %v681
      %805 = vmatpush.msra.mxu0 %v680
      %806 = vmatpush.msra.mxu0 %v679
      %807 = vmatmul.f32.gmra.mxu0 %v684
      %v808 = vpop.f32.mrf.mxu0
      %v809 = vadd.f32 0.0, %v808
      %810 = vmatmul.f32.gmra.mxu0 %v687
      %v811 = vpop.f32.mrf.mxu0
      %v812 = vadd.f32 0.0, %v811
      %813 = vmatmul.f32.gmra.mxu0 %v690
      %v814 = vpop.f32.mrf.mxu0
      %v815 = vadd.f32 0.0, %v814
      %816 = vmatmul.f32.gmra.mxu0 %v693
      %v817 = vpop.f32.mrf.mxu0
      %v818 = vadd.f32 0.0, %v817
      %819 = vmatmul.f32.gmra.mxu0 %v696
      %v820 = vpop.f32.mrf.mxu0
      %v821 = vadd.f32 0.0, %v820
      %822 = vmatmul.f32.gmra.mxu0 %v699
      %v823 = vpop.f32.mrf.mxu0
      %v824 = vadd.f32 0.0, %v823
      %825 = vmatmul.f32.gmra.mxu0 %v702
      %v826 = vpop.f32.mrf.mxu0
      %v827 = vadd.f32 0.0, %v826
      %828 = vmatmul.f32.gmra.mxu0 %v705
      %v829 = vpop.f32.mrf.mxu0
      %v830 = vadd.f32 0.0, %v829
      %831 = vmatmul.f32.gmra.mxu0 %v708
      %v832 = vpop.f32.mrf.mxu0
      %v833 = vadd.f32 0.0, %v832
      %834 = vmatmul.f32.gmra.mxu0 %v711
      %v835 = vpop.f32.mrf.mxu0
      %v836 = vadd.f32 0.0, %v835
      %837 = vmatmul.f32.gmra.mxu0 %v714
      %v838 = vpop.f32.mrf.mxu0
      %v839 = vadd.f32 0.0, %v838
      %840 = vmatmul.f32.gmra.mxu0 %v717
      %v841 = vpop.f32.mrf.mxu0
      %v842 = vadd.f32 0.0, %v841
      %843 = vmatmul.f32.gmra.mxu0 %v720
      %v844 = vpop.f32.mrf.mxu0
      %v845 = vadd.f32 0.0, %v844
      %846 = vmatmul.f32.gmra.mxu0 %v723
      %v847 = vpop.f32.mrf.mxu0
      %v848 = vadd.f32 0.0, %v847
      %849 = vmatmul.f32.gmra.mxu0 %v726
      %v850 = vpop.f32.mrf.mxu0
      %v851 = vadd.f32 0.0, %v850
      %852 = vmatmul.f32.gmra.mxu0 %v729
      %v853 = vpop.f32.mrf.mxu0
      %v854 = vadd.f32 0.0, %v853
      %855 = vmatmul.f32.gmra.mxu0 %v732
      %v856 = vpop.f32.mrf.mxu0
      %v857 = vadd.f32 0.0, %v856
      %858 = vmatmul.f32.gmra.mxu0 %v735
      %v859 = vpop.f32.mrf.mxu0
      %v860 = vadd.f32 0.0, %v859
      %861 = vmatmul.f32.gmra.mxu0 %v738
      %v862 = vpop.f32.mrf.mxu0
      %v863 = vadd.f32 0.0, %v862
      %864 = vmatmul.f32.gmra.mxu0 %v741
      %v865 = vpop.f32.mrf.mxu0
      %v866 = vadd.f32 0.0, %v865
      %867 = vmatmul.f32.gmra.mxu0 %v744
      %v868 = vpop.f32.mrf.mxu0
      %v869 = vadd.f32 0.0, %v868
      %870 = vmatmul.f32.gmra.mxu0 %v747
      %v871 = vpop.f32.mrf.mxu0
      %v872 = vadd.f32 0.0, %v871
      %873 = vmatmul.f32.gmra.mxu0 %v750
      %v874 = vpop.f32.mrf.mxu0
      %v875 = vadd.f32 0.0, %v874
      %876 = vmatmul.f32.gmra.mxu0 %v753
      %v877 = vpop.f32.mrf.mxu0
      %v878 = vadd.f32 0.0, %v877
      %879 = vmatmul.f32.gmra.mxu0 %v756
      %v880 = vpop.f32.mrf.mxu0
      %v881 = vadd.f32 0.0, %v880
      %882 = vmatmul.f32.gmra.mxu0 %v759
      %v883 = vpop.f32.mrf.mxu0
      %v884 = vadd.f32 0.0, %v883
      %885 = vmatmul.f32.gmra.mxu0 %v762
      %v886 = vpop.f32.mrf.mxu0
      %v887 = vadd.f32 0.0, %v886
      %888 = vmatmul.f32.gmra.mxu0 %v765
      %v889 = vpop.f32.mrf.mxu0
      %v890 = vadd.f32 0.0, %v889
      %891 = vmatmul.f32.gmra.mxu0 %v768
      %v892 = vpop.f32.mrf.mxu0
      %v893 = vadd.f32 0.0, %v892
      %894 = vmatmul.f32.gmra.mxu0 %v771
      %v895 = vpop.f32.mrf.mxu0
      %v896 = vadd.f32 0.0, %v895
      %897 = vmatmul.f32.gmra.mxu0 %v774
      %v898 = vpop.f32.mrf.mxu0
      %v899 = vadd.f32 0.0, %v898
      %900 = vmatmul.f32.gmra.mxu0 %v777
      %v901 = vpop.f32.mrf.mxu0
      %v902 = vadd.f32 0.0, %v901
      %903 = vmatmul.f32.gmra.mxu0 %v780
      %v904 = vpop.f32.mrf.mxu0
      %v905 = vadd.f32 0.0, %v904
      %906 = vmatmul.f32.gmra.mxu0 %v783
      %v907 = vpop.f32.mrf.mxu0
      %v908 = vadd.f32 0.0, %v907
      %909 = vmatmul.f32.gmra.mxu0 %v786
      %v910 = vpop.f32.mrf.mxu0
      %v911 = vadd.f32 0.0, %v910
      %912 = vmatmul.f32.gmra.mxu0 %v789
      %v913 = vpop.f32.mrf.mxu0
      %v914 = vadd.f32 0.0, %v913
      %915 = vdwg.mxu0
      %v917 = vsel %vm439, %v602, 0
      %v920 = vsel %vm439, %v603, 0
      %v923 = vsel %vm439, %v604, 0
      %v926 = vsel %vm439, %v605, 0
      %v929 = vsel %vm439, %v606, 0
      %v932 = vsel %vm439, %v607, 0
      %v935 = vsel %vm439, %v608, 0
      %v938 = vsel %vm439, %v609, 0
      %v941 = vsel %vm439, %v610, 0
      %v944 = vsel %vm439, %v611, 0
      %v947 = vsel %vm439, %v612, 0
      %v950 = vsel %vm439, %v613, 0
      %v953 = vsel %vm439, %v614, 0
      %v956 = vsel %vm439, %v615, 0
      %v959 = vsel %vm439, %v616, 0
      %v962 = vsel %vm439, %v617, 0
      %v965 = vsel %vm439, %v618, 0
      %v968 = vsel %vm439, %v619, 0
      %v971 = vsel %vm439, %v620, 0
      %v974 = vsel %vm439, %v621, 0
      %v977 = vsel %vm439, %v622, 0
      %v980 = vsel %vm439, %v623, 0
      %v983 = vsel %vm439, %v624, 0
      %v986 = vsel %vm439, %v625, 0
      %v989 = vsel %vm439, %v626, 0
      %v992 = vsel %vm439, %v627, 0
      %v995 = vsel %vm439, %v628, 0
      %v998 = vsel %vm439, %v629, 0
      %v1001 = vsel %vm439, %v630, 0
      %v1004 = vsel %vm439, %v631, 0
      %v1007 = vsel %vm439, %v632, 0
      %v1010 = vsel %vm439, %v633, 0
      %v1013 = vsel %vm439, %v634, 0
      %v1016 = vsel %vm439, %v635, 0
      %v1019 = vsel %vm439, %v636, 0
      %v1022 = vsel %vm439, %v637, 0
      %1024 = vmatpush.msra.mxu0 0.0
      %1025 = vmatpush.msra.mxu0 0.0
      %1026 = vmatpush.msra.mxu0 0.0
      %1027 = vmatpush.msra.mxu0 0.0
      %1028 = vmatpush.msra.mxu0 0.0
      %1029 = vmatpush.msra.mxu0 0.0
      %1030 = vmatpush.msra.mxu0 0.0
      %1031 = vmatpush.msra.mxu0 0.0
      %1032 = vmatpush.msra.mxu0 0.0
      %1033 = vmatpush.msra.mxu0 0.0
      %1034 = vmatpush.msra.mxu0 0.0
      %1035 = vmatpush.msra.mxu0 0.0
      %1036 = vmatpush.msra.mxu0 %v641
      %1037 = vmatpush.msra.mxu0 %v640
      %1038 = vmatpush.msra.mxu0 %v639
      %1039 = vmatpush.msra.mxu0 %v638
      %1040 = vmatmul.f32.gmra.mxu0 %v917
      %v1041 = vpop.f32.mrf.mxu0
      %v1042 = vadd.f32 %v809, %v1041
      %1043 = vmatmul.f32.gmra.mxu0 %v920
      %v1044 = vpop.f32.mrf.mxu0
      %v1045 = vadd.f32 %v812, %v1044
      %1046 = vmatmul.f32.gmra.mxu0 %v923
      %v1047 = vpop.f32.mrf.mxu0
      %v1048 = vadd.f32 %v815, %v1047
      %1049 = vmatmul.f32.gmra.mxu0 %v926
      %v1050 = vpop.f32.mrf.mxu0
      %v1051 = vadd.f32 %v818, %v1050
      %1052 = vmatmul.f32.gmra.mxu0 %v929
      %v1053 = vpop.f32.mrf.mxu0
      %v1054 = vadd.f32 %v821, %v1053
      %1055 = vmatmul.f32.gmra.mxu0 %v932
      %v1056 = vpop.f32.mrf.mxu0
      %v1057 = vadd.f32 %v824, %v1056
      %1058 = vmatmul.f32.gmra.mxu0 %v935
      %v1059 = vpop.f32.mrf.mxu0
      %v1060 = vadd.f32 %v827, %v1059
      %1061 = vmatmul.f32.gmra.mxu0 %v938
      %v1062 = vpop.f32.mrf.mxu0
      %v1063 = vadd.f32 %v830, %v1062
      %1064 = vmatmul.f32.gmra.mxu0 %v941
      %v1065 = vpop.f32.mrf.mxu0
      %v1066 = vadd.f32 %v833, %v1065
      %1067 = vmatmul.f32.gmra.mxu0 %v944
      %v1068 = vpop.f32.mrf.mxu0
      %v1069 = vadd.f32 %v836, %v1068
      %1070 = vmatmul.f32.gmra.mxu0 %v947
      %v1071 = vpop.f32.mrf.mxu0
      %v1072 = vadd.f32 %v839, %v1071
      %1073 = vmatmul.f32.gmra.mxu0 %v950
      %v1074 = vpop.f32.mrf.mxu0
      %v1075 = vadd.f32 %v842, %v1074
      %1076 = vmatmul.f32.gmra.mxu0 %v953
      %v1077 = vpop.f32.mrf.mxu0
      %v1078 = vadd.f32 %v845, %v1077
      %1079 = vmatmul.f32.gmra.mxu0 %v956
      %v1080 = vpop.f32.mrf.mxu0
      %v1081 = vadd.f32 %v848, %v1080
      %1082 = vmatmul.f32.gmra.mxu0 %v959
      %v1083 = vpop.f32.mrf.mxu0
      %v1084 = vadd.f32 %v851, %v1083
      %1085 = vmatmul.f32.gmra.mxu0 %v962
      %v1086 = vpop.f32.mrf.mxu0
      %v1087 = vadd.f32 %v854, %v1086
      %1088 = vmatmul.f32.gmra.mxu0 %v965
      %v1089 = vpop.f32.mrf.mxu0
      %v1090 = vadd.f32 %v857, %v1089
      %1091 = vmatmul.f32.gmra.mxu0 %v968
      %v1092 = vpop.f32.mrf.mxu0
      %v1093 = vadd.f32 %v860, %v1092
      %1094 = vmatmul.f32.gmra.mxu0 %v971
      %v1095 = vpop.f32.mrf.mxu0
      %v1096 = vadd.f32 %v863, %v1095
      %1097 = vmatmul.f32.gmra.mxu0 %v974
      %v1098 = vpop.f32.mrf.mxu0
      %v1099 = vadd.f32 %v866, %v1098
      %1100 = vmatmul.f32.gmra.mxu0 %v977
      %v1101 = vpop.f32.mrf.mxu0
      %v1102 = vadd.f32 %v869, %v1101
      %1103 = vmatmul.f32.gmra.mxu0 %v980
      %v1104 = vpop.f32.mrf.mxu0
      %v1105 = vadd.f32 %v872, %v1104
      %1106 = vmatmul.f32.gmra.mxu0 %v983
      %v1107 = vpop.f32.mrf.mxu0
      %v1108 = vadd.f32 %v875, %v1107
      %1109 = vmatmul.f32.gmra.mxu0 %v986
      %v1110 = vpop.f32.mrf.mxu0
      %v1111 = vadd.f32 %v878, %v1110
      %1112 = vmatmul.f32.gmra.mxu0 %v989
      %v1113 = vpop.f32.mrf.mxu0
      %v1114 = vadd.f32 %v881, %v1113
      %1115 = vmatmul.f32.gmra.mxu0 %v992
      %v1116 = vpop.f32.mrf.mxu0
      %v1117 = vadd.f32 %v884, %v1116
      %1118 = vmatmul.f32.gmra.mxu0 %v995
      %v1119 = vpop.f32.mrf.mxu0
      %v1120 = vadd.f32 %v887, %v1119
      %1121 = vmatmul.f32.gmra.mxu0 %v998
      %v1122 = vpop.f32.mrf.mxu0
      %v1123 = vadd.f32 %v890, %v1122
      %1124 = vmatmul.f32.gmra.mxu0 %v1001
      %v1125 = vpop.f32.mrf.mxu0
      %v1126 = vadd.f32 %v893, %v1125
      %1127 = vmatmul.f32.gmra.mxu0 %v1004
      %v1128 = vpop.f32.mrf.mxu0
      %v1129 = vadd.f32 %v896, %v1128
      %1130 = vmatmul.f32.gmra.mxu0 %v1007
      %v1131 = vpop.f32.mrf.mxu0
      %v1132 = vadd.f32 %v899, %v1131
      %1133 = vmatmul.f32.gmra.mxu0 %v1010
      %v1134 = vpop.f32.mrf.mxu0
      %v1135 = vadd.f32 %v902, %v1134
      %1136 = vmatmul.f32.gmra.mxu0 %v1013
      %v1137 = vpop.f32.mrf.mxu0
      %v1138 = vadd.f32 %v905, %v1137
      %1139 = vmatmul.f32.gmra.mxu0 %v1016
      %v1140 = vpop.f32.mrf.mxu0
      %v1141 = vadd.f32 %v908, %v1140
      %1142 = vmatmul.f32.gmra.mxu0 %v1019
      %v1143 = vpop.f32.mrf.mxu0
      %v1144 = vadd.f32 %v911, %v1143
      %1145 = vmatmul.f32.gmra.mxu0 %v1022
      %v1146 = vpop.f32.mrf.mxu0
      %v1147 = vadd.f32 %v914, %v1146
      %1148 = vdwg.mxu0
      %v1149 = vld [vmem:[#allocation2 + $0x2] sm:$0xff]
      %v1150 = vld [vmem:[#allocation2 + $0xa] sm:$0xff]
      %v1151 = vld [vmem:[#allocation2 + $0x12] sm:$0xff]
      %v1152 = vld [vmem:[#allocation2 + $0x1a] sm:$0xff]
      %v1153 = vld [vmem:[#allocation2 + $0x22] sm:$0xff]
      %v1154 = vld [vmem:[#allocation2 + $0x2a] sm:$0xff]
      %v1155 = vld [vmem:[#allocation2 + $0x32] sm:$0xff]
      %v1156 = vld [vmem:[#allocation2 + $0x3a] sm:$0xff]
      %v1157 = vld [vmem:[#allocation2 + $0x42] sm:$0xff]
      %v1158 = vld [vmem:[#allocation2 + $0x4a] sm:$0xff]
      %v1159 = vld [vmem:[#allocation2 + $0x52] sm:$0xff]
      %v1160 = vld [vmem:[#allocation2 + $0x5a] sm:$0xff]
      %v1161 = vld [vmem:[#allocation2 + $0x62] sm:$0xff]
      %v1162 = vld [vmem:[#allocation2 + $0x6a] sm:$0xff]
      %v1163 = vld [vmem:[#allocation2 + $0x72] sm:$0xff]
      %v1164 = vld [vmem:[#allocation2 + $0x7a] sm:$0xff]
      %v1165 = vld [vmem:[#allocation2 + $0x82] sm:$0xff]
      %v1166 = vld [vmem:[#allocation2 + $0x8a] sm:$0xff]
      %v1167 = vld [vmem:[#allocation2 + $0x92] sm:$0xff]
      %v1168 = vld [vmem:[#allocation2 + $0x9a] sm:$0xff]
      %v1169 = vld [vmem:[#allocation2 + $0xa2] sm:$0xff]
      %v1170 = vld [vmem:[#allocation2 + $0xaa] sm:$0xff]
      %v1171 = vld [vmem:[#allocation2 + $0xb2] sm:$0xff]
      %v1172 = vld [vmem:[#allocation2 + $0xba] sm:$0xff]
      %v1173 = vld [vmem:[#allocation2 + $0xc2] sm:$0xff]
      %v1174 = vld [vmem:[#allocation2 + $0xca] sm:$0xff]
      %v1175 = vld [vmem:[#allocation2 + $0xd2] sm:$0xff]
      %v1176 = vld [vmem:[#allocation2 + $0xda] sm:$0xff]
      %v1177 = vld [vmem:[#allocation2 + $0xe2] sm:$0xff]
      %v1178 = vld [vmem:[#allocation2 + $0xea] sm:$0xff]
      %v1179 = vld [vmem:[#allocation2 + $0xf2] sm:$0xff]
      %v1180 = vld [vmem:[#allocation2 + $0xfa] sm:$0xff]
      %v1181 = vld [vmem:[#allocation2 + $0x102] sm:$0xff]
      %v1182 = vld [vmem:[#allocation2 + $0x10a] sm:$0xff]
      %v1183 = vld [vmem:[#allocation2 + $0x112] sm:$0xff]
      %v1184 = vld [vmem:[#allocation2 + $0x11a] sm:$0xff]
      %s1185 = scalar_lea.vmem %s2, 64
      %v1186 = vld [vmem:[%s1185] sm:$0xff]
      %v1187 = vld [vmem:[%s1185 + $0x8] sm:$0xff]
      %v1188 = vld [vmem:[%s1185 + $0x10] sm:$0xff]
      %v1189 = vld [vmem:[%s1185 + $0x18] sm:$0xff]
      %v1191 = vsel %vm439, %v1149, 0
      %v1194 = vsel %vm439, %v1150, 0
      %v1197 = vsel %vm439, %v1151, 0
      %v1200 = vsel %vm439, %v1152, 0
      %v1203 = vsel %vm439, %v1153, 0
      %v1206 = vsel %vm439, %v1154, 0
      %v1209 = vsel %vm439, %v1155, 0
      %v1212 = vsel %vm439, %v1156, 0
      %v1215 = vsel %vm439, %v1157, 0
      %v1218 = vsel %vm439, %v1158, 0
      %v1221 = vsel %vm439, %v1159, 0
      %v1224 = vsel %vm439, %v1160, 0
      %v1227 = vsel %vm439, %v1161, 0
      %v1230 = vsel %vm439, %v1162, 0
      %v1233 = vsel %vm439, %v1163, 0
      %v1236 = vsel %vm439, %v1164, 0
      %v1239 = vsel %vm439, %v1165, 0
      %v1242 = vsel %vm439, %v1166, 0
      %v1245 = vsel %vm439, %v1167, 0
      %v1248 = vsel %vm439, %v1168, 0
      %v1251 = vsel %vm439, %v1169, 0
      %v1254 = vsel %vm439, %v1170, 0
      %v1257 = vsel %vm439, %v1171, 0
      %v1260 = vsel %vm439, %v1172, 0
      %v1263 = vsel %vm439, %v1173, 0
      %v1266 = vsel %vm439, %v1174, 0
      %v1269 = vsel %vm439, %v1175, 0
      %v1272 = vsel %vm439, %v1176, 0
      %v1275 = vsel %vm439, %v1177, 0
      %v1278 = vsel %vm439, %v1178, 0
      %v1281 = vsel %vm439, %v1179, 0
      %v1284 = vsel %vm439, %v1180, 0
      %v1287 = vsel %vm439, %v1181, 0
      %v1290 = vsel %vm439, %v1182, 0
      %v1293 = vsel %vm439, %v1183, 0
      %v1296 = vsel %vm439, %v1184, 0
      %1298 = vmatpush.msra.mxu0 0.0
      %1299 = vmatpush.msra.mxu0 0.0
      %1300 = vmatpush.msra.mxu0 0.0
      %1301 = vmatpush.msra.mxu0 0.0
      %1302 = vmatpush.msra.mxu0 0.0
      %1303 = vmatpush.msra.mxu0 0.0
      %1304 = vmatpush.msra.mxu0 0.0
      %1305 = vmatpush.msra.mxu0 0.0
      %1306 = vmatpush.msra.mxu0 0.0
      %1307 = vmatpush.msra.mxu0 0.0
      %1308 = vmatpush.msra.mxu0 0.0
      %1309 = vmatpush.msra.mxu0 0.0
      %1310 = vmatpush.msra.mxu0 %v1189
      %1311 = vmatpush.msra.mxu0 %v1188
      %1312 = vmatpush.msra.mxu0 %v1187
      %1313 = vmatpush.msra.mxu0 %v1186
      %1314 = vmatmul.f32.gmra.mxu0 %v1191
      %v1315 = vpop.f32.mrf.mxu0
      %v1316 = vadd.f32 0.0, %v1315
      %1317 = vmatmul.f32.gmra.mxu0 %v1194
      %v1318 = vpop.f32.mrf.mxu0
      %v1319 = vadd.f32 0.0, %v1318
      %1320 = vmatmul.f32.gmra.mxu0 %v1197
      %v1321 = vpop.f32.mrf.mxu0
      %v1322 = vadd.f32 0.0, %v1321
      %1323 = vmatmul.f32.gmra.mxu0 %v1200
      %v1324 = vpop.f32.mrf.mxu0
      %v1325 = vadd.f32 0.0, %v1324
      %1326 = vmatmul.f32.gmra.mxu0 %v1203
      %v1327 = vpop.f32.mrf.mxu0
      %v1328 = vadd.f32 0.0, %v1327
      %1329 = vmatmul.f32.gmra.mxu0 %v1206
      %v1330 = vpop.f32.mrf.mxu0
      %v1331 = vadd.f32 0.0, %v1330
      %1332 = vmatmul.f32.gmra.mxu0 %v1209
      %v1333 = vpop.f32.mrf.mxu0
      %v1334 = vadd.f32 0.0, %v1333
      %1335 = vmatmul.f32.gmra.mxu0 %v1212
      %v1336 = vpop.f32.mrf.mxu0
      %v1337 = vadd.f32 0.0, %v1336
      %1338 = vmatmul.f32.gmra.mxu0 %v1215
      %v1339 = vpop.f32.mrf.mxu0
      %v1340 = vadd.f32 0.0, %v1339
      %1341 = vmatmul.f32.gmra.mxu0 %v1218
      %v1342 = vpop.f32.mrf.mxu0
      %v1343 = vadd.f32 0.0, %v1342
      %1344 = vmatmul.f32.gmra.mxu0 %v1221
      %v1345 = vpop.f32.mrf.mxu0
      %v1346 = vadd.f32 0.0, %v1345
      %1347 = vmatmul.f32.gmra.mxu0 %v1224
      %v1348 = vpop.f32.mrf.mxu0
      %v1349 = vadd.f32 0.0, %v1348
      %1350 = vmatmul.f32.gmra.mxu0 %v1227
      %v1351 = vpop.f32.mrf.mxu0
      %v1352 = vadd.f32 0.0, %v1351
      %1353 = vmatmul.f32.gmra.mxu0 %v1230
      %v1354 = vpop.f32.mrf.mxu0
      %v1355 = vadd.f32 0.0, %v1354
      %1356 = vmatmul.f32.gmra.mxu0 %v1233
      %v1357 = vpop.f32.mrf.mxu0
      %v1358 = vadd.f32 0.0, %v1357
      %1359 = vmatmul.f32.gmra.mxu0 %v1236
      %v1360 = vpop.f32.mrf.mxu0
      %v1361 = vadd.f32 0.0, %v1360
      %1362 = vmatmul.f32.gmra.mxu0 %v1239
      %v1363 = vpop.f32.mrf.mxu0
      %v1364 = vadd.f32 0.0, %v1363
      %1365 = vmatmul.f32.gmra.mxu0 %v1242
      %v1366 = vpop.f32.mrf.mxu0
      %v1367 = vadd.f32 0.0, %v1366
      %1368 = vmatmul.f32.gmra.mxu0 %v1245
      %v1369 = vpop.f32.mrf.mxu0
      %v1370 = vadd.f32 0.0, %v1369
      %1371 = vmatmul.f32.gmra.mxu0 %v1248
      %v1372 = vpop.f32.mrf.mxu0
      %v1373 = vadd.f32 0.0, %v1372
      %1374 = vmatmul.f32.gmra.mxu0 %v1251
      %v1375 = vpop.f32.mrf.mxu0
      %v1376 = vadd.f32 0.0, %v1375
      %1377 = vmatmul.f32.gmra.mxu0 %v1254
      %v1378 = vpop.f32.mrf.mxu0
      %v1379 = vadd.f32 0.0, %v1378
      %1380 = vmatmul.f32.gmra.mxu0 %v1257
      %v1381 = vpop.f32.mrf.mxu0
      %v1382 = vadd.f32 0.0, %v1381
      %1383 = vmatmul.f32.gmra.mxu0 %v1260
      %v1384 = vpop.f32.mrf.mxu0
      %v1385 = vadd.f32 0.0, %v1384
      %1386 = vmatmul.f32.gmra.mxu0 %v1263
      %v1387 = vpop.f32.mrf.mxu0
      %v1388 = vadd.f32 0.0, %v1387
      %1389 = vmatmul.f32.gmra.mxu0 %v1266
      %v1390 = vpop.f32.mrf.mxu0
      %v1391 = vadd.f32 0.0, %v1390
      %1392 = vmatmul.f32.gmra.mxu0 %v1269
      %v1393 = vpop.f32.mrf.mxu0
      %v1394 = vadd.f32 0.0, %v1393
      %1395 = vmatmul.f32.gmra.mxu0 %v1272
      %v1396 = vpop.f32.mrf.mxu0
      %v1397 = vadd.f32 0.0, %v1396
      %1398 = vmatmul.f32.gmra.mxu0 %v1275
      %v1399 = vpop.f32.mrf.mxu0
      %v1400 = vadd.f32 0.0, %v1399
      %1401 = vmatmul.f32.gmra.mxu0 %v1278
      %v1402 = vpop.f32.mrf.mxu0
      %v1403 = vadd.f32 0.0, %v1402
      %1404 = vmatmul.f32.gmra.mxu0 %v1281
      %v1405 = vpop.f32.mrf.mxu0
      %v1406 = vadd.f32 0.0, %v1405
      %1407 = vmatmul.f32.gmra.mxu0 %v1284
      %v1408 = vpop.f32.mrf.mxu0
      %v1409 = vadd.f32 0.0, %v1408
      %1410 = vmatmul.f32.gmra.mxu0 %v1287
      %v1411 = vpop.f32.mrf.mxu0
      %v1412 = vadd.f32 0.0, %v1411
      %1413 = vmatmul.f32.gmra.mxu0 %v1290
      %v1414 = vpop.f32.mrf.mxu0
      %v1415 = vadd.f32 0.0, %v1414
      %1416 = vmatmul.f32.gmra.mxu0 %v1293
      %v1417 = vpop.f32.mrf.mxu0
      %v1418 = vadd.f32 0.0, %v1417
      %1419 = vmatmul.f32.gmra.mxu0 %v1296
      %v1420 = vpop.f32.mrf.mxu0
      %v1421 = vadd.f32 0.0, %v1420
      %1422 = vdwg.mxu0
      %v1423 = vadd.f32 %v1042, %v1316
      %v1424 = vadd.f32 %v1045, %v1319
      %v1425 = vadd.f32 %v1048, %v1322
      %v1426 = vadd.f32 %v1051, %v1325
      %v1427 = vadd.f32 %v1054, %v1328
      %v1428 = vadd.f32 %v1057, %v1331
      %v1429 = vadd.f32 %v1060, %v1334
      %v1430 = vadd.f32 %v1063, %v1337
      %v1431 = vadd.f32 %v1066, %v1340
      %v1432 = vadd.f32 %v1069, %v1343
      %v1433 = vadd.f32 %v1072, %v1346
      %v1434 = vadd.f32 %v1075, %v1349
      %v1435 = vadd.f32 %v1078, %v1352
      %v1436 = vadd.f32 %v1081, %v1355
      %v1437 = vadd.f32 %v1084, %v1358
      %v1438 = vadd.f32 %v1087, %v1361
      %v1439 = vadd.f32 %v1090, %v1364
      %v1440 = vadd.f32 %v1093, %v1367
      %v1441 = vadd.f32 %v1096, %v1370
      %v1442 = vadd.f32 %v1099, %v1373
      %v1443 = vadd.f32 %v1102, %v1376
      %v1444 = vadd.f32 %v1105, %v1379
      %v1445 = vadd.f32 %v1108, %v1382
      %v1446 = vadd.f32 %v1111, %v1385
      %v1447 = vadd.f32 %v1114, %v1388
      %v1448 = vadd.f32 %v1117, %v1391
      %v1449 = vadd.f32 %v1120, %v1394
      %v1450 = vadd.f32 %v1123, %v1397
      %v1451 = vadd.f32 %v1126, %v1400
      %v1452 = vadd.f32 %v1129, %v1403
      %v1453 = vadd.f32 %v1132, %v1406
      %v1454 = vadd.f32 %v1135, %v1409
      %v1455 = vadd.f32 %v1138, %v1412
      %v1456 = vadd.f32 %v1141, %v1415
      %v1457 = vadd.f32 %v1144, %v1418
      %v1458 = vadd.f32 %v1147, %v1421
      %v1459 = vld [vmem:[#allocation2 + $0x12] sm:$0xff]
      %v1460 = vld [vmem:[#allocation2 + $0x1a] sm:$0xff]
      %v1461 = vld [vmem:[#allocation2 + $0x22] sm:$0xff]
      %v1462 = vld [vmem:[#allocation2 + $0x2a] sm:$0xff]
      %v1463 = vld [vmem:[#allocation2 + $0x32] sm:$0xff]
      %v1464 = vld [vmem:[#allocation2 + $0x3a] sm:$0xff]
      %v1465 = vld [vmem:[#allocation2 + $0x42] sm:$0xff]
      %v1466 = vld [vmem:[#allocation2 + $0x4a] sm:$0xff]
      %v1467 = vld [vmem:[#allocation2 + $0x52] sm:$0xff]
      %v1468 = vld [vmem:[#allocation2 + $0x5a] sm:$0xff]
      %v1469 = vld [vmem:[#allocation2 + $0x62] sm:$0xff]
      %v1470 = vld [vmem:[#allocation2 + $0x6a] sm:$0xff]
      %v1471 = vld [vmem:[#allocation2 + $0x72] sm:$0xff]
      %v1472 = vld [vmem:[#allocation2 + $0x7a] sm:$0xff]
      %v1473 = vld [vmem:[#allocation2 + $0x82] sm:$0xff]
      %v1474 = vld [vmem:[#allocation2 + $0x8a] sm:$0xff]
      %v1475 = vld [vmem:[#allocation2 + $0x92] sm:$0xff]
      %v1476 = vld [vmem:[#allocation2 + $0x9a] sm:$0xff]
      %v1477 = vld [vmem:[#allocation2 + $0xa2] sm:$0xff]
      %v1478 = vld [vmem:[#allocation2 + $0xaa] sm:$0xff]
      %v1479 = vld [vmem:[#allocation2 + $0xb2] sm:$0xff]
      %v1480 = vld [vmem:[#allocation2 + $0xba] sm:$0xff]
      %v1481 = vld [vmem:[#allocation2 + $0xc2] sm:$0xff]
      %v1482 = vld [vmem:[#allocation2 + $0xca] sm:$0xff]
      %v1483 = vld [vmem:[#allocation2 + $0xd2] sm:$0xff]
      %v1484 = vld [vmem:[#allocation2 + $0xda] sm:$0xff]
      %v1485 = vld [vmem:[#allocation2 + $0xe2] sm:$0xff]
      %v1486 = vld [vmem:[#allocation2 + $0xea] sm:$0xff]
      %v1487 = vld [vmem:[#allocation2 + $0xf2] sm:$0xff]
      %v1488 = vld [vmem:[#allocation2 + $0xfa] sm:$0xff]
      %v1489 = vld [vmem:[#allocation2 + $0x102] sm:$0xff]
      %v1490 = vld [vmem:[#allocation2 + $0x10a] sm:$0xff]
      %v1491 = vld [vmem:[#allocation2 + $0x112] sm:$0xff]
      %v1492 = vld [vmem:[#allocation2 + $0x11a] sm:$0xff]
      %v1493 = vld [vmem:[#allocation2 + $0x122] sm:$0xff]
      %v1494 = vld [vmem:[#allocation2 + $0x12a] sm:$0xff]
      %s1495 = scalar_lea.vmem %s2, 96
      %v1496 = vld [vmem:[%s1495] sm:$0xff]
      %v1497 = vld [vmem:[%s1495 + $0x8] sm:$0xff]
      %v1498 = vld [vmem:[%s1495 + $0x10] sm:$0xff]
      %v1499 = vld [vmem:[%s1495 + $0x18] sm:$0xff]
      %v1501 = vsel %vm439, %v1459, 0
      %v1504 = vsel %vm439, %v1460, 0
      %v1507 = vsel %vm439, %v1461, 0
      %v1510 = vsel %vm439, %v1462, 0
      %v1513 = vsel %vm439, %v1463, 0
      %v1516 = vsel %vm439, %v1464, 0
      %v1519 = vsel %vm439, %v1465, 0
      %v1522 = vsel %vm439, %v1466, 0
      %v1525 = vsel %vm439, %v1467, 0
      %v1528 = vsel %vm439, %v1468, 0
      %v1531 = vsel %vm439, %v1469, 0
      %v1534 = vsel %vm439, %v1470, 0
      %v1537 = vsel %vm439, %v1471, 0
      %v1540 = vsel %vm439, %v1472, 0
      %v1543 = vsel %vm439, %v1473, 0
      %v1546 = vsel %vm439, %v1474, 0
      %v1549 = vsel %vm439, %v1475, 0
      %v1552 = vsel %vm439, %v1476, 0
      %v1555 = vsel %vm439, %v1477, 0
      %v1558 = vsel %vm439, %v1478, 0
      %v1561 = vsel %vm439, %v1479, 0
      %v1564 = vsel %vm439, %v1480, 0
      %v1567 = vsel %vm439, %v1481, 0
      %v1570 = vsel %vm439, %v1482, 0
      %v1573 = vsel %vm439, %v1483, 0
      %v1576 = vsel %vm439, %v1484, 0
      %v1579 = vsel %vm439, %v1485, 0
      %v1582 = vsel %vm439, %v1486, 0
      %v1585 = vsel %vm439, %v1487, 0
      %v1588 = vsel %vm439, %v1488, 0
      %v1591 = vsel %vm439, %v1489, 0
      %v1594 = vsel %vm439, %v1490, 0
      %v1597 = vsel %vm439, %v1491, 0
      %v1600 = vsel %vm439, %v1492, 0
      %v1603 = vsel %vm439, %v1493, 0
      %v1606 = vsel %vm439, %v1494, 0
      %1608 = vmatpush.msra.mxu0 0.0
      %1609 = vmatpush.msra.mxu0 0.0
      %1610 = vmatpush.msra.mxu0 0.0
      %1611 = vmatpush.msra.mxu0 0.0
      %1612 = vmatpush.msra.mxu0 0.0
      %1613 = vmatpush.msra.mxu0 0.0
      %1614 = vmatpush.msra.mxu0 0.0
      %1615 = vmatpush.msra.mxu0 0.0
      %1616 = vmatpush.msra.mxu0 0.0
      %1617 = vmatpush.msra.mxu0 0.0
      %1618 = vmatpush.msra.mxu0 0.0
      %1619 = vmatpush.msra.mxu0 0.0
      %1620 = vmatpush.msra.mxu0 %v1499
      %1621 = vmatpush.msra.mxu0 %v1498
      %1622 = vmatpush.msra.mxu0 %v1497
      %1623 = vmatpush.msra.mxu0 %v1496
      %1624 = vmatmul.f32.gmra.mxu0 %v1501
      %v1625 = vpop.f32.mrf.mxu0
      %v1626 = vadd.f32 0.0, %v1625
      %1627 = vmatmul.f32.gmra.mxu0 %v1504
      %v1628 = vpop.f32.mrf.mxu0
      %v1629 = vadd.f32 0.0, %v1628
      %1630 = vmatmul.f32.gmra.mxu0 %v1507
      %v1631 = vpop.f32.mrf.mxu0
      %v1632 = vadd.f32 0.0, %v1631
      %1633 = vmatmul.f32.gmra.mxu0 %v1510
      %v1634 = vpop.f32.mrf.mxu0
      %v1635 = vadd.f32 0.0, %v1634
      %1636 = vmatmul.f32.gmra.mxu0 %v1513
      %v1637 = vpop.f32.mrf.mxu0
      %v1638 = vadd.f32 0.0, %v1637
      %1639 = vmatmul.f32.gmra.mxu0 %v1516
      %v1640 = vpop.f32.mrf.mxu0
      %v1641 = vadd.f32 0.0, %v1640
      %1642 = vmatmul.f32.gmra.mxu0 %v1519
      %v1643 = vpop.f32.mrf.mxu0
      %v1644 = vadd.f32 0.0, %v1643
      %1645 = vmatmul.f32.gmra.mxu0 %v1522
      %v1646 = vpop.f32.mrf.mxu0
      %v1647 = vadd.f32 0.0, %v1646
      %1648 = vmatmul.f32.gmra.mxu0 %v1525
      %v1649 = vpop.f32.mrf.mxu0
      %v1650 = vadd.f32 0.0, %v1649
      %1651 = vmatmul.f32.gmra.mxu0 %v1528
      %v1652 = vpop.f32.mrf.mxu0
      %v1653 = vadd.f32 0.0, %v1652
      %1654 = vmatmul.f32.gmra.mxu0 %v1531
      %v1655 = vpop.f32.mrf.mxu0
      %v1656 = vadd.f32 0.0, %v1655
      %1657 = vmatmul.f32.gmra.mxu0 %v1534
      %v1658 = vpop.f32.mrf.mxu0
      %v1659 = vadd.f32 0.0, %v1658
      %1660 = vmatmul.f32.gmra.mxu0 %v1537
      %v1661 = vpop.f32.mrf.mxu0
      %v1662 = vadd.f32 0.0, %v1661
      %1663 = vmatmul.f32.gmra.mxu0 %v1540
      %v1664 = vpop.f32.mrf.mxu0
      %v1665 = vadd.f32 0.0, %v1664
      %1666 = vmatmul.f32.gmra.mxu0 %v1543
      %v1667 = vpop.f32.mrf.mxu0
      %v1668 = vadd.f32 0.0, %v1667
      %1669 = vmatmul.f32.gmra.mxu0 %v1546
      %v1670 = vpop.f32.mrf.mxu0
      %v1671 = vadd.f32 0.0, %v1670
      %1672 = vmatmul.f32.gmra.mxu0 %v1549
      %v1673 = vpop.f32.mrf.mxu0
      %v1674 = vadd.f32 0.0, %v1673
      %1675 = vmatmul.f32.gmra.mxu0 %v1552
      %v1676 = vpop.f32.mrf.mxu0
      %v1677 = vadd.f32 0.0, %v1676
      %1678 = vmatmul.f32.gmra.mxu0 %v1555
      %v1679 = vpop.f32.mrf.mxu0
      %v1680 = vadd.f32 0.0, %v1679
      %1681 = vmatmul.f32.gmra.mxu0 %v1558
      %v1682 = vpop.f32.mrf.mxu0
      %v1683 = vadd.f32 0.0, %v1682
      %1684 = vmatmul.f32.gmra.mxu0 %v1561
      %v1685 = vpop.f32.mrf.mxu0
      %v1686 = vadd.f32 0.0, %v1685
      %1687 = vmatmul.f32.gmra.mxu0 %v1564
      %v1688 = vpop.f32.mrf.mxu0
      %v1689 = vadd.f32 0.0, %v1688
      %1690 = vmatmul.f32.gmra.mxu0 %v1567
      %v1691 = vpop.f32.mrf.mxu0
      %v1692 = vadd.f32 0.0, %v1691
      %1693 = vmatmul.f32.gmra.mxu0 %v1570
      %v1694 = vpop.f32.mrf.mxu0
      %v1695 = vadd.f32 0.0, %v1694
      %1696 = vmatmul.f32.gmra.mxu0 %v1573
      %v1697 = vpop.f32.mrf.mxu0
      %v1698 = vadd.f32 0.0, %v1697
      %1699 = vmatmul.f32.gmra.mxu0 %v1576
      %v1700 = vpop.f32.mrf.mxu0
      %v1701 = vadd.f32 0.0, %v1700
      %1702 = vmatmul.f32.gmra.mxu0 %v1579
      %v1703 = vpop.f32.mrf.mxu0
      %v1704 = vadd.f32 0.0, %v1703
      %1705 = vmatmul.f32.gmra.mxu0 %v1582
      %v1706 = vpop.f32.mrf.mxu0
      %v1707 = vadd.f32 0.0, %v1706
      %1708 = vmatmul.f32.gmra.mxu0 %v1585
      %v1709 = vpop.f32.mrf.mxu0
      %v1710 = vadd.f32 0.0, %v1709
      %1711 = vmatmul.f32.gmra.mxu0 %v1588
      %v1712 = vpop.f32.mrf.mxu0
      %v1713 = vadd.f32 0.0, %v1712
      %1714 = vmatmul.f32.gmra.mxu0 %v1591
      %v1715 = vpop.f32.mrf.mxu0
      %v1716 = vadd.f32 0.0, %v1715
      %1717 = vmatmul.f32.gmra.mxu0 %v1594
      %v1718 = vpop.f32.mrf.mxu0
      %v1719 = vadd.f32 0.0, %v1718
      %1720 = vmatmul.f32.gmra.mxu0 %v1597
      %v1721 = vpop.f32.mrf.mxu0
      %v1722 = vadd.f32 0.0, %v1721
      %1723 = vmatmul.f32.gmra.mxu0 %v1600
      %v1724 = vpop.f32.mrf.mxu0
      %v1725 = vadd.f32 0.0, %v1724
      %1726 = vmatmul.f32.gmra.mxu0 %v1603
      %v1727 = vpop.f32.mrf.mxu0
      %v1728 = vadd.f32 0.0, %v1727
      %1729 = vmatmul.f32.gmra.mxu0 %v1606
      %v1730 = vpop.f32.mrf.mxu0
      %v1731 = vadd.f32 0.0, %v1730
      %1732 = vdwg.mxu0
      %v1733 = vadd.f32 %v1423, %v1626
      %v1734 = vadd.f32 %v1424, %v1629
      %v1735 = vadd.f32 %v1425, %v1632
      %v1736 = vadd.f32 %v1426, %v1635
      %v1737 = vadd.f32 %v1427, %v1638
      %v1738 = vadd.f32 %v1428, %v1641
      %v1739 = vadd.f32 %v1429, %v1644
      %v1740 = vadd.f32 %v1430, %v1647
      %v1741 = vadd.f32 %v1431, %v1650
      %v1742 = vadd.f32 %v1432, %v1653
      %v1743 = vadd.f32 %v1433, %v1656
      %v1744 = vadd.f32 %v1434, %v1659
      %v1745 = vadd.f32 %v1435, %v1662
      %v1746 = vadd.f32 %v1436, %v1665
      %v1747 = vadd.f32 %v1437, %v1668
      %v1748 = vadd.f32 %v1438, %v1671
      %v1749 = vadd.f32 %v1439, %v1674
      %v1750 = vadd.f32 %v1440, %v1677
      %v1751 = vadd.f32 %v1441, %v1680
      %v1752 = vadd.f32 %v1442, %v1683
      %v1753 = vadd.f32 %v1443, %v1686
      %v1754 = vadd.f32 %v1444, %v1689
      %v1755 = vadd.f32 %v1445, %v1692
      %v1756 = vadd.f32 %v1446, %v1695
      %v1757 = vadd.f32 %v1447, %v1698
      %v1758 = vadd.f32 %v1448, %v1701
      %v1759 = vadd.f32 %v1449, %v1704
      %v1760 = vadd.f32 %v1450, %v1707
      %v1761 = vadd.f32 %v1451, %v1710
      %v1762 = vadd.f32 %v1452, %v1713
      %v1763 = vadd.f32 %v1453, %v1716
      %v1764 = vadd.f32 %v1454, %v1719
      %v1765 = vadd.f32 %v1455, %v1722
      %v1766 = vadd.f32 %v1456, %v1725
      %v1767 = vadd.f32 %v1457, %v1728
      %v1768 = vadd.f32 %v1458, %v1731
      %v1769 = vld [vmem:[#allocation2 + $0x13] sm:$0xff]
      %v1770 = vld [vmem:[#allocation2 + $0x1b] sm:$0xff]
      %v1771 = vld [vmem:[#allocation2 + $0x23] sm:$0xff]
      %v1772 = vld [vmem:[#allocation2 + $0x2b] sm:$0xff]
      %v1773 = vld [vmem:[#allocation2 + $0x33] sm:$0xff]
      %v1774 = vld [vmem:[#allocation2 + $0x3b] sm:$0xff]
      %v1775 = vld [vmem:[#allocation2 + $0x43] sm:$0xff]
      %v1776 = vld [vmem:[#allocation2 + $0x4b] sm:$0xff]
      %v1777 = vld [vmem:[#allocation2 + $0x53] sm:$0xff]
      %v1778 = vld [vmem:[#allocation2 + $0x5b] sm:$0xff]
      %v1779 = vld [vmem:[#allocation2 + $0x63] sm:$0xff]
      %v1780 = vld [vmem:[#allocation2 + $0x6b] sm:$0xff]
      %v1781 = vld [vmem:[#allocation2 + $0x73] sm:$0xff]
      %v1782 = vld [vmem:[#allocation2 + $0x7b] sm:$0xff]
      %v1783 = vld [vmem:[#allocation2 + $0x83] sm:$0xff]
      %v1784 = vld [vmem:[#allocation2 + $0x8b] sm:$0xff]
      %v1785 = vld [vmem:[#allocation2 + $0x93] sm:$0xff]
      %v1786 = vld [vmem:[#allocation2 + $0x9b] sm:$0xff]
      %v1787 = vld [vmem:[#allocation2 + $0xa3] sm:$0xff]
      %v1788 = vld [vmem:[#allocation2 + $0xab] sm:$0xff]
      %v1789 = vld [vmem:[#allocation2 + $0xb3] sm:$0xff]
      %v1790 = vld [vmem:[#allocation2 + $0xbb] sm:$0xff]
      %v1791 = vld [vmem:[#allocation2 + $0xc3] sm:$0xff]
      %v1792 = vld [vmem:[#allocation2 + $0xcb] sm:$0xff]
      %v1793 = vld [vmem:[#allocation2 + $0xd3] sm:$0xff]
      %v1794 = vld [vmem:[#allocation2 + $0xdb] sm:$0xff]
      %v1795 = vld [vmem:[#allocation2 + $0xe3] sm:$0xff]
      %v1796 = vld [vmem:[#allocation2 + $0xeb] sm:$0xff]
      %v1797 = vld [vmem:[#allocation2 + $0xf3] sm:$0xff]
      %v1798 = vld [vmem:[#allocation2 + $0xfb] sm:$0xff]
      %v1799 = vld [vmem:[#allocation2 + $0x103] sm:$0xff]
      %v1800 = vld [vmem:[#allocation2 + $0x10b] sm:$0xff]
      %v1801 = vld [vmem:[#allocation2 + $0x113] sm:$0xff]
      %v1802 = vld [vmem:[#allocation2 + $0x11b] sm:$0xff]
      %v1803 = vld [vmem:[#allocation2 + $0x123] sm:$0xff]
      %v1804 = vld [vmem:[#allocation2 + $0x12b] sm:$0xff]
      %s1805 = scalar_lea.vmem %s2, 128
      %v1806 = vld [vmem:[%s1805] sm:$0xff]
      %v1807 = vld [vmem:[%s1805 + $0x8] sm:$0xff]
      %v1808 = vld [vmem:[%s1805 + $0x10] sm:$0xff]
      %v1809 = vld [vmem:[%s1805 + $0x18] sm:$0xff]
      %v1811 = vsel %vm439, %v1769, 0
      %v1814 = vsel %vm439, %v1770, 0
      %v1817 = vsel %vm439, %v1771, 0
      %v1820 = vsel %vm439, %v1772, 0
      %v1823 = vsel %vm439, %v1773, 0
      %v1826 = vsel %vm439, %v1774, 0
      %v1829 = vsel %vm439, %v1775, 0
      %v1832 = vsel %vm439, %v1776, 0
      %v1835 = vsel %vm439, %v1777, 0
      %v1838 = vsel %vm439, %v1778, 0
      %v1841 = vsel %vm439, %v1779, 0
      %v1844 = vsel %vm439, %v1780, 0
      %v1847 = vsel %vm439, %v1781, 0
      %v1850 = vsel %vm439, %v1782, 0
      %v1853 = vsel %vm439, %v1783, 0
      %v1856 = vsel %vm439, %v1784, 0
      %v1859 = vsel %vm439, %v1785, 0
      %v1862 = vsel %vm439, %v1786, 0
      %v1865 = vsel %vm439, %v1787, 0
      %v1868 = vsel %vm439, %v1788, 0
      %v1871 = vsel %vm439, %v1789, 0
      %v1874 = vsel %vm439, %v1790, 0
      %v1877 = vsel %vm439, %v1791, 0
      %v1880 = vsel %vm439, %v1792, 0
      %v1883 = vsel %vm439, %v1793, 0
      %v1886 = vsel %vm439, %v1794, 0
      %v1889 = vsel %vm439, %v1795, 0
      %v1892 = vsel %vm439, %v1796, 0
      %v1895 = vsel %vm439, %v1797, 0
      %v1898 = vsel %vm439, %v1798, 0
      %v1901 = vsel %vm439, %v1799, 0
      %v1904 = vsel %vm439, %v1800, 0
      %v1907 = vsel %vm439, %v1801, 0
      %v1910 = vsel %vm439, %v1802, 0
      %v1913 = vsel %vm439, %v1803, 0
      %v1916 = vsel %vm439, %v1804, 0
      %1918 = vmatpush.msra.mxu0 0.0
      %1919 = vmatpush.msra.mxu0 0.0
      %1920 = vmatpush.msra.mxu0 0.0
      %1921 = vmatpush.msra.mxu0 0.0
      %1922 = vmatpush.msra.mxu0 0.0
      %1923 = vmatpush.msra.mxu0 0.0
      %1924 = vmatpush.msra.mxu0 0.0
      %1925 = vmatpush.msra.mxu0 0.0
      %1926 = vmatpush.msra.mxu0 0.0
      %1927 = vmatpush.msra.mxu0 0.0
      %1928 = vmatpush.msra.mxu0 0.0
      %1929 = vmatpush.msra.mxu0 0.0
      %1930 = vmatpush.msra.mxu0 %v1809
      %1931 = vmatpush.msra.mxu0 %v1808
      %1932 = vmatpush.msra.mxu0 %v1807
      %1933 = vmatpush.msra.mxu0 %v1806
      %1934 = vmatmul.f32.gmra.mxu0 %v1811
      %v1935 = vpop.f32.mrf.mxu0
      %v1936 = vadd.f32 0.0, %v1935
      %1937 = vmatmul.f32.gmra.mxu0 %v1814
      %v1938 = vpop.f32.mrf.mxu0
      %v1939 = vadd.f32 0.0, %v1938
      %1940 = vmatmul.f32.gmra.mxu0 %v1817
      %v1941 = vpop.f32.mrf.mxu0
      %v1942 = vadd.f32 0.0, %v1941
      %1943 = vmatmul.f32.gmra.mxu0 %v1820
      %v1944 = vpop.f32.mrf.mxu0
      %v1945 = vadd.f32 0.0, %v1944
      %1946 = vmatmul.f32.gmra.mxu0 %v1823
      %v1947 = vpop.f32.mrf.mxu0
      %v1948 = vadd.f32 0.0, %v1947
      %1949 = vmatmul.f32.gmra.mxu0 %v1826
      %v1950 = vpop.f32.mrf.mxu0
      %v1951 = vadd.f32 0.0, %v1950
      %1952 = vmatmul.f32.gmra.mxu0 %v1829
      %v1953 = vpop.f32.mrf.mxu0
      %v1954 = vadd.f32 0.0, %v1953
      %1955 = vmatmul.f32.gmra.mxu0 %v1832
      %v1956 = vpop.f32.mrf.mxu0
      %v1957 = vadd.f32 0.0, %v1956
      %1958 = vmatmul.f32.gmra.mxu0 %v1835
      %v1959 = vpop.f32.mrf.mxu0
      %v1960 = vadd.f32 0.0, %v1959
      %1961 = vmatmul.f32.gmra.mxu0 %v1838
      %v1962 = vpop.f32.mrf.mxu0
      %v1963 = vadd.f32 0.0, %v1962
      %1964 = vmatmul.f32.gmra.mxu0 %v1841
      %v1965 = vpop.f32.mrf.mxu0
      %v1966 = vadd.f32 0.0, %v1965
      %1967 = vmatmul.f32.gmra.mxu0 %v1844
      %v1968 = vpop.f32.mrf.mxu0
      %v1969 = vadd.f32 0.0, %v1968
      %1970 = vmatmul.f32.gmra.mxu0 %v1847
      %v1971 = vpop.f32.mrf.mxu0
      %v1972 = vadd.f32 0.0, %v1971
      %1973 = vmatmul.f32.gmra.mxu0 %v1850
      %v1974 = vpop.f32.mrf.mxu0
      %v1975 = vadd.f32 0.0, %v1974
      %1976 = vmatmul.f32.gmra.mxu0 %v1853
      %v1977 = vpop.f32.mrf.mxu0
      %v1978 = vadd.f32 0.0, %v1977
      %1979 = vmatmul.f32.gmra.mxu0 %v1856
      %v1980 = vpop.f32.mrf.mxu0
      %v1981 = vadd.f32 0.0, %v1980
      %1982 = vmatmul.f32.gmra.mxu0 %v1859
      %v1983 = vpop.f32.mrf.mxu0
      %v1984 = vadd.f32 0.0, %v1983
      %1985 = vmatmul.f32.gmra.mxu0 %v1862
      %v1986 = vpop.f32.mrf.mxu0
      %v1987 = vadd.f32 0.0, %v1986
      %1988 = vmatmul.f32.gmra.mxu0 %v1865
      %v1989 = vpop.f32.mrf.mxu0
      %v1990 = vadd.f32 0.0, %v1989
      %1991 = vmatmul.f32.gmra.mxu0 %v1868
      %v1992 = vpop.f32.mrf.mxu0
      %v1993 = vadd.f32 0.0, %v1992
      %1994 = vmatmul.f32.gmra.mxu0 %v1871
      %v1995 = vpop.f32.mrf.mxu0
      %v1996 = vadd.f32 0.0, %v1995
      %1997 = vmatmul.f32.gmra.mxu0 %v1874
      %v1998 = vpop.f32.mrf.mxu0
      %v1999 = vadd.f32 0.0, %v1998
      %2000 = vmatmul.f32.gmra.mxu0 %v1877
      %v2001 = vpop.f32.mrf.mxu0
      %v2002 = vadd.f32 0.0, %v2001
      %2003 = vmatmul.f32.gmra.mxu0 %v1880
      %v2004 = vpop.f32.mrf.mxu0
      %v2005 = vadd.f32 0.0, %v2004
      %2006 = vmatmul.f32.gmra.mxu0 %v1883
      %v2007 = vpop.f32.mrf.mxu0
      %v2008 = vadd.f32 0.0, %v2007
      %2009 = vmatmul.f32.gmra.mxu0 %v1886
      %v2010 = vpop.f32.mrf.mxu0
      %v2011 = vadd.f32 0.0, %v2010
      %2012 = vmatmul.f32.gmra.mxu0 %v1889
      %v2013 = vpop.f32.mrf.mxu0
      %v2014 = vadd.f32 0.0, %v2013
      %2015 = vmatmul.f32.gmra.mxu0 %v1892
      %v2016 = vpop.f32.mrf.mxu0
      %v2017 = vadd.f32 0.0, %v2016
      %2018 = vmatmul.f32.gmra.mxu0 %v1895
      %v2019 = vpop.f32.mrf.mxu0
      %v2020 = vadd.f32 0.0, %v2019
      %2021 = vmatmul.f32.gmra.mxu0 %v1898
      %v2022 = vpop.f32.mrf.mxu0
      %v2023 = vadd.f32 0.0, %v2022
      %2024 = vmatmul.f32.gmra.mxu0 %v1901
      %v2025 = vpop.f32.mrf.mxu0
      %v2026 = vadd.f32 0.0, %v2025
      %2027 = vmatmul.f32.gmra.mxu0 %v1904
      %v2028 = vpop.f32.mrf.mxu0
      %v2029 = vadd.f32 0.0, %v2028
      %2030 = vmatmul.f32.gmra.mxu0 %v1907
      %v2031 = vpop.f32.mrf.mxu0
      %v2032 = vadd.f32 0.0, %v2031
      %2033 = vmatmul.f32.gmra.mxu0 %v1910
      %v2034 = vpop.f32.mrf.mxu0
      %v2035 = vadd.f32 0.0, %v2034
      %2036 = vmatmul.f32.gmra.mxu0 %v1913
      %v2037 = vpop.f32.mrf.mxu0
      %v2038 = vadd.f32 0.0, %v2037
      %2039 = vmatmul.f32.gmra.mxu0 %v1916
      %v2040 = vpop.f32.mrf.mxu0
      %v2041 = vadd.f32 0.0, %v2040
      %2042 = vdwg.mxu0
      %v2043 = vadd.f32 %v1733, %v1936
      %v2044 = vadd.f32 %v1734, %v1939
      %v2045 = vadd.f32 %v1735, %v1942
      %v2046 = vadd.f32 %v1736, %v1945
      %v2047 = vadd.f32 %v1737, %v1948
      %v2048 = vadd.f32 %v1738, %v1951
      %v2049 = vadd.f32 %v1739, %v1954
      %v2050 = vadd.f32 %v1740, %v1957
      %v2051 = vadd.f32 %v1741, %v1960
      %v2052 = vadd.f32 %v1742, %v1963
      %v2053 = vadd.f32 %v1743, %v1966
      %v2054 = vadd.f32 %v1744, %v1969
      %v2055 = vadd.f32 %v1745, %v1972
      %v2056 = vadd.f32 %v1746, %v1975
      %v2057 = vadd.f32 %v1747, %v1978
      %v2058 = vadd.f32 %v1748, %v1981
      %v2059 = vadd.f32 %v1749, %v1984
      %v2060 = vadd.f32 %v1750, %v1987
      %v2061 = vadd.f32 %v1751, %v1990
      %v2062 = vadd.f32 %v1752, %v1993
      %v2063 = vadd.f32 %v1753, %v1996
      %v2064 = vadd.f32 %v1754, %v1999
      %v2065 = vadd.f32 %v1755, %v2002
      %v2066 = vadd.f32 %v1756, %v2005
      %v2067 = vadd.f32 %v1757, %v2008
      %v2068 = vadd.f32 %v1758, %v2011
      %v2069 = vadd.f32 %v1759, %v2014
      %v2070 = vadd.f32 %v1760, %v2017
      %v2071 = vadd.f32 %v1761, %v2020
      %v2072 = vadd.f32 %v1762, %v2023
      %v2073 = vadd.f32 %v1763, %v2026
      %v2074 = vadd.f32 %v1764, %v2029
      %v2075 = vadd.f32 %v1765, %v2032
      %v2076 = vadd.f32 %v1766, %v2035
      %v2077 = vadd.f32 %v1767, %v2038
      %v2078 = vadd.f32 %v1768, %v2041
      %v2079 = vld [vmem:[#allocation2 + $0x14] sm:$0xff]
      %v2080 = vld [vmem:[#allocation2 + $0x1c] sm:$0xff]
      %v2081 = vld [vmem:[#allocation2 + $0x24] sm:$0xff]
      %v2082 = vld [vmem:[#allocation2 + $0x2c] sm:$0xff]
      %v2083 = vld [vmem:[#allocation2 + $0x34] sm:$0xff]
      %v2084 = vld [vmem:[#allocation2 + $0x3c] sm:$0xff]
      %v2085 = vld [vmem:[#allocation2 + $0x44] sm:$0xff]
      %v2086 = vld [vmem:[#allocation2 + $0x4c] sm:$0xff]
      %v2087 = vld [vmem:[#allocation2 + $0x54] sm:$0xff]
      %v2088 = vld [vmem:[#allocation2 + $0x5c] sm:$0xff]
      %v2089 = vld [vmem:[#allocation2 + $0x64] sm:$0xff]
      %v2090 = vld [vmem:[#allocation2 + $0x6c] sm:$0xff]
      %v2091 = vld [vmem:[#allocation2 + $0x74] sm:$0xff]
      %v2092 = vld [vmem:[#allocation2 + $0x7c] sm:$0xff]
      %v2093 = vld [vmem:[#allocation2 + $0x84] sm:$0xff]
      %v2094 = vld [vmem:[#allocation2 + $0x8c] sm:$0xff]
      %v2095 = vld [vmem:[#allocation2 + $0x94] sm:$0xff]
      %v2096 = vld [vmem:[#allocation2 + $0x9c] sm:$0xff]
      %v2097 = vld [vmem:[#allocation2 + $0xa4] sm:$0xff]
      %v2098 = vld [vmem:[#allocation2 + $0xac] sm:$0xff]
      %v2099 = vld [vmem:[#allocation2 + $0xb4] sm:$0xff]
      %v2100 = vld [vmem:[#allocation2 + $0xbc] sm:$0xff]
      %v2101 = vld [vmem:[#allocation2 + $0xc4] sm:$0xff]
      %v2102 = vld [vmem:[#allocation2 + $0xcc] sm:$0xff]
      %v2103 = vld [vmem:[#allocation2 + $0xd4] sm:$0xff]
      %v2104 = vld [vmem:[#allocation2 + $0xdc] sm:$0xff]
      %v2105 = vld [vmem:[#allocation2 + $0xe4] sm:$0xff]
      %v2106 = vld [vmem:[#allocation2 + $0xec] sm:$0xff]
      %v2107 = vld [vmem:[#allocation2 + $0xf4] sm:$0xff]
      %v2108 = vld [vmem:[#allocation2 + $0xfc] sm:$0xff]
      %v2109 = vld [vmem:[#allocation2 + $0x104] sm:$0xff]
      %v2110 = vld [vmem:[#allocation2 + $0x10c] sm:$0xff]
      %v2111 = vld [vmem:[#allocation2 + $0x114] sm:$0xff]
      %v2112 = vld [vmem:[#allocation2 + $0x11c] sm:$0xff]
      %v2113 = vld [vmem:[#allocation2 + $0x124] sm:$0xff]
      %v2114 = vld [vmem:[#allocation2 + $0x12c] sm:$0xff]
      %s2115 = scalar_lea.vmem %s2, 160
      %v2116 = vld [vmem:[%s2115] sm:$0xff]
      %v2117 = vld [vmem:[%s2115 + $0x8] sm:$0xff]
      %v2118 = vld [vmem:[%s2115 + $0x10] sm:$0xff]
      %v2119 = vld [vmem:[%s2115 + $0x18] sm:$0xff]
      %v2121 = vsel %vm439, %v2079, 0
      %v2124 = vsel %vm439, %v2080, 0
      %v2127 = vsel %vm439, %v2081, 0
      %v2130 = vsel %vm439, %v2082, 0
      %v2133 = vsel %vm439, %v2083, 0
      %v2136 = vsel %vm439, %v2084, 0
      %v2139 = vsel %vm439, %v2085, 0
      %v2142 = vsel %vm439, %v2086, 0
      %v2145 = vsel %vm439, %v2087, 0
      %v2148 = vsel %vm439, %v2088, 0
      %v2151 = vsel %vm439, %v2089, 0
      %v2154 = vsel %vm439, %v2090, 0
      %v2157 = vsel %vm439, %v2091, 0
      %v2160 = vsel %vm439, %v2092, 0
      %v2163 = vsel %vm439, %v2093, 0
      %v2166 = vsel %vm439, %v2094, 0
      %v2169 = vsel %vm439, %v2095, 0
      %v2172 = vsel %vm439, %v2096, 0
      %v2175 = vsel %vm439, %v2097, 0
      %v2178 = vsel %vm439, %v2098, 0
      %v2181 = vsel %vm439, %v2099, 0
      %v2184 = vsel %vm439, %v2100, 0
      %v2187 = vsel %vm439, %v2101, 0
      %v2190 = vsel %vm439, %v2102, 0
      %v2193 = vsel %vm439, %v2103, 0
      %v2196 = vsel %vm439, %v2104, 0
      %v2199 = vsel %vm439, %v2105, 0
      %v2202 = vsel %vm439, %v2106, 0
      %v2205 = vsel %vm439, %v2107, 0
      %v2208 = vsel %vm439, %v2108, 0
      %v2211 = vsel %vm439, %v2109, 0
      %v2214 = vsel %vm439, %v2110, 0
      %v2217 = vsel %vm439, %v2111, 0
      %v2220 = vsel %vm439, %v2112, 0
      %v2223 = vsel %vm439, %v2113, 0
      %v2226 = vsel %vm439, %v2114, 0
      %2228 = vmatpush.msra.mxu0 0.0
      %2229 = vmatpush.msra.mxu0 0.0
      %2230 = vmatpush.msra.mxu0 0.0
      %2231 = vmatpush.msra.mxu0 0.0
      %2232 = vmatpush.msra.mxu0 0.0
      %2233 = vmatpush.msra.mxu0 0.0
      %2234 = vmatpush.msra.mxu0 0.0
      %2235 = vmatpush.msra.mxu0 0.0
      %2236 = vmatpush.msra.mxu0 0.0
      %2237 = vmatpush.msra.mxu0 0.0
      %2238 = vmatpush.msra.mxu0 0.0
      %2239 = vmatpush.msra.mxu0 0.0
      %2240 = vmatpush.msra.mxu0 %v2119
      %2241 = vmatpush.msra.mxu0 %v2118
      %2242 = vmatpush.msra.mxu0 %v2117
      %2243 = vmatpush.msra.mxu0 %v2116
      %2244 = vmatmul.f32.gmra.mxu0 %v2121
      %v2245 = vpop.f32.mrf.mxu0
      %v2246 = vadd.f32 0.0, %v2245
      %2247 = vmatmul.f32.gmra.mxu0 %v2124
      %v2248 = vpop.f32.mrf.mxu0
      %v2249 = vadd.f32 0.0, %v2248
      %2250 = vmatmul.f32.gmra.mxu0 %v2127
      %v2251 = vpop.f32.mrf.mxu0
      %v2252 = vadd.f32 0.0, %v2251
      %2253 = vmatmul.f32.gmra.mxu0 %v2130
      %v2254 = vpop.f32.mrf.mxu0
      %v2255 = vadd.f32 0.0, %v2254
      %2256 = vmatmul.f32.gmra.mxu0 %v2133
      %v2257 = vpop.f32.mrf.mxu0
      %v2258 = vadd.f32 0.0, %v2257
      %2259 = vmatmul.f32.gmra.mxu0 %v2136
      %v2260 = vpop.f32.mrf.mxu0
      %v2261 = vadd.f32 0.0, %v2260
      %2262 = vmatmul.f32.gmra.mxu0 %v2139
      %v2263 = vpop.f32.mrf.mxu0
      %v2264 = vadd.f32 0.0, %v2263
      %2265 = vmatmul.f32.gmra.mxu0 %v2142
      %v2266 = vpop.f32.mrf.mxu0
      %v2267 = vadd.f32 0.0, %v2266
      %2268 = vmatmul.f32.gmra.mxu0 %v2145
      %v2269 = vpop.f32.mrf.mxu0
      %v2270 = vadd.f32 0.0, %v2269
      %2271 = vmatmul.f32.gmra.mxu0 %v2148
      %v2272 = vpop.f32.mrf.mxu0
      %v2273 = vadd.f32 0.0, %v2272
      %2274 = vmatmul.f32.gmra.mxu0 %v2151
      %v2275 = vpop.f32.mrf.mxu0
      %v2276 = vadd.f32 0.0, %v2275
      %2277 = vmatmul.f32.gmra.mxu0 %v2154
      %v2278 = vpop.f32.mrf.mxu0
      %v2279 = vadd.f32 0.0, %v2278
      %2280 = vmatmul.f32.gmra.mxu0 %v2157
      %v2281 = vpop.f32.mrf.mxu0
      %v2282 = vadd.f32 0.0, %v2281
      %2283 = vmatmul.f32.gmra.mxu0 %v2160
      %v2284 = vpop.f32.mrf.mxu0
      %v2285 = vadd.f32 0.0, %v2284
      %2286 = vmatmul.f32.gmra.mxu0 %v2163
      %v2287 = vpop.f32.mrf.mxu0
      %v2288 = vadd.f32 0.0, %v2287
      %2289 = vmatmul.f32.gmra.mxu0 %v2166
      %v2290 = vpop.f32.mrf.mxu0
      %v2291 = vadd.f32 0.0, %v2290
      %2292 = vmatmul.f32.gmra.mxu0 %v2169
      %v2293 = vpop.f32.mrf.mxu0
      %v2294 = vadd.f32 0.0, %v2293
      %2295 = vmatmul.f32.gmra.mxu0 %v2172
      %v2296 = vpop.f32.mrf.mxu0
      %v2297 = vadd.f32 0.0, %v2296
      %2298 = vmatmul.f32.gmra.mxu0 %v2175
      %v2299 = vpop.f32.mrf.mxu0
      %v2300 = vadd.f32 0.0, %v2299
      %2301 = vmatmul.f32.gmra.mxu0 %v2178
      %v2302 = vpop.f32.mrf.mxu0
      %v2303 = vadd.f32 0.0, %v2302
      %2304 = vmatmul.f32.gmra.mxu0 %v2181
      %v2305 = vpop.f32.mrf.mxu0
      %v2306 = vadd.f32 0.0, %v2305
      %2307 = vmatmul.f32.gmra.mxu0 %v2184
      %v2308 = vpop.f32.mrf.mxu0
      %v2309 = vadd.f32 0.0, %v2308
      %2310 = vmatmul.f32.gmra.mxu0 %v2187
      %v2311 = vpop.f32.mrf.mxu0
      %v2312 = vadd.f32 0.0, %v2311
      %2313 = vmatmul.f32.gmra.mxu0 %v2190
      %v2314 = vpop.f32.mrf.mxu0
      %v2315 = vadd.f32 0.0, %v2314
      %2316 = vmatmul.f32.gmra.mxu0 %v2193
      %v2317 = vpop.f32.mrf.mxu0
      %v2318 = vadd.f32 0.0, %v2317
      %2319 = vmatmul.f32.gmra.mxu0 %v2196
      %v2320 = vpop.f32.mrf.mxu0
      %v2321 = vadd.f32 0.0, %v2320
      %2322 = vmatmul.f32.gmra.mxu0 %v2199
      %v2323 = vpop.f32.mrf.mxu0
      %v2324 = vadd.f32 0.0, %v2323
      %2325 = vmatmul.f32.gmra.mxu0 %v2202
      %v2326 = vpop.f32.mrf.mxu0
      %v2327 = vadd.f32 0.0, %v2326
      %2328 = vmatmul.f32.gmra.mxu0 %v2205
      %v2329 = vpop.f32.mrf.mxu0
      %v2330 = vadd.f32 0.0, %v2329
      %2331 = vmatmul.f32.gmra.mxu0 %v2208
      %v2332 = vpop.f32.mrf.mxu0
      %v2333 = vadd.f32 0.0, %v2332
      %2334 = vmatmul.f32.gmra.mxu0 %v2211
      %v2335 = vpop.f32.mrf.mxu0
      %v2336 = vadd.f32 0.0, %v2335
      %2337 = vmatmul.f32.gmra.mxu0 %v2214
      %v2338 = vpop.f32.mrf.mxu0
      %v2339 = vadd.f32 0.0, %v2338
      %2340 = vmatmul.f32.gmra.mxu0 %v2217
      %v2341 = vpop.f32.mrf.mxu0
      %v2342 = vadd.f32 0.0, %v2341
      %2343 = vmatmul.f32.gmra.mxu0 %v2220
      %v2344 = vpop.f32.mrf.mxu0
      %v2345 = vadd.f32 0.0, %v2344
      %2346 = vmatmul.f32.gmra.mxu0 %v2223
      %v2347 = vpop.f32.mrf.mxu0
      %v2348 = vadd.f32 0.0, %v2347
      %2349 = vmatmul.f32.gmra.mxu0 %v2226
      %v2350 = vpop.f32.mrf.mxu0
      %v2351 = vadd.f32 0.0, %v2350
      %2352 = vdwg.mxu0
      %v2353 = vadd.f32 %v2043, %v2246
      %v2354 = vadd.f32 %v2044, %v2249
      %v2355 = vadd.f32 %v2045, %v2252
      %v2356 = vadd.f32 %v2046, %v2255
      %v2357 = vadd.f32 %v2047, %v2258
      %v2358 = vadd.f32 %v2048, %v2261
      %v2359 = vadd.f32 %v2049, %v2264
      %v2360 = vadd.f32 %v2050, %v2267
      %v2361 = vadd.f32 %v2051, %v2270
      %v2362 = vadd.f32 %v2052, %v2273
      %v2363 = vadd.f32 %v2053, %v2276
      %v2364 = vadd.f32 %v2054, %v2279
      %v2365 = vadd.f32 %v2055, %v2282
      %v2366 = vadd.f32 %v2056, %v2285
      %v2367 = vadd.f32 %v2057, %v2288
      %v2368 = vadd.f32 %v2058, %v2291
      %v2369 = vadd.f32 %v2059, %v2294
      %v2370 = vadd.f32 %v2060, %v2297
      %v2371 = vadd.f32 %v2061, %v2300
      %v2372 = vadd.f32 %v2062, %v2303
      %v2373 = vadd.f32 %v2063, %v2306
      %v2374 = vadd.f32 %v2064, %v2309
      %v2375 = vadd.f32 %v2065, %v2312
      %v2376 = vadd.f32 %v2066, %v2315
      %v2377 = vadd.f32 %v2067, %v2318
      %v2378 = vadd.f32 %v2068, %v2321
      %v2379 = vadd.f32 %v2069, %v2324
      %v2380 = vadd.f32 %v2070, %v2327
      %v2381 = vadd.f32 %v2071, %v2330
      %v2382 = vadd.f32 %v2072, %v2333
      %v2383 = vadd.f32 %v2073, %v2336
      %v2384 = vadd.f32 %v2074, %v2339
      %v2385 = vadd.f32 %v2075, %v2342
      %v2386 = vadd.f32 %v2076, %v2345
      %v2387 = vadd.f32 %v2077, %v2348
      %v2388 = vadd.f32 %v2078, %v2351
      %v2389 = vld [vmem:[#allocation2 + $0x24] sm:$0xff]
      %v2390 = vld [vmem:[#allocation2 + $0x2c] sm:$0xff]
      %v2391 = vld [vmem:[#allocation2 + $0x34] sm:$0xff]
      %v2392 = vld [vmem:[#allocation2 + $0x3c] sm:$0xff]
      %v2393 = vld [vmem:[#allocation2 + $0x44] sm:$0xff]
      %v2394 = vld [vmem:[#allocation2 + $0x4c] sm:$0xff]
      %v2395 = vld [vmem:[#allocation2 + $0x54] sm:$0xff]
      %v2396 = vld [vmem:[#allocation2 + $0x5c] sm:$0xff]
      %v2397 = vld [vmem:[#allocation2 + $0x64] sm:$0xff]
      %v2398 = vld [vmem:[#allocation2 + $0x6c] sm:$0xff]
      %v2399 = vld [vmem:[#allocation2 + $0x74] sm:$0xff]
      %v2400 = vld [vmem:[#allocation2 + $0x7c] sm:$0xff]
      %v2401 = vld [vmem:[#allocation2 + $0x84] sm:$0xff]
      %v2402 = vld [vmem:[#allocation2 + $0x8c] sm:$0xff]
      %v2403 = vld [vmem:[#allocation2 + $0x94] sm:$0xff]
      %v2404 = vld [vmem:[#allocation2 + $0x9c] sm:$0xff]
      %v2405 = vld [vmem:[#allocation2 + $0xa4] sm:$0xff]
      %v2406 = vld [vmem:[#allocation2 + $0xac] sm:$0xff]
      %v2407 = vld [vmem:[#allocation2 + $0xb4] sm:$0xff]
      %v2408 = vld [vmem:[#allocation2 + $0xbc] sm:$0xff]
      %v2409 = vld [vmem:[#allocation2 + $0xc4] sm:$0xff]
      %v2410 = vld [vmem:[#allocation2 + $0xcc] sm:$0xff]
      %v2411 = vld [vmem:[#allocation2 + $0xd4] sm:$0xff]
      %v2412 = vld [vmem:[#allocation2 + $0xdc] sm:$0xff]
      %v2413 = vld [vmem:[#allocation2 + $0xe4] sm:$0xff]
      %v2414 = vld [vmem:[#allocation2 + $0xec] sm:$0xff]
      %v2415 = vld [vmem:[#allocation2 + $0xf4] sm:$0xff]
      %v2416 = vld [vmem:[#allocation2 + $0xfc] sm:$0xff]
      %v2417 = vld [vmem:[#allocation2 + $0x104] sm:$0xff]
      %v2418 = vld [vmem:[#allocation2 + $0x10c] sm:$0xff]
      %v2419 = vld [vmem:[#allocation2 + $0x114] sm:$0xff]
      %v2420 = vld [vmem:[#allocation2 + $0x11c] sm:$0xff]
      %v2421 = vld [vmem:[#allocation2 + $0x124] sm:$0xff]
      %v2422 = vld [vmem:[#allocation2 + $0x12c] sm:$0xff]
      %v2423 = vld [vmem:[#allocation2 + $0x134] sm:$0xff]
      %v2424 = vld [vmem:[#allocation2 + $0x13c] sm:$0xff]
      %s2425 = scalar_lea.vmem %s2, 192
      %v2426 = vld [vmem:[%s2425] sm:$0xff]
      %v2427 = vld [vmem:[%s2425 + $0x8] sm:$0xff]
      %v2428 = vld [vmem:[%s2425 + $0x10] sm:$0xff]
      %v2429 = vld [vmem:[%s2425 + $0x18] sm:$0xff]
      %v2431 = vsel %vm439, %v2389, 0
      %v2434 = vsel %vm439, %v2390, 0
      %v2437 = vsel %vm439, %v2391, 0
      %v2440 = vsel %vm439, %v2392, 0
      %v2443 = vsel %vm439, %v2393, 0
      %v2446 = vsel %vm439, %v2394, 0
      %v2449 = vsel %vm439, %v2395, 0
      %v2452 = vsel %vm439, %v2396, 0
      %v2455 = vsel %vm439, %v2397, 0
      %v2458 = vsel %vm439, %v2398, 0
      %v2461 = vsel %vm439, %v2399, 0
      %v2464 = vsel %vm439, %v2400, 0
      %v2467 = vsel %vm439, %v2401, 0
      %v2470 = vsel %vm439, %v2402, 0
      %v2473 = vsel %vm439, %v2403, 0
      %v2476 = vsel %vm439, %v2404, 0
      %v2479 = vsel %vm439, %v2405, 0
      %v2482 = vsel %vm439, %v2406, 0
      %v2485 = vsel %vm439, %v2407, 0
      %v2488 = vsel %vm439, %v2408, 0
      %v2491 = vsel %vm439, %v2409, 0
      %v2494 = vsel %vm439, %v2410, 0
      %v2497 = vsel %vm439, %v2411, 0
      %v2500 = vsel %vm439, %v2412, 0
      %v2503 = vsel %vm439, %v2413, 0
      %v2506 = vsel %vm439, %v2414, 0
      %v2509 = vsel %vm439, %v2415, 0
      %v2512 = vsel %vm439, %v2416, 0
      %v2515 = vsel %vm439, %v2417, 0
      %v2518 = vsel %vm439, %v2418, 0
      %v2521 = vsel %vm439, %v2419, 0
      %v2524 = vsel %vm439, %v2420, 0
      %v2527 = vsel %vm439, %v2421, 0
      %v2530 = vsel %vm439, %v2422, 0
      %v2533 = vsel %vm439, %v2423, 0
      %v2536 = vsel %vm439, %v2424, 0
      %2538 = vmatpush.msra.mxu0 0.0
      %2539 = vmatpush.msra.mxu0 0.0
      %2540 = vmatpush.msra.mxu0 0.0
      %2541 = vmatpush.msra.mxu0 0.0
      %2542 = vmatpush.msra.mxu0 0.0
      %2543 = vmatpush.msra.mxu0 0.0
      %2544 = vmatpush.msra.mxu0 0.0
      %2545 = vmatpush.msra.mxu0 0.0
      %2546 = vmatpush.msra.mxu0 0.0
      %2547 = vmatpush.msra.mxu0 0.0
      %2548 = vmatpush.msra.mxu0 0.0
      %2549 = vmatpush.msra.mxu0 0.0
      %2550 = vmatpush.msra.mxu0 %v2429
      %2551 = vmatpush.msra.mxu0 %v2428
      %2552 = vmatpush.msra.mxu0 %v2427
      %2553 = vmatpush.msra.mxu0 %v2426
      %2554 = vmatmul.f32.gmra.mxu0 %v2431
      %v2555 = vpop.f32.mrf.mxu0
      %v2556 = vadd.f32 0.0, %v2555
      %2557 = vmatmul.f32.gmra.mxu0 %v2434
      %v2558 = vpop.f32.mrf.mxu0
      %v2559 = vadd.f32 0.0, %v2558
      %2560 = vmatmul.f32.gmra.mxu0 %v2437
      %v2561 = vpop.f32.mrf.mxu0
      %v2562 = vadd.f32 0.0, %v2561
      %2563 = vmatmul.f32.gmra.mxu0 %v2440
      %v2564 = vpop.f32.mrf.mxu0
      %v2565 = vadd.f32 0.0, %v2564
      %2566 = vmatmul.f32.gmra.mxu0 %v2443
      %v2567 = vpop.f32.mrf.mxu0
      %v2568 = vadd.f32 0.0, %v2567
      %2569 = vmatmul.f32.gmra.mxu0 %v2446
      %v2570 = vpop.f32.mrf.mxu0
      %v2571 = vadd.f32 0.0, %v2570
      %2572 = vmatmul.f32.gmra.mxu0 %v2449
      %v2573 = vpop.f32.mrf.mxu0
      %v2574 = vadd.f32 0.0, %v2573
      %2575 = vmatmul.f32.gmra.mxu0 %v2452
      %v2576 = vpop.f32.mrf.mxu0
      %v2577 = vadd.f32 0.0, %v2576
      %2578 = vmatmul.f32.gmra.mxu0 %v2455
      %v2579 = vpop.f32.mrf.mxu0
      %v2580 = vadd.f32 0.0, %v2579
      %2581 = vmatmul.f32.gmra.mxu0 %v2458
      %v2582 = vpop.f32.mrf.mxu0
      %v2583 = vadd.f32 0.0, %v2582
      %2584 = vmatmul.f32.gmra.mxu0 %v2461
      %v2585 = vpop.f32.mrf.mxu0
      %v2586 = vadd.f32 0.0, %v2585
      %2587 = vmatmul.f32.gmra.mxu0 %v2464
      %v2588 = vpop.f32.mrf.mxu0
      %v2589 = vadd.f32 0.0, %v2588
      %2590 = vmatmul.f32.gmra.mxu0 %v2467
      %v2591 = vpop.f32.mrf.mxu0
      %v2592 = vadd.f32 0.0, %v2591
      %2593 = vmatmul.f32.gmra.mxu0 %v2470
      %v2594 = vpop.f32.mrf.mxu0
      %v2595 = vadd.f32 0.0, %v2594
      %2596 = vmatmul.f32.gmra.mxu0 %v2473
      %v2597 = vpop.f32.mrf.mxu0
      %v2598 = vadd.f32 0.0, %v2597
      %2599 = vmatmul.f32.gmra.mxu0 %v2476
      %v2600 = vpop.f32.mrf.mxu0
      %v2601 = vadd.f32 0.0, %v2600
      %2602 = vmatmul.f32.gmra.mxu0 %v2479
      %v2603 = vpop.f32.mrf.mxu0
      %v2604 = vadd.f32 0.0, %v2603
      %2605 = vmatmul.f32.gmra.mxu0 %v2482
      %v2606 = vpop.f32.mrf.mxu0
      %v2607 = vadd.f32 0.0, %v2606
      %2608 = vmatmul.f32.gmra.mxu0 %v2485
      %v2609 = vpop.f32.mrf.mxu0
      %v2610 = vadd.f32 0.0, %v2609
      %2611 = vmatmul.f32.gmra.mxu0 %v2488
      %v2612 = vpop.f32.mrf.mxu0
      %v2613 = vadd.f32 0.0, %v2612
      %2614 = vmatmul.f32.gmra.mxu0 %v2491
      %v2615 = vpop.f32.mrf.mxu0
      %v2616 = vadd.f32 0.0, %v2615
      %2617 = vmatmul.f32.gmra.mxu0 %v2494
      %v2618 = vpop.f32.mrf.mxu0
      %v2619 = vadd.f32 0.0, %v2618
      %2620 = vmatmul.f32.gmra.mxu0 %v2497
      %v2621 = vpop.f32.mrf.mxu0
      %v2622 = vadd.f32 0.0, %v2621
      %2623 = vmatmul.f32.gmra.mxu0 %v2500
      %v2624 = vpop.f32.mrf.mxu0
      %v2625 = vadd.f32 0.0, %v2624
      %2626 = vmatmul.f32.gmra.mxu0 %v2503
      %v2627 = vpop.f32.mrf.mxu0
      %v2628 = vadd.f32 0.0, %v2627
      %2629 = vmatmul.f32.gmra.mxu0 %v2506
      %v2630 = vpop.f32.mrf.mxu0
      %v2631 = vadd.f32 0.0, %v2630
      %2632 = vmatmul.f32.gmra.mxu0 %v2509
      %v2633 = vpop.f32.mrf.mxu0
      %v2634 = vadd.f32 0.0, %v2633
      %2635 = vmatmul.f32.gmra.mxu0 %v2512
      %v2636 = vpop.f32.mrf.mxu0
      %v2637 = vadd.f32 0.0, %v2636
      %2638 = vmatmul.f32.gmra.mxu0 %v2515
      %v2639 = vpop.f32.mrf.mxu0
      %v2640 = vadd.f32 0.0, %v2639
      %2641 = vmatmul.f32.gmra.mxu0 %v2518
      %v2642 = vpop.f32.mrf.mxu0
      %v2643 = vadd.f32 0.0, %v2642
      %2644 = vmatmul.f32.gmra.mxu0 %v2521
      %v2645 = vpop.f32.mrf.mxu0
      %v2646 = vadd.f32 0.0, %v2645
      %2647 = vmatmul.f32.gmra.mxu0 %v2524
      %v2648 = vpop.f32.mrf.mxu0
      %v2649 = vadd.f32 0.0, %v2648
      %2650 = vmatmul.f32.gmra.mxu0 %v2527
      %v2651 = vpop.f32.mrf.mxu0
      %v2652 = vadd.f32 0.0, %v2651
      %2653 = vmatmul.f32.gmra.mxu0 %v2530
      %v2654 = vpop.f32.mrf.mxu0
      %v2655 = vadd.f32 0.0, %v2654
      %2656 = vmatmul.f32.gmra.mxu0 %v2533
      %v2657 = vpop.f32.mrf.mxu0
      %v2658 = vadd.f32 0.0, %v2657
      %2659 = vmatmul.f32.gmra.mxu0 %v2536
      %v2660 = vpop.f32.mrf.mxu0
      %v2661 = vadd.f32 0.0, %v2660
      %2662 = vdwg.mxu0
      %v2663 = vadd.f32 %v2353, %v2556
      %v2664 = vadd.f32 %v2354, %v2559
      %v2665 = vadd.f32 %v2355, %v2562
      %v2666 = vadd.f32 %v2356, %v2565
      %v2667 = vadd.f32 %v2357, %v2568
      %v2668 = vadd.f32 %v2358, %v2571
      %v2669 = vadd.f32 %v2359, %v2574
      %v2670 = vadd.f32 %v2360, %v2577
      %v2671 = vadd.f32 %v2361, %v2580
      %v2672 = vadd.f32 %v2362, %v2583
      %v2673 = vadd.f32 %v2363, %v2586
      %v2674 = vadd.f32 %v2364, %v2589
      %v2675 = vadd.f32 %v2365, %v2592
      %v2676 = vadd.f32 %v2366, %v2595
      %v2677 = vadd.f32 %v2367, %v2598
      %v2678 = vadd.f32 %v2368, %v2601
      %v2679 = vadd.f32 %v2369, %v2604
      %v2680 = vadd.f32 %v2370, %v2607
      %v2681 = vadd.f32 %v2371, %v2610
      %v2682 = vadd.f32 %v2372, %v2613
      %v2683 = vadd.f32 %v2373, %v2616
      %v2684 = vadd.f32 %v2374, %v2619
      %v2685 = vadd.f32 %v2375, %v2622
      %v2686 = vadd.f32 %v2376, %v2625
      %v2687 = vadd.f32 %v2377, %v2628
      %v2688 = vadd.f32 %v2378, %v2631
      %v2689 = vadd.f32 %v2379, %v2634
      %v2690 = vadd.f32 %v2380, %v2637
      %v2691 = vadd.f32 %v2381, %v2640
      %v2692 = vadd.f32 %v2382, %v2643
      %v2693 = vadd.f32 %v2383, %v2646
      %v2694 = vadd.f32 %v2384, %v2649
      %v2695 = vadd.f32 %v2385, %v2652
      %v2696 = vadd.f32 %v2386, %v2655
      %v2697 = vadd.f32 %v2387, %v2658
      %v2698 = vadd.f32 %v2388, %v2661
      %v2699 = vld [vmem:[#allocation2 + $0x25] sm:$0xff]
      %v2700 = vld [vmem:[#allocation2 + $0x2d] sm:$0xff]
      %v2701 = vld [vmem:[#allocation2 + $0x35] sm:$0xff]
      %v2702 = vld [vmem:[#allocation2 + $0x3d] sm:$0xff]
      %v2703 = vld [vmem:[#allocation2 + $0x45] sm:$0xff]
      %v2704 = vld [vmem:[#allocation2 + $0x4d] sm:$0xff]
      %v2705 = vld [vmem:[#allocation2 + $0x55] sm:$0xff]
      %v2706 = vld [vmem:[#allocation2 + $0x5d] sm:$0xff]
      %v2707 = vld [vmem:[#allocation2 + $0x65] sm:$0xff]
      %v2708 = vld [vmem:[#allocation2 + $0x6d] sm:$0xff]
      %v2709 = vld [vmem:[#allocation2 + $0x75] sm:$0xff]
      %v2710 = vld [vmem:[#allocation2 + $0x7d] sm:$0xff]
      %v2711 = vld [vmem:[#allocation2 + $0x85] sm:$0xff]
      %v2712 = vld [vmem:[#allocation2 + $0x8d] sm:$0xff]
      %v2713 = vld [vmem:[#allocation2 + $0x95] sm:$0xff]
      %v2714 = vld [vmem:[#allocation2 + $0x9d] sm:$0xff]
      %v2715 = vld [vmem:[#allocation2 + $0xa5] sm:$0xff]
      %v2716 = vld [vmem:[#allocation2 + $0xad] sm:$0xff]
      %v2717 = vld [vmem:[#allocation2 + $0xb5] sm:$0xff]
      %v2718 = vld [vmem:[#allocation2 + $0xbd] sm:$0xff]
      %v2719 = vld [vmem:[#allocation2 + $0xc5] sm:$0xff]
      %v2720 = vld [vmem:[#allocation2 + $0xcd] sm:$0xff]
      %v2721 = vld [vmem:[#allocation2 + $0xd5] sm:$0xff]
      %v2722 = vld [vmem:[#allocation2 + $0xdd] sm:$0xff]
      %v2723 = vld [vmem:[#allocation2 + $0xe5] sm:$0xff]
      %v2724 = vld [vmem:[#allocation2 + $0xed] sm:$0xff]
      %v2725 = vld [vmem:[#allocation2 + $0xf5] sm:$0xff]
      %v2726 = vld [vmem:[#allocation2 + $0xfd] sm:$0xff]
      %v2727 = vld [vmem:[#allocation2 + $0x105] sm:$0xff]
      %v2728 = vld [vmem:[#allocation2 + $0x10d] sm:$0xff]
      %v2729 = vld [vmem:[#allocation2 + $0x115] sm:$0xff]
      %v2730 = vld [vmem:[#allocation2 + $0x11d] sm:$0xff]
      %v2731 = vld [vmem:[#allocation2 + $0x125] sm:$0xff]
      %v2732 = vld [vmem:[#allocation2 + $0x12d] sm:$0xff]
      %v2733 = vld [vmem:[#allocation2 + $0x135] sm:$0xff]
      %v2734 = vld [vmem:[#allocation2 + $0x13d] sm:$0xff]
      %s2735 = scalar_lea.vmem %s2, 224
      %v2736 = vld [vmem:[%s2735] sm:$0xff]
      %v2737 = vld [vmem:[%s2735 + $0x8] sm:$0xff]
      %v2738 = vld [vmem:[%s2735 + $0x10] sm:$0xff]
      %v2739 = vld [vmem:[%s2735 + $0x18] sm:$0xff]
      %v2741 = vsel %vm439, %v2699, 0
      %v2744 = vsel %vm439, %v2700, 0
      %v2747 = vsel %vm439, %v2701, 0
      %v2750 = vsel %vm439, %v2702, 0
      %v2753 = vsel %vm439, %v2703, 0
      %v2756 = vsel %vm439, %v2704, 0
      %v2759 = vsel %vm439, %v2705, 0
      %v2762 = vsel %vm439, %v2706, 0
      %v2765 = vsel %vm439, %v2707, 0
      %v2768 = vsel %vm439, %v2708, 0
      %v2771 = vsel %vm439, %v2709, 0
      %v2774 = vsel %vm439, %v2710, 0
      %v2777 = vsel %vm439, %v2711, 0
      %v2780 = vsel %vm439, %v2712, 0
      %v2783 = vsel %vm439, %v2713, 0
      %v2786 = vsel %vm439, %v2714, 0
      %v2789 = vsel %vm439, %v2715, 0
      %v2792 = vsel %vm439, %v2716, 0
      %v2795 = vsel %vm439, %v2717, 0
      %v2798 = vsel %vm439, %v2718, 0
      %v2801 = vsel %vm439, %v2719, 0
      %v2804 = vsel %vm439, %v2720, 0
      %v2807 = vsel %vm439, %v2721, 0
      %v2810 = vsel %vm439, %v2722, 0
      %v2813 = vsel %vm439, %v2723, 0
      %v2816 = vsel %vm439, %v2724, 0
      %v2819 = vsel %vm439, %v2725, 0
      %v2822 = vsel %vm439, %v2726, 0
      %v2825 = vsel %vm439, %v2727, 0
      %v2828 = vsel %vm439, %v2728, 0
      %v2831 = vsel %vm439, %v2729, 0
      %v2834 = vsel %vm439, %v2730, 0
      %v2837 = vsel %vm439, %v2731, 0
      %v2840 = vsel %vm439, %v2732, 0
      %v2843 = vsel %vm439, %v2733, 0
      %v2846 = vsel %vm439, %v2734, 0
      %2848 = vmatpush.msra.mxu0 0.0
      %2849 = vmatpush.msra.mxu0 0.0
      %2850 = vmatpush.msra.mxu0 0.0
      %2851 = vmatpush.msra.mxu0 0.0
      %2852 = vmatpush.msra.mxu0 0.0
      %2853 = vmatpush.msra.mxu0 0.0
      %2854 = vmatpush.msra.mxu0 0.0
      %2855 = vmatpush.msra.mxu0 0.0
      %2856 = vmatpush.msra.mxu0 0.0
      %2857 = vmatpush.msra.mxu0 0.0
      %2858 = vmatpush.msra.mxu0 0.0
      %2859 = vmatpush.msra.mxu0 0.0
      %2860 = vmatpush.msra.mxu0 %v2739
      %2861 = vmatpush.msra.mxu0 %v2738
      %2862 = vmatpush.msra.mxu0 %v2737
      %2863 = vmatpush.msra.mxu0 %v2736
      %2864 = vmatmul.f32.gmra.mxu0 %v2741
      %v2865 = vpop.f32.mrf.mxu0
      %v2866 = vadd.f32 0.0, %v2865
      %2867 = vmatmul.f32.gmra.mxu0 %v2744
      %v2868 = vpop.f32.mrf.mxu0
      %v2869 = vadd.f32 0.0, %v2868
      %2870 = vmatmul.f32.gmra.mxu0 %v2747
      %v2871 = vpop.f32.mrf.mxu0
      %v2872 = vadd.f32 0.0, %v2871
      %2873 = vmatmul.f32.gmra.mxu0 %v2750
      %v2874 = vpop.f32.mrf.mxu0
      %v2875 = vadd.f32 0.0, %v2874
      %2876 = vmatmul.f32.gmra.mxu0 %v2753
      %v2877 = vpop.f32.mrf.mxu0
      %v2878 = vadd.f32 0.0, %v2877
      %2879 = vmatmul.f32.gmra.mxu0 %v2756
      %v2880 = vpop.f32.mrf.mxu0
      %v2881 = vadd.f32 0.0, %v2880
      %2882 = vmatmul.f32.gmra.mxu0 %v2759
      %v2883 = vpop.f32.mrf.mxu0
      %v2884 = vadd.f32 0.0, %v2883
      %2885 = vmatmul.f32.gmra.mxu0 %v2762
      %v2886 = vpop.f32.mrf.mxu0
      %v2887 = vadd.f32 0.0, %v2886
      %2888 = vmatmul.f32.gmra.mxu0 %v2765
      %v2889 = vpop.f32.mrf.mxu0
      %v2890 = vadd.f32 0.0, %v2889
      %2891 = vmatmul.f32.gmra.mxu0 %v2768
      %v2892 = vpop.f32.mrf.mxu0
      %v2893 = vadd.f32 0.0, %v2892
      %2894 = vmatmul.f32.gmra.mxu0 %v2771
      %v2895 = vpop.f32.mrf.mxu0
      %v2896 = vadd.f32 0.0, %v2895
      %2897 = vmatmul.f32.gmra.mxu0 %v2774
      %v2898 = vpop.f32.mrf.mxu0
      %v2899 = vadd.f32 0.0, %v2898
      %2900 = vmatmul.f32.gmra.mxu0 %v2777
      %v2901 = vpop.f32.mrf.mxu0
      %v2902 = vadd.f32 0.0, %v2901
      %2903 = vmatmul.f32.gmra.mxu0 %v2780
      %v2904 = vpop.f32.mrf.mxu0
      %v2905 = vadd.f32 0.0, %v2904
      %2906 = vmatmul.f32.gmra.mxu0 %v2783
      %v2907 = vpop.f32.mrf.mxu0
      %v2908 = vadd.f32 0.0, %v2907
      %2909 = vmatmul.f32.gmra.mxu0 %v2786
      %v2910 = vpop.f32.mrf.mxu0
      %v2911 = vadd.f32 0.0, %v2910
      %2912 = vmatmul.f32.gmra.mxu0 %v2789
      %v2913 = vpop.f32.mrf.mxu0
      %v2914 = vadd.f32 0.0, %v2913
      %2915 = vmatmul.f32.gmra.mxu0 %v2792
      %v2916 = vpop.f32.mrf.mxu0
      %v2917 = vadd.f32 0.0, %v2916
      %2918 = vmatmul.f32.gmra.mxu0 %v2795
      %v2919 = vpop.f32.mrf.mxu0
      %v2920 = vadd.f32 0.0, %v2919
      %2921 = vmatmul.f32.gmra.mxu0 %v2798
      %v2922 = vpop.f32.mrf.mxu0
      %v2923 = vadd.f32 0.0, %v2922
      %2924 = vmatmul.f32.gmra.mxu0 %v2801
      %v2925 = vpop.f32.mrf.mxu0
      %v2926 = vadd.f32 0.0, %v2925
      %2927 = vmatmul.f32.gmra.mxu0 %v2804
      %v2928 = vpop.f32.mrf.mxu0
      %v2929 = vadd.f32 0.0, %v2928
      %2930 = vmatmul.f32.gmra.mxu0 %v2807
      %v2931 = vpop.f32.mrf.mxu0
      %v2932 = vadd.f32 0.0, %v2931
      %2933 = vmatmul.f32.gmra.mxu0 %v2810
      %v2934 = vpop.f32.mrf.mxu0
      %v2935 = vadd.f32 0.0, %v2934
      %2936 = vmatmul.f32.gmra.mxu0 %v2813
      %v2937 = vpop.f32.mrf.mxu0
      %v2938 = vadd.f32 0.0, %v2937
      %2939 = vmatmul.f32.gmra.mxu0 %v2816
      %v2940 = vpop.f32.mrf.mxu0
      %v2941 = vadd.f32 0.0, %v2940
      %2942 = vmatmul.f32.gmra.mxu0 %v2819
      %v2943 = vpop.f32.mrf.mxu0
      %v2944 = vadd.f32 0.0, %v2943
      %2945 = vmatmul.f32.gmra.mxu0 %v2822
      %v2946 = vpop.f32.mrf.mxu0
      %v2947 = vadd.f32 0.0, %v2946
      %2948 = vmatmul.f32.gmra.mxu0 %v2825
      %v2949 = vpop.f32.mrf.mxu0
      %v2950 = vadd.f32 0.0, %v2949
      %2951 = vmatmul.f32.gmra.mxu0 %v2828
      %v2952 = vpop.f32.mrf.mxu0
      %v2953 = vadd.f32 0.0, %v2952
      %2954 = vmatmul.f32.gmra.mxu0 %v2831
      %v2955 = vpop.f32.mrf.mxu0
      %v2956 = vadd.f32 0.0, %v2955
      %2957 = vmatmul.f32.gmra.mxu0 %v2834
      %v2958 = vpop.f32.mrf.mxu0
      %v2959 = vadd.f32 0.0, %v2958
      %2960 = vmatmul.f32.gmra.mxu0 %v2837
      %v2961 = vpop.f32.mrf.mxu0
      %v2962 = vadd.f32 0.0, %v2961
      %2963 = vmatmul.f32.gmra.mxu0 %v2840
      %v2964 = vpop.f32.mrf.mxu0
      %v2965 = vadd.f32 0.0, %v2964
      %2966 = vmatmul.f32.gmra.mxu0 %v2843
      %v2967 = vpop.f32.mrf.mxu0
      %v2968 = vadd.f32 0.0, %v2967
      %2969 = vmatmul.f32.gmra.mxu0 %v2846
      %v2970 = vpop.f32.mrf.mxu0
      %v2971 = vadd.f32 0.0, %v2970
      %2972 = vdwg.mxu0
      %v2973 = vadd.f32 %v2663, %v2866
      %v2974 = vadd.f32 %v2664, %v2869
      %v2975 = vadd.f32 %v2665, %v2872
      %v2976 = vadd.f32 %v2666, %v2875
      %v2977 = vadd.f32 %v2667, %v2878
      %v2978 = vadd.f32 %v2668, %v2881
      %v2979 = vadd.f32 %v2669, %v2884
      %v2980 = vadd.f32 %v2670, %v2887
      %v2981 = vadd.f32 %v2671, %v2890
      %v2982 = vadd.f32 %v2672, %v2893
      %v2983 = vadd.f32 %v2673, %v2896
      %v2984 = vadd.f32 %v2674, %v2899
      %v2985 = vadd.f32 %v2675, %v2902
      %v2986 = vadd.f32 %v2676, %v2905
      %v2987 = vadd.f32 %v2677, %v2908
      %v2988 = vadd.f32 %v2678, %v2911
      %v2989 = vadd.f32 %v2679, %v2914
      %v2990 = vadd.f32 %v2680, %v2917
      %v2991 = vadd.f32 %v2681, %v2920
      %v2992 = vadd.f32 %v2682, %v2923
      %v2993 = vadd.f32 %v2683, %v2926
      %v2994 = vadd.f32 %v2684, %v2929
      %v2995 = vadd.f32 %v2685, %v2932
      %v2996 = vadd.f32 %v2686, %v2935
      %v2997 = vadd.f32 %v2687, %v2938
      %v2998 = vadd.f32 %v2688, %v2941
      %v2999 = vadd.f32 %v2689, %v2944
      %v3000 = vadd.f32 %v2690, %v2947
      %v3001 = vadd.f32 %v2691, %v2950
      %v3002 = vadd.f32 %v2692, %v2953
      %v3003 = vadd.f32 %v2693, %v2956
      %v3004 = vadd.f32 %v2694, %v2959
      %v3005 = vadd.f32 %v2695, %v2962
      %v3006 = vadd.f32 %v2696, %v2965
      %v3007 = vadd.f32 %v2697, %v2968
      %v3008 = vadd.f32 %v2698, %v2971
      %v3009 = vld [vmem:[#allocation2 + $0x26] sm:$0xff]
      %v3010 = vld [vmem:[#allocation2 + $0x2e] sm:$0xff]
      %v3011 = vld [vmem:[#allocation2 + $0x36] sm:$0xff]
      %v3012 = vld [vmem:[#allocation2 + $0x3e] sm:$0xff]
      %v3013 = vld [vmem:[#allocation2 + $0x46] sm:$0xff]
      %v3014 = vld [vmem:[#allocation2 + $0x4e] sm:$0xff]
      %v3015 = vld [vmem:[#allocation2 + $0x56] sm:$0xff]
      %v3016 = vld [vmem:[#allocation2 + $0x5e] sm:$0xff]
      %v3017 = vld [vmem:[#allocation2 + $0x66] sm:$0xff]
      %v3018 = vld [vmem:[#allocation2 + $0x6e] sm:$0xff]
      %v3019 = vld [vmem:[#allocation2 + $0x76] sm:$0xff]
      %v3020 = vld [vmem:[#allocation2 + $0x7e] sm:$0xff]
      %v3021 = vld [vmem:[#allocation2 + $0x86] sm:$0xff]
      %v3022 = vld [vmem:[#allocation2 + $0x8e] sm:$0xff]
      %v3023 = vld [vmem:[#allocation2 + $0x96] sm:$0xff]
      %v3024 = vld [vmem:[#allocation2 + $0x9e] sm:$0xff]
      %v3025 = vld [vmem:[#allocation2 + $0xa6] sm:$0xff]
      %v3026 = vld [vmem:[#allocation2 + $0xae] sm:$0xff]
      %v3027 = vld [vmem:[#allocation2 + $0xb6] sm:$0xff]
      %v3028 = vld [vmem:[#allocation2 + $0xbe] sm:$0xff]
      %v3029 = vld [vmem:[#allocation2 + $0xc6] sm:$0xff]
      %v3030 = vld [vmem:[#allocation2 + $0xce] sm:$0xff]
      %v3031 = vld [vmem:[#allocation2 + $0xd6] sm:$0xff]
      %v3032 = vld [vmem:[#allocation2 + $0xde] sm:$0xff]
      %v3033 = vld [vmem:[#allocation2 + $0xe6] sm:$0xff]
      %v3034 = vld [vmem:[#allocation2 + $0xee] sm:$0xff]
      %v3035 = vld [vmem:[#allocation2 + $0xf6] sm:$0xff]
      %v3036 = vld [vmem:[#allocation2 + $0xfe] sm:$0xff]
      %v3037 = vld [vmem:[#allocation2 + $0x106] sm:$0xff]
      %v3038 = vld [vmem:[#allocation2 + $0x10e] sm:$0xff]
      %v3039 = vld [vmem:[#allocation2 + $0x116] sm:$0xff]
      %v3040 = vld [vmem:[#allocation2 + $0x11e] sm:$0xff]
      %v3041 = vld [vmem:[#allocation2 + $0x126] sm:$0xff]
      %v3042 = vld [vmem:[#allocation2 + $0x12e] sm:$0xff]
      %v3043 = vld [vmem:[#allocation2 + $0x136] sm:$0xff]
      %v3044 = vld [vmem:[#allocation2 + $0x13e] sm:$0xff]
      %s3045 = scalar_lea.vmem %s2, 256
      %v3046 = vld [vmem:[%s3045] sm:$0xff]
      %v3047 = vld [vmem:[%s3045 + $0x8] sm:$0xff]
      %v3048 = vld [vmem:[%s3045 + $0x10] sm:$0xff]
      %v3049 = vld [vmem:[%s3045 + $0x18] sm:$0xff]
      %v3051 = vsel %vm439, %v3009, 0
      %v3054 = vsel %vm439, %v3010, 0
      %v3057 = vsel %vm439, %v3011, 0
      %v3060 = vsel %vm439, %v3012, 0
      %v3063 = vsel %vm439, %v3013, 0
      %v3066 = vsel %vm439, %v3014, 0
      %v3069 = vsel %vm439, %v3015, 0
      %v3072 = vsel %vm439, %v3016, 0
      %v3075 = vsel %vm439, %v3017, 0
      %v3078 = vsel %vm439, %v3018, 0
      %v3081 = vsel %vm439, %v3019, 0
      %v3084 = vsel %vm439, %v3020, 0
      %v3087 = vsel %vm439, %v3021, 0
      %v3090 = vsel %vm439, %v3022, 0
      %v3093 = vsel %vm439, %v3023, 0
      %v3096 = vsel %vm439, %v3024, 0
      %v3099 = vsel %vm439, %v3025, 0
      %v3102 = vsel %vm439, %v3026, 0
      %v3105 = vsel %vm439, %v3027, 0
      %v3108 = vsel %vm439, %v3028, 0
      %v3111 = vsel %vm439, %v3029, 0
      %v3114 = vsel %vm439, %v3030, 0
      %v3117 = vsel %vm439, %v3031, 0
      %v3120 = vsel %vm439, %v3032, 0
      %v3123 = vsel %vm439, %v3033, 0
      %v3126 = vsel %vm439, %v3034, 0
      %v3129 = vsel %vm439, %v3035, 0
      %v3132 = vsel %vm439, %v3036, 0
      %v3135 = vsel %vm439, %v3037, 0
      %v3138 = vsel %vm439, %v3038, 0
      %v3141 = vsel %vm439, %v3039, 0
      %v3144 = vsel %vm439, %v3040, 0
      %v3147 = vsel %vm439, %v3041, 0
      %v3150 = vsel %vm439, %v3042, 0
      %v3153 = vsel %vm439, %v3043, 0
      %v3156 = vsel %vm439, %v3044, 0
      %3158 = vmatpush.msra.mxu0 0.0
      %3159 = vmatpush.msra.mxu0 0.0
      %3160 = vmatpush.msra.mxu0 0.0
      %3161 = vmatpush.msra.mxu0 0.0
      %3162 = vmatpush.msra.mxu0 0.0
      %3163 = vmatpush.msra.mxu0 0.0
      %3164 = vmatpush.msra.mxu0 0.0
      %3165 = vmatpush.msra.mxu0 0.0
      %3166 = vmatpush.msra.mxu0 0.0
      %3167 = vmatpush.msra.mxu0 0.0
      %3168 = vmatpush.msra.mxu0 0.0
      %3169 = vmatpush.msra.mxu0 0.0
      %3170 = vmatpush.msra.mxu0 %v3049
      %3171 = vmatpush.msra.mxu0 %v3048
      %3172 = vmatpush.msra.mxu0 %v3047
      %3173 = vmatpush.msra.mxu0 %v3046
      %3174 = vmatmul.f32.gmra.mxu0 %v3051
      %v3175 = vpop.f32.mrf.mxu0
      %v3176 = vadd.f32 0.0, %v3175
      %3177 = vmatmul.f32.gmra.mxu0 %v3054
      %v3178 = vpop.f32.mrf.mxu0
      %v3179 = vadd.f32 0.0, %v3178
      %3180 = vmatmul.f32.gmra.mxu0 %v3057
      %v3181 = vpop.f32.mrf.mxu0
      %v3182 = vadd.f32 0.0, %v3181
      %3183 = vmatmul.f32.gmra.mxu0 %v3060
      %v3184 = vpop.f32.mrf.mxu0
      %v3185 = vadd.f32 0.0, %v3184
      %3186 = vmatmul.f32.gmra.mxu0 %v3063
      %v3187 = vpop.f32.mrf.mxu0
      %v3188 = vadd.f32 0.0, %v3187
      %3189 = vmatmul.f32.gmra.mxu0 %v3066
      %v3190 = vpop.f32.mrf.mxu0
      %v3191 = vadd.f32 0.0, %v3190
      %3192 = vmatmul.f32.gmra.mxu0 %v3069
      %v3193 = vpop.f32.mrf.mxu0
      %v3194 = vadd.f32 0.0, %v3193
      %3195 = vmatmul.f32.gmra.mxu0 %v3072
      %v3196 = vpop.f32.mrf.mxu0
      %v3197 = vadd.f32 0.0, %v3196
      %3198 = vmatmul.f32.gmra.mxu0 %v3075
      %v3199 = vpop.f32.mrf.mxu0
      %v3200 = vadd.f32 0.0, %v3199
      %3201 = vmatmul.f32.gmra.mxu0 %v3078
      %v3202 = vpop.f32.mrf.mxu0
      %v3203 = vadd.f32 0.0, %v3202
      %3204 = vmatmul.f32.gmra.mxu0 %v3081
      %v3205 = vpop.f32.mrf.mxu0
      %v3206 = vadd.f32 0.0, %v3205
      %3207 = vmatmul.f32.gmra.mxu0 %v3084
      %v3208 = vpop.f32.mrf.mxu0
      %v3209 = vadd.f32 0.0, %v3208
      %3210 = vmatmul.f32.gmra.mxu0 %v3087
      %v3211 = vpop.f32.mrf.mxu0
      %v3212 = vadd.f32 0.0, %v3211
      %3213 = vmatmul.f32.gmra.mxu0 %v3090
      %v3214 = vpop.f32.mrf.mxu0
      %v3215 = vadd.f32 0.0, %v3214
      %3216 = vmatmul.f32.gmra.mxu0 %v3093
      %v3217 = vpop.f32.mrf.mxu0
      %v3218 = vadd.f32 0.0, %v3217
      %3219 = vmatmul.f32.gmra.mxu0 %v3096
      %v3220 = vpop.f32.mrf.mxu0
      %v3221 = vadd.f32 0.0, %v3220
      %3222 = vmatmul.f32.gmra.mxu0 %v3099
      %v3223 = vpop.f32.mrf.mxu0
      %v3224 = vadd.f32 0.0, %v3223
      %3225 = vmatmul.f32.gmra.mxu0 %v3102
      %v3226 = vpop.f32.mrf.mxu0
      %v3227 = vadd.f32 0.0, %v3226
      %3228 = vmatmul.f32.gmra.mxu0 %v3105
      %v3229 = vpop.f32.mrf.mxu0
      %v3230 = vadd.f32 0.0, %v3229
      %3231 = vmatmul.f32.gmra.mxu0 %v3108
      %v3232 = vpop.f32.mrf.mxu0
      %v3233 = vadd.f32 0.0, %v3232
      %3234 = vmatmul.f32.gmra.mxu0 %v3111
      %v3235 = vpop.f32.mrf.mxu0
      %v3236 = vadd.f32 0.0, %v3235
      %3237 = vmatmul.f32.gmra.mxu0 %v3114
      %v3238 = vpop.f32.mrf.mxu0
      %v3239 = vadd.f32 0.0, %v3238
      %3240 = vmatmul.f32.gmra.mxu0 %v3117
      %v3241 = vpop.f32.mrf.mxu0
      %v3242 = vadd.f32 0.0, %v3241
      %3243 = vmatmul.f32.gmra.mxu0 %v3120
      %v3244 = vpop.f32.mrf.mxu0
      %v3245 = vadd.f32 0.0, %v3244
      %3246 = vmatmul.f32.gmra.mxu0 %v3123
      %v3247 = vpop.f32.mrf.mxu0
      %v3248 = vadd.f32 0.0, %v3247
      %3249 = vmatmul.f32.gmra.mxu0 %v3126
      %v3250 = vpop.f32.mrf.mxu0
      %v3251 = vadd.f32 0.0, %v3250
      %3252 = vmatmul.f32.gmra.mxu0 %v3129
      %v3253 = vpop.f32.mrf.mxu0
      %v3254 = vadd.f32 0.0, %v3253
      %3255 = vmatmul.f32.gmra.mxu0 %v3132
      %v3256 = vpop.f32.mrf.mxu0
      %v3257 = vadd.f32 0.0, %v3256
      %3258 = vmatmul.f32.gmra.mxu0 %v3135
      %v3259 = vpop.f32.mrf.mxu0
      %v3260 = vadd.f32 0.0, %v3259
      %3261 = vmatmul.f32.gmra.mxu0 %v3138
      %v3262 = vpop.f32.mrf.mxu0
      %v3263 = vadd.f32 0.0, %v3262
      %3264 = vmatmul.f32.gmra.mxu0 %v3141
      %v3265 = vpop.f32.mrf.mxu0
      %v3266 = vadd.f32 0.0, %v3265
      %3267 = vmatmul.f32.gmra.mxu0 %v3144
      %v3268 = vpop.f32.mrf.mxu0
      %v3269 = vadd.f32 0.0, %v3268
      %3270 = vmatmul.f32.gmra.mxu0 %v3147
      %v3271 = vpop.f32.mrf.mxu0
      %v3272 = vadd.f32 0.0, %v3271
      %3273 = vmatmul.f32.gmra.mxu0 %v3150
      %v3274 = vpop.f32.mrf.mxu0
      %v3275 = vadd.f32 0.0, %v3274
      %3276 = vmatmul.f32.gmra.mxu0 %v3153
      %v3277 = vpop.f32.mrf.mxu0
      %v3278 = vadd.f32 0.0, %v3277
      %3279 = vmatmul.f32.gmra.mxu0 %v3156
      %v3280 = vpop.f32.mrf.mxu0
      %v3281 = vadd.f32 0.0, %v3280
      %3282 = vdwg.mxu0
      %v3283 = vadd.f32 %v2973, %v3176
      %v3284 = vadd.f32 %v2974, %v3179
      %v3285 = vadd.f32 %v2975, %v3182
      %v3286 = vadd.f32 %v2976, %v3185
      %v3287 = vadd.f32 %v2977, %v3188
      %v3288 = vadd.f32 %v2978, %v3191
      %v3289 = vadd.f32 %v2979, %v3194
      %v3290 = vadd.f32 %v2980, %v3197
      %v3291 = vadd.f32 %v2981, %v3200
      %v3292 = vadd.f32 %v2982, %v3203
      %v3293 = vadd.f32 %v2983, %v3206
      %v3294 = vadd.f32 %v2984, %v3209
      %v3295 = vadd.f32 %v2985, %v3212
      %v3296 = vadd.f32 %v2986, %v3215
      %v3297 = vadd.f32 %v2987, %v3218
      %v3298 = vadd.f32 %v2988, %v3221
      %v3299 = vadd.f32 %v2989, %v3224
      %v3300 = vadd.f32 %v2990, %v3227
      %v3301 = vadd.f32 %v2991, %v3230
      %v3302 = vadd.f32 %v2992, %v3233
      %v3303 = vadd.f32 %v2993, %v3236
      %v3304 = vadd.f32 %v2994, %v3239
      %v3305 = vadd.f32 %v2995, %v3242
      %v3306 = vadd.f32 %v2996, %v3245
      %v3307 = vadd.f32 %v2997, %v3248
      %v3308 = vadd.f32 %v2998, %v3251
      %v3309 = vadd.f32 %v2999, %v3254
      %v3310 = vadd.f32 %v3000, %v3257
      %v3311 = vadd.f32 %v3001, %v3260
      %v3312 = vadd.f32 %v3002, %v3263
      %v3313 = vadd.f32 %v3003, %v3266
      %v3314 = vadd.f32 %v3004, %v3269
      %v3315 = vadd.f32 %v3005, %v3272
      %v3316 = vadd.f32 %v3006, %v3275
      %v3317 = vadd.f32 %v3007, %v3278
      %v3318 = vadd.f32 %v3008, %v3281
      %v3319 = vld [vmem:[%s3] sm:$0x1]
      %v3321 = vperm.slane %v3319, 0
      %v3323 = vadd.f32 %v3283, %v3321
      %v3324 = vadd.f32 %v3284, %v3321
      %v3325 = vadd.f32 %v3285, %v3321
      %v3326 = vadd.f32 %v3286, %v3321
      %v3327 = vadd.f32 %v3287, %v3321
      %v3328 = vadd.f32 %v3288, %v3321
      %v3329 = vadd.f32 %v3289, %v3321
      %v3330 = vadd.f32 %v3290, %v3321
      %v3331 = vadd.f32 %v3291, %v3321
      %v3332 = vadd.f32 %v3292, %v3321
      %v3333 = vadd.f32 %v3293, %v3321
      %v3334 = vadd.f32 %v3294, %v3321
      %v3335 = vadd.f32 %v3295, %v3321
      %v3336 = vadd.f32 %v3296, %v3321
      %v3337 = vadd.f32 %v3297, %v3321
      %v3338 = vadd.f32 %v3298, %v3321
      %v3339 = vadd.f32 %v3299, %v3321
      %v3340 = vadd.f32 %v3300, %v3321
      %v3341 = vadd.f32 %v3301, %v3321
      %v3342 = vadd.f32 %v3302, %v3321
      %v3343 = vadd.f32 %v3303, %v3321
      %v3344 = vadd.f32 %v3304, %v3321
      %v3345 = vadd.f32 %v3305, %v3321
      %v3346 = vadd.f32 %v3306, %v3321
      %v3347 = vadd.f32 %v3307, %v3321
      %v3348 = vadd.f32 %v3308, %v3321
      %v3349 = vadd.f32 %v3309, %v3321
      %v3350 = vadd.f32 %v3310, %v3321
      %v3351 = vadd.f32 %v3311, %v3321
      %v3352 = vadd.f32 %v3312, %v3321
      %v3353 = vadd.f32 %v3313, %v3321
      %v3354 = vadd.f32 %v3314, %v3321
      %v3355 = vadd.f32 %v3315, %v3321
      %v3356 = vadd.f32 %v3316, %v3321
      %v3357 = vadd.f32 %v3317, %v3321
      %v3358 = vadd.f32 %v3318, %v3321
      %v3359 = vmax.f32 %v3323, 0.0
      %v3360 = vmax.f32 %v3324, 0.0
      %v3361 = vmax.f32 %v3325, 0.0
      %v3362 = vmax.f32 %v3326, 0.0
      %v3363 = vmax.f32 %v3327, 0.0
      %v3364 = vmax.f32 %v3328, 0.0
      %v3365 = vmax.f32 %v3329, 0.0
      %v3366 = vmax.f32 %v3330, 0.0
      %v3367 = vmax.f32 %v3331, 0.0
      %v3368 = vmax.f32 %v3332, 0.0
      %v3369 = vmax.f32 %v3333, 0.0
      %v3370 = vmax.f32 %v3334, 0.0
      %v3371 = vmax.f32 %v3335, 0.0
      %v3372 = vmax.f32 %v3336, 0.0
      %v3373 = vmax.f32 %v3337, 0.0
      %v3374 = vmax.f32 %v3338, 0.0
      %v3375 = vmax.f32 %v3339, 0.0
      %v3376 = vmax.f32 %v3340, 0.0
      %v3377 = vmax.f32 %v3341, 0.0
      %v3378 = vmax.f32 %v3342, 0.0
      %v3379 = vmax.f32 %v3343, 0.0
      %v3380 = vmax.f32 %v3344, 0.0
      %v3381 = vmax.f32 %v3345, 0.0
      %v3382 = vmax.f32 %v3346, 0.0
      %v3383 = vmax.f32 %v3347, 0.0
      %v3384 = vmax.f32 %v3348, 0.0
      %v3385 = vmax.f32 %v3349, 0.0
      %v3386 = vmax.f32 %v3350, 0.0
      %v3387 = vmax.f32 %v3351, 0.0
      %v3388 = vmax.f32 %v3352, 0.0
      %v3389 = vmax.f32 %v3353, 0.0
      %v3390 = vmax.f32 %v3354, 0.0
      %v3391 = vmax.f32 %v3355, 0.0
      %v3392 = vmax.f32 %v3356, 0.0
      %v3393 = vmax.f32 %v3357, 0.0
      %v3394 = vmax.f32 %v3358, 0.0
      %3396 = vset.pattern.permute.xlu0 0
      %3397 = vperm.xlu0 %3396, %v566
      %v3398 = vpop.permute.xlu0 %3397
      %3401 = vset.pattern.permute.xlu0 0
      %3402 = vperm.xlu0 %3401, %v567
      %v3403 = vpop.permute.xlu0 %3402
      %3406 = vset.pattern.permute.xlu0 0
      %3407 = vperm.xlu0 %3406, %v568
      %v3408 = vpop.permute.xlu0 %3407
      %3411 = vset.pattern.permute.xlu0 0
      %3412 = vperm.xlu0 %3411, %v569
      %v3413 = vpop.permute.xlu0 %3412
      %3416 = vset.pattern.permute.xlu0 0
      %3417 = vperm.xlu0 %3416, %v570
      %v3418 = vpop.permute.xlu0 %3417
      %3421 = vset.pattern.permute.xlu0 0
      %3422 = vperm.xlu0 %3421, %v571
      %v3423 = vpop.permute.xlu0 %3422
      %3426 = vset.pattern.permute.xlu0 0
      %3427 = vperm.xlu0 %3426, %v572
      %v3428 = vpop.permute.xlu0 %3427
      %3431 = vset.pattern.permute.xlu0 0
      %3432 = vperm.xlu0 %3431, %v573
      %v3433 = vpop.permute.xlu0 %3432
      %3436 = vset.pattern.permute.xlu0 0
      %3437 = vperm.xlu0 %3436, %v574
      %v3438 = vpop.permute.xlu0 %3437
      %3441 = vset.pattern.permute.xlu0 0
      %3442 = vperm.xlu0 %3441, %v575
      %v3443 = vpop.permute.xlu0 %3442
      %3446 = vset.pattern.permute.xlu0 0
      %3447 = vperm.xlu0 %3446, %v576
      %v3448 = vpop.permute.xlu0 %3447
      %3451 = vset.pattern.permute.xlu0 0
      %3452 = vperm.xlu0 %3451, %v577
      %v3453 = vpop.permute.xlu0 %3452
      %3456 = vset.pattern.permute.xlu0 0
      %3457 = vperm.xlu0 %3456, %v578
      %v3458 = vpop.permute.xlu0 %3457
      %3461 = vset.pattern.permute.xlu0 0
      %3462 = vperm.xlu0 %3461, %v579
      %v3463 = vpop.permute.xlu0 %3462
      %3466 = vset.pattern.permute.xlu0 0
      %3467 = vperm.xlu0 %3466, %v580
      %v3468 = vpop.permute.xlu0 %3467
      %3471 = vset.pattern.permute.xlu0 0
      %3472 = vperm.xlu0 %3471, %v581
      %v3473 = vpop.permute.xlu0 %3472
      %3476 = vset.pattern.permute.xlu0 0
      %3477 = vperm.xlu0 %3476, %v582
      %v3478 = vpop.permute.xlu0 %3477
      %3481 = vset.pattern.permute.xlu0 0
      %3482 = vperm.xlu0 %3481, %v583
      %v3483 = vpop.permute.xlu0 %3482
      %3486 = vset.pattern.permute.xlu0 0
      %3487 = vperm.xlu0 %3486, %v584
      %v3488 = vpop.permute.xlu0 %3487
      %3491 = vset.pattern.permute.xlu0 0
      %3492 = vperm.xlu0 %3491, %v585
      %v3493 = vpop.permute.xlu0 %3492
      %3496 = vset.pattern.permute.xlu0 0
      %3497 = vperm.xlu0 %3496, %v586
      %v3498 = vpop.permute.xlu0 %3497
      %3501 = vset.pattern.permute.xlu0 0
      %3502 = vperm.xlu0 %3501, %v587
      %v3503 = vpop.permute.xlu0 %3502
      %3506 = vset.pattern.permute.xlu0 0
      %3507 = vperm.xlu0 %3506, %v588
      %v3508 = vpop.permute.xlu0 %3507
      %3511 = vset.pattern.permute.xlu0 0
      %3512 = vperm.xlu0 %3511, %v589
      %v3513 = vpop.permute.xlu0 %3512
      %3516 = vset.pattern.permute.xlu0 0
      %3517 = vperm.xlu0 %3516, %v590
      %v3518 = vpop.permute.xlu0 %3517
      %3521 = vset.pattern.permute.xlu0 0
      %3522 = vperm.xlu0 %3521, %v591
      %v3523 = vpop.permute.xlu0 %3522
      %3526 = vset.pattern.permute.xlu0 0
      %3527 = vperm.xlu0 %3526, %v592
      %v3528 = vpop.permute.xlu0 %3527
      %3531 = vset.pattern.permute.xlu0 0
      %3532 = vperm.xlu0 %3531, %v593
      %v3533 = vpop.permute.xlu0 %3532
      %3536 = vset.pattern.permute.xlu0 0
      %3537 = vperm.xlu0 %3536, %v594
      %v3538 = vpop.permute.xlu0 %3537
      %3541 = vset.pattern.permute.xlu0 0
      %3542 = vperm.xlu0 %3541, %v595
      %v3543 = vpop.permute.xlu0 %3542
      %3546 = vset.pattern.permute.xlu0 0
      %3547 = vperm.xlu0 %3546, %v596
      %v3548 = vpop.permute.xlu0 %3547
      %3551 = vset.pattern.permute.xlu0 0
      %3552 = vperm.xlu0 %3551, %v597
      %v3553 = vpop.permute.xlu0 %3552
      %3556 = vset.pattern.permute.xlu0 0
      %3557 = vperm.xlu0 %3556, %v598
      %v3558 = vpop.permute.xlu0 %3557
      %3561 = vset.pattern.permute.xlu0 0
      %3562 = vperm.xlu0 %3561, %v599
      %v3563 = vpop.permute.xlu0 %3562
      %3566 = vset.pattern.permute.xlu0 0
      %3567 = vperm.xlu0 %3566, %v600
      %v3568 = vpop.permute.xlu0 %3567
      %3571 = vset.pattern.permute.xlu0 0
      %3572 = vperm.xlu0 %3571, %v601
      %v3573 = vpop.permute.xlu0 %3572
      %v3575 = vmul.f32 %v3359, %v3398
      %v3576 = vmul.f32 %v3360, %v3403
      %v3577 = vmul.f32 %v3361, %v3408
      %v3578 = vmul.f32 %v3362, %v3413
      %v3579 = vmul.f32 %v3363, %v3418
      %v3580 = vmul.f32 %v3364, %v3423
      %v3581 = vmul.f32 %v3365, %v3428
      %v3582 = vmul.f32 %v3366, %v3433
      %v3583 = vmul.f32 %v3367, %v3438
      %v3584 = vmul.f32 %v3368, %v3443
      %v3585 = vmul.f32 %v3369, %v3448
      %v3586 = vmul.f32 %v3370, %v3453
      %v3587 = vmul.f32 %v3371, %v3458
      %v3588 = vmul.f32 %v3372, %v3463
      %v3589 = vmul.f32 %v3373, %v3468
      %v3590 = vmul.f32 %v3374, %v3473
      %v3591 = vmul.f32 %v3375, %v3478
      %v3592 = vmul.f32 %v3376, %v3483
      %v3593 = vmul.f32 %v3377, %v3488
      %v3594 = vmul.f32 %v3378, %v3493
      %v3595 = vmul.f32 %v3379, %v3498
      %v3596 = vmul.f32 %v3380, %v3503
      %v3597 = vmul.f32 %v3381, %v3508
      %v3598 = vmul.f32 %v3382, %v3513
      %v3599 = vmul.f32 %v3383, %v3518
      %v3600 = vmul.f32 %v3384, %v3523
      %v3601 = vmul.f32 %v3385, %v3528
      %v3602 = vmul.f32 %v3386, %v3533
      %v3603 = vmul.f32 %v3387, %v3538
      %v3604 = vmul.f32 %v3388, %v3543
      %v3605 = vmul.f32 %v3389, %v3548
      %v3606 = vmul.f32 %v3390, %v3553
      %v3607 = vmul.f32 %v3391, %v3558
      %v3608 = vmul.f32 %v3392, %v3563
      %v3609 = vmul.f32 %v3393, %v3568
      %v3610 = vmul.f32 %v3394, %v3573
      %3611 = vst.msk [vmem:[#allocation2 + $0x13] sm:$0xff] %vm439, %v3575
      %3612 = vst.msk [vmem:[#allocation2 + $0x1b] sm:$0xff] %vm439, %v3576
      %3613 = vst.msk [vmem:[#allocation2 + $0x23] sm:$0xff] %vm439, %v3577
      %3614 = vst.msk [vmem:[#allocation2 + $0x2b] sm:$0xff] %vm439, %v3578
      %3615 = vst.msk [vmem:[#allocation2 + $0x33] sm:$0xff] %vm439, %v3579
      %3616 = vst.msk [vmem:[#allocation2 + $0x3b] sm:$0xff] %vm439, %v3580
      %3617 = vst.msk [vmem:[#allocation2 + $0x43] sm:$0xff] %vm439, %v3581
      %3618 = vst.msk [vmem:[#allocation2 + $0x4b] sm:$0xff] %vm439, %v3582
      %3619 = vst.msk [vmem:[#allocation2 + $0x53] sm:$0xff] %vm439, %v3583
      %3620 = vst.msk [vmem:[#allocation2 + $0x5b] sm:$0xff] %vm439, %v3584
      %3621 = vst.msk [vmem:[#allocation2 + $0x63] sm:$0xff] %vm439, %v3585
      %3622 = vst.msk [vmem:[#allocation2 + $0x6b] sm:$0xff] %vm439, %v3586
      %3623 = vst.msk [vmem:[#allocation2 + $0x73] sm:$0xff] %vm439, %v3587
      %3624 = vst.msk [vmem:[#allocation2 + $0x7b] sm:$0xff] %vm439, %v3588
      %3625 = vst.msk [vmem:[#allocation2 + $0x83] sm:$0xff] %vm439, %v3589
      %3626 = vst.msk [vmem:[#allocation2 + $0x8b] sm:$0xff] %vm439, %v3590
      %3627 = vst.msk [vmem:[#allocation2 + $0x93] sm:$0xff] %vm439, %v3591
      %3628 = vst.msk [vmem:[#allocation2 + $0x9b] sm:$0xff] %vm439, %v3592
      %3629 = vst.msk [vmem:[#allocation2 + $0xa3] sm:$0xff] %vm439, %v3593
      %3630 = vst.msk [vmem:[#allocation2 + $0xab] sm:$0xff] %vm439, %v3594
      %3631 = vst.msk [vmem:[#allocation2 + $0xb3] sm:$0xff] %vm439, %v3595
      %3632 = vst.msk [vmem:[#allocation2 + $0xbb] sm:$0xff] %vm439, %v3596
      %3633 = vst.msk [vmem:[#allocation2 + $0xc3] sm:$0xff] %vm439, %v3597
      %3634 = vst.msk [vmem:[#allocation2 + $0xcb] sm:$0xff] %vm439, %v3598
      %3635 = vst.msk [vmem:[#allocation2 + $0xd3] sm:$0xff] %vm439, %v3599
      %3636 = vst.msk [vmem:[#allocation2 + $0xdb] sm:$0xff] %vm439, %v3600
      %3637 = vst.msk [vmem:[#allocation2 + $0xe3] sm:$0xff] %vm439, %v3601
      %3638 = vst.msk [vmem:[#allocation2 + $0xeb] sm:$0xff] %vm439, %v3602
      %3639 = vst.msk [vmem:[#allocation2 + $0xf3] sm:$0xff] %vm439, %v3603
      %3640 = vst.msk [vmem:[#allocation2 + $0xfb] sm:$0xff] %vm439, %v3604
      %3641 = vst.msk [vmem:[#allocation2 + $0x103] sm:$0xff] %vm439, %v3605
      %3642 = vst.msk [vmem:[#allocation2 + $0x10b] sm:$0xff] %vm439, %v3606
      %3643 = vst.msk [vmem:[#allocation2 + $0x113] sm:$0xff] %vm439, %v3607
      %3644 = vst.msk [vmem:[#allocation2 + $0x11b] sm:$0xff] %vm439, %v3608
      %3645 = vst.msk [vmem:[#allocation2 + $0x123] sm:$0xff] %vm439, %v3609
      %3646 = vst.msk [vmem:[#allocation2 + $0x12b] sm:$0xff] %vm439, %v3610
      %v3647 = vld [vmem:[#allocation2] sm:$0xff]
      %v3648 = vld [vmem:[#allocation2 + $0x8] sm:$0xff]
      %v3649 = vld [vmem:[#allocation2 + $0x10] sm:$0xff]
      %v3650 = vld [vmem:[#allocation2 + $0x18] sm:$0xff]
      %v3651 = vld [vmem:[#allocation2 + $0x20] sm:$0xff]
      %v3652 = vld [vmem:[#allocation2 + $0x28] sm:$0xff]
      %v3653 = vld [vmem:[#allocation2 + $0x30] sm:$0xff]
      %v3654 = vld [vmem:[#allocation2 + $0x38] sm:$0xff]
      %v3655 = vld [vmem:[#allocation2 + $0x40] sm:$0xff]
      %v3656 = vld [vmem:[#allocation2 + $0x48] sm:$0xff]
      %v3657 = vld [vmem:[#allocation2 + $0x50] sm:$0xff]
      %v3658 = vld [vmem:[#allocation2 + $0x58] sm:$0xff]
      %v3659 = vld [vmem:[#allocation2 + $0x60] sm:$0xff]
      %v3660 = vld [vmem:[#allocation2 + $0x68] sm:$0xff]
      %v3661 = vld [vmem:[#allocation2 + $0x70] sm:$0xff]
      %v3662 = vld [vmem:[#allocation2 + $0x78] sm:$0xff]
      %v3663 = vld [vmem:[#allocation2 + $0x80] sm:$0xff]
      %v3664 = vld [vmem:[#allocation2 + $0x88] sm:$0xff]
      %v3665 = vld [vmem:[#allocation2 + $0x90] sm:$0xff]
      %v3666 = vld [vmem:[#allocation2 + $0x98] sm:$0xff]
      %v3667 = vld [vmem:[#allocation2 + $0xa0] sm:$0xff]
      %v3668 = vld [vmem:[#allocation2 + $0xa8] sm:$0xff]
      %v3669 = vld [vmem:[#allocation2 + $0xb0] sm:$0xff]
      %v3670 = vld [vmem:[#allocation2 + $0xb8] sm:$0xff]
      %v3671 = vld [vmem:[#allocation2 + $0xc0] sm:$0xff]
      %v3672 = vld [vmem:[#allocation2 + $0xc8] sm:$0xff]
      %v3673 = vld [vmem:[#allocation2 + $0xd0] sm:$0xff]
      %v3674 = vld [vmem:[#allocation2 + $0xd8] sm:$0xff]
      %v3675 = vld [vmem:[#allocation2 + $0xe0] sm:$0xff]
      %v3676 = vld [vmem:[#allocation2 + $0xe8] sm:$0xff]
      %v3677 = vld [vmem:[#allocation2 + $0xf0] sm:$0xff]
      %v3678 = vld [vmem:[#allocation2 + $0xf8] sm:$0xff]
      %v3679 = vld [vmem:[#allocation2 + $0x100] sm:$0xff]
      %v3680 = vld [vmem:[#allocation2 + $0x108] sm:$0xff]
      %v3681 = vld [vmem:[#allocation2 + $0x110] sm:$0xff]
      %v3682 = vld [vmem:[#allocation2 + $0x118] sm:$0xff]
      %v3683 = vld [vmem:[%s4] sm:$0xff]
      %v3684 = vld [vmem:[%s4 + $0x8] sm:$0xff]
      %v3685 = vld [vmem:[%s4 + $0x10] sm:$0xff]
      %v3686 = vld [vmem:[%s4 + $0x18] sm:$0xff]
      %v3687 = vld [vmem:[#allocation2 + $0x1] sm:$0xff]
      %v3688 = vld [vmem:[#allocation2 + $0x9] sm:$0xff]
      %v3689 = vld [vmem:[#allocation2 + $0x11] sm:$0xff]
      %v3690 = vld [vmem:[#allocation2 + $0x19] sm:$0xff]
      %v3691 = vld [vmem:[#allocation2 + $0x21] sm:$0xff]
      %v3692 = vld [vmem:[#allocation2 + $0x29] sm:$0xff]
      %v3693 = vld [vmem:[#allocation2 + $0x31] sm:$0xff]
      %v3694 = vld [vmem:[#allocation2 + $0x39] sm:$0xff]
      %v3695 = vld [vmem:[#allocation2 + $0x41] sm:$0xff]
      %v3696 = vld [vmem:[#allocation2 + $0x49] sm:$0xff]
      %v3697 = vld [vmem:[#allocation2 + $0x51] sm:$0xff]
      %v3698 = vld [vmem:[#allocation2 + $0x59] sm:$0xff]
      %v3699 = vld [vmem:[#allocation2 + $0x61] sm:$0xff]
      %v3700 = vld [vmem:[#allocation2 + $0x69] sm:$0xff]
      %v3701 = vld [vmem:[#allocation2 + $0x71] sm:$0xff]
      %v3702 = vld [vmem:[#allocation2 + $0x79] sm:$0xff]
      %v3703 = vld [vmem:[#allocation2 + $0x81] sm:$0xff]
      %v3704 = vld [vmem:[#allocation2 + $0x89] sm:$0xff]
      %v3705 = vld [vmem:[#allocation2 + $0x91] sm:$0xff]
      %v3706 = vld [vmem:[#allocation2 + $0x99] sm:$0xff]
      %v3707 = vld [vmem:[#allocation2 + $0xa1] sm:$0xff]
      %v3708 = vld [vmem:[#allocation2 + $0xa9] sm:$0xff]
      %v3709 = vld [vmem:[#allocation2 + $0xb1] sm:$0xff]
      %v3710 = vld [vmem:[#allocation2 + $0xb9] sm:$0xff]
      %v3711 = vld [vmem:[#allocation2 + $0xc1] sm:$0xff]
      %v3712 = vld [vmem:[#allocation2 + $0xc9] sm:$0xff]
      %v3713 = vld [vmem:[#allocation2 + $0xd1] sm:$0xff]
      %v3714 = vld [vmem:[#allocation2 + $0xd9] sm:$0xff]
      %v3715 = vld [vmem:[#allocation2 + $0xe1] sm:$0xff]
      %v3716 = vld [vmem:[#allocation2 + $0xe9] sm:$0xff]
      %v3717 = vld [vmem:[#allocation2 + $0xf1] sm:$0xff]
      %v3718 = vld [vmem:[#allocation2 + $0xf9] sm:$0xff]
      %v3719 = vld [vmem:[#allocation2 + $0x101] sm:$0xff]
      %v3720 = vld [vmem:[#allocation2 + $0x109] sm:$0xff]
      %v3721 = vld [vmem:[#allocation2 + $0x111] sm:$0xff]
      %v3722 = vld [vmem:[#allocation2 + $0x119] sm:$0xff]
      %s3723 = scalar_lea.vmem %s4, 32
      %v3724 = vld [vmem:[%s3723] sm:$0xff]
      %v3725 = vld [vmem:[%s3723 + $0x8] sm:$0xff]
      %v3726 = vld [vmem:[%s3723 + $0x10] sm:$0xff]
      %v3727 = vld [vmem:[%s3723 + $0x18] sm:$0xff]
      %v3729 = vsel %vm439, %v3687, 0
      %v3732 = vsel %vm439, %v3688, 0
      %v3735 = vsel %vm439, %v3689, 0
      %v3738 = vsel %vm439, %v3690, 0
      %v3741 = vsel %vm439, %v3691, 0
      %v3744 = vsel %vm439, %v3692, 0
      %v3747 = vsel %vm439, %v3693, 0
      %v3750 = vsel %vm439, %v3694, 0
      %v3753 = vsel %vm439, %v3695, 0
      %v3756 = vsel %vm439, %v3696, 0
      %v3759 = vsel %vm439, %v3697, 0
      %v3762 = vsel %vm439, %v3698, 0
      %v3765 = vsel %vm439, %v3699, 0
      %v3768 = vsel %vm439, %v3700, 0
      %v3771 = vsel %vm439, %v3701, 0
      %v3774 = vsel %vm439, %v3702, 0
      %v3777 = vsel %vm439, %v3703, 0
      %v3780 = vsel %vm439, %v3704, 0
      %v3783 = vsel %vm439, %v3705, 0
      %v3786 = vsel %vm439, %v3706, 0
      %v3789 = vsel %vm439, %v3707, 0
      %v3792 = vsel %vm439, %v3708, 0
      %v3795 = vsel %vm439, %v3709, 0
      %v3798 = vsel %vm439, %v3710, 0
      %v3801 = vsel %vm439, %v3711, 0
      %v3804 = vsel %vm439, %v3712, 0
      %v3807 = vsel %vm439, %v3713, 0
      %v3810 = vsel %vm439, %v3714, 0
      %v3813 = vsel %vm439, %v3715, 0
      %v3816 = vsel %vm439, %v3716, 0
      %v3819 = vsel %vm439, %v3717, 0
      %v3822 = vsel %vm439, %v3718, 0
      %v3825 = vsel %vm439, %v3719, 0
      %v3828 = vsel %vm439, %v3720, 0
      %v3831 = vsel %vm439, %v3721, 0
      %v3834 = vsel %vm439, %v3722, 0
      %3836 = vmatpush.msra.mxu0 0.0
      %3837 = vmatpush.msra.mxu0 0.0
      %3838 = vmatpush.msra.mxu0 0.0
      %3839 = vmatpush.msra.mxu0 0.0
      %3840 = vmatpush.msra.mxu0 0.0
      %3841 = vmatpush.msra.mxu0 0.0
      %3842 = vmatpush.msra.mxu0 0.0
      %3843 = vmatpush.msra.mxu0 0.0
      %3844 = vmatpush.msra.mxu0 0.0
      %3845 = vmatpush.msra.mxu0 0.0
      %3846 = vmatpush.msra.mxu0 0.0
      %3847 = vmatpush.msra.mxu0 0.0
      %3848 = vmatpush.msra.mxu0 %v3727
      %3849 = vmatpush.msra.mxu0 %v3726
      %3850 = vmatpush.msra.mxu0 %v3725
      %3851 = vmatpush.msra.mxu0 %v3724
      %3852 = vmatmul.f32.gmra.mxu0 %v3729
      %v3853 = vpop.f32.mrf.mxu0
      %v3854 = vadd.f32 0.0, %v3853
      %3855 = vmatmul.f32.gmra.mxu0 %v3732
      %v3856 = vpop.f32.mrf.mxu0
      %v3857 = vadd.f32 0.0, %v3856
      %3858 = vmatmul.f32.gmra.mxu0 %v3735
      %v3859 = vpop.f32.mrf.mxu0
      %v3860 = vadd.f32 0.0, %v3859
      %3861 = vmatmul.f32.gmra.mxu0 %v3738
      %v3862 = vpop.f32.mrf.mxu0
      %v3863 = vadd.f32 0.0, %v3862
      %3864 = vmatmul.f32.gmra.mxu0 %v3741
      %v3865 = vpop.f32.mrf.mxu0
      %v3866 = vadd.f32 0.0, %v3865
      %3867 = vmatmul.f32.gmra.mxu0 %v3744
      %v3868 = vpop.f32.mrf.mxu0
      %v3869 = vadd.f32 0.0, %v3868
      %3870 = vmatmul.f32.gmra.mxu0 %v3747
      %v3871 = vpop.f32.mrf.mxu0
      %v3872 = vadd.f32 0.0, %v3871
      %3873 = vmatmul.f32.gmra.mxu0 %v3750
      %v3874 = vpop.f32.mrf.mxu0
      %v3875 = vadd.f32 0.0, %v3874
      %3876 = vmatmul.f32.gmra.mxu0 %v3753
      %v3877 = vpop.f32.mrf.mxu0
      %v3878 = vadd.f32 0.0, %v3877
      %3879 = vmatmul.f32.gmra.mxu0 %v3756
      %v3880 = vpop.f32.mrf.mxu0
      %v3881 = vadd.f32 0.0, %v3880
      %3882 = vmatmul.f32.gmra.mxu0 %v3759
      %v3883 = vpop.f32.mrf.mxu0
      %v3884 = vadd.f32 0.0, %v3883
      %3885 = vmatmul.f32.gmra.mxu0 %v3762
      %v3886 = vpop.f32.mrf.mxu0
      %v3887 = vadd.f32 0.0, %v3886
      %3888 = vmatmul.f32.gmra.mxu0 %v3765
      %v3889 = vpop.f32.mrf.mxu0
      %v3890 = vadd.f32 0.0, %v3889
      %3891 = vmatmul.f32.gmra.mxu0 %v3768
      %v3892 = vpop.f32.mrf.mxu0
      %v3893 = vadd.f32 0.0, %v3892
      %3894 = vmatmul.f32.gmra.mxu0 %v3771
      %v3895 = vpop.f32.mrf.mxu0
      %v3896 = vadd.f32 0.0, %v3895
      %3897 = vmatmul.f32.gmra.mxu0 %v3774
      %v3898 = vpop.f32.mrf.mxu0
      %v3899 = vadd.f32 0.0, %v3898
      %3900 = vmatmul.f32.gmra.mxu0 %v3777
      %v3901 = vpop.f32.mrf.mxu0
      %v3902 = vadd.f32 0.0, %v3901
      %3903 = vmatmul.f32.gmra.mxu0 %v3780
      %v3904 = vpop.f32.mrf.mxu0
      %v3905 = vadd.f32 0.0, %v3904
      %3906 = vmatmul.f32.gmra.mxu0 %v3783
      %v3907 = vpop.f32.mrf.mxu0
      %v3908 = vadd.f32 0.0, %v3907
      %3909 = vmatmul.f32.gmra.mxu0 %v3786
      %v3910 = vpop.f32.mrf.mxu0
      %v3911 = vadd.f32 0.0, %v3910
      %3912 = vmatmul.f32.gmra.mxu0 %v3789
      %v3913 = vpop.f32.mrf.mxu0
      %v3914 = vadd.f32 0.0, %v3913
      %3915 = vmatmul.f32.gmra.mxu0 %v3792
      %v3916 = vpop.f32.mrf.mxu0
      %v3917 = vadd.f32 0.0, %v3916
      %3918 = vmatmul.f32.gmra.mxu0 %v3795
      %v3919 = vpop.f32.mrf.mxu0
      %v3920 = vadd.f32 0.0, %v3919
      %3921 = vmatmul.f32.gmra.mxu0 %v3798
      %v3922 = vpop.f32.mrf.mxu0
      %v3923 = vadd.f32 0.0, %v3922
      %3924 = vmatmul.f32.gmra.mxu0 %v3801
      %v3925 = vpop.f32.mrf.mxu0
      %v3926 = vadd.f32 0.0, %v3925
      %3927 = vmatmul.f32.gmra.mxu0 %v3804
      %v3928 = vpop.f32.mrf.mxu0
      %v3929 = vadd.f32 0.0, %v3928
      %3930 = vmatmul.f32.gmra.mxu0 %v3807
      %v3931 = vpop.f32.mrf.mxu0
      %v3932 = vadd.f32 0.0, %v3931
      %3933 = vmatmul.f32.gmra.mxu0 %v3810
      %v3934 = vpop.f32.mrf.mxu0
      %v3935 = vadd.f32 0.0, %v3934
      %3936 = vmatmul.f32.gmra.mxu0 %v3813
      %v3937 = vpop.f32.mrf.mxu0
      %v3938 = vadd.f32 0.0, %v3937
      %3939 = vmatmul.f32.gmra.mxu0 %v3816
      %v3940 = vpop.f32.mrf.mxu0
      %v3941 = vadd.f32 0.0, %v3940
      %3942 = vmatmul.f32.gmra.mxu0 %v3819
      %v3943 = vpop.f32.mrf.mxu0
      %v3944 = vadd.f32 0.0, %v3943
      %3945 = vmatmul.f32.gmra.mxu0 %v3822
      %v3946 = vpop.f32.mrf.mxu0
      %v3947 = vadd.f32 0.0, %v3946
      %3948 = vmatmul.f32.gmra.mxu0 %v3825
      %v3949 = vpop.f32.mrf.mxu0
      %v3950 = vadd.f32 0.0, %v3949
      %3951 = vmatmul.f32.gmra.mxu0 %v3828
      %v3952 = vpop.f32.mrf.mxu0
      %v3953 = vadd.f32 0.0, %v3952
      %3954 = vmatmul.f32.gmra.mxu0 %v3831
      %v3955 = vpop.f32.mrf.mxu0
      %v3956 = vadd.f32 0.0, %v3955
      %3957 = vmatmul.f32.gmra.mxu0 %v3834
      %v3958 = vpop.f32.mrf.mxu0
      %v3959 = vadd.f32 0.0, %v3958
      %3960 = vdwg.mxu0
      %v3962 = vsel %vm439, %v3647, 0
      %v3965 = vsel %vm439, %v3648, 0
      %v3968 = vsel %vm439, %v3649, 0
      %v3971 = vsel %vm439, %v3650, 0
      %v3974 = vsel %vm439, %v3651, 0
      %v3977 = vsel %vm439, %v3652, 0
      %v3980 = vsel %vm439, %v3653, 0
      %v3983 = vsel %vm439, %v3654, 0
      %v3986 = vsel %vm439, %v3655, 0
      %v3989 = vsel %vm439, %v3656, 0
      %v3992 = vsel %vm439, %v3657, 0
      %v3995 = vsel %vm439, %v3658, 0
      %v3998 = vsel %vm439, %v3659, 0
      %v4001 = vsel %vm439, %v3660, 0
      %v4004 = vsel %vm439, %v3661, 0
      %v4007 = vsel %vm439, %v3662, 0
      %v4010 = vsel %vm439, %v3663, 0
      %v4013 = vsel %vm439, %v3664, 0
      %v4016 = vsel %vm439, %v3665, 0
      %v4019 = vsel %vm439, %v3666, 0
      %v4022 = vsel %vm439, %v3667, 0
      %v4025 = vsel %vm439, %v3668, 0
      %v4028 = vsel %vm439, %v3669, 0
      %v4031 = vsel %vm439, %v3670, 0
      %v4034 = vsel %vm439, %v3671, 0
      %v4037 = vsel %vm439, %v3672, 0
      %v4040 = vsel %vm439, %v3673, 0
      %v4043 = vsel %vm439, %v3674, 0
      %v4046 = vsel %vm439, %v3675, 0
      %v4049 = vsel %vm439, %v3676, 0
      %v4052 = vsel %vm439, %v3677, 0
      %v4055 = vsel %vm439, %v3678, 0
      %v4058 = vsel %vm439, %v3679, 0
      %v4061 = vsel %vm439, %v3680, 0
      %v4064 = vsel %vm439, %v3681, 0
      %v4067 = vsel %vm439, %v3682, 0
      %4069 = vmatpush.msra.mxu0 0.0
      %4070 = vmatpush.msra.mxu0 0.0
      %4071 = vmatpush.msra.mxu0 0.0
      %4072 = vmatpush.msra.mxu0 0.0
      %4073 = vmatpush.msra.mxu0 0.0
      %4074 = vmatpush.msra.mxu0 0.0
      %4075 = vmatpush.msra.mxu0 0.0
      %4076 = vmatpush.msra.mxu0 0.0
      %4077 = vmatpush.msra.mxu0 0.0
      %4078 = vmatpush.msra.mxu0 0.0
      %4079 = vmatpush.msra.mxu0 0.0
      %4080 = vmatpush.msra.mxu0 0.0
      %4081 = vmatpush.msra.mxu0 %v3686
      %4082 = vmatpush.msra.mxu0 %v3685
      %4083 = vmatpush.msra.mxu0 %v3684
      %4084 = vmatpush.msra.mxu0 %v3683
      %4085 = vmatmul.f32.gmra.mxu0 %v3962
      %v4086 = vpop.f32.mrf.mxu0
      %v4087 = vadd.f32 %v3854, %v4086
      %4088 = vmatmul.f32.gmra.mxu0 %v3965
      %v4089 = vpop.f32.mrf.mxu0
      %v4090 = vadd.f32 %v3857, %v4089
      %4091 = vmatmul.f32.gmra.mxu0 %v3968
      %v4092 = vpop.f32.mrf.mxu0
      %v4093 = vadd.f32 %v3860, %v4092
      %4094 = vmatmul.f32.gmra.mxu0 %v3971
      %v4095 = vpop.f32.mrf.mxu0
      %v4096 = vadd.f32 %v3863, %v4095
      %4097 = vmatmul.f32.gmra.mxu0 %v3974
      %v4098 = vpop.f32.mrf.mxu0
      %v4099 = vadd.f32 %v3866, %v4098
      %4100 = vmatmul.f32.gmra.mxu0 %v3977
      %v4101 = vpop.f32.mrf.mxu0
      %v4102 = vadd.f32 %v3869, %v4101
      %4103 = vmatmul.f32.gmra.mxu0 %v3980
      %v4104 = vpop.f32.mrf.mxu0
      %v4105 = vadd.f32 %v3872, %v4104
      %4106 = vmatmul.f32.gmra.mxu0 %v3983
      %v4107 = vpop.f32.mrf.mxu0
      %v4108 = vadd.f32 %v3875, %v4107
      %4109 = vmatmul.f32.gmra.mxu0 %v3986
      %v4110 = vpop.f32.mrf.mxu0
      %v4111 = vadd.f32 %v3878, %v4110
      %4112 = vmatmul.f32.gmra.mxu0 %v3989
      %v4113 = vpop.f32.mrf.mxu0
      %v4114 = vadd.f32 %v3881, %v4113
      %4115 = vmatmul.f32.gmra.mxu0 %v3992
      %v4116 = vpop.f32.mrf.mxu0
      %v4117 = vadd.f32 %v3884, %v4116
      %4118 = vmatmul.f32.gmra.mxu0 %v3995
      %v4119 = vpop.f32.mrf.mxu0
      %v4120 = vadd.f32 %v3887, %v4119
      %4121 = vmatmul.f32.gmra.mxu0 %v3998
      %v4122 = vpop.f32.mrf.mxu0
      %v4123 = vadd.f32 %v3890, %v4122
      %4124 = vmatmul.f32.gmra.mxu0 %v4001
      %v4125 = vpop.f32.mrf.mxu0
      %v4126 = vadd.f32 %v3893, %v4125
      %4127 = vmatmul.f32.gmra.mxu0 %v4004
      %v4128 = vpop.f32.mrf.mxu0
      %v4129 = vadd.f32 %v3896, %v4128
      %4130 = vmatmul.f32.gmra.mxu0 %v4007
      %v4131 = vpop.f32.mrf.mxu0
      %v4132 = vadd.f32 %v3899, %v4131
      %4133 = vmatmul.f32.gmra.mxu0 %v4010
      %v4134 = vpop.f32.mrf.mxu0
      %v4135 = vadd.f32 %v3902, %v4134
      %4136 = vmatmul.f32.gmra.mxu0 %v4013
      %v4137 = vpop.f32.mrf.mxu0
      %v4138 = vadd.f32 %v3905, %v4137
      %4139 = vmatmul.f32.gmra.mxu0 %v4016
      %v4140 = vpop.f32.mrf.mxu0
      %v4141 = vadd.f32 %v3908, %v4140
      %4142 = vmatmul.f32.gmra.mxu0 %v4019
      %v4143 = vpop.f32.mrf.mxu0
      %v4144 = vadd.f32 %v3911, %v4143
      %4145 = vmatmul.f32.gmra.mxu0 %v4022
      %v4146 = vpop.f32.mrf.mxu0
      %v4147 = vadd.f32 %v3914, %v4146
      %4148 = vmatmul.f32.gmra.mxu0 %v4025
      %v4149 = vpop.f32.mrf.mxu0
      %v4150 = vadd.f32 %v3917, %v4149
      %4151 = vmatmul.f32.gmra.mxu0 %v4028
      %v4152 = vpop.f32.mrf.mxu0
      %v4153 = vadd.f32 %v3920, %v4152
      %4154 = vmatmul.f32.gmra.mxu0 %v4031
      %v4155 = vpop.f32.mrf.mxu0
      %v4156 = vadd.f32 %v3923, %v4155
      %4157 = vmatmul.f32.gmra.mxu0 %v4034
      %v4158 = vpop.f32.mrf.mxu0
      %v4159 = vadd.f32 %v3926, %v4158
      %4160 = vmatmul.f32.gmra.mxu0 %v4037
      %v4161 = vpop.f32.mrf.mxu0
      %v4162 = vadd.f32 %v3929, %v4161
      %4163 = vmatmul.f32.gmra.mxu0 %v4040
      %v4164 = vpop.f32.mrf.mxu0
      %v4165 = vadd.f32 %v3932, %v4164
      %4166 = vmatmul.f32.gmra.mxu0 %v4043
      %v4167 = vpop.f32.mrf.mxu0
      %v4168 = vadd.f32 %v3935, %v4167
      %4169 = vmatmul.f32.gmra.mxu0 %v4046
      %v4170 = vpop.f32.mrf.mxu0
      %v4171 = vadd.f32 %v3938, %v4170
      %4172 = vmatmul.f32.gmra.mxu0 %v4049
      %v4173 = vpop.f32.mrf.mxu0
      %v4174 = vadd.f32 %v3941, %v4173
      %4175 = vmatmul.f32.gmra.mxu0 %v4052
      %v4176 = vpop.f32.mrf.mxu0
      %v4177 = vadd.f32 %v3944, %v4176
      %4178 = vmatmul.f32.gmra.mxu0 %v4055
      %v4179 = vpop.f32.mrf.mxu0
      %v4180 = vadd.f32 %v3947, %v4179
      %4181 = vmatmul.f32.gmra.mxu0 %v4058
      %v4182 = vpop.f32.mrf.mxu0
      %v4183 = vadd.f32 %v3950, %v4182
      %4184 = vmatmul.f32.gmra.mxu0 %v4061
      %v4185 = vpop.f32.mrf.mxu0
      %v4186 = vadd.f32 %v3953, %v4185
      %4187 = vmatmul.f32.gmra.mxu0 %v4064
      %v4188 = vpop.f32.mrf.mxu0
      %v4189 = vadd.f32 %v3956, %v4188
      %4190 = vmatmul.f32.gmra.mxu0 %v4067
      %v4191 = vpop.f32.mrf.mxu0
      %v4192 = vadd.f32 %v3959, %v4191
      %4193 = vdwg.mxu0
      %v4194 = vld [vmem:[#allocation2 + $0x2] sm:$0xff]
      %v4195 = vld [vmem:[#allocation2 + $0xa] sm:$0xff]
      %v4196 = vld [vmem:[#allocation2 + $0x12] sm:$0xff]
      %v4197 = vld [vmem:[#allocation2 + $0x1a] sm:$0xff]
      %v4198 = vld [vmem:[#allocation2 + $0x22] sm:$0xff]
      %v4199 = vld [vmem:[#allocation2 + $0x2a] sm:$0xff]
      %v4200 = vld [vmem:[#allocation2 + $0x32] sm:$0xff]
      %v4201 = vld [vmem:[#allocation2 + $0x3a] sm:$0xff]
      %v4202 = vld [vmem:[#allocation2 + $0x42] sm:$0xff]
      %v4203 = vld [vmem:[#allocation2 + $0x4a] sm:$0xff]
      %v4204 = vld [vmem:[#allocation2 + $0x52] sm:$0xff]
      %v4205 = vld [vmem:[#allocation2 + $0x5a] sm:$0xff]
      %v4206 = vld [vmem:[#allocation2 + $0x62] sm:$0xff]
      %v4207 = vld [vmem:[#allocation2 + $0x6a] sm:$0xff]
      %v4208 = vld [vmem:[#allocation2 + $0x72] sm:$0xff]
      %v4209 = vld [vmem:[#allocation2 + $0x7a] sm:$0xff]
      %v4210 = vld [vmem:[#allocation2 + $0x82] sm:$0xff]
      %v4211 = vld [vmem:[#allocation2 + $0x8a] sm:$0xff]
      %v4212 = vld [vmem:[#allocation2 + $0x92] sm:$0xff]
      %v4213 = vld [vmem:[#allocation2 + $0x9a] sm:$0xff]
      %v4214 = vld [vmem:[#allocation2 + $0xa2] sm:$0xff]
      %v4215 = vld [vmem:[#allocation2 + $0xaa] sm:$0xff]
      %v4216 = vld [vmem:[#allocation2 + $0xb2] sm:$0xff]
      %v4217 = vld [vmem:[#allocation2 + $0xba] sm:$0xff]
      %v4218 = vld [vmem:[#allocation2 + $0xc2] sm:$0xff]
      %v4219 = vld [vmem:[#allocation2 + $0xca] sm:$0xff]
      %v4220 = vld [vmem:[#allocation2 + $0xd2] sm:$0xff]
      %v4221 = vld [vmem:[#allocation2 + $0xda] sm:$0xff]
      %v4222 = vld [vmem:[#allocation2 + $0xe2] sm:$0xff]
      %v4223 = vld [vmem:[#allocation2 + $0xea] sm:$0xff]
      %v4224 = vld [vmem:[#allocation2 + $0xf2] sm:$0xff]
      %v4225 = vld [vmem:[#allocation2 + $0xfa] sm:$0xff]
      %v4226 = vld [vmem:[#allocation2 + $0x102] sm:$0xff]
      %v4227 = vld [vmem:[#allocation2 + $0x10a] sm:$0xff]
      %v4228 = vld [vmem:[#allocation2 + $0x112] sm:$0xff]
      %v4229 = vld [vmem:[#allocation2 + $0x11a] sm:$0xff]
      %s4230 = scalar_lea.vmem %s4, 64
      %v4231 = vld [vmem:[%s4230] sm:$0xff]
      %v4232 = vld [vmem:[%s4230 + $0x8] sm:$0xff]
      %v4233 = vld [vmem:[%s4230 + $0x10] sm:$0xff]
      %v4234 = vld [vmem:[%s4230 + $0x18] sm:$0xff]
      %v4236 = vsel %vm439, %v4194, 0
      %v4239 = vsel %vm439, %v4195, 0
      %v4242 = vsel %vm439, %v4196, 0
      %v4245 = vsel %vm439, %v4197, 0
      %v4248 = vsel %vm439, %v4198, 0
      %v4251 = vsel %vm439, %v4199, 0
      %v4254 = vsel %vm439, %v4200, 0
      %v4257 = vsel %vm439, %v4201, 0
      %v4260 = vsel %vm439, %v4202, 0
      %v4263 = vsel %vm439, %v4203, 0
      %v4266 = vsel %vm439, %v4204, 0
      %v4269 = vsel %vm439, %v4205, 0
      %v4272 = vsel %vm439, %v4206, 0
      %v4275 = vsel %vm439, %v4207, 0
      %v4278 = vsel %vm439, %v4208, 0
      %v4281 = vsel %vm439, %v4209, 0
      %v4284 = vsel %vm439, %v4210, 0
      %v4287 = vsel %vm439, %v4211, 0
      %v4290 = vsel %vm439, %v4212, 0
      %v4293 = vsel %vm439, %v4213, 0
      %v4296 = vsel %vm439, %v4214, 0
      %v4299 = vsel %vm439, %v4215, 0
      %v4302 = vsel %vm439, %v4216, 0
      %v4305 = vsel %vm439, %v4217, 0
      %v4308 = vsel %vm439, %v4218, 0
      %v4311 = vsel %vm439, %v4219, 0
      %v4314 = vsel %vm439, %v4220, 0
      %v4317 = vsel %vm439, %v4221, 0
      %v4320 = vsel %vm439, %v4222, 0
      %v4323 = vsel %vm439, %v4223, 0
      %v4326 = vsel %vm439, %v4224, 0
      %v4329 = vsel %vm439, %v4225, 0
      %v4332 = vsel %vm439, %v4226, 0
      %v4335 = vsel %vm439, %v4227, 0
      %v4338 = vsel %vm439, %v4228, 0
      %v4341 = vsel %vm439, %v4229, 0
      %4343 = vmatpush.msra.mxu0 0.0
      %4344 = vmatpush.msra.mxu0 0.0
      %4345 = vmatpush.msra.mxu0 0.0
      %4346 = vmatpush.msra.mxu0 0.0
      %4347 = vmatpush.msra.mxu0 0.0
      %4348 = vmatpush.msra.mxu0 0.0
      %4349 = vmatpush.msra.mxu0 0.0
      %4350 = vmatpush.msra.mxu0 0.0
      %4351 = vmatpush.msra.mxu0 0.0
      %4352 = vmatpush.msra.mxu0 0.0
      %4353 = vmatpush.msra.mxu0 0.0
      %4354 = vmatpush.msra.mxu0 0.0
      %4355 = vmatpush.msra.mxu0 %v4234
      %4356 = vmatpush.msra.mxu0 %v4233
      %4357 = vmatpush.msra.mxu0 %v4232
      %4358 = vmatpush.msra.mxu0 %v4231
      %4359 = vmatmul.f32.gmra.mxu0 %v4236
      %v4360 = vpop.f32.mrf.mxu0
      %v4361 = vadd.f32 0.0, %v4360
      %4362 = vmatmul.f32.gmra.mxu0 %v4239
      %v4363 = vpop.f32.mrf.mxu0
      %v4364 = vadd.f32 0.0, %v4363
      %4365 = vmatmul.f32.gmra.mxu0 %v4242
      %v4366 = vpop.f32.mrf.mxu0
      %v4367 = vadd.f32 0.0, %v4366
      %4368 = vmatmul.f32.gmra.mxu0 %v4245
      %v4369 = vpop.f32.mrf.mxu0
      %v4370 = vadd.f32 0.0, %v4369
      %4371 = vmatmul.f32.gmra.mxu0 %v4248
      %v4372 = vpop.f32.mrf.mxu0
      %v4373 = vadd.f32 0.0, %v4372
      %4374 = vmatmul.f32.gmra.mxu0 %v4251
      %v4375 = vpop.f32.mrf.mxu0
      %v4376 = vadd.f32 0.0, %v4375
      %4377 = vmatmul.f32.gmra.mxu0 %v4254
      %v4378 = vpop.f32.mrf.mxu0
      %v4379 = vadd.f32 0.0, %v4378
      %4380 = vmatmul.f32.gmra.mxu0 %v4257
      %v4381 = vpop.f32.mrf.mxu0
      %v4382 = vadd.f32 0.0, %v4381
      %4383 = vmatmul.f32.gmra.mxu0 %v4260
      %v4384 = vpop.f32.mrf.mxu0
      %v4385 = vadd.f32 0.0, %v4384
      %4386 = vmatmul.f32.gmra.mxu0 %v4263
      %v4387 = vpop.f32.mrf.mxu0
      %v4388 = vadd.f32 0.0, %v4387
      %4389 = vmatmul.f32.gmra.mxu0 %v4266
      %v4390 = vpop.f32.mrf.mxu0
      %v4391 = vadd.f32 0.0, %v4390
      %4392 = vmatmul.f32.gmra.mxu0 %v4269
      %v4393 = vpop.f32.mrf.mxu0
      %v4394 = vadd.f32 0.0, %v4393
      %4395 = vmatmul.f32.gmra.mxu0 %v4272
      %v4396 = vpop.f32.mrf.mxu0
      %v4397 = vadd.f32 0.0, %v4396
      %4398 = vmatmul.f32.gmra.mxu0 %v4275
      %v4399 = vpop.f32.mrf.mxu0
      %v4400 = vadd.f32 0.0, %v4399
      %4401 = vmatmul.f32.gmra.mxu0 %v4278
      %v4402 = vpop.f32.mrf.mxu0
      %v4403 = vadd.f32 0.0, %v4402
      %4404 = vmatmul.f32.gmra.mxu0 %v4281
      %v4405 = vpop.f32.mrf.mxu0
      %v4406 = vadd.f32 0.0, %v4405
      %4407 = vmatmul.f32.gmra.mxu0 %v4284
      %v4408 = vpop.f32.mrf.mxu0
      %v4409 = vadd.f32 0.0, %v4408
      %4410 = vmatmul.f32.gmra.mxu0 %v4287
      %v4411 = vpop.f32.mrf.mxu0
      %v4412 = vadd.f32 0.0, %v4411
      %4413 = vmatmul.f32.gmra.mxu0 %v4290
      %v4414 = vpop.f32.mrf.mxu0
      %v4415 = vadd.f32 0.0, %v4414
      %4416 = vmatmul.f32.gmra.mxu0 %v4293
      %v4417 = vpop.f32.mrf.mxu0
      %v4418 = vadd.f32 0.0, %v4417
      %4419 = vmatmul.f32.gmra.mxu0 %v4296
      %v4420 = vpop.f32.mrf.mxu0
      %v4421 = vadd.f32 0.0, %v4420
      %4422 = vmatmul.f32.gmra.mxu0 %v4299
      %v4423 = vpop.f32.mrf.mxu0
      %v4424 = vadd.f32 0.0, %v4423
      %4425 = vmatmul.f32.gmra.mxu0 %v4302
      %v4426 = vpop.f32.mrf.mxu0
      %v4427 = vadd.f32 0.0, %v4426
      %4428 = vmatmul.f32.gmra.mxu0 %v4305
      %v4429 = vpop.f32.mrf.mxu0
      %v4430 = vadd.f32 0.0, %v4429
      %4431 = vmatmul.f32.gmra.mxu0 %v4308
      %v4432 = vpop.f32.mrf.mxu0
      %v4433 = vadd.f32 0.0, %v4432
      %4434 = vmatmul.f32.gmra.mxu0 %v4311
      %v4435 = vpop.f32.mrf.mxu0
      %v4436 = vadd.f32 0.0, %v4435
      %4437 = vmatmul.f32.gmra.mxu0 %v4314
      %v4438 = vpop.f32.mrf.mxu0
      %v4439 = vadd.f32 0.0, %v4438
      %4440 = vmatmul.f32.gmra.mxu0 %v4317
      %v4441 = vpop.f32.mrf.mxu0
      %v4442 = vadd.f32 0.0, %v4441
      %4443 = vmatmul.f32.gmra.mxu0 %v4320
      %v4444 = vpop.f32.mrf.mxu0
      %v4445 = vadd.f32 0.0, %v4444
      %4446 = vmatmul.f32.gmra.mxu0 %v4323
      %v4447 = vpop.f32.mrf.mxu0
      %v4448 = vadd.f32 0.0, %v4447
      %4449 = vmatmul.f32.gmra.mxu0 %v4326
      %v4450 = vpop.f32.mrf.mxu0
      %v4451 = vadd.f32 0.0, %v4450
      %4452 = vmatmul.f32.gmra.mxu0 %v4329
      %v4453 = vpop.f32.mrf.mxu0
      %v4454 = vadd.f32 0.0, %v4453
      %4455 = vmatmul.f32.gmra.mxu0 %v4332
      %v4456 = vpop.f32.mrf.mxu0
      %v4457 = vadd.f32 0.0, %v4456
      %4458 = vmatmul.f32.gmra.mxu0 %v4335
      %v4459 = vpop.f32.mrf.mxu0
      %v4460 = vadd.f32 0.0, %v4459
      %4461 = vmatmul.f32.gmra.mxu0 %v4338
      %v4462 = vpop.f32.mrf.mxu0
      %v4463 = vadd.f32 0.0, %v4462
      %4464 = vmatmul.f32.gmra.mxu0 %v4341
      %v4465 = vpop.f32.mrf.mxu0
      %v4466 = vadd.f32 0.0, %v4465
      %4467 = vdwg.mxu0
      %v4468 = vadd.f32 %v4087, %v4361
      %v4469 = vadd.f32 %v4090, %v4364
      %v4470 = vadd.f32 %v4093, %v4367
      %v4471 = vadd.f32 %v4096, %v4370
      %v4472 = vadd.f32 %v4099, %v4373
      %v4473 = vadd.f32 %v4102, %v4376
      %v4474 = vadd.f32 %v4105, %v4379
      %v4475 = vadd.f32 %v4108, %v4382
      %v4476 = vadd.f32 %v4111, %v4385
      %v4477 = vadd.f32 %v4114, %v4388
      %v4478 = vadd.f32 %v4117, %v4391
      %v4479 = vadd.f32 %v4120, %v4394
      %v4480 = vadd.f32 %v4123, %v4397
      %v4481 = vadd.f32 %v4126, %v4400
      %v4482 = vadd.f32 %v4129, %v4403
      %v4483 = vadd.f32 %v4132, %v4406
      %v4484 = vadd.f32 %v4135, %v4409
      %v4485 = vadd.f32 %v4138, %v4412
      %v4486 = vadd.f32 %v4141, %v4415
      %v4487 = vadd.f32 %v4144, %v4418
      %v4488 = vadd.f32 %v4147, %v4421
      %v4489 = vadd.f32 %v4150, %v4424
      %v4490 = vadd.f32 %v4153, %v4427
      %v4491 = vadd.f32 %v4156, %v4430
      %v4492 = vadd.f32 %v4159, %v4433
      %v4493 = vadd.f32 %v4162, %v4436
      %v4494 = vadd.f32 %v4165, %v4439
      %v4495 = vadd.f32 %v4168, %v4442
      %v4496 = vadd.f32 %v4171, %v4445
      %v4497 = vadd.f32 %v4174, %v4448
      %v4498 = vadd.f32 %v4177, %v4451
      %v4499 = vadd.f32 %v4180, %v4454
      %v4500 = vadd.f32 %v4183, %v4457
      %v4501 = vadd.f32 %v4186, %v4460
      %v4502 = vadd.f32 %v4189, %v4463
      %v4503 = vadd.f32 %v4192, %v4466
      %v4504 = vld [vmem:[#allocation2 + $0x12] sm:$0xff]
      %v4505 = vld [vmem:[#allocation2 + $0x1a] sm:$0xff]
      %v4506 = vld [vmem:[#allocation2 + $0x22] sm:$0xff]
      %v4507 = vld [vmem:[#allocation2 + $0x2a] sm:$0xff]
      %v4508 = vld [vmem:[#allocation2 + $0x32] sm:$0xff]
      %v4509 = vld [vmem:[#allocation2 + $0x3a] sm:$0xff]
      %v4510 = vld [vmem:[#allocation2 + $0x42] sm:$0xff]
      %v4511 = vld [vmem:[#allocation2 + $0x4a] sm:$0xff]
      %v4512 = vld [vmem:[#allocation2 + $0x52] sm:$0xff]
      %v4513 = vld [vmem:[#allocation2 + $0x5a] sm:$0xff]
      %v4514 = vld [vmem:[#allocation2 + $0x62] sm:$0xff]
      %v4515 = vld [vmem:[#allocation2 + $0x6a] sm:$0xff]
      %v4516 = vld [vmem:[#allocation2 + $0x72] sm:$0xff]
      %v4517 = vld [vmem:[#allocation2 + $0x7a] sm:$0xff]
      %v4518 = vld [vmem:[#allocation2 + $0x82] sm:$0xff]
      %v4519 = vld [vmem:[#allocation2 + $0x8a] sm:$0xff]
      %v4520 = vld [vmem:[#allocation2 + $0x92] sm:$0xff]
      %v4521 = vld [vmem:[#allocation2 + $0x9a] sm:$0xff]
      %v4522 = vld [vmem:[#allocation2 + $0xa2] sm:$0xff]
      %v4523 = vld [vmem:[#allocation2 + $0xaa] sm:$0xff]
      %v4524 = vld [vmem:[#allocation2 + $0xb2] sm:$0xff]
      %v4525 = vld [vmem:[#allocation2 + $0xba] sm:$0xff]
      %v4526 = vld [vmem:[#allocation2 + $0xc2] sm:$0xff]
      %v4527 = vld [vmem:[#allocation2 + $0xca] sm:$0xff]
      %v4528 = vld [vmem:[#allocation2 + $0xd2] sm:$0xff]
      %v4529 = vld [vmem:[#allocation2 + $0xda] sm:$0xff]
      %v4530 = vld [vmem:[#allocation2 + $0xe2] sm:$0xff]
      %v4531 = vld [vmem:[#allocation2 + $0xea] sm:$0xff]
      %v4532 = vld [vmem:[#allocation2 + $0xf2] sm:$0xff]
      %v4533 = vld [vmem:[#allocation2 + $0xfa] sm:$0xff]
      %v4534 = vld [vmem:[#allocation2 + $0x102] sm:$0xff]
      %v4535 = vld [vmem:[#allocation2 + $0x10a] sm:$0xff]
      %v4536 = vld [vmem:[#allocation2 + $0x112] sm:$0xff]
      %v4537 = vld [vmem:[#allocation2 + $0x11a] sm:$0xff]
      %v4538 = vld [vmem:[#allocation2 + $0x122] sm:$0xff]
      %v4539 = vld [vmem:[#allocation2 + $0x12a] sm:$0xff]
      %s4540 = scalar_lea.vmem %s4, 96
      %v4541 = vld [vmem:[%s4540] sm:$0xff]
      %v4542 = vld [vmem:[%s4540 + $0x8] sm:$0xff]
      %v4543 = vld [vmem:[%s4540 + $0x10] sm:$0xff]
      %v4544 = vld [vmem:[%s4540 + $0x18] sm:$0xff]
      %v4546 = vsel %vm439, %v4504, 0
      %v4549 = vsel %vm439, %v4505, 0
      %v4552 = vsel %vm439, %v4506, 0
      %v4555 = vsel %vm439, %v4507, 0
      %v4558 = vsel %vm439, %v4508, 0
      %v4561 = vsel %vm439, %v4509, 0
      %v4564 = vsel %vm439, %v4510, 0
      %v4567 = vsel %vm439, %v4511, 0
      %v4570 = vsel %vm439, %v4512, 0
      %v4573 = vsel %vm439, %v4513, 0
      %v4576 = vsel %vm439, %v4514, 0
      %v4579 = vsel %vm439, %v4515, 0
      %v4582 = vsel %vm439, %v4516, 0
      %v4585 = vsel %vm439, %v4517, 0
      %v4588 = vsel %vm439, %v4518, 0
      %v4591 = vsel %vm439, %v4519, 0
      %v4594 = vsel %vm439, %v4520, 0
      %v4597 = vsel %vm439, %v4521, 0
      %v4600 = vsel %vm439, %v4522, 0
      %v4603 = vsel %vm439, %v4523, 0
      %v4606 = vsel %vm439, %v4524, 0
      %v4609 = vsel %vm439, %v4525, 0
      %v4612 = vsel %vm439, %v4526, 0
      %v4615 = vsel %vm439, %v4527, 0
      %v4618 = vsel %vm439, %v4528, 0
      %v4621 = vsel %vm439, %v4529, 0
      %v4624 = vsel %vm439, %v4530, 0
      %v4627 = vsel %vm439, %v4531, 0
      %v4630 = vsel %vm439, %v4532, 0
      %v4633 = vsel %vm439, %v4533, 0
      %v4636 = vsel %vm439, %v4534, 0
      %v4639 = vsel %vm439, %v4535, 0
      %v4642 = vsel %vm439, %v4536, 0
      %v4645 = vsel %vm439, %v4537, 0
      %v4648 = vsel %vm439, %v4538, 0
      %v4651 = vsel %vm439, %v4539, 0
      %4653 = vmatpush.msra.mxu0 0.0
      %4654 = vmatpush.msra.mxu0 0.0
      %4655 = vmatpush.msra.mxu0 0.0
      %4656 = vmatpush.msra.mxu0 0.0
      %4657 = vmatpush.msra.mxu0 0.0
      %4658 = vmatpush.msra.mxu0 0.0
      %4659 = vmatpush.msra.mxu0 0.0
      %4660 = vmatpush.msra.mxu0 0.0
      %4661 = vmatpush.msra.mxu0 0.0
      %4662 = vmatpush.msra.mxu0 0.0
      %4663 = vmatpush.msra.mxu0 0.0
      %4664 = vmatpush.msra.mxu0 0.0
      %4665 = vmatpush.msra.mxu0 %v4544
      %4666 = vmatpush.msra.mxu0 %v4543
      %4667 = vmatpush.msra.mxu0 %v4542
      %4668 = vmatpush.msra.mxu0 %v4541
      %4669 = vmatmul.f32.gmra.mxu0 %v4546
      %v4670 = vpop.f32.mrf.mxu0
      %v4671 = vadd.f32 0.0, %v4670
      %4672 = vmatmul.f32.gmra.mxu0 %v4549
      %v4673 = vpop.f32.mrf.mxu0
      %v4674 = vadd.f32 0.0, %v4673
      %4675 = vmatmul.f32.gmra.mxu0 %v4552
      %v4676 = vpop.f32.mrf.mxu0
      %v4677 = vadd.f32 0.0, %v4676
      %4678 = vmatmul.f32.gmra.mxu0 %v4555
      %v4679 = vpop.f32.mrf.mxu0
      %v4680 = vadd.f32 0.0, %v4679
      %4681 = vmatmul.f32.gmra.mxu0 %v4558
      %v4682 = vpop.f32.mrf.mxu0
      %v4683 = vadd.f32 0.0, %v4682
      %4684 = vmatmul.f32.gmra.mxu0 %v4561
      %v4685 = vpop.f32.mrf.mxu0
      %v4686 = vadd.f32 0.0, %v4685
      %4687 = vmatmul.f32.gmra.mxu0 %v4564
      %v4688 = vpop.f32.mrf.mxu0
      %v4689 = vadd.f32 0.0, %v4688
      %4690 = vmatmul.f32.gmra.mxu0 %v4567
      %v4691 = vpop.f32.mrf.mxu0
      %v4692 = vadd.f32 0.0, %v4691
      %4693 = vmatmul.f32.gmra.mxu0 %v4570
      %v4694 = vpop.f32.mrf.mxu0
      %v4695 = vadd.f32 0.0, %v4694
      %4696 = vmatmul.f32.gmra.mxu0 %v4573
      %v4697 = vpop.f32.mrf.mxu0
      %v4698 = vadd.f32 0.0, %v4697
      %4699 = vmatmul.f32.gmra.mxu0 %v4576
      %v4700 = vpop.f32.mrf.mxu0
      %v4701 = vadd.f32 0.0, %v4700
      %4702 = vmatmul.f32.gmra.mxu0 %v4579
      %v4703 = vpop.f32.mrf.mxu0
      %v4704 = vadd.f32 0.0, %v4703
      %4705 = vmatmul.f32.gmra.mxu0 %v4582
      %v4706 = vpop.f32.mrf.mxu0
      %v4707 = vadd.f32 0.0, %v4706
      %4708 = vmatmul.f32.gmra.mxu0 %v4585
      %v4709 = vpop.f32.mrf.mxu0
      %v4710 = vadd.f32 0.0, %v4709
      %4711 = vmatmul.f32.gmra.mxu0 %v4588
      %v4712 = vpop.f32.mrf.mxu0
      %v4713 = vadd.f32 0.0, %v4712
      %4714 = vmatmul.f32.gmra.mxu0 %v4591
      %v4715 = vpop.f32.mrf.mxu0
      %v4716 = vadd.f32 0.0, %v4715
      %4717 = vmatmul.f32.gmra.mxu0 %v4594
      %v4718 = vpop.f32.mrf.mxu0
      %v4719 = vadd.f32 0.0, %v4718
      %4720 = vmatmul.f32.gmra.mxu0 %v4597
      %v4721 = vpop.f32.mrf.mxu0
      %v4722 = vadd.f32 0.0, %v4721
      %4723 = vmatmul.f32.gmra.mxu0 %v4600
      %v4724 = vpop.f32.mrf.mxu0
      %v4725 = vadd.f32 0.0, %v4724
      %4726 = vmatmul.f32.gmra.mxu0 %v4603
      %v4727 = vpop.f32.mrf.mxu0
      %v4728 = vadd.f32 0.0, %v4727
      %4729 = vmatmul.f32.gmra.mxu0 %v4606
      %v4730 = vpop.f32.mrf.mxu0
      %v4731 = vadd.f32 0.0, %v4730
      %4732 = vmatmul.f32.gmra.mxu0 %v4609
      %v4733 = vpop.f32.mrf.mxu0
      %v4734 = vadd.f32 0.0, %v4733
      %4735 = vmatmul.f32.gmra.mxu0 %v4612
      %v4736 = vpop.f32.mrf.mxu0
      %v4737 = vadd.f32 0.0, %v4736
      %4738 = vmatmul.f32.gmra.mxu0 %v4615
      %v4739 = vpop.f32.mrf.mxu0
      %v4740 = vadd.f32 0.0, %v4739
      %4741 = vmatmul.f32.gmra.mxu0 %v4618
      %v4742 = vpop.f32.mrf.mxu0
      %v4743 = vadd.f32 0.0, %v4742
      %4744 = vmatmul.f32.gmra.mxu0 %v4621
      %v4745 = vpop.f32.mrf.mxu0
      %v4746 = vadd.f32 0.0, %v4745
      %4747 = vmatmul.f32.gmra.mxu0 %v4624
      %v4748 = vpop.f32.mrf.mxu0
      %v4749 = vadd.f32 0.0, %v4748
      %4750 = vmatmul.f32.gmra.mxu0 %v4627
      %v4751 = vpop.f32.mrf.mxu0
      %v4752 = vadd.f32 0.0, %v4751
      %4753 = vmatmul.f32.gmra.mxu0 %v4630
      %v4754 = vpop.f32.mrf.mxu0
      %v4755 = vadd.f32 0.0, %v4754
      %4756 = vmatmul.f32.gmra.mxu0 %v4633
      %v4757 = vpop.f32.mrf.mxu0
      %v4758 = vadd.f32 0.0, %v4757
      %4759 = vmatmul.f32.gmra.mxu0 %v4636
      %v4760 = vpop.f32.mrf.mxu0
      %v4761 = vadd.f32 0.0, %v4760
      %4762 = vmatmul.f32.gmra.mxu0 %v4639
      %v4763 = vpop.f32.mrf.mxu0
      %v4764 = vadd.f32 0.0, %v4763
      %4765 = vmatmul.f32.gmra.mxu0 %v4642
      %v4766 = vpop.f32.mrf.mxu0
      %v4767 = vadd.f32 0.0, %v4766
      %4768 = vmatmul.f32.gmra.mxu0 %v4645
      %v4769 = vpop.f32.mrf.mxu0
      %v4770 = vadd.f32 0.0, %v4769
      %4771 = vmatmul.f32.gmra.mxu0 %v4648
      %v4772 = vpop.f32.mrf.mxu0
      %v4773 = vadd.f32 0.0, %v4772
      %4774 = vmatmul.f32.gmra.mxu0 %v4651
      %v4775 = vpop.f32.mrf.mxu0
      %v4776 = vadd.f32 0.0, %v4775
      %4777 = vdwg.mxu0
      %v4778 = vadd.f32 %v4468, %v4671
      %v4779 = vadd.f32 %v4469, %v4674
      %v4780 = vadd.f32 %v4470, %v4677
      %v4781 = vadd.f32 %v4471, %v4680
      %v4782 = vadd.f32 %v4472, %v4683
      %v4783 = vadd.f32 %v4473, %v4686
      %v4784 = vadd.f32 %v4474, %v4689
      %v4785 = vadd.f32 %v4475, %v4692
      %v4786 = vadd.f32 %v4476, %v4695
      %v4787 = vadd.f32 %v4477, %v4698
      %v4788 = vadd.f32 %v4478, %v4701
      %v4789 = vadd.f32 %v4479, %v4704
      %v4790 = vadd.f32 %v4480, %v4707
      %v4791 = vadd.f32 %v4481, %v4710
      %v4792 = vadd.f32 %v4482, %v4713
      %v4793 = vadd.f32 %v4483, %v4716
      %v4794 = vadd.f32 %v4484, %v4719
      %v4795 = vadd.f32 %v4485, %v4722
      %v4796 = vadd.f32 %v4486, %v4725
      %v4797 = vadd.f32 %v4487, %v4728
      %v4798 = vadd.f32 %v4488, %v4731
      %v4799 = vadd.f32 %v4489, %v4734
      %v4800 = vadd.f32 %v4490, %v4737
      %v4801 = vadd.f32 %v4491, %v4740
      %v4802 = vadd.f32 %v4492, %v4743
      %v4803 = vadd.f32 %v4493, %v4746
      %v4804 = vadd.f32 %v4494, %v4749
      %v4805 = vadd.f32 %v4495, %v4752
      %v4806 = vadd.f32 %v4496, %v4755
      %v4807 = vadd.f32 %v4497, %v4758
      %v4808 = vadd.f32 %v4498, %v4761
      %v4809 = vadd.f32 %v4499, %v4764
      %v4810 = vadd.f32 %v4500, %v4767
      %v4811 = vadd.f32 %v4501, %v4770
      %v4812 = vadd.f32 %v4502, %v4773
      %v4813 = vadd.f32 %v4503, %v4776
      %v4814 = vld [vmem:[#allocation2 + $0x13] sm:$0xff]
      %v4815 = vld [vmem:[#allocation2 + $0x1b] sm:$0xff]
      %v4816 = vld [vmem:[#allocation2 + $0x23] sm:$0xff]
      %v4817 = vld [vmem:[#allocation2 + $0x2b] sm:$0xff]
      %v4818 = vld [vmem:[#allocation2 + $0x33] sm:$0xff]
      %v4819 = vld [vmem:[#allocation2 + $0x3b] sm:$0xff]
      %v4820 = vld [vmem:[#allocation2 + $0x43] sm:$0xff]
      %v4821 = vld [vmem:[#allocation2 + $0x4b] sm:$0xff]
      %v4822 = vld [vmem:[#allocation2 + $0x53] sm:$0xff]
      %v4823 = vld [vmem:[#allocation2 + $0x5b] sm:$0xff]
      %v4824 = vld [vmem:[#allocation2 + $0x63] sm:$0xff]
      %v4825 = vld [vmem:[#allocation2 + $0x6b] sm:$0xff]
      %v4826 = vld [vmem:[#allocation2 + $0x73] sm:$0xff]
      %v4827 = vld [vmem:[#allocation2 + $0x7b] sm:$0xff]
      %v4828 = vld [vmem:[#allocation2 + $0x83] sm:$0xff]
      %v4829 = vld [vmem:[#allocation2 + $0x8b] sm:$0xff]
      %v4830 = vld [vmem:[#allocation2 + $0x93] sm:$0xff]
      %v4831 = vld [vmem:[#allocation2 + $0x9b] sm:$0xff]
      %v4832 = vld [vmem:[#allocation2 + $0xa3] sm:$0xff]
      %v4833 = vld [vmem:[#allocation2 + $0xab] sm:$0xff]
      %v4834 = vld [vmem:[#allocation2 + $0xb3] sm:$0xff]
      %v4835 = vld [vmem:[#allocation2 + $0xbb] sm:$0xff]
      %v4836 = vld [vmem:[#allocation2 + $0xc3] sm:$0xff]
      %v4837 = vld [vmem:[#allocation2 + $0xcb] sm:$0xff]
      %v4838 = vld [vmem:[#allocation2 + $0xd3] sm:$0xff]
      %v4839 = vld [vmem:[#allocation2 + $0xdb] sm:$0xff]
      %v4840 = vld [vmem:[#allocation2 + $0xe3] sm:$0xff]
      %v4841 = vld [vmem:[#allocation2 + $0xeb] sm:$0xff]
      %v4842 = vld [vmem:[#allocation2 + $0xf3] sm:$0xff]
      %v4843 = vld [vmem:[#allocation2 + $0xfb] sm:$0xff]
      %v4844 = vld [vmem:[#allocation2 + $0x103] sm:$0xff]
      %v4845 = vld [vmem:[#allocation2 + $0x10b] sm:$0xff]
      %v4846 = vld [vmem:[#allocation2 + $0x113] sm:$0xff]
      %v4847 = vld [vmem:[#allocation2 + $0x11b] sm:$0xff]
      %v4848 = vld [vmem:[#allocation2 + $0x123] sm:$0xff]
      %v4849 = vld [vmem:[#allocation2 + $0x12b] sm:$0xff]
      %s4850 = scalar_lea.vmem %s4, 128
      %v4851 = vld [vmem:[%s4850] sm:$0xff]
      %v4852 = vld [vmem:[%s4850 + $0x8] sm:$0xff]
      %v4853 = vld [vmem:[%s4850 + $0x10] sm:$0xff]
      %v4854 = vld [vmem:[%s4850 + $0x18] sm:$0xff]
      %v4856 = vsel %vm439, %v4814, 0
      %v4859 = vsel %vm439, %v4815, 0
      %v4862 = vsel %vm439, %v4816, 0
      %v4865 = vsel %vm439, %v4817, 0
      %v4868 = vsel %vm439, %v4818, 0
      %v4871 = vsel %vm439, %v4819, 0
      %v4874 = vsel %vm439, %v4820, 0
      %v4877 = vsel %vm439, %v4821, 0
      %v4880 = vsel %vm439, %v4822, 0
      %v4883 = vsel %vm439, %v4823, 0
      %v4886 = vsel %vm439, %v4824, 0
      %v4889 = vsel %vm439, %v4825, 0
      %v4892 = vsel %vm439, %v4826, 0
      %v4895 = vsel %vm439, %v4827, 0
      %v4898 = vsel %vm439, %v4828, 0
      %v4901 = vsel %vm439, %v4829, 0
      %v4904 = vsel %vm439, %v4830, 0
      %v4907 = vsel %vm439, %v4831, 0
      %v4910 = vsel %vm439, %v4832, 0
      %v4913 = vsel %vm439, %v4833, 0
      %v4916 = vsel %vm439, %v4834, 0
      %v4919 = vsel %vm439, %v4835, 0
      %v4922 = vsel %vm439, %v4836, 0
      %v4925 = vsel %vm439, %v4837, 0
      %v4928 = vsel %vm439, %v4838, 0
      %v4931 = vsel %vm439, %v4839, 0
      %v4934 = vsel %vm439, %v4840, 0
      %v4937 = vsel %vm439, %v4841, 0
      %v4940 = vsel %vm439, %v4842, 0
      %v4943 = vsel %vm439, %v4843, 0
      %v4946 = vsel %vm439, %v4844, 0
      %v4949 = vsel %vm439, %v4845, 0
      %v4952 = vsel %vm439, %v4846, 0
      %v4955 = vsel %vm439, %v4847, 0
      %v4958 = vsel %vm439, %v4848, 0
      %v4961 = vsel %vm439, %v4849, 0
      %4963 = vmatpush.msra.mxu0 0.0
      %4964 = vmatpush.msra.mxu0 0.0
      %4965 = vmatpush.msra.mxu0 0.0
      %4966 = vmatpush.msra.mxu0 0.0
      %4967 = vmatpush.msra.mxu0 0.0
      %4968 = vmatpush.msra.mxu0 0.0
      %4969 = vmatpush.msra.mxu0 0.0
      %4970 = vmatpush.msra.mxu0 0.0
      %4971 = vmatpush.msra.mxu0 0.0
      %4972 = vmatpush.msra.mxu0 0.0
      %4973 = vmatpush.msra.mxu0 0.0
      %4974 = vmatpush.msra.mxu0 0.0
      %4975 = vmatpush.msra.mxu0 %v4854
      %4976 = vmatpush.msra.mxu0 %v4853
      %4977 = vmatpush.msra.mxu0 %v4852
      %4978 = vmatpush.msra.mxu0 %v4851
      %4979 = vmatmul.f32.gmra.mxu0 %v4856
      %v4980 = vpop.f32.mrf.mxu0
      %v4981 = vadd.f32 0.0, %v4980
      %4982 = vmatmul.f32.gmra.mxu0 %v4859
      %v4983 = vpop.f32.mrf.mxu0
      %v4984 = vadd.f32 0.0, %v4983
      %4985 = vmatmul.f32.gmra.mxu0 %v4862
      %v4986 = vpop.f32.mrf.mxu0
      %v4987 = vadd.f32 0.0, %v4986
      %4988 = vmatmul.f32.gmra.mxu0 %v4865
      %v4989 = vpop.f32.mrf.mxu0
      %v4990 = vadd.f32 0.0, %v4989
      %4991 = vmatmul.f32.gmra.mxu0 %v4868
      %v4992 = vpop.f32.mrf.mxu0
      %v4993 = vadd.f32 0.0, %v4992
      %4994 = vmatmul.f32.gmra.mxu0 %v4871
      %v4995 = vpop.f32.mrf.mxu0
      %v4996 = vadd.f32 0.0, %v4995
      %4997 = vmatmul.f32.gmra.mxu0 %v4874
      %v4998 = vpop.f32.mrf.mxu0
      %v4999 = vadd.f32 0.0, %v4998
      %5000 = vmatmul.f32.gmra.mxu0 %v4877
      %v5001 = vpop.f32.mrf.mxu0
      %v5002 = vadd.f32 0.0, %v5001
      %5003 = vmatmul.f32.gmra.mxu0 %v4880
      %v5004 = vpop.f32.mrf.mxu0
      %v5005 = vadd.f32 0.0, %v5004
      %5006 = vmatmul.f32.gmra.mxu0 %v4883
      %v5007 = vpop.f32.mrf.mxu0
      %v5008 = vadd.f32 0.0, %v5007
      %5009 = vmatmul.f32.gmra.mxu0 %v4886
      %v5010 = vpop.f32.mrf.mxu0
      %v5011 = vadd.f32 0.0, %v5010
      %5012 = vmatmul.f32.gmra.mxu0 %v4889
      %v5013 = vpop.f32.mrf.mxu0
      %v5014 = vadd.f32 0.0, %v5013
      %5015 = vmatmul.f32.gmra.mxu0 %v4892
      %v5016 = vpop.f32.mrf.mxu0
      %v5017 = vadd.f32 0.0, %v5016
      %5018 = vmatmul.f32.gmra.mxu0 %v4895
      %v5019 = vpop.f32.mrf.mxu0
      %v5020 = vadd.f32 0.0, %v5019
      %5021 = vmatmul.f32.gmra.mxu0 %v4898
      %v5022 = vpop.f32.mrf.mxu0
      %v5023 = vadd.f32 0.0, %v5022
      %5024 = vmatmul.f32.gmra.mxu0 %v4901
      %v5025 = vpop.f32.mrf.mxu0
      %v5026 = vadd.f32 0.0, %v5025
      %5027 = vmatmul.f32.gmra.mxu0 %v4904
      %v5028 = vpop.f32.mrf.mxu0
      %v5029 = vadd.f32 0.0, %v5028
      %5030 = vmatmul.f32.gmra.mxu0 %v4907
      %v5031 = vpop.f32.mrf.mxu0
      %v5032 = vadd.f32 0.0, %v5031
      %5033 = vmatmul.f32.gmra.mxu0 %v4910
      %v5034 = vpop.f32.mrf.mxu0
      %v5035 = vadd.f32 0.0, %v5034
      %5036 = vmatmul.f32.gmra.mxu0 %v4913
      %v5037 = vpop.f32.mrf.mxu0
      %v5038 = vadd.f32 0.0, %v5037
      %5039 = vmatmul.f32.gmra.mxu0 %v4916
      %v5040 = vpop.f32.mrf.mxu0
      %v5041 = vadd.f32 0.0, %v5040
      %5042 = vmatmul.f32.gmra.mxu0 %v4919
      %v5043 = vpop.f32.mrf.mxu0
      %v5044 = vadd.f32 0.0, %v5043
      %5045 = vmatmul.f32.gmra.mxu0 %v4922
      %v5046 = vpop.f32.mrf.mxu0
      %v5047 = vadd.f32 0.0, %v5046
      %5048 = vmatmul.f32.gmra.mxu0 %v4925
      %v5049 = vpop.f32.mrf.mxu0
      %v5050 = vadd.f32 0.0, %v5049
      %5051 = vmatmul.f32.gmra.mxu0 %v4928
      %v5052 = vpop.f32.mrf.mxu0
      %v5053 = vadd.f32 0.0, %v5052
      %5054 = vmatmul.f32.gmra.mxu0 %v4931
      %v5055 = vpop.f32.mrf.mxu0
      %v5056 = vadd.f32 0.0, %v5055
      %5057 = vmatmul.f32.gmra.mxu0 %v4934
      %v5058 = vpop.f32.mrf.mxu0
      %v5059 = vadd.f32 0.0, %v5058
      %5060 = vmatmul.f32.gmra.mxu0 %v4937
      %v5061 = vpop.f32.mrf.mxu0
      %v5062 = vadd.f32 0.0, %v5061
      %5063 = vmatmul.f32.gmra.mxu0 %v4940
      %v5064 = vpop.f32.mrf.mxu0
      %v5065 = vadd.f32 0.0, %v5064
      %5066 = vmatmul.f32.gmra.mxu0 %v4943
      %v5067 = vpop.f32.mrf.mxu0
      %v5068 = vadd.f32 0.0, %v5067
      %5069 = vmatmul.f32.gmra.mxu0 %v4946
      %v5070 = vpop.f32.mrf.mxu0
      %v5071 = vadd.f32 0.0, %v5070
      %5072 = vmatmul.f32.gmra.mxu0 %v4949
      %v5073 = vpop.f32.mrf.mxu0
      %v5074 = vadd.f32 0.0, %v5073
      %5075 = vmatmul.f32.gmra.mxu0 %v4952
      %v5076 = vpop.f32.mrf.mxu0
      %v5077 = vadd.f32 0.0, %v5076
      %5078 = vmatmul.f32.gmra.mxu0 %v4955
      %v5079 = vpop.f32.mrf.mxu0
      %v5080 = vadd.f32 0.0, %v5079
      %5081 = vmatmul.f32.gmra.mxu0 %v4958
      %v5082 = vpop.f32.mrf.mxu0
      %v5083 = vadd.f32 0.0, %v5082
      %5084 = vmatmul.f32.gmra.mxu0 %v4961
      %v5085 = vpop.f32.mrf.mxu0
      %v5086 = vadd.f32 0.0, %v5085
      %5087 = vdwg.mxu0
      %v5088 = vadd.f32 %v4778, %v4981
      %v5089 = vadd.f32 %v4779, %v4984
      %v5090 = vadd.f32 %v4780, %v4987
      %v5091 = vadd.f32 %v4781, %v4990
      %v5092 = vadd.f32 %v4782, %v4993
      %v5093 = vadd.f32 %v4783, %v4996
      %v5094 = vadd.f32 %v4784, %v4999
      %v5095 = vadd.f32 %v4785, %v5002
      %v5096 = vadd.f32 %v4786, %v5005
      %v5097 = vadd.f32 %v4787, %v5008
      %v5098 = vadd.f32 %v4788, %v5011
      %v5099 = vadd.f32 %v4789, %v5014
      %v5100 = vadd.f32 %v4790, %v5017
      %v5101 = vadd.f32 %v4791, %v5020
      %v5102 = vadd.f32 %v4792, %v5023
      %v5103 = vadd.f32 %v4793, %v5026
      %v5104 = vadd.f32 %v4794, %v5029
      %v5105 = vadd.f32 %v4795, %v5032
      %v5106 = vadd.f32 %v4796, %v5035
      %v5107 = vadd.f32 %v4797, %v5038
      %v5108 = vadd.f32 %v4798, %v5041
      %v5109 = vadd.f32 %v4799, %v5044
      %v5110 = vadd.f32 %v4800, %v5047
      %v5111 = vadd.f32 %v4801, %v5050
      %v5112 = vadd.f32 %v4802, %v5053
      %v5113 = vadd.f32 %v4803, %v5056
      %v5114 = vadd.f32 %v4804, %v5059
      %v5115 = vadd.f32 %v4805, %v5062
      %v5116 = vadd.f32 %v4806, %v5065
      %v5117 = vadd.f32 %v4807, %v5068
      %v5118 = vadd.f32 %v4808, %v5071
      %v5119 = vadd.f32 %v4809, %v5074
      %v5120 = vadd.f32 %v4810, %v5077
      %v5121 = vadd.f32 %v4811, %v5080
      %v5122 = vadd.f32 %v4812, %v5083
      %v5123 = vadd.f32 %v4813, %v5086
      %v5124 = vld [vmem:[#allocation2 + $0x14] sm:$0xff]
      %v5125 = vld [vmem:[#allocation2 + $0x1c] sm:$0xff]
      %v5126 = vld [vmem:[#allocation2 + $0x24] sm:$0xff]
      %v5127 = vld [vmem:[#allocation2 + $0x2c] sm:$0xff]
      %v5128 = vld [vmem:[#allocation2 + $0x34] sm:$0xff]
      %v5129 = vld [vmem:[#allocation2 + $0x3c] sm:$0xff]
      %v5130 = vld [vmem:[#allocation2 + $0x44] sm:$0xff]
      %v5131 = vld [vmem:[#allocation2 + $0x4c] sm:$0xff]
      %v5132 = vld [vmem:[#allocation2 + $0x54] sm:$0xff]
      %v5133 = vld [vmem:[#allocation2 + $0x5c] sm:$0xff]
      %v5134 = vld [vmem:[#allocation2 + $0x64] sm:$0xff]
      %v5135 = vld [vmem:[#allocation2 + $0x6c] sm:$0xff]
      %v5136 = vld [vmem:[#allocation2 + $0x74] sm:$0xff]
      %v5137 = vld [vmem:[#allocation2 + $0x7c] sm:$0xff]
      %v5138 = vld [vmem:[#allocation2 + $0x84] sm:$0xff]
      %v5139 = vld [vmem:[#allocation2 + $0x8c] sm:$0xff]
      %v5140 = vld [vmem:[#allocation2 + $0x94] sm:$0xff]
      %v5141 = vld [vmem:[#allocation2 + $0x9c] sm:$0xff]
      %v5142 = vld [vmem:[#allocation2 + $0xa4] sm:$0xff]
      %v5143 = vld [vmem:[#allocation2 + $0xac] sm:$0xff]
      %v5144 = vld [vmem:[#allocation2 + $0xb4] sm:$0xff]
      %v5145 = vld [vmem:[#allocation2 + $0xbc] sm:$0xff]
      %v5146 = vld [vmem:[#allocation2 + $0xc4] sm:$0xff]
      %v5147 = vld [vmem:[#allocation2 + $0xcc] sm:$0xff]
      %v5148 = vld [vmem:[#allocation2 + $0xd4] sm:$0xff]
      %v5149 = vld [vmem:[#allocation2 + $0xdc] sm:$0xff]
      %v5150 = vld [vmem:[#allocation2 + $0xe4] sm:$0xff]
      %v5151 = vld [vmem:[#allocation2 + $0xec] sm:$0xff]
      %v5152 = vld [vmem:[#allocation2 + $0xf4] sm:$0xff]
      %v5153 = vld [vmem:[#allocation2 + $0xfc] sm:$0xff]
      %v5154 = vld [vmem:[#allocation2 + $0x104] sm:$0xff]
      %v5155 = vld [vmem:[#allocation2 + $0x10c] sm:$0xff]
      %v5156 = vld [vmem:[#allocation2 + $0x114] sm:$0xff]
      %v5157 = vld [vmem:[#allocation2 + $0x11c] sm:$0xff]
      %v5158 = vld [vmem:[#allocation2 + $0x124] sm:$0xff]
      %v5159 = vld [vmem:[#allocation2 + $0x12c] sm:$0xff]
      %s5160 = scalar_lea.vmem %s4, 160
      %v5161 = vld [vmem:[%s5160] sm:$0xff]
      %v5162 = vld [vmem:[%s5160 + $0x8] sm:$0xff]
      %v5163 = vld [vmem:[%s5160 + $0x10] sm:$0xff]
      %v5164 = vld [vmem:[%s5160 + $0x18] sm:$0xff]
      %v5166 = vsel %vm439, %v5124, 0
      %v5169 = vsel %vm439, %v5125, 0
      %v5172 = vsel %vm439, %v5126, 0
      %v5175 = vsel %vm439, %v5127, 0
      %v5178 = vsel %vm439, %v5128, 0
      %v5181 = vsel %vm439, %v5129, 0
      %v5184 = vsel %vm439, %v5130, 0
      %v5187 = vsel %vm439, %v5131, 0
      %v5190 = vsel %vm439, %v5132, 0
      %v5193 = vsel %vm439, %v5133, 0
      %v5196 = vsel %vm439, %v5134, 0
      %v5199 = vsel %vm439, %v5135, 0
      %v5202 = vsel %vm439, %v5136, 0
      %v5205 = vsel %vm439, %v5137, 0
      %v5208 = vsel %vm439, %v5138, 0
      %v5211 = vsel %vm439, %v5139, 0
      %v5214 = vsel %vm439, %v5140, 0
      %v5217 = vsel %vm439, %v5141, 0
      %v5220 = vsel %vm439, %v5142, 0
      %v5223 = vsel %vm439, %v5143, 0
      %v5226 = vsel %vm439, %v5144, 0
      %v5229 = vsel %vm439, %v5145, 0
      %v5232 = vsel %vm439, %v5146, 0
      %v5235 = vsel %vm439, %v5147, 0
      %v5238 = vsel %vm439, %v5148, 0
      %v5241 = vsel %vm439, %v5149, 0
      %v5244 = vsel %vm439, %v5150, 0
      %v5247 = vsel %vm439, %v5151, 0
      %v5250 = vsel %vm439, %v5152, 0
      %v5253 = vsel %vm439, %v5153, 0
      %v5256 = vsel %vm439, %v5154, 0
      %v5259 = vsel %vm439, %v5155, 0
      %v5262 = vsel %vm439, %v5156, 0
      %v5265 = vsel %vm439, %v5157, 0
      %v5268 = vsel %vm439, %v5158, 0
      %v5271 = vsel %vm439, %v5159, 0
      %5273 = vmatpush.msra.mxu0 0.0
      %5274 = vmatpush.msra.mxu0 0.0
      %5275 = vmatpush.msra.mxu0 0.0
      %5276 = vmatpush.msra.mxu0 0.0
      %5277 = vmatpush.msra.mxu0 0.0
      %5278 = vmatpush.msra.mxu0 0.0
      %5279 = vmatpush.msra.mxu0 0.0
      %5280 = vmatpush.msra.mxu0 0.0
      %5281 = vmatpush.msra.mxu0 0.0
      %5282 = vmatpush.msra.mxu0 0.0
      %5283 = vmatpush.msra.mxu0 0.0
      %5284 = vmatpush.msra.mxu0 0.0
      %5285 = vmatpush.msra.mxu0 %v5164
      %5286 = vmatpush.msra.mxu0 %v5163
      %5287 = vmatpush.msra.mxu0 %v5162
      %5288 = vmatpush.msra.mxu0 %v5161
      %5289 = vmatmul.f32.gmra.mxu0 %v5166
      %v5290 = vpop.f32.mrf.mxu0
      %v5291 = vadd.f32 0.0, %v5290
      %5292 = vmatmul.f32.gmra.mxu0 %v5169
      %v5293 = vpop.f32.mrf.mxu0
      %v5294 = vadd.f32 0.0, %v5293
      %5295 = vmatmul.f32.gmra.mxu0 %v5172
      %v5296 = vpop.f32.mrf.mxu0
      %v5297 = vadd.f32 0.0, %v5296
      %5298 = vmatmul.f32.gmra.mxu0 %v5175
      %v5299 = vpop.f32.mrf.mxu0
      %v5300 = vadd.f32 0.0, %v5299
      %5301 = vmatmul.f32.gmra.mxu0 %v5178
      %v5302 = vpop.f32.mrf.mxu0
      %v5303 = vadd.f32 0.0, %v5302
      %5304 = vmatmul.f32.gmra.mxu0 %v5181
      %v5305 = vpop.f32.mrf.mxu0
      %v5306 = vadd.f32 0.0, %v5305
      %5307 = vmatmul.f32.gmra.mxu0 %v5184
      %v5308 = vpop.f32.mrf.mxu0
      %v5309 = vadd.f32 0.0, %v5308
      %5310 = vmatmul.f32.gmra.mxu0 %v5187
      %v5311 = vpop.f32.mrf.mxu0
      %v5312 = vadd.f32 0.0, %v5311
      %5313 = vmatmul.f32.gmra.mxu0 %v5190
      %v5314 = vpop.f32.mrf.mxu0
      %v5315 = vadd.f32 0.0, %v5314
      %5316 = vmatmul.f32.gmra.mxu0 %v5193
      %v5317 = vpop.f32.mrf.mxu0
      %v5318 = vadd.f32 0.0, %v5317
      %5319 = vmatmul.f32.gmra.mxu0 %v5196
      %v5320 = vpop.f32.mrf.mxu0
      %v5321 = vadd.f32 0.0, %v5320
      %5322 = vmatmul.f32.gmra.mxu0 %v5199
      %v5323 = vpop.f32.mrf.mxu0
      %v5324 = vadd.f32 0.0, %v5323
      %5325 = vmatmul.f32.gmra.mxu0 %v5202
      %v5326 = vpop.f32.mrf.mxu0
      %v5327 = vadd.f32 0.0, %v5326
      %5328 = vmatmul.f32.gmra.mxu0 %v5205
      %v5329 = vpop.f32.mrf.mxu0
      %v5330 = vadd.f32 0.0, %v5329
      %5331 = vmatmul.f32.gmra.mxu0 %v5208
      %v5332 = vpop.f32.mrf.mxu0
      %v5333 = vadd.f32 0.0, %v5332
      %5334 = vmatmul.f32.gmra.mxu0 %v5211
      %v5335 = vpop.f32.mrf.mxu0
      %v5336 = vadd.f32 0.0, %v5335
      %5337 = vmatmul.f32.gmra.mxu0 %v5214
      %v5338 = vpop.f32.mrf.mxu0
      %v5339 = vadd.f32 0.0, %v5338
      %5340 = vmatmul.f32.gmra.mxu0 %v5217
      %v5341 = vpop.f32.mrf.mxu0
      %v5342 = vadd.f32 0.0, %v5341
      %5343 = vmatmul.f32.gmra.mxu0 %v5220
      %v5344 = vpop.f32.mrf.mxu0
      %v5345 = vadd.f32 0.0, %v5344
      %5346 = vmatmul.f32.gmra.mxu0 %v5223
      %v5347 = vpop.f32.mrf.mxu0
      %v5348 = vadd.f32 0.0, %v5347
      %5349 = vmatmul.f32.gmra.mxu0 %v5226
      %v5350 = vpop.f32.mrf.mxu0
      %v5351 = vadd.f32 0.0, %v5350
      %5352 = vmatmul.f32.gmra.mxu0 %v5229
      %v5353 = vpop.f32.mrf.mxu0
      %v5354 = vadd.f32 0.0, %v5353
      %5355 = vmatmul.f32.gmra.mxu0 %v5232
      %v5356 = vpop.f32.mrf.mxu0
      %v5357 = vadd.f32 0.0, %v5356
      %5358 = vmatmul.f32.gmra.mxu0 %v5235
      %v5359 = vpop.f32.mrf.mxu0
      %v5360 = vadd.f32 0.0, %v5359
      %5361 = vmatmul.f32.gmra.mxu0 %v5238
      %v5362 = vpop.f32.mrf.mxu0
      %v5363 = vadd.f32 0.0, %v5362
      %5364 = vmatmul.f32.gmra.mxu0 %v5241
      %v5365 = vpop.f32.mrf.mxu0
      %v5366 = vadd.f32 0.0, %v5365
      %5367 = vmatmul.f32.gmra.mxu0 %v5244
      %v5368 = vpop.f32.mrf.mxu0
      %v5369 = vadd.f32 0.0, %v5368
      %5370 = vmatmul.f32.gmra.mxu0 %v5247
      %v5371 = vpop.f32.mrf.mxu0
      %v5372 = vadd.f32 0.0, %v5371
      %5373 = vmatmul.f32.gmra.mxu0 %v5250
      %v5374 = vpop.f32.mrf.mxu0
      %v5375 = vadd.f32 0.0, %v5374
      %5376 = vmatmul.f32.gmra.mxu0 %v5253
      %v5377 = vpop.f32.mrf.mxu0
      %v5378 = vadd.f32 0.0, %v5377
      %5379 = vmatmul.f32.gmra.mxu0 %v5256
      %v5380 = vpop.f32.mrf.mxu0
      %v5381 = vadd.f32 0.0, %v5380
      %5382 = vmatmul.f32.gmra.mxu0 %v5259
      %v5383 = vpop.f32.mrf.mxu0
      %v5384 = vadd.f32 0.0, %v5383
      %5385 = vmatmul.f32.gmra.mxu0 %v5262
      %v5386 = vpop.f32.mrf.mxu0
      %v5387 = vadd.f32 0.0, %v5386
      %5388 = vmatmul.f32.gmra.mxu0 %v5265
      %v5389 = vpop.f32.mrf.mxu0
      %v5390 = vadd.f32 0.0, %v5389
      %5391 = vmatmul.f32.gmra.mxu0 %v5268
      %v5392 = vpop.f32.mrf.mxu0
      %v5393 = vadd.f32 0.0, %v5392
      %5394 = vmatmul.f32.gmra.mxu0 %v5271
      %v5395 = vpop.f32.mrf.mxu0
      %v5396 = vadd.f32 0.0, %v5395
      %5397 = vdwg.mxu0
      %v5398 = vadd.f32 %v5088, %v5291
      %v5399 = vadd.f32 %v5089, %v5294
      %v5400 = vadd.f32 %v5090, %v5297
      %v5401 = vadd.f32 %v5091, %v5300
      %v5402 = vadd.f32 %v5092, %v5303
      %v5403 = vadd.f32 %v5093, %v5306
      %v5404 = vadd.f32 %v5094, %v5309
      %v5405 = vadd.f32 %v5095, %v5312
      %v5406 = vadd.f32 %v5096, %v5315
      %v5407 = vadd.f32 %v5097, %v5318
      %v5408 = vadd.f32 %v5098, %v5321
      %v5409 = vadd.f32 %v5099, %v5324
      %v5410 = vadd.f32 %v5100, %v5327
      %v5411 = vadd.f32 %v5101, %v5330
      %v5412 = vadd.f32 %v5102, %v5333
      %v5413 = vadd.f32 %v5103, %v5336
      %v5414 = vadd.f32 %v5104, %v5339
      %v5415 = vadd.f32 %v5105, %v5342
      %v5416 = vadd.f32 %v5106, %v5345
      %v5417 = vadd.f32 %v5107, %v5348
      %v5418 = vadd.f32 %v5108, %v5351
      %v5419 = vadd.f32 %v5109, %v5354
      %v5420 = vadd.f32 %v5110, %v5357
      %v5421 = vadd.f32 %v5111, %v5360
      %v5422 = vadd.f32 %v5112, %v5363
      %v5423 = vadd.f32 %v5113, %v5366
      %v5424 = vadd.f32 %v5114, %v5369
      %v5425 = vadd.f32 %v5115, %v5372
      %v5426 = vadd.f32 %v5116, %v5375
      %v5427 = vadd.f32 %v5117, %v5378
      %v5428 = vadd.f32 %v5118, %v5381
      %v5429 = vadd.f32 %v5119, %v5384
      %v5430 = vadd.f32 %v5120, %v5387
      %v5431 = vadd.f32 %v5121, %v5390
      %v5432 = vadd.f32 %v5122, %v5393
      %v5433 = vadd.f32 %v5123, %v5396
      %v5434 = vld [vmem:[#allocation2 + $0x24] sm:$0xff]
      %v5435 = vld [vmem:[#allocation2 + $0x2c] sm:$0xff]
      %v5436 = vld [vmem:[#allocation2 + $0x34] sm:$0xff]
      %v5437 = vld [vmem:[#allocation2 + $0x3c] sm:$0xff]
      %v5438 = vld [vmem:[#allocation2 + $0x44] sm:$0xff]
      %v5439 = vld [vmem:[#allocation2 + $0x4c] sm:$0xff]
      %v5440 = vld [vmem:[#allocation2 + $0x54] sm:$0xff]
      %v5441 = vld [vmem:[#allocation2 + $0x5c] sm:$0xff]
      %v5442 = vld [vmem:[#allocation2 + $0x64] sm:$0xff]
      %v5443 = vld [vmem:[#allocation2 + $0x6c] sm:$0xff]
      %v5444 = vld [vmem:[#allocation2 + $0x74] sm:$0xff]
      %v5445 = vld [vmem:[#allocation2 + $0x7c] sm:$0xff]
      %v5446 = vld [vmem:[#allocation2 + $0x84] sm:$0xff]
      %v5447 = vld [vmem:[#allocation2 + $0x8c] sm:$0xff]
      %v5448 = vld [vmem:[#allocation2 + $0x94] sm:$0xff]
      %v5449 = vld [vmem:[#allocation2 + $0x9c] sm:$0xff]
      %v5450 = vld [vmem:[#allocation2 + $0xa4] sm:$0xff]
      %v5451 = vld [vmem:[#allocation2 + $0xac] sm:$0xff]
      %v5452 = vld [vmem:[#allocation2 + $0xb4] sm:$0xff]
      %v5453 = vld [vmem:[#allocation2 + $0xbc] sm:$0xff]
      %v5454 = vld [vmem:[#allocation2 + $0xc4] sm:$0xff]
      %v5455 = vld [vmem:[#allocation2 + $0xcc] sm:$0xff]
      %v5456 = vld [vmem:[#allocation2 + $0xd4] sm:$0xff]
      %v5457 = vld [vmem:[#allocation2 + $0xdc] sm:$0xff]
      %v5458 = vld [vmem:[#allocation2 + $0xe4] sm:$0xff]
      %v5459 = vld [vmem:[#allocation2 + $0xec] sm:$0xff]
      %v5460 = vld [vmem:[#allocation2 + $0xf4] sm:$0xff]
      %v5461 = vld [vmem:[#allocation2 + $0xfc] sm:$0xff]
      %v5462 = vld [vmem:[#allocation2 + $0x104] sm:$0xff]
      %v5463 = vld [vmem:[#allocation2 + $0x10c] sm:$0xff]
      %v5464 = vld [vmem:[#allocation2 + $0x114] sm:$0xff]
      %v5465 = vld [vmem:[#allocation2 + $0x11c] sm:$0xff]
      %v5466 = vld [vmem:[#allocation2 + $0x124] sm:$0xff]
      %v5467 = vld [vmem:[#allocation2 + $0x12c] sm:$0xff]
      %v5468 = vld [vmem:[#allocation2 + $0x134] sm:$0xff]
      %v5469 = vld [vmem:[#allocation2 + $0x13c] sm:$0xff]
      %s5470 = scalar_lea.vmem %s4, 192
      %v5471 = vld [vmem:[%s5470] sm:$0xff]
      %v5472 = vld [vmem:[%s5470 + $0x8] sm:$0xff]
      %v5473 = vld [vmem:[%s5470 + $0x10] sm:$0xff]
      %v5474 = vld [vmem:[%s5470 + $0x18] sm:$0xff]
      %v5476 = vsel %vm439, %v5434, 0
      %v5479 = vsel %vm439, %v5435, 0
      %v5482 = vsel %vm439, %v5436, 0
      %v5485 = vsel %vm439, %v5437, 0
      %v5488 = vsel %vm439, %v5438, 0
      %v5491 = vsel %vm439, %v5439, 0
      %v5494 = vsel %vm439, %v5440, 0
      %v5497 = vsel %vm439, %v5441, 0
      %v5500 = vsel %vm439, %v5442, 0
      %v5503 = vsel %vm439, %v5443, 0
      %v5506 = vsel %vm439, %v5444, 0
      %v5509 = vsel %vm439, %v5445, 0
      %v5512 = vsel %vm439, %v5446, 0
      %v5515 = vsel %vm439, %v5447, 0
      %v5518 = vsel %vm439, %v5448, 0
      %v5521 = vsel %vm439, %v5449, 0
      %v5524 = vsel %vm439, %v5450, 0
      %v5527 = vsel %vm439, %v5451, 0
      %v5530 = vsel %vm439, %v5452, 0
      %v5533 = vsel %vm439, %v5453, 0
      %v5536 = vsel %vm439, %v5454, 0
      %v5539 = vsel %vm439, %v5455, 0
      %v5542 = vsel %vm439, %v5456, 0
      %v5545 = vsel %vm439, %v5457, 0
      %v5548 = vsel %vm439, %v5458, 0
      %v5551 = vsel %vm439, %v5459, 0
      %v5554 = vsel %vm439, %v5460, 0
      %v5557 = vsel %vm439, %v5461, 0
      %v5560 = vsel %vm439, %v5462, 0
      %v5563 = vsel %vm439, %v5463, 0
      %v5566 = vsel %vm439, %v5464, 0
      %v5569 = vsel %vm439, %v5465, 0
      %v5572 = vsel %vm439, %v5466, 0
      %v5575 = vsel %vm439, %v5467, 0
      %v5578 = vsel %vm439, %v5468, 0
      %v5581 = vsel %vm439, %v5469, 0
      %5583 = vmatpush.msra.mxu0 0.0
      %5584 = vmatpush.msra.mxu0 0.0
      %5585 = vmatpush.msra.mxu0 0.0
      %5586 = vmatpush.msra.mxu0 0.0
      %5587 = vmatpush.msra.mxu0 0.0
      %5588 = vmatpush.msra.mxu0 0.0
      %5589 = vmatpush.msra.mxu0 0.0
      %5590 = vmatpush.msra.mxu0 0.0
      %5591 = vmatpush.msra.mxu0 0.0
      %5592 = vmatpush.msra.mxu0 0.0
      %5593 = vmatpush.msra.mxu0 0.0
      %5594 = vmatpush.msra.mxu0 0.0
      %5595 = vmatpush.msra.mxu0 %v5474
      %5596 = vmatpush.msra.mxu0 %v5473
      %5597 = vmatpush.msra.mxu0 %v5472
      %5598 = vmatpush.msra.mxu0 %v5471
      %5599 = vmatmul.f32.gmra.mxu0 %v5476
      %v5600 = vpop.f32.mrf.mxu0
      %v5601 = vadd.f32 0.0, %v5600
      %5602 = vmatmul.f32.gmra.mxu0 %v5479
      %v5603 = vpop.f32.mrf.mxu0
      %v5604 = vadd.f32 0.0, %v5603
      %5605 = vmatmul.f32.gmra.mxu0 %v5482
      %v5606 = vpop.f32.mrf.mxu0
      %v5607 = vadd.f32 0.0, %v5606
      %5608 = vmatmul.f32.gmra.mxu0 %v5485
      %v5609 = vpop.f32.mrf.mxu0
      %v5610 = vadd.f32 0.0, %v5609
      %5611 = vmatmul.f32.gmra.mxu0 %v5488
      %v5612 = vpop.f32.mrf.mxu0
      %v5613 = vadd.f32 0.0, %v5612
      %5614 = vmatmul.f32.gmra.mxu0 %v5491
      %v5615 = vpop.f32.mrf.mxu0
      %v5616 = vadd.f32 0.0, %v5615
      %5617 = vmatmul.f32.gmra.mxu0 %v5494
      %v5618 = vpop.f32.mrf.mxu0
      %v5619 = vadd.f32 0.0, %v5618
      %5620 = vmatmul.f32.gmra.mxu0 %v5497
      %v5621 = vpop.f32.mrf.mxu0
      %v5622 = vadd.f32 0.0, %v5621
      %5623 = vmatmul.f32.gmra.mxu0 %v5500
      %v5624 = vpop.f32.mrf.mxu0
      %v5625 = vadd.f32 0.0, %v5624
      %5626 = vmatmul.f32.gmra.mxu0 %v5503
      %v5627 = vpop.f32.mrf.mxu0
      %v5628 = vadd.f32 0.0, %v5627
      %5629 = vmatmul.f32.gmra.mxu0 %v5506
      %v5630 = vpop.f32.mrf.mxu0
      %v5631 = vadd.f32 0.0, %v5630
      %5632 = vmatmul.f32.gmra.mxu0 %v5509
      %v5633 = vpop.f32.mrf.mxu0
      %v5634 = vadd.f32 0.0, %v5633
      %5635 = vmatmul.f32.gmra.mxu0 %v5512
      %v5636 = vpop.f32.mrf.mxu0
      %v5637 = vadd.f32 0.0, %v5636
      %5638 = vmatmul.f32.gmra.mxu0 %v5515
      %v5639 = vpop.f32.mrf.mxu0
      %v5640 = vadd.f32 0.0, %v5639
      %5641 = vmatmul.f32.gmra.mxu0 %v5518
      %v5642 = vpop.f32.mrf.mxu0
      %v5643 = vadd.f32 0.0, %v5642
      %5644 = vmatmul.f32.gmra.mxu0 %v5521
      %v5645 = vpop.f32.mrf.mxu0
      %v5646 = vadd.f32 0.0, %v5645
      %5647 = vmatmul.f32.gmra.mxu0 %v5524
      %v5648 = vpop.f32.mrf.mxu0
      %v5649 = vadd.f32 0.0, %v5648
      %5650 = vmatmul.f32.gmra.mxu0 %v5527
      %v5651 = vpop.f32.mrf.mxu0
      %v5652 = vadd.f32 0.0, %v5651
      %5653 = vmatmul.f32.gmra.mxu0 %v5530
      %v5654 = vpop.f32.mrf.mxu0
      %v5655 = vadd.f32 0.0, %v5654
      %5656 = vmatmul.f32.gmra.mxu0 %v5533
      %v5657 = vpop.f32.mrf.mxu0
      %v5658 = vadd.f32 0.0, %v5657
      %5659 = vmatmul.f32.gmra.mxu0 %v5536
      %v5660 = vpop.f32.mrf.mxu0
      %v5661 = vadd.f32 0.0, %v5660
      %5662 = vmatmul.f32.gmra.mxu0 %v5539
      %v5663 = vpop.f32.mrf.mxu0
      %v5664 = vadd.f32 0.0, %v5663
      %5665 = vmatmul.f32.gmra.mxu0 %v5542
      %v5666 = vpop.f32.mrf.mxu0
      %v5667 = vadd.f32 0.0, %v5666
      %5668 = vmatmul.f32.gmra.mxu0 %v5545
      %v5669 = vpop.f32.mrf.mxu0
      %v5670 = vadd.f32 0.0, %v5669
      %5671 = vmatmul.f32.gmra.mxu0 %v5548
      %v5672 = vpop.f32.mrf.mxu0
      %v5673 = vadd.f32 0.0, %v5672
      %5674 = vmatmul.f32.gmra.mxu0 %v5551
      %v5675 = vpop.f32.mrf.mxu0
      %v5676 = vadd.f32 0.0, %v5675
      %5677 = vmatmul.f32.gmra.mxu0 %v5554
      %v5678 = vpop.f32.mrf.mxu0
      %v5679 = vadd.f32 0.0, %v5678
      %5680 = vmatmul.f32.gmra.mxu0 %v5557
      %v5681 = vpop.f32.mrf.mxu0
      %v5682 = vadd.f32 0.0, %v5681
      %5683 = vmatmul.f32.gmra.mxu0 %v5560
      %v5684 = vpop.f32.mrf.mxu0
      %v5685 = vadd.f32 0.0, %v5684
      %5686 = vmatmul.f32.gmra.mxu0 %v5563
      %v5687 = vpop.f32.mrf.mxu0
      %v5688 = vadd.f32 0.0, %v5687
      %5689 = vmatmul.f32.gmra.mxu0 %v5566
      %v5690 = vpop.f32.mrf.mxu0
      %v5691 = vadd.f32 0.0, %v5690
      %5692 = vmatmul.f32.gmra.mxu0 %v5569
      %v5693 = vpop.f32.mrf.mxu0
      %v5694 = vadd.f32 0.0, %v5693
      %5695 = vmatmul.f32.gmra.mxu0 %v5572
      %v5696 = vpop.f32.mrf.mxu0
      %v5697 = vadd.f32 0.0, %v5696
      %5698 = vmatmul.f32.gmra.mxu0 %v5575
      %v5699 = vpop.f32.mrf.mxu0
      %v5700 = vadd.f32 0.0, %v5699
      %5701 = vmatmul.f32.gmra.mxu0 %v5578
      %v5702 = vpop.f32.mrf.mxu0
      %v5703 = vadd.f32 0.0, %v5702
      %5704 = vmatmul.f32.gmra.mxu0 %v5581
      %v5705 = vpop.f32.mrf.mxu0
      %v5706 = vadd.f32 0.0, %v5705
      %5707 = vdwg.mxu0
      %v5708 = vadd.f32 %v5398, %v5601
      %v5709 = vadd.f32 %v5399, %v5604
      %v5710 = vadd.f32 %v5400, %v5607
      %v5711 = vadd.f32 %v5401, %v5610
      %v5712 = vadd.f32 %v5402, %v5613
      %v5713 = vadd.f32 %v5403, %v5616
      %v5714 = vadd.f32 %v5404, %v5619
      %v5715 = vadd.f32 %v5405, %v5622
      %v5716 = vadd.f32 %v5406, %v5625
      %v5717 = vadd.f32 %v5407, %v5628
      %v5718 = vadd.f32 %v5408, %v5631
      %v5719 = vadd.f32 %v5409, %v5634
      %v5720 = vadd.f32 %v5410, %v5637
      %v5721 = vadd.f32 %v5411, %v5640
      %v5722 = vadd.f32 %v5412, %v5643
      %v5723 = vadd.f32 %v5413, %v5646
      %v5724 = vadd.f32 %v5414, %v5649
      %v5725 = vadd.f32 %v5415, %v5652
      %v5726 = vadd.f32 %v5416, %v5655
      %v5727 = vadd.f32 %v5417, %v5658
      %v5728 = vadd.f32 %v5418, %v5661
      %v5729 = vadd.f32 %v5419, %v5664
      %v5730 = vadd.f32 %v5420, %v5667
      %v5731 = vadd.f32 %v5421, %v5670
      %v5732 = vadd.f32 %v5422, %v5673
      %v5733 = vadd.f32 %v5423, %v5676
      %v5734 = vadd.f32 %v5424, %v5679
      %v5735 = vadd.f32 %v5425, %v5682
      %v5736 = vadd.f32 %v5426, %v5685
      %v5737 = vadd.f32 %v5427, %v5688
      %v5738 = vadd.f32 %v5428, %v5691
      %v5739 = vadd.f32 %v5429, %v5694
      %v5740 = vadd.f32 %v5430, %v5697
      %v5741 = vadd.f32 %v5431, %v5700
      %v5742 = vadd.f32 %v5432, %v5703
      %v5743 = vadd.f32 %v5433, %v5706
      %v5744 = vld [vmem:[#allocation2 + $0x25] sm:$0xff]
      %v5745 = vld [vmem:[#allocation2 + $0x2d] sm:$0xff]
      %v5746 = vld [vmem:[#allocation2 + $0x35] sm:$0xff]
      %v5747 = vld [vmem:[#allocation2 + $0x3d] sm:$0xff]
      %v5748 = vld [vmem:[#allocation2 + $0x45] sm:$0xff]
      %v5749 = vld [vmem:[#allocation2 + $0x4d] sm:$0xff]
      %v5750 = vld [vmem:[#allocation2 + $0x55] sm:$0xff]
      %v5751 = vld [vmem:[#allocation2 + $0x5d] sm:$0xff]
      %v5752 = vld [vmem:[#allocation2 + $0x65] sm:$0xff]
      %v5753 = vld [vmem:[#allocation2 + $0x6d] sm:$0xff]
      %v5754 = vld [vmem:[#allocation2 + $0x75] sm:$0xff]
      %v5755 = vld [vmem:[#allocation2 + $0x7d] sm:$0xff]
      %v5756 = vld [vmem:[#allocation2 + $0x85] sm:$0xff]
      %v5757 = vld [vmem:[#allocation2 + $0x8d] sm:$0xff]
      %v5758 = vld [vmem:[#allocation2 + $0x95] sm:$0xff]
      %v5759 = vld [vmem:[#allocation2 + $0x9d] sm:$0xff]
      %v5760 = vld [vmem:[#allocation2 + $0xa5] sm:$0xff]
      %v5761 = vld [vmem:[#allocation2 + $0xad] sm:$0xff]
      %v5762 = vld [vmem:[#allocation2 + $0xb5] sm:$0xff]
      %v5763 = vld [vmem:[#allocation2 + $0xbd] sm:$0xff]
      %v5764 = vld [vmem:[#allocation2 + $0xc5] sm:$0xff]
      %v5765 = vld [vmem:[#allocation2 + $0xcd] sm:$0xff]
      %v5766 = vld [vmem:[#allocation2 + $0xd5] sm:$0xff]
      %v5767 = vld [vmem:[#allocation2 + $0xdd] sm:$0xff]
      %v5768 = vld [vmem:[#allocation2 + $0xe5] sm:$0xff]
      %v5769 = vld [vmem:[#allocation2 + $0xed] sm:$0xff]
      %v5770 = vld [vmem:[#allocation2 + $0xf5] sm:$0xff]
      %v5771 = vld [vmem:[#allocation2 + $0xfd] sm:$0xff]
      %v5772 = vld [vmem:[#allocation2 + $0x105] sm:$0xff]
      %v5773 = vld [vmem:[#allocation2 + $0x10d] sm:$0xff]
      %v5774 = vld [vmem:[#allocation2 + $0x115] sm:$0xff]
      %v5775 = vld [vmem:[#allocation2 + $0x11d] sm:$0xff]
      %v5776 = vld [vmem:[#allocation2 + $0x125] sm:$0xff]
      %v5777 = vld [vmem:[#allocation2 + $0x12d] sm:$0xff]
      %v5778 = vld [vmem:[#allocation2 + $0x135] sm:$0xff]
      %v5779 = vld [vmem:[#allocation2 + $0x13d] sm:$0xff]
      %s5780 = scalar_lea.vmem %s4, 224
      %v5781 = vld [vmem:[%s5780] sm:$0xff]
      %v5782 = vld [vmem:[%s5780 + $0x8] sm:$0xff]
      %v5783 = vld [vmem:[%s5780 + $0x10] sm:$0xff]
      %v5784 = vld [vmem:[%s5780 + $0x18] sm:$0xff]
      %v5786 = vsel %vm439, %v5744, 0
      %v5789 = vsel %vm439, %v5745, 0
      %v5792 = vsel %vm439, %v5746, 0
      %v5795 = vsel %vm439, %v5747, 0
      %v5798 = vsel %vm439, %v5748, 0
      %v5801 = vsel %vm439, %v5749, 0
      %v5804 = vsel %vm439, %v5750, 0
      %v5807 = vsel %vm439, %v5751, 0
      %v5810 = vsel %vm439, %v5752, 0
      %v5813 = vsel %vm439, %v5753, 0
      %v5816 = vsel %vm439, %v5754, 0
      %v5819 = vsel %vm439, %v5755, 0
      %v5822 = vsel %vm439, %v5756, 0
      %v5825 = vsel %vm439, %v5757, 0
      %v5828 = vsel %vm439, %v5758, 0
      %v5831 = vsel %vm439, %v5759, 0
      %v5834 = vsel %vm439, %v5760, 0
      %v5837 = vsel %vm439, %v5761, 0
      %v5840 = vsel %vm439, %v5762, 0
      %v5843 = vsel %vm439, %v5763, 0
      %v5846 = vsel %vm439, %v5764, 0
      %v5849 = vsel %vm439, %v5765, 0
      %v5852 = vsel %vm439, %v5766, 0
      %v5855 = vsel %vm439, %v5767, 0
      %v5858 = vsel %vm439, %v5768, 0
      %v5861 = vsel %vm439, %v5769, 0
      %v5864 = vsel %vm439, %v5770, 0
      %v5867 = vsel %vm439, %v5771, 0
      %v5870 = vsel %vm439, %v5772, 0
      %v5873 = vsel %vm439, %v5773, 0
      %v5876 = vsel %vm439, %v5774, 0
      %v5879 = vsel %vm439, %v5775, 0
      %v5882 = vsel %vm439, %v5776, 0
      %v5885 = vsel %vm439, %v5777, 0
      %v5888 = vsel %vm439, %v5778, 0
      %v5891 = vsel %vm439, %v5779, 0
      %5893 = vmatpush.msra.mxu0 0.0
      %5894 = vmatpush.msra.mxu0 0.0
      %5895 = vmatpush.msra.mxu0 0.0
      %5896 = vmatpush.msra.mxu0 0.0
      %5897 = vmatpush.msra.mxu0 0.0
      %5898 = vmatpush.msra.mxu0 0.0
      %5899 = vmatpush.msra.mxu0 0.0
      %5900 = vmatpush.msra.mxu0 0.0
      %5901 = vmatpush.msra.mxu0 0.0
      %5902 = vmatpush.msra.mxu0 0.0
      %5903 = vmatpush.msra.mxu0 0.0
      %5904 = vmatpush.msra.mxu0 0.0
      %5905 = vmatpush.msra.mxu0 %v5784
      %5906 = vmatpush.msra.mxu0 %v5783
      %5907 = vmatpush.msra.mxu0 %v5782
      %5908 = vmatpush.msra.mxu0 %v5781
      %5909 = vmatmul.f32.gmra.mxu0 %v5786
      %v5910 = vpop.f32.mrf.mxu0
      %v5911 = vadd.f32 0.0, %v5910
      %5912 = vmatmul.f32.gmra.mxu0 %v5789
      %v5913 = vpop.f32.mrf.mxu0
      %v5914 = vadd.f32 0.0, %v5913
      %5915 = vmatmul.f32.gmra.mxu0 %v5792
      %v5916 = vpop.f32.mrf.mxu0
      %v5917 = vadd.f32 0.0, %v5916
      %5918 = vmatmul.f32.gmra.mxu0 %v5795
      %v5919 = vpop.f32.mrf.mxu0
      %v5920 = vadd.f32 0.0, %v5919
      %5921 = vmatmul.f32.gmra.mxu0 %v5798
      %v5922 = vpop.f32.mrf.mxu0
      %v5923 = vadd.f32 0.0, %v5922
      %5924 = vmatmul.f32.gmra.mxu0 %v5801
      %v5925 = vpop.f32.mrf.mxu0
      %v5926 = vadd.f32 0.0, %v5925
      %5927 = vmatmul.f32.gmra.mxu0 %v5804
      %v5928 = vpop.f32.mrf.mxu0
      %v5929 = vadd.f32 0.0, %v5928
      %5930 = vmatmul.f32.gmra.mxu0 %v5807
      %v5931 = vpop.f32.mrf.mxu0
      %v5932 = vadd.f32 0.0, %v5931
      %5933 = vmatmul.f32.gmra.mxu0 %v5810
      %v5934 = vpop.f32.mrf.mxu0
      %v5935 = vadd.f32 0.0, %v5934
      %5936 = vmatmul.f32.gmra.mxu0 %v5813
      %v5937 = vpop.f32.mrf.mxu0
      %v5938 = vadd.f32 0.0, %v5937
      %5939 = vmatmul.f32.gmra.mxu0 %v5816
      %v5940 = vpop.f32.mrf.mxu0
      %v5941 = vadd.f32 0.0, %v5940
      %5942 = vmatmul.f32.gmra.mxu0 %v5819
      %v5943 = vpop.f32.mrf.mxu0
      %v5944 = vadd.f32 0.0, %v5943
      %5945 = vmatmul.f32.gmra.mxu0 %v5822
      %v5946 = vpop.f32.mrf.mxu0
      %v5947 = vadd.f32 0.0, %v5946
      %5948 = vmatmul.f32.gmra.mxu0 %v5825
      %v5949 = vpop.f32.mrf.mxu0
      %v5950 = vadd.f32 0.0, %v5949
      %5951 = vmatmul.f32.gmra.mxu0 %v5828
      %v5952 = vpop.f32.mrf.mxu0
      %v5953 = vadd.f32 0.0, %v5952
      %5954 = vmatmul.f32.gmra.mxu0 %v5831
      %v5955 = vpop.f32.mrf.mxu0
      %v5956 = vadd.f32 0.0, %v5955
      %5957 = vmatmul.f32.gmra.mxu0 %v5834
      %v5958 = vpop.f32.mrf.mxu0
      %v5959 = vadd.f32 0.0, %v5958
      %5960 = vmatmul.f32.gmra.mxu0 %v5837
      %v5961 = vpop.f32.mrf.mxu0
      %v5962 = vadd.f32 0.0, %v5961
      %5963 = vmatmul.f32.gmra.mxu0 %v5840
      %v5964 = vpop.f32.mrf.mxu0
      %v5965 = vadd.f32 0.0, %v5964
      %5966 = vmatmul.f32.gmra.mxu0 %v5843
      %v5967 = vpop.f32.mrf.mxu0
      %v5968 = vadd.f32 0.0, %v5967
      %5969 = vmatmul.f32.gmra.mxu0 %v5846
      %v5970 = vpop.f32.mrf.mxu0
      %v5971 = vadd.f32 0.0, %v5970
      %5972 = vmatmul.f32.gmra.mxu0 %v5849
      %v5973 = vpop.f32.mrf.mxu0
      %v5974 = vadd.f32 0.0, %v5973
      %5975 = vmatmul.f32.gmra.mxu0 %v5852
      %v5976 = vpop.f32.mrf.mxu0
      %v5977 = vadd.f32 0.0, %v5976
      %5978 = vmatmul.f32.gmra.mxu0 %v5855
      %v5979 = vpop.f32.mrf.mxu0
      %v5980 = vadd.f32 0.0, %v5979
      %5981 = vmatmul.f32.gmra.mxu0 %v5858
      %v5982 = vpop.f32.mrf.mxu0
      %v5983 = vadd.f32 0.0, %v5982
      %5984 = vmatmul.f32.gmra.mxu0 %v5861
      %v5985 = vpop.f32.mrf.mxu0
      %v5986 = vadd.f32 0.0, %v5985
      %5987 = vmatmul.f32.gmra.mxu0 %v5864
      %v5988 = vpop.f32.mrf.mxu0
      %v5989 = vadd.f32 0.0, %v5988
      %5990 = vmatmul.f32.gmra.mxu0 %v5867
      %v5991 = vpop.f32.mrf.mxu0
      %v5992 = vadd.f32 0.0, %v5991
      %5993 = vmatmul.f32.gmra.mxu0 %v5870
      %v5994 = vpop.f32.mrf.mxu0
      %v5995 = vadd.f32 0.0, %v5994
      %5996 = vmatmul.f32.gmra.mxu0 %v5873
      %v5997 = vpop.f32.mrf.mxu0
      %v5998 = vadd.f32 0.0, %v5997
      %5999 = vmatmul.f32.gmra.mxu0 %v5876
      %v6000 = vpop.f32.mrf.mxu0
      %v6001 = vadd.f32 0.0, %v6000
      %6002 = vmatmul.f32.gmra.mxu0 %v5879
      %v6003 = vpop.f32.mrf.mxu0
      %v6004 = vadd.f32 0.0, %v6003
      %6005 = vmatmul.f32.gmra.mxu0 %v5882
      %v6006 = vpop.f32.mrf.mxu0
      %v6007 = vadd.f32 0.0, %v6006
      %6008 = vmatmul.f32.gmra.mxu0 %v5885
      %v6009 = vpop.f32.mrf.mxu0
      %v6010 = vadd.f32 0.0, %v6009
      %6011 = vmatmul.f32.gmra.mxu0 %v5888
      %v6012 = vpop.f32.mrf.mxu0
      %v6013 = vadd.f32 0.0, %v6012
      %6014 = vmatmul.f32.gmra.mxu0 %v5891
      %v6015 = vpop.f32.mrf.mxu0
      %v6016 = vadd.f32 0.0, %v6015
      %6017 = vdwg.mxu0
      %v6018 = vadd.f32 %v5708, %v5911
      %v6019 = vadd.f32 %v5709, %v5914
      %v6020 = vadd.f32 %v5710, %v5917
      %v6021 = vadd.f32 %v5711, %v5920
      %v6022 = vadd.f32 %v5712, %v5923
      %v6023 = vadd.f32 %v5713, %v5926
      %v6024 = vadd.f32 %v5714, %v5929
      %v6025 = vadd.f32 %v5715, %v5932
      %v6026 = vadd.f32 %v5716, %v5935
      %v6027 = vadd.f32 %v5717, %v5938
      %v6028 = vadd.f32 %v5718, %v5941
      %v6029 = vadd.f32 %v5719, %v5944
      %v6030 = vadd.f32 %v5720, %v5947
      %v6031 = vadd.f32 %v5721, %v5950
      %v6032 = vadd.f32 %v5722, %v5953
      %v6033 = vadd.f32 %v5723, %v5956
      %v6034 = vadd.f32 %v5724, %v5959
      %v6035 = vadd.f32 %v5725, %v5962
      %v6036 = vadd.f32 %v5726, %v5965
      %v6037 = vadd.f32 %v5727, %v5968
      %v6038 = vadd.f32 %v5728, %v5971
      %v6039 = vadd.f32 %v5729, %v5974
      %v6040 = vadd.f32 %v5730, %v5977
      %v6041 = vadd.f32 %v5731, %v5980
      %v6042 = vadd.f32 %v5732, %v5983
      %v6043 = vadd.f32 %v5733, %v5986
      %v6044 = vadd.f32 %v5734, %v5989
      %v6045 = vadd.f32 %v5735, %v5992
      %v6046 = vadd.f32 %v5736, %v5995
      %v6047 = vadd.f32 %v5737, %v5998
      %v6048 = vadd.f32 %v5738, %v6001
      %v6049 = vadd.f32 %v5739, %v6004
      %v6050 = vadd.f32 %v5740, %v6007
      %v6051 = vadd.f32 %v5741, %v6010
      %v6052 = vadd.f32 %v5742, %v6013
      %v6053 = vadd.f32 %v5743, %v6016
      %v6054 = vld [vmem:[#allocation2 + $0x26] sm:$0xff]
      %v6055 = vld [vmem:[#allocation2 + $0x2e] sm:$0xff]
      %v6056 = vld [vmem:[#allocation2 + $0x36] sm:$0xff]
      %v6057 = vld [vmem:[#allocation2 + $0x3e] sm:$0xff]
      %v6058 = vld [vmem:[#allocation2 + $0x46] sm:$0xff]
      %v6059 = vld [vmem:[#allocation2 + $0x4e] sm:$0xff]
      %v6060 = vld [vmem:[#allocation2 + $0x56] sm:$0xff]
      %v6061 = vld [vmem:[#allocation2 + $0x5e] sm:$0xff]
      %v6062 = vld [vmem:[#allocation2 + $0x66] sm:$0xff]
      %v6063 = vld [vmem:[#allocation2 + $0x6e] sm:$0xff]
      %v6064 = vld [vmem:[#allocation2 + $0x76] sm:$0xff]
      %v6065 = vld [vmem:[#allocation2 + $0x7e] sm:$0xff]
      %v6066 = vld [vmem:[#allocation2 + $0x86] sm:$0xff]
      %v6067 = vld [vmem:[#allocation2 + $0x8e] sm:$0xff]
      %v6068 = vld [vmem:[#allocation2 + $0x96] sm:$0xff]
      %v6069 = vld [vmem:[#allocation2 + $0x9e] sm:$0xff]
      %v6070 = vld [vmem:[#allocation2 + $0xa6] sm:$0xff]
      %v6071 = vld [vmem:[#allocation2 + $0xae] sm:$0xff]
      %v6072 = vld [vmem:[#allocation2 + $0xb6] sm:$0xff]
      %v6073 = vld [vmem:[#allocation2 + $0xbe] sm:$0xff]
      %v6074 = vld [vmem:[#allocation2 + $0xc6] sm:$0xff]
      %v6075 = vld [vmem:[#allocation2 + $0xce] sm:$0xff]
      %v6076 = vld [vmem:[#allocation2 + $0xd6] sm:$0xff]
      %v6077 = vld [vmem:[#allocation2 + $0xde] sm:$0xff]
      %v6078 = vld [vmem:[#allocation2 + $0xe6] sm:$0xff]
      %v6079 = vld [vmem:[#allocation2 + $0xee] sm:$0xff]
      %v6080 = vld [vmem:[#allocation2 + $0xf6] sm:$0xff]
      %v6081 = vld [vmem:[#allocation2 + $0xfe] sm:$0xff]
      %v6082 = vld [vmem:[#allocation2 + $0x106] sm:$0xff]
      %v6083 = vld [vmem:[#allocation2 + $0x10e] sm:$0xff]
      %v6084 = vld [vmem:[#allocation2 + $0x116] sm:$0xff]
      %v6085 = vld [vmem:[#allocation2 + $0x11e] sm:$0xff]
      %v6086 = vld [vmem:[#allocation2 + $0x126] sm:$0xff]
      %v6087 = vld [vmem:[#allocation2 + $0x12e] sm:$0xff]
      %v6088 = vld [vmem:[#allocation2 + $0x136] sm:$0xff]
      %v6089 = vld [vmem:[#allocation2 + $0x13e] sm:$0xff]
      %s6090 = scalar_lea.vmem %s4, 256
      %v6091 = vld [vmem:[%s6090] sm:$0xff]
      %v6092 = vld [vmem:[%s6090 + $0x8] sm:$0xff]
      %v6093 = vld [vmem:[%s6090 + $0x10] sm:$0xff]
      %v6094 = vld [vmem:[%s6090 + $0x18] sm:$0xff]
      %v6096 = vsel %vm439, %v6054, 0
      %v6099 = vsel %vm439, %v6055, 0
      %v6102 = vsel %vm439, %v6056, 0
      %v6105 = vsel %vm439, %v6057, 0
      %v6108 = vsel %vm439, %v6058, 0
      %v6111 = vsel %vm439, %v6059, 0
      %v6114 = vsel %vm439, %v6060, 0
      %v6117 = vsel %vm439, %v6061, 0
      %v6120 = vsel %vm439, %v6062, 0
      %v6123 = vsel %vm439, %v6063, 0
      %v6126 = vsel %vm439, %v6064, 0
      %v6129 = vsel %vm439, %v6065, 0
      %v6132 = vsel %vm439, %v6066, 0
      %v6135 = vsel %vm439, %v6067, 0
      %v6138 = vsel %vm439, %v6068, 0
      %v6141 = vsel %vm439, %v6069, 0
      %v6144 = vsel %vm439, %v6070, 0
      %v6147 = vsel %vm439, %v6071, 0
      %v6150 = vsel %vm439, %v6072, 0
      %v6153 = vsel %vm439, %v6073, 0
      %v6156 = vsel %vm439, %v6074, 0
      %v6159 = vsel %vm439, %v6075, 0
      %v6162 = vsel %vm439, %v6076, 0
      %v6165 = vsel %vm439, %v6077, 0
      %v6168 = vsel %vm439, %v6078, 0
      %v6171 = vsel %vm439, %v6079, 0
      %v6174 = vsel %vm439, %v6080, 0
      %v6177 = vsel %vm439, %v6081, 0
      %v6180 = vsel %vm439, %v6082, 0
      %v6183 = vsel %vm439, %v6083, 0
      %v6186 = vsel %vm439, %v6084, 0
      %v6189 = vsel %vm439, %v6085, 0
      %v6192 = vsel %vm439, %v6086, 0
      %v6195 = vsel %vm439, %v6087, 0
      %v6198 = vsel %vm439, %v6088, 0
      %v6201 = vsel %vm439, %v6089, 0
      %6203 = vmatpush.msra.mxu0 0.0
      %6204 = vmatpush.msra.mxu0 0.0
      %6205 = vmatpush.msra.mxu0 0.0
      %6206 = vmatpush.msra.mxu0 0.0
      %6207 = vmatpush.msra.mxu0 0.0
      %6208 = vmatpush.msra.mxu0 0.0
      %6209 = vmatpush.msra.mxu0 0.0
      %6210 = vmatpush.msra.mxu0 0.0
      %6211 = vmatpush.msra.mxu0 0.0
      %6212 = vmatpush.msra.mxu0 0.0
      %6213 = vmatpush.msra.mxu0 0.0
      %6214 = vmatpush.msra.mxu0 0.0
      %6215 = vmatpush.msra.mxu0 %v6094
      %6216 = vmatpush.msra.mxu0 %v6093
      %6217 = vmatpush.msra.mxu0 %v6092
      %6218 = vmatpush.msra.mxu0 %v6091
      %6219 = vmatmul.f32.gmra.mxu0 %v6096
      %v6220 = vpop.f32.mrf.mxu0
      %v6221 = vadd.f32 0.0, %v6220
      %6222 = vmatmul.f32.gmra.mxu0 %v6099
      %v6223 = vpop.f32.mrf.mxu0
      %v6224 = vadd.f32 0.0, %v6223
      %6225 = vmatmul.f32.gmra.mxu0 %v6102
      %v6226 = vpop.f32.mrf.mxu0
      %v6227 = vadd.f32 0.0, %v6226
      %6228 = vmatmul.f32.gmra.mxu0 %v6105
      %v6229 = vpop.f32.mrf.mxu0
      %v6230 = vadd.f32 0.0, %v6229
      %6231 = vmatmul.f32.gmra.mxu0 %v6108
      %v6232 = vpop.f32.mrf.mxu0
      %v6233 = vadd.f32 0.0, %v6232
      %6234 = vmatmul.f32.gmra.mxu0 %v6111
      %v6235 = vpop.f32.mrf.mxu0
      %v6236 = vadd.f32 0.0, %v6235
      %6237 = vmatmul.f32.gmra.mxu0 %v6114
      %v6238 = vpop.f32.mrf.mxu0
      %v6239 = vadd.f32 0.0, %v6238
      %6240 = vmatmul.f32.gmra.mxu0 %v6117
      %v6241 = vpop.f32.mrf.mxu0
      %v6242 = vadd.f32 0.0, %v6241
      %6243 = vmatmul.f32.gmra.mxu0 %v6120
      %v6244 = vpop.f32.mrf.mxu0
      %v6245 = vadd.f32 0.0, %v6244
      %6246 = vmatmul.f32.gmra.mxu0 %v6123
      %v6247 = vpop.f32.mrf.mxu0
      %v6248 = vadd.f32 0.0, %v6247
      %6249 = vmatmul.f32.gmra.mxu0 %v6126
      %v6250 = vpop.f32.mrf.mxu0
      %v6251 = vadd.f32 0.0, %v6250
      %6252 = vmatmul.f32.gmra.mxu0 %v6129
      %v6253 = vpop.f32.mrf.mxu0
      %v6254 = vadd.f32 0.0, %v6253
      %6255 = vmatmul.f32.gmra.mxu0 %v6132
      %v6256 = vpop.f32.mrf.mxu0
      %v6257 = vadd.f32 0.0, %v6256
      %6258 = vmatmul.f32.gmra.mxu0 %v6135
      %v6259 = vpop.f32.mrf.mxu0
      %v6260 = vadd.f32 0.0, %v6259
      %6261 = vmatmul.f32.gmra.mxu0 %v6138
      %v6262 = vpop.f32.mrf.mxu0
      %v6263 = vadd.f32 0.0, %v6262
      %6264 = vmatmul.f32.gmra.mxu0 %v6141
      %v6265 = vpop.f32.mrf.mxu0
      %v6266 = vadd.f32 0.0, %v6265
      %6267 = vmatmul.f32.gmra.mxu0 %v6144
      %v6268 = vpop.f32.mrf.mxu0
      %v6269 = vadd.f32 0.0, %v6268
      %6270 = vmatmul.f32.gmra.mxu0 %v6147
      %v6271 = vpop.f32.mrf.mxu0
      %v6272 = vadd.f32 0.0, %v6271
      %6273 = vmatmul.f32.gmra.mxu0 %v6150
      %v6274 = vpop.f32.mrf.mxu0
      %v6275 = vadd.f32 0.0, %v6274
      %6276 = vmatmul.f32.gmra.mxu0 %v6153
      %v6277 = vpop.f32.mrf.mxu0
      %v6278 = vadd.f32 0.0, %v6277
      %6279 = vmatmul.f32.gmra.mxu0 %v6156
      %v6280 = vpop.f32.mrf.mxu0
      %v6281 = vadd.f32 0.0, %v6280
      %6282 = vmatmul.f32.gmra.mxu0 %v6159
      %v6283 = vpop.f32.mrf.mxu0
      %v6284 = vadd.f32 0.0, %v6283
      %6285 = vmatmul.f32.gmra.mxu0 %v6162
      %v6286 = vpop.f32.mrf.mxu0
      %v6287 = vadd.f32 0.0, %v6286
      %6288 = vmatmul.f32.gmra.mxu0 %v6165
      %v6289 = vpop.f32.mrf.mxu0
      %v6290 = vadd.f32 0.0, %v6289
      %6291 = vmatmul.f32.gmra.mxu0 %v6168
      %v6292 = vpop.f32.mrf.mxu0
      %v6293 = vadd.f32 0.0, %v6292
      %6294 = vmatmul.f32.gmra.mxu0 %v6171
      %v6295 = vpop.f32.mrf.mxu0
      %v6296 = vadd.f32 0.0, %v6295
      %6297 = vmatmul.f32.gmra.mxu0 %v6174
      %v6298 = vpop.f32.mrf.mxu0
      %v6299 = vadd.f32 0.0, %v6298
      %6300 = vmatmul.f32.gmra.mxu0 %v6177
      %v6301 = vpop.f32.mrf.mxu0
      %v6302 = vadd.f32 0.0, %v6301
      %6303 = vmatmul.f32.gmra.mxu0 %v6180
      %v6304 = vpop.f32.mrf.mxu0
      %v6305 = vadd.f32 0.0, %v6304
      %6306 = vmatmul.f32.gmra.mxu0 %v6183
      %v6307 = vpop.f32.mrf.mxu0
      %v6308 = vadd.f32 0.0, %v6307
      %6309 = vmatmul.f32.gmra.mxu0 %v6186
      %v6310 = vpop.f32.mrf.mxu0
      %v6311 = vadd.f32 0.0, %v6310
      %6312 = vmatmul.f32.gmra.mxu0 %v6189
      %v6313 = vpop.f32.mrf.mxu0
      %v6314 = vadd.f32 0.0, %v6313
      %6315 = vmatmul.f32.gmra.mxu0 %v6192
      %v6316 = vpop.f32.mrf.mxu0
      %v6317 = vadd.f32 0.0, %v6316
      %6318 = vmatmul.f32.gmra.mxu0 %v6195
      %v6319 = vpop.f32.mrf.mxu0
      %v6320 = vadd.f32 0.0, %v6319
      %6321 = vmatmul.f32.gmra.mxu0 %v6198
      %v6322 = vpop.f32.mrf.mxu0
      %v6323 = vadd.f32 0.0, %v6322
      %6324 = vmatmul.f32.gmra.mxu0 %v6201
      %v6325 = vpop.f32.mrf.mxu0
      %v6326 = vadd.f32 0.0, %v6325
      %6327 = vdwg.mxu0
      %v6328 = vadd.f32 %v6018, %v6221
      %v6329 = vadd.f32 %v6019, %v6224
      %v6330 = vadd.f32 %v6020, %v6227
      %v6331 = vadd.f32 %v6021, %v6230
      %v6332 = vadd.f32 %v6022, %v6233
      %v6333 = vadd.f32 %v6023, %v6236
      %v6334 = vadd.f32 %v6024, %v6239
      %v6335 = vadd.f32 %v6025, %v6242
      %v6336 = vadd.f32 %v6026, %v6245
      %v6337 = vadd.f32 %v6027, %v6248
      %v6338 = vadd.f32 %v6028, %v6251
      %v6339 = vadd.f32 %v6029, %v6254
      %v6340 = vadd.f32 %v6030, %v6257
      %v6341 = vadd.f32 %v6031, %v6260
      %v6342 = vadd.f32 %v6032, %v6263
      %v6343 = vadd.f32 %v6033, %v6266
      %v6344 = vadd.f32 %v6034, %v6269
      %v6345 = vadd.f32 %v6035, %v6272
      %v6346 = vadd.f32 %v6036, %v6275
      %v6347 = vadd.f32 %v6037, %v6278
      %v6348 = vadd.f32 %v6038, %v6281
      %v6349 = vadd.f32 %v6039, %v6284
      %v6350 = vadd.f32 %v6040, %v6287
      %v6351 = vadd.f32 %v6041, %v6290
      %v6352 = vadd.f32 %v6042, %v6293
      %v6353 = vadd.f32 %v6043, %v6296
      %v6354 = vadd.f32 %v6044, %v6299
      %v6355 = vadd.f32 %v6045, %v6302
      %v6356 = vadd.f32 %v6046, %v6305
      %v6357 = vadd.f32 %v6047, %v6308
      %v6358 = vadd.f32 %v6048, %v6311
      %v6359 = vadd.f32 %v6049, %v6314
      %v6360 = vadd.f32 %v6050, %v6317
      %v6361 = vadd.f32 %v6051, %v6320
      %v6362 = vadd.f32 %v6052, %v6323
      %v6363 = vadd.f32 %v6053, %v6326
      %v6364 = vld [vmem:[%s5] sm:$0x1]
      %v6366 = vperm.slane %v6364, 0
      %v6368 = vadd.f32 %v6328, %v6366
      %v6369 = vadd.f32 %v6329, %v6366
      %v6370 = vadd.f32 %v6330, %v6366
      %v6371 = vadd.f32 %v6331, %v6366
      %v6372 = vadd.f32 %v6332, %v6366
      %v6373 = vadd.f32 %v6333, %v6366
      %v6374 = vadd.f32 %v6334, %v6366
      %v6375 = vadd.f32 %v6335, %v6366
      %v6376 = vadd.f32 %v6336, %v6366
      %v6377 = vadd.f32 %v6337, %v6366
      %v6378 = vadd.f32 %v6338, %v6366
      %v6379 = vadd.f32 %v6339, %v6366
      %v6380 = vadd.f32 %v6340, %v6366
      %v6381 = vadd.f32 %v6341, %v6366
      %v6382 = vadd.f32 %v6342, %v6366
      %v6383 = vadd.f32 %v6343, %v6366
      %v6384 = vadd.f32 %v6344, %v6366
      %v6385 = vadd.f32 %v6345, %v6366
      %v6386 = vadd.f32 %v6346, %v6366
      %v6387 = vadd.f32 %v6347, %v6366
      %v6388 = vadd.f32 %v6348, %v6366
      %v6389 = vadd.f32 %v6349, %v6366
      %v6390 = vadd.f32 %v6350, %v6366
      %v6391 = vadd.f32 %v6351, %v6366
      %v6392 = vadd.f32 %v6352, %v6366
      %v6393 = vadd.f32 %v6353, %v6366
      %v6394 = vadd.f32 %v6354, %v6366
      %v6395 = vadd.f32 %v6355, %v6366
      %v6396 = vadd.f32 %v6356, %v6366
      %v6397 = vadd.f32 %v6357, %v6366
      %v6398 = vadd.f32 %v6358, %v6366
      %v6399 = vadd.f32 %v6359, %v6366
      %v6400 = vadd.f32 %v6360, %v6366
      %v6401 = vadd.f32 %v6361, %v6366
      %v6402 = vadd.f32 %v6362, %v6366
      %v6403 = vadd.f32 %v6363, %v6366
      %v6404 = vmax.f32 %v6368, 0.0
      %v6405 = vmax.f32 %v6369, 0.0
      %v6406 = vmax.f32 %v6370, 0.0
      %v6407 = vmax.f32 %v6371, 0.0
      %v6408 = vmax.f32 %v6372, 0.0
      %v6409 = vmax.f32 %v6373, 0.0
      %v6410 = vmax.f32 %v6374, 0.0
      %v6411 = vmax.f32 %v6375, 0.0
      %v6412 = vmax.f32 %v6376, 0.0
      %v6413 = vmax.f32 %v6377, 0.0
      %v6414 = vmax.f32 %v6378, 0.0
      %v6415 = vmax.f32 %v6379, 0.0
      %v6416 = vmax.f32 %v6380, 0.0
      %v6417 = vmax.f32 %v6381, 0.0
      %v6418 = vmax.f32 %v6382, 0.0
      %v6419 = vmax.f32 %v6383, 0.0
      %v6420 = vmax.f32 %v6384, 0.0
      %v6421 = vmax.f32 %v6385, 0.0
      %v6422 = vmax.f32 %v6386, 0.0
      %v6423 = vmax.f32 %v6387, 0.0
      %v6424 = vmax.f32 %v6388, 0.0
      %v6425 = vmax.f32 %v6389, 0.0
      %v6426 = vmax.f32 %v6390, 0.0
      %v6427 = vmax.f32 %v6391, 0.0
      %v6428 = vmax.f32 %v6392, 0.0
      %v6429 = vmax.f32 %v6393, 0.0
      %v6430 = vmax.f32 %v6394, 0.0
      %v6431 = vmax.f32 %v6395, 0.0
      %v6432 = vmax.f32 %v6396, 0.0
      %v6433 = vmax.f32 %v6397, 0.0
      %v6434 = vmax.f32 %v6398, 0.0
      %v6435 = vmax.f32 %v6399, 0.0
      %v6436 = vmax.f32 %v6400, 0.0
      %v6437 = vmax.f32 %v6401, 0.0
      %v6438 = vmax.f32 %v6402, 0.0
      %v6439 = vmax.f32 %v6403, 0.0
      %v6440 = vmul.f32 %v6404, %v3398
      %v6441 = vmul.f32 %v6405, %v3403
      %v6442 = vmul.f32 %v6406, %v3408
      %v6443 = vmul.f32 %v6407, %v3413
      %v6444 = vmul.f32 %v6408, %v3418
      %v6445 = vmul.f32 %v6409, %v3423
      %v6446 = vmul.f32 %v6410, %v3428
      %v6447 = vmul.f32 %v6411, %v3433
      %v6448 = vmul.f32 %v6412, %v3438
      %v6449 = vmul.f32 %v6413, %v3443
      %v6450 = vmul.f32 %v6414, %v3448
      %v6451 = vmul.f32 %v6415, %v3453
      %v6452 = vmul.f32 %v6416, %v3458
      %v6453 = vmul.f32 %v6417, %v3463
      %v6454 = vmul.f32 %v6418, %v3468
      %v6455 = vmul.f32 %v6419, %v3473
      %v6456 = vmul.f32 %v6420, %v3478
      %v6457 = vmul.f32 %v6421, %v3483
      %v6458 = vmul.f32 %v6422, %v3488
      %v6459 = vmul.f32 %v6423, %v3493
      %v6460 = vmul.f32 %v6424, %v3498
      %v6461 = vmul.f32 %v6425, %v3503
      %v6462 = vmul.f32 %v6426, %v3508
      %v6463 = vmul.f32 %v6427, %v3513
      %v6464 = vmul.f32 %v6428, %v3518
      %v6465 = vmul.f32 %v6429, %v3523
      %v6466 = vmul.f32 %v6430, %v3528
      %v6467 = vmul.f32 %v6431, %v3533
      %v6468 = vmul.f32 %v6432, %v3538
      %v6469 = vmul.f32 %v6433, %v3543
      %v6470 = vmul.f32 %v6434, %v3548
      %v6471 = vmul.f32 %v6435, %v3553
      %v6472 = vmul.f32 %v6436, %v3558
      %v6473 = vmul.f32 %v6437, %v3563
      %v6474 = vmul.f32 %v6438, %v3568
      %v6475 = vmul.f32 %v6439, %v3573
      %6476 = vst.msk [vmem:[#allocation2 + $0x13] sm:$0xff] %vm439, %v6440
      %6477 = vst.msk [vmem:[#allocation2 + $0x1b] sm:$0xff] %vm439, %v6441
      %6478 = vst.msk [vmem:[#allocation2 + $0x23] sm:$0xff] %vm439, %v6442
      %6479 = vst.msk [vmem:[#allocation2 + $0x2b] sm:$0xff] %vm439, %v6443
      %6480 = vst.msk [vmem:[#allocation2 + $0x33] sm:$0xff] %vm439, %v6444
      %6481 = vst.msk [vmem:[#allocation2 + $0x3b] sm:$0xff] %vm439, %v6445
      %6482 = vst.msk [vmem:[#allocation2 + $0x43] sm:$0xff] %vm439, %v6446
      %6483 = vst.msk [vmem:[#allocation2 + $0x4b] sm:$0xff] %vm439, %v6447
      %6484 = vst.msk [vmem:[#allocation2 + $0x53] sm:$0xff] %vm439, %v6448
      %6485 = vst.msk [vmem:[#allocation2 + $0x5b] sm:$0xff] %vm439, %v6449
      %6486 = vst.msk [vmem:[#allocation2 + $0x63] sm:$0xff] %vm439, %v6450
      %6487 = vst.msk [vmem:[#allocation2 + $0x6b] sm:$0xff] %vm439, %v6451
      %6488 = vst.msk [vmem:[#allocation2 + $0x73] sm:$0xff] %vm439, %v6452
      %6489 = vst.msk [vmem:[#allocation2 + $0x7b] sm:$0xff] %vm439, %v6453
      %6490 = vst.msk [vmem:[#allocation2 + $0x83] sm:$0xff] %vm439, %v6454
      %6491 = vst.msk [vmem:[#allocation2 + $0x8b] sm:$0xff] %vm439, %v6455
      %6492 = vst.msk [vmem:[#allocation2 + $0x93] sm:$0xff] %vm439, %v6456
      %6493 = vst.msk [vmem:[#allocation2 + $0x9b] sm:$0xff] %vm439, %v6457
      %6494 = vst.msk [vmem:[#allocation2 + $0xa3] sm:$0xff] %vm439, %v6458
      %6495 = vst.msk [vmem:[#allocation2 + $0xab] sm:$0xff] %vm439, %v6459
      %6496 = vst.msk [vmem:[#allocation2 + $0xb3] sm:$0xff] %vm439, %v6460
      %6497 = vst.msk [vmem:[#allocation2 + $0xbb] sm:$0xff] %vm439, %v6461
      %6498 = vst.msk [vmem:[#allocation2 + $0xc3] sm:$0xff] %vm439, %v6462
      %6499 = vst.msk [vmem:[#allocation2 + $0xcb] sm:$0xff] %vm439, %v6463
      %6500 = vst.msk [vmem:[#allocation2 + $0xd3] sm:$0xff] %vm439, %v6464
      %6501 = vst.msk [vmem:[#allocation2 + $0xdb] sm:$0xff] %vm439, %v6465
      %6502 = vst.msk [vmem:[#allocation2 + $0xe3] sm:$0xff] %vm439, %v6466
      %6503 = vst.msk [vmem:[#allocation2 + $0xeb] sm:$0xff] %vm439, %v6467
      %6504 = vst.msk [vmem:[#allocation2 + $0xf3] sm:$0xff] %vm439, %v6468
      %6505 = vst.msk [vmem:[#allocation2 + $0xfb] sm:$0xff] %vm439, %v6469
      %6506 = vst.msk [vmem:[#allocation2 + $0x103] sm:$0xff] %vm439, %v6470
      %6507 = vst.msk [vmem:[#allocation2 + $0x10b] sm:$0xff] %vm439, %v6471
      %6508 = vst.msk [vmem:[#allocation2 + $0x113] sm:$0xff] %vm439, %v6472
      %6509 = vst.msk [vmem:[#allocation2 + $0x11b] sm:$0xff] %vm439, %v6473
      %6510 = vst.msk [vmem:[#allocation2 + $0x123] sm:$0xff] %vm439, %v6474
      %6511 = vst.msk [vmem:[#allocation2 + $0x12b] sm:$0xff] %vm439, %v6475
      %vm6512 = vcmask 130048
      %6513 = vst.msk [vmem:[%s428] sm:$0xff] %vm6512, %v6440
      %6514 = vst.msk [vmem:[%s428 + $0x8] sm:$0xff] %vm6512, %v6441
      %6515 = vst.msk [vmem:[%s428 + $0x10] sm:$0xff] %vm6512, %v6442
      %6516 = vst.msk [vmem:[%s428 + $0x18] sm:$0xff] %vm6512, %v6443
      %6517 = vst.msk [vmem:[%s428 + $0x20] sm:$0xff] %vm6512, %v6444
      %6518 = vst.msk [vmem:[%s428 + $0x28] sm:$0xff] %vm6512, %v6445
      %6519 = vst.msk [vmem:[%s428 + $0x30] sm:$0xff] %vm6512, %v6446
      %6520 = vst.msk [vmem:[%s428 + $0x38] sm:$0xff] %vm6512, %v6447
      %6521 = vst.msk [vmem:[%s428 + $0x40] sm:$0xff] %vm6512, %v6448
      %6522 = vst.msk [vmem:[%s428 + $0x48] sm:$0xff] %vm6512, %v6449
      %6523 = vst.msk [vmem:[%s428 + $0x50] sm:$0xff] %vm6512, %v6450
      %6524 = vst.msk [vmem:[%s428 + $0x58] sm:$0xff] %vm6512, %v6451
      %6525 = vst.msk [vmem:[%s428 + $0x60] sm:$0xff] %vm6512, %v6452
      %6526 = vst.msk [vmem:[%s428 + $0x68] sm:$0xff] %vm6512, %v6453
      %6527 = vst.msk [vmem:[%s428 + $0x70] sm:$0xff] %vm6512, %v6454
      %6528 = vst.msk [vmem:[%s428 + $0x78] sm:$0xff] %vm6512, %v6455
      %6529 = vst.msk [vmem:[%s428 + $0x80] sm:$0xff] %vm6512, %v6456
      %6530 = vst.msk [vmem:[%s428 + $0x88] sm:$0xff] %vm6512, %v6457
      %6531 = vst.msk [vmem:[%s428 + $0x90] sm:$0xff] %vm6512, %v6458
      %6532 = vst.msk [vmem:[%s428 + $0x98] sm:$0xff] %vm6512, %v6459
      %6533 = vst.msk [vmem:[%s428 + $0xa0] sm:$0xff] %vm6512, %v6460
      %6534 = vst.msk [vmem:[%s428 + $0xa8] sm:$0xff] %vm6512, %v6461
      %6535 = vst.msk [vmem:[%s428 + $0xb0] sm:$0xff] %vm6512, %v6462
      %6536 = vst.msk [vmem:[%s428 + $0xb8] sm:$0xff] %vm6512, %v6463
      %6537 = vst.msk [vmem:[%s428 + $0xc0] sm:$0xff] %vm6512, %v6464
      %6538 = vst.msk [vmem:[%s428 + $0xc8] sm:$0xff] %vm6512, %v6465
      %6539 = vst.msk [vmem:[%s428 + $0xd0] sm:$0xff] %vm6512, %v6466
      %6540 = vst.msk [vmem:[%s428 + $0xd8] sm:$0xff] %vm6512, %v6467
      %6541 = vst.msk [vmem:[%s428 + $0xe0] sm:$0xff] %vm6512, %v6468
      %6542 = vst.msk [vmem:[%s428 + $0xe8] sm:$0xff] %vm6512, %v6469
      %6543 = vst.msk [vmem:[%s428 + $0xf0] sm:$0xff] %vm6512, %v6470
      %6544 = vst.msk [vmem:[%s428 + $0xf8] sm:$0xff] %vm6512, %v6471
      %6545 = vst.msk [vmem:[%s428 + $0x100] sm:$0xff] %vm6512, %v6472
      %6546 = vst.msk [vmem:[%s428 + $0x108] sm:$0xff] %vm6512, %v6473
      %6547 = vst.msk [vmem:[%s428 + $0x110] sm:$0xff] %vm6512, %v6474
      %6548 = vst.msk [vmem:[%s428 + $0x118] sm:$0xff] %vm6512, %v6475
      %v6549 = vld [vmem:[#allocation2] sm:$0xff]
      %v6550 = vld [vmem:[#allocation2 + $0x8] sm:$0xff]
      %v6551 = vld [vmem:[#allocation2 + $0x10] sm:$0xff]
      %v6552 = vld [vmem:[#allocation2 + $0x18] sm:$0xff]
      %v6553 = vld [vmem:[#allocation2 + $0x20] sm:$0xff]
      %v6554 = vld [vmem:[#allocation2 + $0x28] sm:$0xff]
      %v6555 = vld [vmem:[#allocation2 + $0x30] sm:$0xff]
      %v6556 = vld [vmem:[#allocation2 + $0x38] sm:$0xff]
      %v6557 = vld [vmem:[#allocation2 + $0x40] sm:$0xff]
      %v6558 = vld [vmem:[#allocation2 + $0x48] sm:$0xff]
      %v6559 = vld [vmem:[#allocation2 + $0x50] sm:$0xff]
      %v6560 = vld [vmem:[#allocation2 + $0x58] sm:$0xff]
      %v6561 = vld [vmem:[#allocation2 + $0x60] sm:$0xff]
      %v6562 = vld [vmem:[#allocation2 + $0x68] sm:$0xff]
      %v6563 = vld [vmem:[#allocation2 + $0x70] sm:$0xff]
      %v6564 = vld [vmem:[#allocation2 + $0x78] sm:$0xff]
      %v6565 = vld [vmem:[#allocation2 + $0x80] sm:$0xff]
      %v6566 = vld [vmem:[#allocation2 + $0x88] sm:$0xff]
      %v6567 = vld [vmem:[#allocation2 + $0x90] sm:$0xff]
      %v6568 = vld [vmem:[#allocation2 + $0x98] sm:$0xff]
      %v6569 = vld [vmem:[#allocation2 + $0xa0] sm:$0xff]
      %v6570 = vld [vmem:[#allocation2 + $0xa8] sm:$0xff]
      %v6571 = vld [vmem:[#allocation2 + $0xb0] sm:$0xff]
      %v6572 = vld [vmem:[#allocation2 + $0xb8] sm:$0xff]
      %v6573 = vld [vmem:[#allocation2 + $0xc0] sm:$0xff]
      %v6574 = vld [vmem:[#allocation2 + $0xc8] sm:$0xff]
      %v6575 = vld [vmem:[#allocation2 + $0xd0] sm:$0xff]
      %v6576 = vld [vmem:[#allocation2 + $0xd8] sm:$0xff]
      %v6577 = vld [vmem:[#allocation2 + $0xe0] sm:$0xff]
      %v6578 = vld [vmem:[#allocation2 + $0xe8] sm:$0xff]
      %v6579 = vld [vmem:[#allocation2 + $0xf0] sm:$0xff]
      %v6580 = vld [vmem:[#allocation2 + $0xf8] sm:$0xff]
      %v6581 = vld [vmem:[#allocation2 + $0x100] sm:$0xff]
      %v6582 = vld [vmem:[#allocation2 + $0x108] sm:$0xff]
      %v6583 = vld [vmem:[#allocation2 + $0x110] sm:$0xff]
      %v6584 = vld [vmem:[#allocation2 + $0x118] sm:$0xff]
      %v6585 = vld [vmem:[%s6] sm:$0xff]
      %v6586 = vld [vmem:[%s6 + $0x8] sm:$0xff]
      %v6587 = vld [vmem:[%s6 + $0x10] sm:$0xff]
      %v6588 = vld [vmem:[%s6 + $0x18] sm:$0xff]
      %v6589 = vld [vmem:[#allocation2 + $0x1] sm:$0xff]
      %v6590 = vld [vmem:[#allocation2 + $0x9] sm:$0xff]
      %v6591 = vld [vmem:[#allocation2 + $0x11] sm:$0xff]
      %v6592 = vld [vmem:[#allocation2 + $0x19] sm:$0xff]
      %v6593 = vld [vmem:[#allocation2 + $0x21] sm:$0xff]
      %v6594 = vld [vmem:[#allocation2 + $0x29] sm:$0xff]
      %v6595 = vld [vmem:[#allocation2 + $0x31] sm:$0xff]
      %v6596 = vld [vmem:[#allocation2 + $0x39] sm:$0xff]
      %v6597 = vld [vmem:[#allocation2 + $0x41] sm:$0xff]
      %v6598 = vld [vmem:[#allocation2 + $0x49] sm:$0xff]
      %v6599 = vld [vmem:[#allocation2 + $0x51] sm:$0xff]
      %v6600 = vld [vmem:[#allocation2 + $0x59] sm:$0xff]
      %v6601 = vld [vmem:[#allocation2 + $0x61] sm:$0xff]
      %v6602 = vld [vmem:[#allocation2 + $0x69] sm:$0xff]
      %v6603 = vld [vmem:[#allocation2 + $0x71] sm:$0xff]
      %v6604 = vld [vmem:[#allocation2 + $0x79] sm:$0xff]
      %v6605 = vld [vmem:[#allocation2 + $0x81] sm:$0xff]
      %v6606 = vld [vmem:[#allocation2 + $0x89] sm:$0xff]
      %v6607 = vld [vmem:[#allocation2 + $0x91] sm:$0xff]
      %v6608 = vld [vmem:[#allocation2 + $0x99] sm:$0xff]
      %v6609 = vld [vmem:[#allocation2 + $0xa1] sm:$0xff]
      %v6610 = vld [vmem:[#allocation2 + $0xa9] sm:$0xff]
      %v6611 = vld [vmem:[#allocation2 + $0xb1] sm:$0xff]
      %v6612 = vld [vmem:[#allocation2 + $0xb9] sm:$0xff]
      %v6613 = vld [vmem:[#allocation2 + $0xc1] sm:$0xff]
      %v6614 = vld [vmem:[#allocation2 + $0xc9] sm:$0xff]
      %v6615 = vld [vmem:[#allocation2 + $0xd1] sm:$0xff]
      %v6616 = vld [vmem:[#allocation2 + $0xd9] sm:$0xff]
      %v6617 = vld [vmem:[#allocation2 + $0xe1] sm:$0xff]
      %v6618 = vld [vmem:[#allocation2 + $0xe9] sm:$0xff]
      %v6619 = vld [vmem:[#allocation2 + $0xf1] sm:$0xff]
      %v6620 = vld [vmem:[#allocation2 + $0xf9] sm:$0xff]
      %v6621 = vld [vmem:[#allocation2 + $0x101] sm:$0xff]
      %v6622 = vld [vmem:[#allocation2 + $0x109] sm:$0xff]
      %v6623 = vld [vmem:[#allocation2 + $0x111] sm:$0xff]
      %v6624 = vld [vmem:[#allocation2 + $0x119] sm:$0xff]
      %s6625 = scalar_lea.vmem %s6, 32
      %v6626 = vld [vmem:[%s6625] sm:$0xff]
      %v6627 = vld [vmem:[%s6625 + $0x8] sm:$0xff]
      %v6628 = vld [vmem:[%s6625 + $0x10] sm:$0xff]
      %v6629 = vld [vmem:[%s6625 + $0x18] sm:$0xff]
      %v6631 = vsel %vm439, %v6589, 0
      %v6634 = vsel %vm439, %v6590, 0
      %v6637 = vsel %vm439, %v6591, 0
      %v6640 = vsel %vm439, %v6592, 0
      %v6643 = vsel %vm439, %v6593, 0
      %v6646 = vsel %vm439, %v6594, 0
      %v6649 = vsel %vm439, %v6595, 0
      %v6652 = vsel %vm439, %v6596, 0
      %v6655 = vsel %vm439, %v6597, 0
      %v6658 = vsel %vm439, %v6598, 0
      %v6661 = vsel %vm439, %v6599, 0
      %v6664 = vsel %vm439, %v6600, 0
      %v6667 = vsel %vm439, %v6601, 0
      %v6670 = vsel %vm439, %v6602, 0
      %v6673 = vsel %vm439, %v6603, 0
      %v6676 = vsel %vm439, %v6604, 0
      %v6679 = vsel %vm439, %v6605, 0
      %v6682 = vsel %vm439, %v6606, 0
      %v6685 = vsel %vm439, %v6607, 0
      %v6688 = vsel %vm439, %v6608, 0
      %v6691 = vsel %vm439, %v6609, 0
      %v6694 = vsel %vm439, %v6610, 0
      %v6697 = vsel %vm439, %v6611, 0
      %v6700 = vsel %vm439, %v6612, 0
      %v6703 = vsel %vm439, %v6613, 0
      %v6706 = vsel %vm439, %v6614, 0
      %v6709 = vsel %vm439, %v6615, 0
      %v6712 = vsel %vm439, %v6616, 0
      %v6715 = vsel %vm439, %v6617, 0
      %v6718 = vsel %vm439, %v6618, 0
      %v6721 = vsel %vm439, %v6619, 0
      %v6724 = vsel %vm439, %v6620, 0
      %v6727 = vsel %vm439, %v6621, 0
      %v6730 = vsel %vm439, %v6622, 0
      %v6733 = vsel %vm439, %v6623, 0
      %v6736 = vsel %vm439, %v6624, 0
      %6738 = vmatpush.msra.mxu0 0.0
      %6739 = vmatpush.msra.mxu0 0.0
      %6740 = vmatpush.msra.mxu0 0.0
      %6741 = vmatpush.msra.mxu0 0.0
      %6742 = vmatpush.msra.mxu0 0.0
      %6743 = vmatpush.msra.mxu0 0.0
      %6744 = vmatpush.msra.mxu0 0.0
      %6745 = vmatpush.msra.mxu0 0.0
      %6746 = vmatpush.msra.mxu0 0.0
      %6747 = vmatpush.msra.mxu0 0.0
      %6748 = vmatpush.msra.mxu0 0.0
      %6749 = vmatpush.msra.mxu0 0.0
      %6750 = vmatpush.msra.mxu0 %v6629
      %6751 = vmatpush.msra.mxu0 %v6628
      %6752 = vmatpush.msra.mxu0 %v6627
      %6753 = vmatpush.msra.mxu0 %v6626
      %6754 = vmatmul.f32.gmra.mxu0 %v6631
      %v6755 = vpop.f32.mrf.mxu0
      %v6756 = vadd.f32 0.0, %v6755
      %6757 = vmatmul.f32.gmra.mxu0 %v6634
      %v6758 = vpop.f32.mrf.mxu0
      %v6759 = vadd.f32 0.0, %v6758
      %6760 = vmatmul.f32.gmra.mxu0 %v6637
      %v6761 = vpop.f32.mrf.mxu0
      %v6762 = vadd.f32 0.0, %v6761
      %6763 = vmatmul.f32.gmra.mxu0 %v6640
      %v6764 = vpop.f32.mrf.mxu0
      %v6765 = vadd.f32 0.0, %v6764
      %6766 = vmatmul.f32.gmra.mxu0 %v6643
      %v6767 = vpop.f32.mrf.mxu0
      %v6768 = vadd.f32 0.0, %v6767
      %6769 = vmatmul.f32.gmra.mxu0 %v6646
      %v6770 = vpop.f32.mrf.mxu0
      %v6771 = vadd.f32 0.0, %v6770
      %6772 = vmatmul.f32.gmra.mxu0 %v6649
      %v6773 = vpop.f32.mrf.mxu0
      %v6774 = vadd.f32 0.0, %v6773
      %6775 = vmatmul.f32.gmra.mxu0 %v6652
      %v6776 = vpop.f32.mrf.mxu0
      %v6777 = vadd.f32 0.0, %v6776
      %6778 = vmatmul.f32.gmra.mxu0 %v6655
      %v6779 = vpop.f32.mrf.mxu0
      %v6780 = vadd.f32 0.0, %v6779
      %6781 = vmatmul.f32.gmra.mxu0 %v6658
      %v6782 = vpop.f32.mrf.mxu0
      %v6783 = vadd.f32 0.0, %v6782
      %6784 = vmatmul.f32.gmra.mxu0 %v6661
      %v6785 = vpop.f32.mrf.mxu0
      %v6786 = vadd.f32 0.0, %v6785
      %6787 = vmatmul.f32.gmra.mxu0 %v6664
      %v6788 = vpop.f32.mrf.mxu0
      %v6789 = vadd.f32 0.0, %v6788
      %6790 = vmatmul.f32.gmra.mxu0 %v6667
      %v6791 = vpop.f32.mrf.mxu0
      %v6792 = vadd.f32 0.0, %v6791
      %6793 = vmatmul.f32.gmra.mxu0 %v6670
      %v6794 = vpop.f32.mrf.mxu0
      %v6795 = vadd.f32 0.0, %v6794
      %6796 = vmatmul.f32.gmra.mxu0 %v6673
      %v6797 = vpop.f32.mrf.mxu0
      %v6798 = vadd.f32 0.0, %v6797
      %6799 = vmatmul.f32.gmra.mxu0 %v6676
      %v6800 = vpop.f32.mrf.mxu0
      %v6801 = vadd.f32 0.0, %v6800
      %6802 = vmatmul.f32.gmra.mxu0 %v6679
      %v6803 = vpop.f32.mrf.mxu0
      %v6804 = vadd.f32 0.0, %v6803
      %6805 = vmatmul.f32.gmra.mxu0 %v6682
      %v6806 = vpop.f32.mrf.mxu0
      %v6807 = vadd.f32 0.0, %v6806
      %6808 = vmatmul.f32.gmra.mxu0 %v6685
      %v6809 = vpop.f32.mrf.mxu0
      %v6810 = vadd.f32 0.0, %v6809
      %6811 = vmatmul.f32.gmra.mxu0 %v6688
      %v6812 = vpop.f32.mrf.mxu0
      %v6813 = vadd.f32 0.0, %v6812
      %6814 = vmatmul.f32.gmra.mxu0 %v6691
      %v6815 = vpop.f32.mrf.mxu0
      %v6816 = vadd.f32 0.0, %v6815
      %6817 = vmatmul.f32.gmra.mxu0 %v6694
      %v6818 = vpop.f32.mrf.mxu0
      %v6819 = vadd.f32 0.0, %v6818
      %6820 = vmatmul.f32.gmra.mxu0 %v6697
      %v6821 = vpop.f32.mrf.mxu0
      %v6822 = vadd.f32 0.0, %v6821
      %6823 = vmatmul.f32.gmra.mxu0 %v6700
      %v6824 = vpop.f32.mrf.mxu0
      %v6825 = vadd.f32 0.0, %v6824
      %6826 = vmatmul.f32.gmra.mxu0 %v6703
      %v6827 = vpop.f32.mrf.mxu0
      %v6828 = vadd.f32 0.0, %v6827
      %6829 = vmatmul.f32.gmra.mxu0 %v6706
      %v6830 = vpop.f32.mrf.mxu0
      %v6831 = vadd.f32 0.0, %v6830
      %6832 = vmatmul.f32.gmra.mxu0 %v6709
      %v6833 = vpop.f32.mrf.mxu0
      %v6834 = vadd.f32 0.0, %v6833
      %6835 = vmatmul.f32.gmra.mxu0 %v6712
      %v6836 = vpop.f32.mrf.mxu0
      %v6837 = vadd.f32 0.0, %v6836
      %6838 = vmatmul.f32.gmra.mxu0 %v6715
      %v6839 = vpop.f32.mrf.mxu0
      %v6840 = vadd.f32 0.0, %v6839
      %6841 = vmatmul.f32.gmra.mxu0 %v6718
      %v6842 = vpop.f32.mrf.mxu0
      %v6843 = vadd.f32 0.0, %v6842
      %6844 = vmatmul.f32.gmra.mxu0 %v6721
      %v6845 = vpop.f32.mrf.mxu0
      %v6846 = vadd.f32 0.0, %v6845
      %6847 = vmatmul.f32.gmra.mxu0 %v6724
      %v6848 = vpop.f32.mrf.mxu0
      %v6849 = vadd.f32 0.0, %v6848
      %6850 = vmatmul.f32.gmra.mxu0 %v6727
      %v6851 = vpop.f32.mrf.mxu0
      %v6852 = vadd.f32 0.0, %v6851
      %6853 = vmatmul.f32.gmra.mxu0 %v6730
      %v6854 = vpop.f32.mrf.mxu0
      %v6855 = vadd.f32 0.0, %v6854
      %6856 = vmatmul.f32.gmra.mxu0 %v6733
      %v6857 = vpop.f32.mrf.mxu0
      %v6858 = vadd.f32 0.0, %v6857
      %6859 = vmatmul.f32.gmra.mxu0 %v6736
      %v6860 = vpop.f32.mrf.mxu0
      %v6861 = vadd.f32 0.0, %v6860
      %6862 = vdwg.mxu0
      %v6864 = vsel %vm439, %v6549, 0
      %v6867 = vsel %vm439, %v6550, 0
      %v6870 = vsel %vm439, %v6551, 0
      %v6873 = vsel %vm439, %v6552, 0
      %v6876 = vsel %vm439, %v6553, 0
      %v6879 = vsel %vm439, %v6554, 0
      %v6882 = vsel %vm439, %v6555, 0
      %v6885 = vsel %vm439, %v6556, 0
      %v6888 = vsel %vm439, %v6557, 0
      %v6891 = vsel %vm439, %v6558, 0
      %v6894 = vsel %vm439, %v6559, 0
      %v6897 = vsel %vm439, %v6560, 0
      %v6900 = vsel %vm439, %v6561, 0
      %v6903 = vsel %vm439, %v6562, 0
      %v6906 = vsel %vm439, %v6563, 0
      %v6909 = vsel %vm439, %v6564, 0
      %v6912 = vsel %vm439, %v6565, 0
      %v6915 = vsel %vm439, %v6566, 0
      %v6918 = vsel %vm439, %v6567, 0
      %v6921 = vsel %vm439, %v6568, 0
      %v6924 = vsel %vm439, %v6569, 0
      %v6927 = vsel %vm439, %v6570, 0
      %v6930 = vsel %vm439, %v6571, 0
      %v6933 = vsel %vm439, %v6572, 0
      %v6936 = vsel %vm439, %v6573, 0
      %v6939 = vsel %vm439, %v6574, 0
      %v6942 = vsel %vm439, %v6575, 0
      %v6945 = vsel %vm439, %v6576, 0
      %v6948 = vsel %vm439, %v6577, 0
      %v6951 = vsel %vm439, %v6578, 0
      %v6954 = vsel %vm439, %v6579, 0
      %v6957 = vsel %vm439, %v6580, 0
      %v6960 = vsel %vm439, %v6581, 0
      %v6963 = vsel %vm439, %v6582, 0
      %v6966 = vsel %vm439, %v6583, 0
      %v6969 = vsel %vm439, %v6584, 0
      %6971 = vmatpush.msra.mxu0 0.0
      %6972 = vmatpush.msra.mxu0 0.0
      %6973 = vmatpush.msra.mxu0 0.0
      %6974 = vmatpush.msra.mxu0 0.0
      %6975 = vmatpush.msra.mxu0 0.0
      %6976 = vmatpush.msra.mxu0 0.0
      %6977 = vmatpush.msra.mxu0 0.0
      %6978 = vmatpush.msra.mxu0 0.0
      %6979 = vmatpush.msra.mxu0 0.0
      %6980 = vmatpush.msra.mxu0 0.0
      %6981 = vmatpush.msra.mxu0 0.0
      %6982 = vmatpush.msra.mxu0 0.0
      %6983 = vmatpush.msra.mxu0 %v6588
      %6984 = vmatpush.msra.mxu0 %v6587
      %6985 = vmatpush.msra.mxu0 %v6586
      %6986 = vmatpush.msra.mxu0 %v6585
      %6987 = vmatmul.f32.gmra.mxu0 %v6864
      %v6988 = vpop.f32.mrf.mxu0
      %v6989 = vadd.f32 %v6756, %v6988
      %6990 = vmatmul.f32.gmra.mxu0 %v6867
      %v6991 = vpop.f32.mrf.mxu0
      %v6992 = vadd.f32 %v6759, %v6991
      %6993 = vmatmul.f32.gmra.mxu0 %v6870
      %v6994 = vpop.f32.mrf.mxu0
      %v6995 = vadd.f32 %v6762, %v6994
      %6996 = vmatmul.f32.gmra.mxu0 %v6873
      %v6997 = vpop.f32.mrf.mxu0
      %v6998 = vadd.f32 %v6765, %v6997
      %6999 = vmatmul.f32.gmra.mxu0 %v6876
      %v7000 = vpop.f32.mrf.mxu0
      %v7001 = vadd.f32 %v6768, %v7000
      %7002 = vmatmul.f32.gmra.mxu0 %v6879
      %v7003 = vpop.f32.mrf.mxu0
      %v7004 = vadd.f32 %v6771, %v7003
      %7005 = vmatmul.f32.gmra.mxu0 %v6882
      %v7006 = vpop.f32.mrf.mxu0
      %v7007 = vadd.f32 %v6774, %v7006
      %7008 = vmatmul.f32.gmra.mxu0 %v6885
      %v7009 = vpop.f32.mrf.mxu0
      %v7010 = vadd.f32 %v6777, %v7009
      %7011 = vmatmul.f32.gmra.mxu0 %v6888
      %v7012 = vpop.f32.mrf.mxu0
      %v7013 = vadd.f32 %v6780, %v7012
      %7014 = vmatmul.f32.gmra.mxu0 %v6891
      %v7015 = vpop.f32.mrf.mxu0
      %v7016 = vadd.f32 %v6783, %v7015
      %7017 = vmatmul.f32.gmra.mxu0 %v6894
      %v7018 = vpop.f32.mrf.mxu0
      %v7019 = vadd.f32 %v6786, %v7018
      %7020 = vmatmul.f32.gmra.mxu0 %v6897
      %v7021 = vpop.f32.mrf.mxu0
      %v7022 = vadd.f32 %v6789, %v7021
      %7023 = vmatmul.f32.gmra.mxu0 %v6900
      %v7024 = vpop.f32.mrf.mxu0
      %v7025 = vadd.f32 %v6792, %v7024
      %7026 = vmatmul.f32.gmra.mxu0 %v6903
      %v7027 = vpop.f32.mrf.mxu0
      %v7028 = vadd.f32 %v6795, %v7027
      %7029 = vmatmul.f32.gmra.mxu0 %v6906
      %v7030 = vpop.f32.mrf.mxu0
      %v7031 = vadd.f32 %v6798, %v7030
      %7032 = vmatmul.f32.gmra.mxu0 %v6909
      %v7033 = vpop.f32.mrf.mxu0
      %v7034 = vadd.f32 %v6801, %v7033
      %7035 = vmatmul.f32.gmra.mxu0 %v6912
      %v7036 = vpop.f32.mrf.mxu0
      %v7037 = vadd.f32 %v6804, %v7036
      %7038 = vmatmul.f32.gmra.mxu0 %v6915
      %v7039 = vpop.f32.mrf.mxu0
      %v7040 = vadd.f32 %v6807, %v7039
      %7041 = vmatmul.f32.gmra.mxu0 %v6918
      %v7042 = vpop.f32.mrf.mxu0
      %v7043 = vadd.f32 %v6810, %v7042
      %7044 = vmatmul.f32.gmra.mxu0 %v6921
      %v7045 = vpop.f32.mrf.mxu0
      %v7046 = vadd.f32 %v6813, %v7045
      %7047 = vmatmul.f32.gmra.mxu0 %v6924
      %v7048 = vpop.f32.mrf.mxu0
      %v7049 = vadd.f32 %v6816, %v7048
      %7050 = vmatmul.f32.gmra.mxu0 %v6927
      %v7051 = vpop.f32.mrf.mxu0
      %v7052 = vadd.f32 %v6819, %v7051
      %7053 = vmatmul.f32.gmra.mxu0 %v6930
      %v7054 = vpop.f32.mrf.mxu0
      %v7055 = vadd.f32 %v6822, %v7054
      %7056 = vmatmul.f32.gmra.mxu0 %v6933
      %v7057 = vpop.f32.mrf.mxu0
      %v7058 = vadd.f32 %v6825, %v7057
      %7059 = vmatmul.f32.gmra.mxu0 %v6936
      %v7060 = vpop.f32.mrf.mxu0
      %v7061 = vadd.f32 %v6828, %v7060
      %7062 = vmatmul.f32.gmra.mxu0 %v6939
      %v7063 = vpop.f32.mrf.mxu0
      %v7064 = vadd.f32 %v6831, %v7063
      %7065 = vmatmul.f32.gmra.mxu0 %v6942
      %v7066 = vpop.f32.mrf.mxu0
      %v7067 = vadd.f32 %v6834, %v7066
      %7068 = vmatmul.f32.gmra.mxu0 %v6945
      %v7069 = vpop.f32.mrf.mxu0
      %v7070 = vadd.f32 %v6837, %v7069
      %7071 = vmatmul.f32.gmra.mxu0 %v6948
      %v7072 = vpop.f32.mrf.mxu0
      %v7073 = vadd.f32 %v6840, %v7072
      %7074 = vmatmul.f32.gmra.mxu0 %v6951
      %v7075 = vpop.f32.mrf.mxu0
      %v7076 = vadd.f32 %v6843, %v7075
      %7077 = vmatmul.f32.gmra.mxu0 %v6954
      %v7078 = vpop.f32.mrf.mxu0
      %v7079 = vadd.f32 %v6846, %v7078
      %7080 = vmatmul.f32.gmra.mxu0 %v6957
      %v7081 = vpop.f32.mrf.mxu0
      %v7082 = vadd.f32 %v6849, %v7081
      %7083 = vmatmul.f32.gmra.mxu0 %v6960
      %v7084 = vpop.f32.mrf.mxu0
      %v7085 = vadd.f32 %v6852, %v7084
      %7086 = vmatmul.f32.gmra.mxu0 %v6963
      %v7087 = vpop.f32.mrf.mxu0
      %v7088 = vadd.f32 %v6855, %v7087
      %7089 = vmatmul.f32.gmra.mxu0 %v6966
      %v7090 = vpop.f32.mrf.mxu0
      %v7091 = vadd.f32 %v6858, %v7090
      %7092 = vmatmul.f32.gmra.mxu0 %v6969
      %v7093 = vpop.f32.mrf.mxu0
      %v7094 = vadd.f32 %v6861, %v7093
      %7095 = vdwg.mxu0
      %v7096 = vld [vmem:[#allocation2 + $0x2] sm:$0xff]
      %v7097 = vld [vmem:[#allocation2 + $0xa] sm:$0xff]
      %v7098 = vld [vmem:[#allocation2 + $0x12] sm:$0xff]
      %v7099 = vld [vmem:[#allocation2 + $0x1a] sm:$0xff]
      %v7100 = vld [vmem:[#allocation2 + $0x22] sm:$0xff]
      %v7101 = vld [vmem:[#allocation2 + $0x2a] sm:$0xff]
      %v7102 = vld [vmem:[#allocation2 + $0x32] sm:$0xff]
      %v7103 = vld [vmem:[#allocation2 + $0x3a] sm:$0xff]
      %v7104 = vld [vmem:[#allocation2 + $0x42] sm:$0xff]
      %v7105 = vld [vmem:[#allocation2 + $0x4a] sm:$0xff]
      %v7106 = vld [vmem:[#allocation2 + $0x52] sm:$0xff]
      %v7107 = vld [vmem:[#allocation2 + $0x5a] sm:$0xff]
      %v7108 = vld [vmem:[#allocation2 + $0x62] sm:$0xff]
      %v7109 = vld [vmem:[#allocation2 + $0x6a] sm:$0xff]
      %v7110 = vld [vmem:[#allocation2 + $0x72] sm:$0xff]
      %v7111 = vld [vmem:[#allocation2 + $0x7a] sm:$0xff]
      %v7112 = vld [vmem:[#allocation2 + $0x82] sm:$0xff]
      %v7113 = vld [vmem:[#allocation2 + $0x8a] sm:$0xff]
      %v7114 = vld [vmem:[#allocation2 + $0x92] sm:$0xff]
      %v7115 = vld [vmem:[#allocation2 + $0x9a] sm:$0xff]
      %v7116 = vld [vmem:[#allocation2 + $0xa2] sm:$0xff]
      %v7117 = vld [vmem:[#allocation2 + $0xaa] sm:$0xff]
      %v7118 = vld [vmem:[#allocation2 + $0xb2] sm:$0xff]
      %v7119 = vld [vmem:[#allocation2 + $0xba] sm:$0xff]
      %v7120 = vld [vmem:[#allocation2 + $0xc2] sm:$0xff]
      %v7121 = vld [vmem:[#allocation2 + $0xca] sm:$0xff]
      %v7122 = vld [vmem:[#allocation2 + $0xd2] sm:$0xff]
      %v7123 = vld [vmem:[#allocation2 + $0xda] sm:$0xff]
      %v7124 = vld [vmem:[#allocation2 + $0xe2] sm:$0xff]
      %v7125 = vld [vmem:[#allocation2 + $0xea] sm:$0xff]
      %v7126 = vld [vmem:[#allocation2 + $0xf2] sm:$0xff]
      %v7127 = vld [vmem:[#allocation2 + $0xfa] sm:$0xff]
      %v7128 = vld [vmem:[#allocation2 + $0x102] sm:$0xff]
      %v7129 = vld [vmem:[#allocation2 + $0x10a] sm:$0xff]
      %v7130 = vld [vmem:[#allocation2 + $0x112] sm:$0xff]
      %v7131 = vld [vmem:[#allocation2 + $0x11a] sm:$0xff]
      %s7132 = scalar_lea.vmem %s6, 64
      %v7133 = vld [vmem:[%s7132] sm:$0xff]
      %v7134 = vld [vmem:[%s7132 + $0x8] sm:$0xff]
      %v7135 = vld [vmem:[%s7132 + $0x10] sm:$0xff]
      %v7136 = vld [vmem:[%s7132 + $0x18] sm:$0xff]
      %v7138 = vsel %vm439, %v7096, 0
      %v7141 = vsel %vm439, %v7097, 0
      %v7144 = vsel %vm439, %v7098, 0
      %v7147 = vsel %vm439, %v7099, 0
      %v7150 = vsel %vm439, %v7100, 0
      %v7153 = vsel %vm439, %v7101, 0
      %v7156 = vsel %vm439, %v7102, 0
      %v7159 = vsel %vm439, %v7103, 0
      %v7162 = vsel %vm439, %v7104, 0
      %v7165 = vsel %vm439, %v7105, 0
      %v7168 = vsel %vm439, %v7106, 0
      %v7171 = vsel %vm439, %v7107, 0
      %v7174 = vsel %vm439, %v7108, 0
      %v7177 = vsel %vm439, %v7109, 0
      %v7180 = vsel %vm439, %v7110, 0
      %v7183 = vsel %vm439, %v7111, 0
      %v7186 = vsel %vm439, %v7112, 0
      %v7189 = vsel %vm439, %v7113, 0
      %v7192 = vsel %vm439, %v7114, 0
      %v7195 = vsel %vm439, %v7115, 0
      %v7198 = vsel %vm439, %v7116, 0
      %v7201 = vsel %vm439, %v7117, 0
      %v7204 = vsel %vm439, %v7118, 0
      %v7207 = vsel %vm439, %v7119, 0
      %v7210 = vsel %vm439, %v7120, 0
      %v7213 = vsel %vm439, %v7121, 0
      %v7216 = vsel %vm439, %v7122, 0
      %v7219 = vsel %vm439, %v7123, 0
      %v7222 = vsel %vm439, %v7124, 0
      %v7225 = vsel %vm439, %v7125, 0
      %v7228 = vsel %vm439, %v7126, 0
      %v7231 = vsel %vm439, %v7127, 0
      %v7234 = vsel %vm439, %v7128, 0
      %v7237 = vsel %vm439, %v7129, 0
      %v7240 = vsel %vm439, %v7130, 0
      %v7243 = vsel %vm439, %v7131, 0
      %7245 = vmatpush.msra.mxu0 0.0
      %7246 = vmatpush.msra.mxu0 0.0
      %7247 = vmatpush.msra.mxu0 0.0
      %7248 = vmatpush.msra.mxu0 0.0
      %7249 = vmatpush.msra.mxu0 0.0
      %7250 = vmatpush.msra.mxu0 0.0
      %7251 = vmatpush.msra.mxu0 0.0
      %7252 = vmatpush.msra.mxu0 0.0
      %7253 = vmatpush.msra.mxu0 0.0
      %7254 = vmatpush.msra.mxu0 0.0
      %7255 = vmatpush.msra.mxu0 0.0
      %7256 = vmatpush.msra.mxu0 0.0
      %7257 = vmatpush.msra.mxu0 %v7136
      %7258 = vmatpush.msra.mxu0 %v7135
      %7259 = vmatpush.msra.mxu0 %v7134
      %7260 = vmatpush.msra.mxu0 %v7133
      %7261 = vmatmul.f32.gmra.mxu0 %v7138
      %v7262 = vpop.f32.mrf.mxu0
      %v7263 = vadd.f32 0.0, %v7262
      %7264 = vmatmul.f32.gmra.mxu0 %v7141
      %v7265 = vpop.f32.mrf.mxu0
      %v7266 = vadd.f32 0.0, %v7265
      %7267 = vmatmul.f32.gmra.mxu0 %v7144
      %v7268 = vpop.f32.mrf.mxu0
      %v7269 = vadd.f32 0.0, %v7268
      %7270 = vmatmul.f32.gmra.mxu0 %v7147
      %v7271 = vpop.f32.mrf.mxu0
      %v7272 = vadd.f32 0.0, %v7271
      %7273 = vmatmul.f32.gmra.mxu0 %v7150
      %v7274 = vpop.f32.mrf.mxu0
      %v7275 = vadd.f32 0.0, %v7274
      %7276 = vmatmul.f32.gmra.mxu0 %v7153
      %v7277 = vpop.f32.mrf.mxu0
      %v7278 = vadd.f32 0.0, %v7277
      %7279 = vmatmul.f32.gmra.mxu0 %v7156
      %v7280 = vpop.f32.mrf.mxu0
      %v7281 = vadd.f32 0.0, %v7280
      %7282 = vmatmul.f32.gmra.mxu0 %v7159
      %v7283 = vpop.f32.mrf.mxu0
      %v7284 = vadd.f32 0.0, %v7283
      %7285 = vmatmul.f32.gmra.mxu0 %v7162
      %v7286 = vpop.f32.mrf.mxu0
      %v7287 = vadd.f32 0.0, %v7286
      %7288 = vmatmul.f32.gmra.mxu0 %v7165
      %v7289 = vpop.f32.mrf.mxu0
      %v7290 = vadd.f32 0.0, %v7289
      %7291 = vmatmul.f32.gmra.mxu0 %v7168
      %v7292 = vpop.f32.mrf.mxu0
      %v7293 = vadd.f32 0.0, %v7292
      %7294 = vmatmul.f32.gmra.mxu0 %v7171
      %v7295 = vpop.f32.mrf.mxu0
      %v7296 = vadd.f32 0.0, %v7295
      %7297 = vmatmul.f32.gmra.mxu0 %v7174
      %v7298 = vpop.f32.mrf.mxu0
      %v7299 = vadd.f32 0.0, %v7298
      %7300 = vmatmul.f32.gmra.mxu0 %v7177
      %v7301 = vpop.f32.mrf.mxu0
      %v7302 = vadd.f32 0.0, %v7301
      %7303 = vmatmul.f32.gmra.mxu0 %v7180
      %v7304 = vpop.f32.mrf.mxu0
      %v7305 = vadd.f32 0.0, %v7304
      %7306 = vmatmul.f32.gmra.mxu0 %v7183
      %v7307 = vpop.f32.mrf.mxu0
      %v7308 = vadd.f32 0.0, %v7307
      %7309 = vmatmul.f32.gmra.mxu0 %v7186
      %v7310 = vpop.f32.mrf.mxu0
      %v7311 = vadd.f32 0.0, %v7310
      %7312 = vmatmul.f32.gmra.mxu0 %v7189
      %v7313 = vpop.f32.mrf.mxu0
      %v7314 = vadd.f32 0.0, %v7313
      %7315 = vmatmul.f32.gmra.mxu0 %v7192
      %v7316 = vpop.f32.mrf.mxu0
      %v7317 = vadd.f32 0.0, %v7316
      %7318 = vmatmul.f32.gmra.mxu0 %v7195
      %v7319 = vpop.f32.mrf.mxu0
      %v7320 = vadd.f32 0.0, %v7319
      %7321 = vmatmul.f32.gmra.mxu0 %v7198
      %v7322 = vpop.f32.mrf.mxu0
      %v7323 = vadd.f32 0.0, %v7322
      %7324 = vmatmul.f32.gmra.mxu0 %v7201
      %v7325 = vpop.f32.mrf.mxu0
      %v7326 = vadd.f32 0.0, %v7325
      %7327 = vmatmul.f32.gmra.mxu0 %v7204
      %v7328 = vpop.f32.mrf.mxu0
      %v7329 = vadd.f32 0.0, %v7328
      %7330 = vmatmul.f32.gmra.mxu0 %v7207
      %v7331 = vpop.f32.mrf.mxu0
      %v7332 = vadd.f32 0.0, %v7331
      %7333 = vmatmul.f32.gmra.mxu0 %v7210
      %v7334 = vpop.f32.mrf.mxu0
      %v7335 = vadd.f32 0.0, %v7334
      %7336 = vmatmul.f32.gmra.mxu0 %v7213
      %v7337 = vpop.f32.mrf.mxu0
      %v7338 = vadd.f32 0.0, %v7337
      %7339 = vmatmul.f32.gmra.mxu0 %v7216
      %v7340 = vpop.f32.mrf.mxu0
      %v7341 = vadd.f32 0.0, %v7340
      %7342 = vmatmul.f32.gmra.mxu0 %v7219
      %v7343 = vpop.f32.mrf.mxu0
      %v7344 = vadd.f32 0.0, %v7343
      %7345 = vmatmul.f32.gmra.mxu0 %v7222
      %v7346 = vpop.f32.mrf.mxu0
      %v7347 = vadd.f32 0.0, %v7346
      %7348 = vmatmul.f32.gmra.mxu0 %v7225
      %v7349 = vpop.f32.mrf.mxu0
      %v7350 = vadd.f32 0.0, %v7349
      %7351 = vmatmul.f32.gmra.mxu0 %v7228
      %v7352 = vpop.f32.mrf.mxu0
      %v7353 = vadd.f32 0.0, %v7352
      %7354 = vmatmul.f32.gmra.mxu0 %v7231
      %v7355 = vpop.f32.mrf.mxu0
      %v7356 = vadd.f32 0.0, %v7355
      %7357 = vmatmul.f32.gmra.mxu0 %v7234
      %v7358 = vpop.f32.mrf.mxu0
      %v7359 = vadd.f32 0.0, %v7358
      %7360 = vmatmul.f32.gmra.mxu0 %v7237
      %v7361 = vpop.f32.mrf.mxu0
      %v7362 = vadd.f32 0.0, %v7361
      %7363 = vmatmul.f32.gmra.mxu0 %v7240
      %v7364 = vpop.f32.mrf.mxu0
      %v7365 = vadd.f32 0.0, %v7364
      %7366 = vmatmul.f32.gmra.mxu0 %v7243
      %v7367 = vpop.f32.mrf.mxu0
      %v7368 = vadd.f32 0.0, %v7367
      %7369 = vdwg.mxu0
      %v7370 = vadd.f32 %v6989, %v7263
      %v7371 = vadd.f32 %v6992, %v7266
      %v7372 = vadd.f32 %v6995, %v7269
      %v7373 = vadd.f32 %v6998, %v7272
      %v7374 = vadd.f32 %v7001, %v7275
      %v7375 = vadd.f32 %v7004, %v7278
      %v7376 = vadd.f32 %v7007, %v7281
      %v7377 = vadd.f32 %v7010, %v7284
      %v7378 = vadd.f32 %v7013, %v7287
      %v7379 = vadd.f32 %v7016, %v7290
      %v7380 = vadd.f32 %v7019, %v7293
      %v7381 = vadd.f32 %v7022, %v7296
      %v7382 = vadd.f32 %v7025, %v7299
      %v7383 = vadd.f32 %v7028, %v7302
      %v7384 = vadd.f32 %v7031, %v7305
      %v7385 = vadd.f32 %v7034, %v7308
      %v7386 = vadd.f32 %v7037, %v7311
      %v7387 = vadd.f32 %v7040, %v7314
      %v7388 = vadd.f32 %v7043, %v7317
      %v7389 = vadd.f32 %v7046, %v7320
      %v7390 = vadd.f32 %v7049, %v7323
      %v7391 = vadd.f32 %v7052, %v7326
      %v7392 = vadd.f32 %v7055, %v7329
      %v7393 = vadd.f32 %v7058, %v7332
      %v7394 = vadd.f32 %v7061, %v7335
      %v7395 = vadd.f32 %v7064, %v7338
      %v7396 = vadd.f32 %v7067, %v7341
      %v7397 = vadd.f32 %v7070, %v7344
      %v7398 = vadd.f32 %v7073, %v7347
      %v7399 = vadd.f32 %v7076, %v7350
      %v7400 = vadd.f32 %v7079, %v7353
      %v7401 = vadd.f32 %v7082, %v7356
      %v7402 = vadd.f32 %v7085, %v7359
      %v7403 = vadd.f32 %v7088, %v7362
      %v7404 = vadd.f32 %v7091, %v7365
      %v7405 = vadd.f32 %v7094, %v7368
      %v7406 = vld [vmem:[#allocation2 + $0x12] sm:$0xff]
      %v7407 = vld [vmem:[#allocation2 + $0x1a] sm:$0xff]
      %v7408 = vld [vmem:[#allocation2 + $0x22] sm:$0xff]
      %v7409 = vld [vmem:[#allocation2 + $0x2a] sm:$0xff]
      %v7410 = vld [vmem:[#allocation2 + $0x32] sm:$0xff]
      %v7411 = vld [vmem:[#allocation2 + $0x3a] sm:$0xff]
      %v7412 = vld [vmem:[#allocation2 + $0x42] sm:$0xff]
      %v7413 = vld [vmem:[#allocation2 + $0x4a] sm:$0xff]
      %v7414 = vld [vmem:[#allocation2 + $0x52] sm:$0xff]
      %v7415 = vld [vmem:[#allocation2 + $0x5a] sm:$0xff]
      %v7416 = vld [vmem:[#allocation2 + $0x62] sm:$0xff]
      %v7417 = vld [vmem:[#allocation2 + $0x6a] sm:$0xff]
      %v7418 = vld [vmem:[#allocation2 + $0x72] sm:$0xff]
      %v7419 = vld [vmem:[#allocation2 + $0x7a] sm:$0xff]
      %v7420 = vld [vmem:[#allocation2 + $0x82] sm:$0xff]
      %v7421 = vld [vmem:[#allocation2 + $0x8a] sm:$0xff]
      %v7422 = vld [vmem:[#allocation2 + $0x92] sm:$0xff]
      %v7423 = vld [vmem:[#allocation2 + $0x9a] sm:$0xff]
      %v7424 = vld [vmem:[#allocation2 + $0xa2] sm:$0xff]
      %v7425 = vld [vmem:[#allocation2 + $0xaa] sm:$0xff]
      %v7426 = vld [vmem:[#allocation2 + $0xb2] sm:$0xff]
      %v7427 = vld [vmem:[#allocation2 + $0xba] sm:$0xff]
      %v7428 = vld [vmem:[#allocation2 + $0xc2] sm:$0xff]
      %v7429 = vld [vmem:[#allocation2 + $0xca] sm:$0xff]
      %v7430 = vld [vmem:[#allocation2 + $0xd2] sm:$0xff]
      %v7431 = vld [vmem:[#allocation2 + $0xda] sm:$0xff]
      %v7432 = vld [vmem:[#allocation2 + $0xe2] sm:$0xff]
      %v7433 = vld [vmem:[#allocation2 + $0xea] sm:$0xff]
      %v7434 = vld [vmem:[#allocation2 + $0xf2] sm:$0xff]
      %v7435 = vld [vmem:[#allocation2 + $0xfa] sm:$0xff]
      %v7436 = vld [vmem:[#allocation2 + $0x102] sm:$0xff]
      %v7437 = vld [vmem:[#allocation2 + $0x10a] sm:$0xff]
      %v7438 = vld [vmem:[#allocation2 + $0x112] sm:$0xff]
      %v7439 = vld [vmem:[#allocation2 + $0x11a] sm:$0xff]
      %v7440 = vld [vmem:[#allocation2 + $0x122] sm:$0xff]
      %v7441 = vld [vmem:[#allocation2 + $0x12a] sm:$0xff]
      %s7442 = scalar_lea.vmem %s6, 96
      %v7443 = vld [vmem:[%s7442] sm:$0xff]
      %v7444 = vld [vmem:[%s7442 + $0x8] sm:$0xff]
      %v7445 = vld [vmem:[%s7442 + $0x10] sm:$0xff]
      %v7446 = vld [vmem:[%s7442 + $0x18] sm:$0xff]
      %v7448 = vsel %vm439, %v7406, 0
      %v7451 = vsel %vm439, %v7407, 0
      %v7454 = vsel %vm439, %v7408, 0
      %v7457 = vsel %vm439, %v7409, 0
      %v7460 = vsel %vm439, %v7410, 0
      %v7463 = vsel %vm439, %v7411, 0
      %v7466 = vsel %vm439, %v7412, 0
      %v7469 = vsel %vm439, %v7413, 0
      %v7472 = vsel %vm439, %v7414, 0
      %v7475 = vsel %vm439, %v7415, 0
      %v7478 = vsel %vm439, %v7416, 0
      %v7481 = vsel %vm439, %v7417, 0
      %v7484 = vsel %vm439, %v7418, 0
      %v7487 = vsel %vm439, %v7419, 0
      %v7490 = vsel %vm439, %v7420, 0
      %v7493 = vsel %vm439, %v7421, 0
      %v7496 = vsel %vm439, %v7422, 0
      %v7499 = vsel %vm439, %v7423, 0
      %v7502 = vsel %vm439, %v7424, 0
      %v7505 = vsel %vm439, %v7425, 0
      %v7508 = vsel %vm439, %v7426, 0
      %v7511 = vsel %vm439, %v7427, 0
      %v7514 = vsel %vm439, %v7428, 0
      %v7517 = vsel %vm439, %v7429, 0
      %v7520 = vsel %vm439, %v7430, 0
      %v7523 = vsel %vm439, %v7431, 0
      %v7526 = vsel %vm439, %v7432, 0
      %v7529 = vsel %vm439, %v7433, 0
      %v7532 = vsel %vm439, %v7434, 0
      %v7535 = vsel %vm439, %v7435, 0
      %v7538 = vsel %vm439, %v7436, 0
      %v7541 = vsel %vm439, %v7437, 0
      %v7544 = vsel %vm439, %v7438, 0
      %v7547 = vsel %vm439, %v7439, 0
      %v7550 = vsel %vm439, %v7440, 0
      %v7553 = vsel %vm439, %v7441, 0
      %7555 = vmatpush.msra.mxu0 0.0
      %7556 = vmatpush.msra.mxu0 0.0
      %7557 = vmatpush.msra.mxu0 0.0
      %7558 = vmatpush.msra.mxu0 0.0
      %7559 = vmatpush.msra.mxu0 0.0
      %7560 = vmatpush.msra.mxu0 0.0
      %7561 = vmatpush.msra.mxu0 0.0
      %7562 = vmatpush.msra.mxu0 0.0
      %7563 = vmatpush.msra.mxu0 0.0
      %7564 = vmatpush.msra.mxu0 0.0
      %7565 = vmatpush.msra.mxu0 0.0
      %7566 = vmatpush.msra.mxu0 0.0
      %7567 = vmatpush.msra.mxu0 %v7446
      %7568 = vmatpush.msra.mxu0 %v7445
      %7569 = vmatpush.msra.mxu0 %v7444
      %7570 = vmatpush.msra.mxu0 %v7443
      %7571 = vmatmul.f32.gmra.mxu0 %v7448
      %v7572 = vpop.f32.mrf.mxu0
      %v7573 = vadd.f32 0.0, %v7572
      %7574 = vmatmul.f32.gmra.mxu0 %v7451
      %v7575 = vpop.f32.mrf.mxu0
      %v7576 = vadd.f32 0.0, %v7575
      %7577 = vmatmul.f32.gmra.mxu0 %v7454
      %v7578 = vpop.f32.mrf.mxu0
      %v7579 = vadd.f32 0.0, %v7578
      %7580 = vmatmul.f32.gmra.mxu0 %v7457
      %v7581 = vpop.f32.mrf.mxu0
      %v7582 = vadd.f32 0.0, %v7581
      %7583 = vmatmul.f32.gmra.mxu0 %v7460
      %v7584 = vpop.f32.mrf.mxu0
      %v7585 = vadd.f32 0.0, %v7584
      %7586 = vmatmul.f32.gmra.mxu0 %v7463
      %v7587 = vpop.f32.mrf.mxu0
      %v7588 = vadd.f32 0.0, %v7587
      %7589 = vmatmul.f32.gmra.mxu0 %v7466
      %v7590 = vpop.f32.mrf.mxu0
      %v7591 = vadd.f32 0.0, %v7590
      %7592 = vmatmul.f32.gmra.mxu0 %v7469
      %v7593 = vpop.f32.mrf.mxu0
      %v7594 = vadd.f32 0.0, %v7593
      %7595 = vmatmul.f32.gmra.mxu0 %v7472
      %v7596 = vpop.f32.mrf.mxu0
      %v7597 = vadd.f32 0.0, %v7596
      %7598 = vmatmul.f32.gmra.mxu0 %v7475
      %v7599 = vpop.f32.mrf.mxu0
      %v7600 = vadd.f32 0.0, %v7599
      %7601 = vmatmul.f32.gmra.mxu0 %v7478
      %v7602 = vpop.f32.mrf.mxu0
      %v7603 = vadd.f32 0.0, %v7602
      %7604 = vmatmul.f32.gmra.mxu0 %v7481
      %v7605 = vpop.f32.mrf.mxu0
      %v7606 = vadd.f32 0.0, %v7605
      %7607 = vmatmul.f32.gmra.mxu0 %v7484
      %v7608 = vpop.f32.mrf.mxu0
      %v7609 = vadd.f32 0.0, %v7608
      %7610 = vmatmul.f32.gmra.mxu0 %v7487
      %v7611 = vpop.f32.mrf.mxu0
      %v7612 = vadd.f32 0.0, %v7611
      %7613 = vmatmul.f32.gmra.mxu0 %v7490
      %v7614 = vpop.f32.mrf.mxu0
      %v7615 = vadd.f32 0.0, %v7614
      %7616 = vmatmul.f32.gmra.mxu0 %v7493
      %v7617 = vpop.f32.mrf.mxu0
      %v7618 = vadd.f32 0.0, %v7617
      %7619 = vmatmul.f32.gmra.mxu0 %v7496
      %v7620 = vpop.f32.mrf.mxu0
      %v7621 = vadd.f32 0.0, %v7620
      %7622 = vmatmul.f32.gmra.mxu0 %v7499
      %v7623 = vpop.f32.mrf.mxu0
      %v7624 = vadd.f32 0.0, %v7623
      %7625 = vmatmul.f32.gmra.mxu0 %v7502
      %v7626 = vpop.f32.mrf.mxu0
      %v7627 = vadd.f32 0.0, %v7626
      %7628 = vmatmul.f32.gmra.mxu0 %v7505
      %v7629 = vpop.f32.mrf.mxu0
      %v7630 = vadd.f32 0.0, %v7629
      %7631 = vmatmul.f32.gmra.mxu0 %v7508
      %v7632 = vpop.f32.mrf.mxu0
      %v7633 = vadd.f32 0.0, %v7632
      %7634 = vmatmul.f32.gmra.mxu0 %v7511
      %v7635 = vpop.f32.mrf.mxu0
      %v7636 = vadd.f32 0.0, %v7635
      %7637 = vmatmul.f32.gmra.mxu0 %v7514
      %v7638 = vpop.f32.mrf.mxu0
      %v7639 = vadd.f32 0.0, %v7638
      %7640 = vmatmul.f32.gmra.mxu0 %v7517
      %v7641 = vpop.f32.mrf.mxu0
      %v7642 = vadd.f32 0.0, %v7641
      %7643 = vmatmul.f32.gmra.mxu0 %v7520
      %v7644 = vpop.f32.mrf.mxu0
      %v7645 = vadd.f32 0.0, %v7644
      %7646 = vmatmul.f32.gmra.mxu0 %v7523
      %v7647 = vpop.f32.mrf.mxu0
      %v7648 = vadd.f32 0.0, %v7647
      %7649 = vmatmul.f32.gmra.mxu0 %v7526
      %v7650 = vpop.f32.mrf.mxu0
      %v7651 = vadd.f32 0.0, %v7650
      %7652 = vmatmul.f32.gmra.mxu0 %v7529
      %v7653 = vpop.f32.mrf.mxu0
      %v7654 = vadd.f32 0.0, %v7653
      %7655 = vmatmul.f32.gmra.mxu0 %v7532
      %v7656 = vpop.f32.mrf.mxu0
      %v7657 = vadd.f32 0.0, %v7656
      %7658 = vmatmul.f32.gmra.mxu0 %v7535
      %v7659 = vpop.f32.mrf.mxu0
      %v7660 = vadd.f32 0.0, %v7659
      %7661 = vmatmul.f32.gmra.mxu0 %v7538
      %v7662 = vpop.f32.mrf.mxu0
      %v7663 = vadd.f32 0.0, %v7662
      %7664 = vmatmul.f32.gmra.mxu0 %v7541
      %v7665 = vpop.f32.mrf.mxu0
      %v7666 = vadd.f32 0.0, %v7665
      %7667 = vmatmul.f32.gmra.mxu0 %v7544
      %v7668 = vpop.f32.mrf.mxu0
      %v7669 = vadd.f32 0.0, %v7668
      %7670 = vmatmul.f32.gmra.mxu0 %v7547
      %v7671 = vpop.f32.mrf.mxu0
      %v7672 = vadd.f32 0.0, %v7671
      %7673 = vmatmul.f32.gmra.mxu0 %v7550
      %v7674 = vpop.f32.mrf.mxu0
      %v7675 = vadd.f32 0.0, %v7674
      %7676 = vmatmul.f32.gmra.mxu0 %v7553
      %v7677 = vpop.f32.mrf.mxu0
      %v7678 = vadd.f32 0.0, %v7677
      %7679 = vdwg.mxu0
      %v7680 = vadd.f32 %v7370, %v7573
      %v7681 = vadd.f32 %v7371, %v7576
      %v7682 = vadd.f32 %v7372, %v7579
      %v7683 = vadd.f32 %v7373, %v7582
      %v7684 = vadd.f32 %v7374, %v7585
      %v7685 = vadd.f32 %v7375, %v7588
      %v7686 = vadd.f32 %v7376, %v7591
      %v7687 = vadd.f32 %v7377, %v7594
      %v7688 = vadd.f32 %v7378, %v7597
      %v7689 = vadd.f32 %v7379, %v7600
      %v7690 = vadd.f32 %v7380, %v7603
      %v7691 = vadd.f32 %v7381, %v7606
      %v7692 = vadd.f32 %v7382, %v7609
      %v7693 = vadd.f32 %v7383, %v7612
      %v7694 = vadd.f32 %v7384, %v7615
      %v7695 = vadd.f32 %v7385, %v7618
      %v7696 = vadd.f32 %v7386, %v7621
      %v7697 = vadd.f32 %v7387, %v7624
      %v7698 = vadd.f32 %v7388, %v7627
      %v7699 = vadd.f32 %v7389, %v7630
      %v7700 = vadd.f32 %v7390, %v7633
      %v7701 = vadd.f32 %v7391, %v7636
      %v7702 = vadd.f32 %v7392, %v7639
      %v7703 = vadd.f32 %v7393, %v7642
      %v7704 = vadd.f32 %v7394, %v7645
      %v7705 = vadd.f32 %v7395, %v7648
      %v7706 = vadd.f32 %v7396, %v7651
      %v7707 = vadd.f32 %v7397, %v7654
      %v7708 = vadd.f32 %v7398, %v7657
      %v7709 = vadd.f32 %v7399, %v7660
      %v7710 = vadd.f32 %v7400, %v7663
      %v7711 = vadd.f32 %v7401, %v7666
      %v7712 = vadd.f32 %v7402, %v7669
      %v7713 = vadd.f32 %v7403, %v7672
      %v7714 = vadd.f32 %v7404, %v7675
      %v7715 = vadd.f32 %v7405, %v7678
      %v7716 = vld [vmem:[#allocation2 + $0x13] sm:$0xff]
      %v7717 = vld [vmem:[#allocation2 + $0x1b] sm:$0xff]
      %v7718 = vld [vmem:[#allocation2 + $0x23] sm:$0xff]
      %v7719 = vld [vmem:[#allocation2 + $0x2b] sm:$0xff]
      %v7720 = vld [vmem:[#allocation2 + $0x33] sm:$0xff]
      %v7721 = vld [vmem:[#allocation2 + $0x3b] sm:$0xff]
      %v7722 = vld [vmem:[#allocation2 + $0x43] sm:$0xff]
      %v7723 = vld [vmem:[#allocation2 + $0x4b] sm:$0xff]
      %v7724 = vld [vmem:[#allocation2 + $0x53] sm:$0xff]
      %v7725 = vld [vmem:[#allocation2 + $0x5b] sm:$0xff]
      %v7726 = vld [vmem:[#allocation2 + $0x63] sm:$0xff]
      %v7727 = vld [vmem:[#allocation2 + $0x6b] sm:$0xff]
      %v7728 = vld [vmem:[#allocation2 + $0x73] sm:$0xff]
      %v7729 = vld [vmem:[#allocation2 + $0x7b] sm:$0xff]
      %v7730 = vld [vmem:[#allocation2 + $0x83] sm:$0xff]
      %v7731 = vld [vmem:[#allocation2 + $0x8b] sm:$0xff]
      %v7732 = vld [vmem:[#allocation2 + $0x93] sm:$0xff]
      %v7733 = vld [vmem:[#allocation2 + $0x9b] sm:$0xff]
      %v7734 = vld [vmem:[#allocation2 + $0xa3] sm:$0xff]
      %v7735 = vld [vmem:[#allocation2 + $0xab] sm:$0xff]
      %v7736 = vld [vmem:[#allocation2 + $0xb3] sm:$0xff]
      %v7737 = vld [vmem:[#allocation2 + $0xbb] sm:$0xff]
      %v7738 = vld [vmem:[#allocation2 + $0xc3] sm:$0xff]
      %v7739 = vld [vmem:[#allocation2 + $0xcb] sm:$0xff]
      %v7740 = vld [vmem:[#allocation2 + $0xd3] sm:$0xff]
      %v7741 = vld [vmem:[#allocation2 + $0xdb] sm:$0xff]
      %v7742 = vld [vmem:[#allocation2 + $0xe3] sm:$0xff]
      %v7743 = vld [vmem:[#allocation2 + $0xeb] sm:$0xff]
      %v7744 = vld [vmem:[#allocation2 + $0xf3] sm:$0xff]
      %v7745 = vld [vmem:[#allocation2 + $0xfb] sm:$0xff]
      %v7746 = vld [vmem:[#allocation2 + $0x103] sm:$0xff]
      %v7747 = vld [vmem:[#allocation2 + $0x10b] sm:$0xff]
      %v7748 = vld [vmem:[#allocation2 + $0x113] sm:$0xff]
      %v7749 = vld [vmem:[#allocation2 + $0x11b] sm:$0xff]
      %v7750 = vld [vmem:[#allocation2 + $0x123] sm:$0xff]
      %v7751 = vld [vmem:[#allocation2 + $0x12b] sm:$0xff]
      %s7752 = scalar_lea.vmem %s6, 128
      %v7753 = vld [vmem:[%s7752] sm:$0xff]
      %v7754 = vld [vmem:[%s7752 + $0x8] sm:$0xff]
      %v7755 = vld [vmem:[%s7752 + $0x10] sm:$0xff]
      %v7756 = vld [vmem:[%s7752 + $0x18] sm:$0xff]
      %v7758 = vsel %vm439, %v7716, 0
      %v7761 = vsel %vm439, %v7717, 0
      %v7764 = vsel %vm439, %v7718, 0
      %v7767 = vsel %vm439, %v7719, 0
      %v7770 = vsel %vm439, %v7720, 0
      %v7773 = vsel %vm439, %v7721, 0
      %v7776 = vsel %vm439, %v7722, 0
      %v7779 = vsel %vm439, %v7723, 0
      %v7782 = vsel %vm439, %v7724, 0
      %v7785 = vsel %vm439, %v7725, 0
      %v7788 = vsel %vm439, %v7726, 0
      %v7791 = vsel %vm439, %v7727, 0
      %v7794 = vsel %vm439, %v7728, 0
      %v7797 = vsel %vm439, %v7729, 0
      %v7800 = vsel %vm439, %v7730, 0
      %v7803 = vsel %vm439, %v7731, 0
      %v7806 = vsel %vm439, %v7732, 0
      %v7809 = vsel %vm439, %v7733, 0
      %v7812 = vsel %vm439, %v7734, 0
      %v7815 = vsel %vm439, %v7735, 0
      %v7818 = vsel %vm439, %v7736, 0
      %v7821 = vsel %vm439, %v7737, 0
      %v7824 = vsel %vm439, %v7738, 0
      %v7827 = vsel %vm439, %v7739, 0
      %v7830 = vsel %vm439, %v7740, 0
      %v7833 = vsel %vm439, %v7741, 0
      %v7836 = vsel %vm439, %v7742, 0
      %v7839 = vsel %vm439, %v7743, 0
      %v7842 = vsel %vm439, %v7744, 0
      %v7845 = vsel %vm439, %v7745, 0
      %v7848 = vsel %vm439, %v7746, 0
      %v7851 = vsel %vm439, %v7747, 0
      %v7854 = vsel %vm439, %v7748, 0
      %v7857 = vsel %vm439, %v7749, 0
      %v7860 = vsel %vm439, %v7750, 0
      %v7863 = vsel %vm439, %v7751, 0
      %7865 = vmatpush.msra.mxu0 0.0
      %7866 = vmatpush.msra.mxu0 0.0
      %7867 = vmatpush.msra.mxu0 0.0
      %7868 = vmatpush.msra.mxu0 0.0
      %7869 = vmatpush.msra.mxu0 0.0
      %7870 = vmatpush.msra.mxu0 0.0
      %7871 = vmatpush.msra.mxu0 0.0
      %7872 = vmatpush.msra.mxu0 0.0
      %7873 = vmatpush.msra.mxu0 0.0
      %7874 = vmatpush.msra.mxu0 0.0
      %7875 = vmatpush.msra.mxu0 0.0
      %7876 = vmatpush.msra.mxu0 0.0
      %7877 = vmatpush.msra.mxu0 %v7756
      %7878 = vmatpush.msra.mxu0 %v7755
      %7879 = vmatpush.msra.mxu0 %v7754
      %7880 = vmatpush.msra.mxu0 %v7753
      %7881 = vmatmul.f32.gmra.mxu0 %v7758
      %v7882 = vpop.f32.mrf.mxu0
      %v7883 = vadd.f32 0.0, %v7882
      %7884 = vmatmul.f32.gmra.mxu0 %v7761
      %v7885 = vpop.f32.mrf.mxu0
      %v7886 = vadd.f32 0.0, %v7885
      %7887 = vmatmul.f32.gmra.mxu0 %v7764
      %v7888 = vpop.f32.mrf.mxu0
      %v7889 = vadd.f32 0.0, %v7888
      %7890 = vmatmul.f32.gmra.mxu0 %v7767
      %v7891 = vpop.f32.mrf.mxu0
      %v7892 = vadd.f32 0.0, %v7891
      %7893 = vmatmul.f32.gmra.mxu0 %v7770
      %v7894 = vpop.f32.mrf.mxu0
      %v7895 = vadd.f32 0.0, %v7894
      %7896 = vmatmul.f32.gmra.mxu0 %v7773
      %v7897 = vpop.f32.mrf.mxu0
      %v7898 = vadd.f32 0.0, %v7897
      %7899 = vmatmul.f32.gmra.mxu0 %v7776
      %v7900 = vpop.f32.mrf.mxu0
      %v7901 = vadd.f32 0.0, %v7900
      %7902 = vmatmul.f32.gmra.mxu0 %v7779
      %v7903 = vpop.f32.mrf.mxu0
      %v7904 = vadd.f32 0.0, %v7903
      %7905 = vmatmul.f32.gmra.mxu0 %v7782
      %v7906 = vpop.f32.mrf.mxu0
      %v7907 = vadd.f32 0.0, %v7906
      %7908 = vmatmul.f32.gmra.mxu0 %v7785
      %v7909 = vpop.f32.mrf.mxu0
      %v7910 = vadd.f32 0.0, %v7909
      %7911 = vmatmul.f32.gmra.mxu0 %v7788
      %v7912 = vpop.f32.mrf.mxu0
      %v7913 = vadd.f32 0.0, %v7912
      %7914 = vmatmul.f32.gmra.mxu0 %v7791
      %v7915 = vpop.f32.mrf.mxu0
      %v7916 = vadd.f32 0.0, %v7915
      %7917 = vmatmul.f32.gmra.mxu0 %v7794
      %v7918 = vpop.f32.mrf.mxu0
      %v7919 = vadd.f32 0.0, %v7918
      %7920 = vmatmul.f32.gmra.mxu0 %v7797
      %v7921 = vpop.f32.mrf.mxu0
      %v7922 = vadd.f32 0.0, %v7921
      %7923 = vmatmul.f32.gmra.mxu0 %v7800
      %v7924 = vpop.f32.mrf.mxu0
      %v7925 = vadd.f32 0.0, %v7924
      %7926 = vmatmul.f32.gmra.mxu0 %v7803
      %v7927 = vpop.f32.mrf.mxu0
      %v7928 = vadd.f32 0.0, %v7927
      %7929 = vmatmul.f32.gmra.mxu0 %v7806
      %v7930 = vpop.f32.mrf.mxu0
      %v7931 = vadd.f32 0.0, %v7930
      %7932 = vmatmul.f32.gmra.mxu0 %v7809
      %v7933 = vpop.f32.mrf.mxu0
      %v7934 = vadd.f32 0.0, %v7933
      %7935 = vmatmul.f32.gmra.mxu0 %v7812
      %v7936 = vpop.f32.mrf.mxu0
      %v7937 = vadd.f32 0.0, %v7936
      %7938 = vmatmul.f32.gmra.mxu0 %v7815
      %v7939 = vpop.f32.mrf.mxu0
      %v7940 = vadd.f32 0.0, %v7939
      %7941 = vmatmul.f32.gmra.mxu0 %v7818
      %v7942 = vpop.f32.mrf.mxu0
      %v7943 = vadd.f32 0.0, %v7942
      %7944 = vmatmul.f32.gmra.mxu0 %v7821
      %v7945 = vpop.f32.mrf.mxu0
      %v7946 = vadd.f32 0.0, %v7945
      %7947 = vmatmul.f32.gmra.mxu0 %v7824
      %v7948 = vpop.f32.mrf.mxu0
      %v7949 = vadd.f32 0.0, %v7948
      %7950 = vmatmul.f32.gmra.mxu0 %v7827
      %v7951 = vpop.f32.mrf.mxu0
      %v7952 = vadd.f32 0.0, %v7951
      %7953 = vmatmul.f32.gmra.mxu0 %v7830
      %v7954 = vpop.f32.mrf.mxu0
      %v7955 = vadd.f32 0.0, %v7954
      %7956 = vmatmul.f32.gmra.mxu0 %v7833
      %v7957 = vpop.f32.mrf.mxu0
      %v7958 = vadd.f32 0.0, %v7957
      %7959 = vmatmul.f32.gmra.mxu0 %v7836
      %v7960 = vpop.f32.mrf.mxu0
      %v7961 = vadd.f32 0.0, %v7960
      %7962 = vmatmul.f32.gmra.mxu0 %v7839
      %v7963 = vpop.f32.mrf.mxu0
      %v7964 = vadd.f32 0.0, %v7963
      %7965 = vmatmul.f32.gmra.mxu0 %v7842
      %v7966 = vpop.f32.mrf.mxu0
      %v7967 = vadd.f32 0.0, %v7966
      %7968 = vmatmul.f32.gmra.mxu0 %v7845
      %v7969 = vpop.f32.mrf.mxu0
      %v7970 = vadd.f32 0.0, %v7969
      %7971 = vmatmul.f32.gmra.mxu0 %v7848
      %v7972 = vpop.f32.mrf.mxu0
      %v7973 = vadd.f32 0.0, %v7972
      %7974 = vmatmul.f32.gmra.mxu0 %v7851
      %v7975 = vpop.f32.mrf.mxu0
      %v7976 = vadd.f32 0.0, %v7975
      %7977 = vmatmul.f32.gmra.mxu0 %v7854
      %v7978 = vpop.f32.mrf.mxu0
      %v7979 = vadd.f32 0.0, %v7978
      %7980 = vmatmul.f32.gmra.mxu0 %v7857
      %v7981 = vpop.f32.mrf.mxu0
      %v7982 = vadd.f32 0.0, %v7981
      %7983 = vmatmul.f32.gmra.mxu0 %v7860
      %v7984 = vpop.f32.mrf.mxu0
      %v7985 = vadd.f32 0.0, %v7984
      %7986 = vmatmul.f32.gmra.mxu0 %v7863
      %v7987 = vpop.f32.mrf.mxu0
      %v7988 = vadd.f32 0.0, %v7987
      %7989 = vdwg.mxu0
      %v7990 = vadd.f32 %v7680, %v7883
      %v7991 = vadd.f32 %v7681, %v7886
      %v7992 = vadd.f32 %v7682, %v7889
      %v7993 = vadd.f32 %v7683, %v7892
      %v7994 = vadd.f32 %v7684, %v7895
      %v7995 = vadd.f32 %v7685, %v7898
      %v7996 = vadd.f32 %v7686, %v7901
      %v7997 = vadd.f32 %v7687, %v7904
      %v7998 = vadd.f32 %v7688, %v7907
      %v7999 = vadd.f32 %v7689, %v7910
      %v8000 = vadd.f32 %v7690, %v7913
      %v8001 = vadd.f32 %v7691, %v7916
      %v8002 = vadd.f32 %v7692, %v7919
      %v8003 = vadd.f32 %v7693, %v7922
      %v8004 = vadd.f32 %v7694, %v7925
      %v8005 = vadd.f32 %v7695, %v7928
      %v8006 = vadd.f32 %v7696, %v7931
      %v8007 = vadd.f32 %v7697, %v7934
      %v8008 = vadd.f32 %v7698, %v7937
      %v8009 = vadd.f32 %v7699, %v7940
      %v8010 = vadd.f32 %v7700, %v7943
      %v8011 = vadd.f32 %v7701, %v7946
      %v8012 = vadd.f32 %v7702, %v7949
      %v8013 = vadd.f32 %v7703, %v7952
      %v8014 = vadd.f32 %v7704, %v7955
      %v8015 = vadd.f32 %v7705, %v7958
      %v8016 = vadd.f32 %v7706, %v7961
      %v8017 = vadd.f32 %v7707, %v7964
      %v8018 = vadd.f32 %v7708, %v7967
      %v8019 = vadd.f32 %v7709, %v7970
      %v8020 = vadd.f32 %v7710, %v7973
      %v8021 = vadd.f32 %v7711, %v7976
      %v8022 = vadd.f32 %v7712, %v7979
      %v8023 = vadd.f32 %v7713, %v7982
      %v8024 = vadd.f32 %v7714, %v7985
      %v8025 = vadd.f32 %v7715, %v7988
      %v8026 = vld [vmem:[#allocation2 + $0x14] sm:$0xff]
      %v8027 = vld [vmem:[#allocation2 + $0x1c] sm:$0xff]
      %v8028 = vld [vmem:[#allocation2 + $0x24] sm:$0xff]
      %v8029 = vld [vmem:[#allocation2 + $0x2c] sm:$0xff]
      %v8030 = vld [vmem:[#allocation2 + $0x34] sm:$0xff]
      %v8031 = vld [vmem:[#allocation2 + $0x3c] sm:$0xff]
      %v8032 = vld [vmem:[#allocation2 + $0x44] sm:$0xff]
      %v8033 = vld [vmem:[#allocation2 + $0x4c] sm:$0xff]
      %v8034 = vld [vmem:[#allocation2 + $0x54] sm:$0xff]
      %v8035 = vld [vmem:[#allocation2 + $0x5c] sm:$0xff]
      %v8036 = vld [vmem:[#allocation2 + $0x64] sm:$0xff]
      %v8037 = vld [vmem:[#allocation2 + $0x6c] sm:$0xff]
      %v8038 = vld [vmem:[#allocation2 + $0x74] sm:$0xff]
      %v8039 = vld [vmem:[#allocation2 + $0x7c] sm:$0xff]
      %v8040 = vld [vmem:[#allocation2 + $0x84] sm:$0xff]
      %v8041 = vld [vmem:[#allocation2 + $0x8c] sm:$0xff]
      %v8042 = vld [vmem:[#allocation2 + $0x94] sm:$0xff]
      %v8043 = vld [vmem:[#allocation2 + $0x9c] sm:$0xff]
      %v8044 = vld [vmem:[#allocation2 + $0xa4] sm:$0xff]
      %v8045 = vld [vmem:[#allocation2 + $0xac] sm:$0xff]
      %v8046 = vld [vmem:[#allocation2 + $0xb4] sm:$0xff]
      %v8047 = vld [vmem:[#allocation2 + $0xbc] sm:$0xff]
      %v8048 = vld [vmem:[#allocation2 + $0xc4] sm:$0xff]
      %v8049 = vld [vmem:[#allocation2 + $0xcc] sm:$0xff]
      %v8050 = vld [vmem:[#allocation2 + $0xd4] sm:$0xff]
      %v8051 = vld [vmem:[#allocation2 + $0xdc] sm:$0xff]
      %v8052 = vld [vmem:[#allocation2 + $0xe4] sm:$0xff]
      %v8053 = vld [vmem:[#allocation2 + $0xec] sm:$0xff]
      %v8054 = vld [vmem:[#allocation2 + $0xf4] sm:$0xff]
      %v8055 = vld [vmem:[#allocation2 + $0xfc] sm:$0xff]
      %v8056 = vld [vmem:[#allocation2 + $0x104] sm:$0xff]
      %v8057 = vld [vmem:[#allocation2 + $0x10c] sm:$0xff]
      %v8058 = vld [vmem:[#allocation2 + $0x114] sm:$0xff]
      %v8059 = vld [vmem:[#allocation2 + $0x11c] sm:$0xff]
      %v8060 = vld [vmem:[#allocation2 + $0x124] sm:$0xff]
      %v8061 = vld [vmem:[#allocation2 + $0x12c] sm:$0xff]
      %s8062 = scalar_lea.vmem %s6, 160
      %v8063 = vld [vmem:[%s8062] sm:$0xff]
      %v8064 = vld [vmem:[%s8062 + $0x8] sm:$0xff]
      %v8065 = vld [vmem:[%s8062 + $0x10] sm:$0xff]
      %v8066 = vld [vmem:[%s8062 + $0x18] sm:$0xff]
      %v8068 = vsel %vm439, %v8026, 0
      %v8071 = vsel %vm439, %v8027, 0
      %v8074 = vsel %vm439, %v8028, 0
      %v8077 = vsel %vm439, %v8029, 0
      %v8080 = vsel %vm439, %v8030, 0
      %v8083 = vsel %vm439, %v8031, 0
      %v8086 = vsel %vm439, %v8032, 0
      %v8089 = vsel %vm439, %v8033, 0
      %v8092 = vsel %vm439, %v8034, 0
      %v8095 = vsel %vm439, %v8035, 0
      %v8098 = vsel %vm439, %v8036, 0
      %v8101 = vsel %vm439, %v8037, 0
      %v8104 = vsel %vm439, %v8038, 0
      %v8107 = vsel %vm439, %v8039, 0
      %v8110 = vsel %vm439, %v8040, 0
      %v8113 = vsel %vm439, %v8041, 0
      %v8116 = vsel %vm439, %v8042, 0
      %v8119 = vsel %vm439, %v8043, 0
      %v8122 = vsel %vm439, %v8044, 0
      %v8125 = vsel %vm439, %v8045, 0
      %v8128 = vsel %vm439, %v8046, 0
      %v8131 = vsel %vm439, %v8047, 0
      %v8134 = vsel %vm439, %v8048, 0
      %v8137 = vsel %vm439, %v8049, 0
      %v8140 = vsel %vm439, %v8050, 0
      %v8143 = vsel %vm439, %v8051, 0
      %v8146 = vsel %vm439, %v8052, 0
      %v8149 = vsel %vm439, %v8053, 0
      %v8152 = vsel %vm439, %v8054, 0
      %v8155 = vsel %vm439, %v8055, 0
      %v8158 = vsel %vm439, %v8056, 0
      %v8161 = vsel %vm439, %v8057, 0
      %v8164 = vsel %vm439, %v8058, 0
      %v8167 = vsel %vm439, %v8059, 0
      %v8170 = vsel %vm439, %v8060, 0
      %v8173 = vsel %vm439, %v8061, 0
      %8175 = vmatpush.msra.mxu0 0.0
      %8176 = vmatpush.msra.mxu0 0.0
      %8177 = vmatpush.msra.mxu0 0.0
      %8178 = vmatpush.msra.mxu0 0.0
      %8179 = vmatpush.msra.mxu0 0.0
      %8180 = vmatpush.msra.mxu0 0.0
      %8181 = vmatpush.msra.mxu0 0.0
      %8182 = vmatpush.msra.mxu0 0.0
      %8183 = vmatpush.msra.mxu0 0.0
      %8184 = vmatpush.msra.mxu0 0.0
      %8185 = vmatpush.msra.mxu0 0.0
      %8186 = vmatpush.msra.mxu0 0.0
      %8187 = vmatpush.msra.mxu0 %v8066
      %8188 = vmatpush.msra.mxu0 %v8065
      %8189 = vmatpush.msra.mxu0 %v8064
      %8190 = vmatpush.msra.mxu0 %v8063
      %8191 = vmatmul.f32.gmra.mxu0 %v8068
      %v8192 = vpop.f32.mrf.mxu0
      %v8193 = vadd.f32 0.0, %v8192
      %8194 = vmatmul.f32.gmra.mxu0 %v8071
      %v8195 = vpop.f32.mrf.mxu0
      %v8196 = vadd.f32 0.0, %v8195
      %8197 = vmatmul.f32.gmra.mxu0 %v8074
      %v8198 = vpop.f32.mrf.mxu0
      %v8199 = vadd.f32 0.0, %v8198
      %8200 = vmatmul.f32.gmra.mxu0 %v8077
      %v8201 = vpop.f32.mrf.mxu0
      %v8202 = vadd.f32 0.0, %v8201
      %8203 = vmatmul.f32.gmra.mxu0 %v8080
      %v8204 = vpop.f32.mrf.mxu0
      %v8205 = vadd.f32 0.0, %v8204
      %8206 = vmatmul.f32.gmra.mxu0 %v8083
      %v8207 = vpop.f32.mrf.mxu0
      %v8208 = vadd.f32 0.0, %v8207
      %8209 = vmatmul.f32.gmra.mxu0 %v8086
      %v8210 = vpop.f32.mrf.mxu0
      %v8211 = vadd.f32 0.0, %v8210
      %8212 = vmatmul.f32.gmra.mxu0 %v8089
      %v8213 = vpop.f32.mrf.mxu0
      %v8214 = vadd.f32 0.0, %v8213
      %8215 = vmatmul.f32.gmra.mxu0 %v8092
      %v8216 = vpop.f32.mrf.mxu0
      %v8217 = vadd.f32 0.0, %v8216
      %8218 = vmatmul.f32.gmra.mxu0 %v8095
      %v8219 = vpop.f32.mrf.mxu0
      %v8220 = vadd.f32 0.0, %v8219
      %8221 = vmatmul.f32.gmra.mxu0 %v8098
      %v8222 = vpop.f32.mrf.mxu0
      %v8223 = vadd.f32 0.0, %v8222
      %8224 = vmatmul.f32.gmra.mxu0 %v8101
      %v8225 = vpop.f32.mrf.mxu0
      %v8226 = vadd.f32 0.0, %v8225
      %8227 = vmatmul.f32.gmra.mxu0 %v8104
      %v8228 = vpop.f32.mrf.mxu0
      %v8229 = vadd.f32 0.0, %v8228
      %8230 = vmatmul.f32.gmra.mxu0 %v8107
      %v8231 = vpop.f32.mrf.mxu0
      %v8232 = vadd.f32 0.0, %v8231
      %8233 = vmatmul.f32.gmra.mxu0 %v8110
      %v8234 = vpop.f32.mrf.mxu0
      %v8235 = vadd.f32 0.0, %v8234
      %8236 = vmatmul.f32.gmra.mxu0 %v8113
      %v8237 = vpop.f32.mrf.mxu0
      %v8238 = vadd.f32 0.0, %v8237
      %8239 = vmatmul.f32.gmra.mxu0 %v8116
      %v8240 = vpop.f32.mrf.mxu0
      %v8241 = vadd.f32 0.0, %v8240
      %8242 = vmatmul.f32.gmra.mxu0 %v8119
      %v8243 = vpop.f32.mrf.mxu0
      %v8244 = vadd.f32 0.0, %v8243
      %8245 = vmatmul.f32.gmra.mxu0 %v8122
      %v8246 = vpop.f32.mrf.mxu0
      %v8247 = vadd.f32 0.0, %v8246
      %8248 = vmatmul.f32.gmra.mxu0 %v8125
      %v8249 = vpop.f32.mrf.mxu0
      %v8250 = vadd.f32 0.0, %v8249
      %8251 = vmatmul.f32.gmra.mxu0 %v8128
      %v8252 = vpop.f32.mrf.mxu0
      %v8253 = vadd.f32 0.0, %v8252
      %8254 = vmatmul.f32.gmra.mxu0 %v8131
      %v8255 = vpop.f32.mrf.mxu0
      %v8256 = vadd.f32 0.0, %v8255
      %8257 = vmatmul.f32.gmra.mxu0 %v8134
      %v8258 = vpop.f32.mrf.mxu0
      %v8259 = vadd.f32 0.0, %v8258
      %8260 = vmatmul.f32.gmra.mxu0 %v8137
      %v8261 = vpop.f32.mrf.mxu0
      %v8262 = vadd.f32 0.0, %v8261
      %8263 = vmatmul.f32.gmra.mxu0 %v8140
      %v8264 = vpop.f32.mrf.mxu0
      %v8265 = vadd.f32 0.0, %v8264
      %8266 = vmatmul.f32.gmra.mxu0 %v8143
      %v8267 = vpop.f32.mrf.mxu0
      %v8268 = vadd.f32 0.0, %v8267
      %8269 = vmatmul.f32.gmra.mxu0 %v8146
      %v8270 = vpop.f32.mrf.mxu0
      %v8271 = vadd.f32 0.0, %v8270
      %8272 = vmatmul.f32.gmra.mxu0 %v8149
      %v8273 = vpop.f32.mrf.mxu0
      %v8274 = vadd.f32 0.0, %v8273
      %8275 = vmatmul.f32.gmra.mxu0 %v8152
      %v8276 = vpop.f32.mrf.mxu0
      %v8277 = vadd.f32 0.0, %v8276
      %8278 = vmatmul.f32.gmra.mxu0 %v8155
      %v8279 = vpop.f32.mrf.mxu0
      %v8280 = vadd.f32 0.0, %v8279
      %8281 = vmatmul.f32.gmra.mxu0 %v8158
      %v8282 = vpop.f32.mrf.mxu0
      %v8283 = vadd.f32 0.0, %v8282
      %8284 = vmatmul.f32.gmra.mxu0 %v8161
      %v8285 = vpop.f32.mrf.mxu0
      %v8286 = vadd.f32 0.0, %v8285
      %8287 = vmatmul.f32.gmra.mxu0 %v8164
      %v8288 = vpop.f32.mrf.mxu0
      %v8289 = vadd.f32 0.0, %v8288
      %8290 = vmatmul.f32.gmra.mxu0 %v8167
      %v8291 = vpop.f32.mrf.mxu0
      %v8292 = vadd.f32 0.0, %v8291
      %8293 = vmatmul.f32.gmra.mxu0 %v8170
      %v8294 = vpop.f32.mrf.mxu0
      %v8295 = vadd.f32 0.0, %v8294
      %8296 = vmatmul.f32.gmra.mxu0 %v8173
      %v8297 = vpop.f32.mrf.mxu0
      %v8298 = vadd.f32 0.0, %v8297
      %8299 = vdwg.mxu0
      %v8300 = vadd.f32 %v7990, %v8193
      %v8301 = vadd.f32 %v7991, %v8196
      %v8302 = vadd.f32 %v7992, %v8199
      %v8303 = vadd.f32 %v7993, %v8202
      %v8304 = vadd.f32 %v7994, %v8205
      %v8305 = vadd.f32 %v7995, %v8208
      %v8306 = vadd.f32 %v7996, %v8211
      %v8307 = vadd.f32 %v7997, %v8214
      %v8308 = vadd.f32 %v7998, %v8217
      %v8309 = vadd.f32 %v7999, %v8220
      %v8310 = vadd.f32 %v8000, %v8223
      %v8311 = vadd.f32 %v8001, %v8226
      %v8312 = vadd.f32 %v8002, %v8229
      %v8313 = vadd.f32 %v8003, %v8232
      %v8314 = vadd.f32 %v8004, %v8235
      %v8315 = vadd.f32 %v8005, %v8238
      %v8316 = vadd.f32 %v8006, %v8241
      %v8317 = vadd.f32 %v8007, %v8244
      %v8318 = vadd.f32 %v8008, %v8247
      %v8319 = vadd.f32 %v8009, %v8250
      %v8320 = vadd.f32 %v8010, %v8253
      %v8321 = vadd.f32 %v8011, %v8256
      %v8322 = vadd.f32 %v8012, %v8259
      %v8323 = vadd.f32 %v8013, %v8262
      %v8324 = vadd.f32 %v8014, %v8265
      %v8325 = vadd.f32 %v8015, %v8268
      %v8326 = vadd.f32 %v8016, %v8271
      %v8327 = vadd.f32 %v8017, %v8274
      %v8328 = vadd.f32 %v8018, %v8277
      %v8329 = vadd.f32 %v8019, %v8280
      %v8330 = vadd.f32 %v8020, %v8283
      %v8331 = vadd.f32 %v8021, %v8286
      %v8332 = vadd.f32 %v8022, %v8289
      %v8333 = vadd.f32 %v8023, %v8292
      %v8334 = vadd.f32 %v8024, %v8295
      %v8335 = vadd.f32 %v8025, %v8298
      %v8336 = vld [vmem:[#allocation2 + $0x24] sm:$0xff]
      %v8337 = vld [vmem:[#allocation2 + $0x2c] sm:$0xff]
      %v8338 = vld [vmem:[#allocation2 + $0x34] sm:$0xff]
      %v8339 = vld [vmem:[#allocation2 + $0x3c] sm:$0xff]
      %v8340 = vld [vmem:[#allocation2 + $0x44] sm:$0xff]
      %v8341 = vld [vmem:[#allocation2 + $0x4c] sm:$0xff]
      %v8342 = vld [vmem:[#allocation2 + $0x54] sm:$0xff]
      %v8343 = vld [vmem:[#allocation2 + $0x5c] sm:$0xff]
      %v8344 = vld [vmem:[#allocation2 + $0x64] sm:$0xff]
      %v8345 = vld [vmem:[#allocation2 + $0x6c] sm:$0xff]
      %v8346 = vld [vmem:[#allocation2 + $0x74] sm:$0xff]
      %v8347 = vld [vmem:[#allocation2 + $0x7c] sm:$0xff]
      %v8348 = vld [vmem:[#allocation2 + $0x84] sm:$0xff]
      %v8349 = vld [vmem:[#allocation2 + $0x8c] sm:$0xff]
      %v8350 = vld [vmem:[#allocation2 + $0x94] sm:$0xff]
      %v8351 = vld [vmem:[#allocation2 + $0x9c] sm:$0xff]
      %v8352 = vld [vmem:[#allocation2 + $0xa4] sm:$0xff]
      %v8353 = vld [vmem:[#allocation2 + $0xac] sm:$0xff]
      %v8354 = vld [vmem:[#allocation2 + $0xb4] sm:$0xff]
      %v8355 = vld [vmem:[#allocation2 + $0xbc] sm:$0xff]
      %v8356 = vld [vmem:[#allocation2 + $0xc4] sm:$0xff]
      %v8357 = vld [vmem:[#allocation2 + $0xcc] sm:$0xff]
      %v8358 = vld [vmem:[#allocation2 + $0xd4] sm:$0xff]
      %v8359 = vld [vmem:[#allocation2 + $0xdc] sm:$0xff]
      %v8360 = vld [vmem:[#allocation2 + $0xe4] sm:$0xff]
      %v8361 = vld [vmem:[#allocation2 + $0xec] sm:$0xff]
      %v8362 = vld [vmem:[#allocation2 + $0xf4] sm:$0xff]
      %v8363 = vld [vmem:[#allocation2 + $0xfc] sm:$0xff]
      %v8364 = vld [vmem:[#allocation2 + $0x104] sm:$0xff]
      %v8365 = vld [vmem:[#allocation2 + $0x10c] sm:$0xff]
      %v8366 = vld [vmem:[#allocation2 + $0x114] sm:$0xff]
      %v8367 = vld [vmem:[#allocation2 + $0x11c] sm:$0xff]
      %v8368 = vld [vmem:[#allocation2 + $0x124] sm:$0xff]
      %v8369 = vld [vmem:[#allocation2 + $0x12c] sm:$0xff]
      %v8370 = vld [vmem:[#allocation2 + $0x134] sm:$0xff]
      %v8371 = vld [vmem:[#allocation2 + $0x13c] sm:$0xff]
      %s8372 = scalar_lea.vmem %s6, 192
      %v8373 = vld [vmem:[%s8372] sm:$0xff]
      %v8374 = vld [vmem:[%s8372 + $0x8] sm:$0xff]
      %v8375 = vld [vmem:[%s8372 + $0x10] sm:$0xff]
      %v8376 = vld [vmem:[%s8372 + $0x18] sm:$0xff]
      %v8378 = vsel %vm439, %v8336, 0
      %v8381 = vsel %vm439, %v8337, 0
      %v8384 = vsel %vm439, %v8338, 0
      %v8387 = vsel %vm439, %v8339, 0
      %v8390 = vsel %vm439, %v8340, 0
      %v8393 = vsel %vm439, %v8341, 0
      %v8396 = vsel %vm439, %v8342, 0
      %v8399 = vsel %vm439, %v8343, 0
      %v8402 = vsel %vm439, %v8344, 0
      %v8405 = vsel %vm439, %v8345, 0
      %v8408 = vsel %vm439, %v8346, 0
      %v8411 = vsel %vm439, %v8347, 0
      %v8414 = vsel %vm439, %v8348, 0
      %v8417 = vsel %vm439, %v8349, 0
      %v8420 = vsel %vm439, %v8350, 0
      %v8423 = vsel %vm439, %v8351, 0
      %v8426 = vsel %vm439, %v8352, 0
      %v8429 = vsel %vm439, %v8353, 0
      %v8432 = vsel %vm439, %v8354, 0
      %v8435 = vsel %vm439, %v8355, 0
      %v8438 = vsel %vm439, %v8356, 0
      %v8441 = vsel %vm439, %v8357, 0
      %v8444 = vsel %vm439, %v8358, 0
      %v8447 = vsel %vm439, %v8359, 0
      %v8450 = vsel %vm439, %v8360, 0
      %v8453 = vsel %vm439, %v8361, 0
      %v8456 = vsel %vm439, %v8362, 0
      %v8459 = vsel %vm439, %v8363, 0
      %v8462 = vsel %vm439, %v8364, 0
      %v8465 = vsel %vm439, %v8365, 0
      %v8468 = vsel %vm439, %v8366, 0
      %v8471 = vsel %vm439, %v8367, 0
      %v8474 = vsel %vm439, %v8368, 0
      %v8477 = vsel %vm439, %v8369, 0
      %v8480 = vsel %vm439, %v8370, 0
      %v8483 = vsel %vm439, %v8371, 0
      %8485 = vmatpush.msra.mxu0 0.0
      %8486 = vmatpush.msra.mxu0 0.0
      %8487 = vmatpush.msra.mxu0 0.0
      %8488 = vmatpush.msra.mxu0 0.0
      %8489 = vmatpush.msra.mxu0 0.0
      %8490 = vmatpush.msra.mxu0 0.0
      %8491 = vmatpush.msra.mxu0 0.0
      %8492 = vmatpush.msra.mxu0 0.0
      %8493 = vmatpush.msra.mxu0 0.0
      %8494 = vmatpush.msra.mxu0 0.0
      %8495 = vmatpush.msra.mxu0 0.0
      %8496 = vmatpush.msra.mxu0 0.0
      %8497 = vmatpush.msra.mxu0 %v8376
      %8498 = vmatpush.msra.mxu0 %v8375
      %8499 = vmatpush.msra.mxu0 %v8374
      %8500 = vmatpush.msra.mxu0 %v8373
      %8501 = vmatmul.f32.gmra.mxu0 %v8378
      %v8502 = vpop.f32.mrf.mxu0
      %v8503 = vadd.f32 0.0, %v8502
      %8504 = vmatmul.f32.gmra.mxu0 %v8381
      %v8505 = vpop.f32.mrf.mxu0
      %v8506 = vadd.f32 0.0, %v8505
      %8507 = vmatmul.f32.gmra.mxu0 %v8384
      %v8508 = vpop.f32.mrf.mxu0
      %v8509 = vadd.f32 0.0, %v8508
      %8510 = vmatmul.f32.gmra.mxu0 %v8387
      %v8511 = vpop.f32.mrf.mxu0
      %v8512 = vadd.f32 0.0, %v8511
      %8513 = vmatmul.f32.gmra.mxu0 %v8390
      %v8514 = vpop.f32.mrf.mxu0
      %v8515 = vadd.f32 0.0, %v8514
      %8516 = vmatmul.f32.gmra.mxu0 %v8393
      %v8517 = vpop.f32.mrf.mxu0
      %v8518 = vadd.f32 0.0, %v8517
      %8519 = vmatmul.f32.gmra.mxu0 %v8396
      %v8520 = vpop.f32.mrf.mxu0
      %v8521 = vadd.f32 0.0, %v8520
      %8522 = vmatmul.f32.gmra.mxu0 %v8399
      %v8523 = vpop.f32.mrf.mxu0
      %v8524 = vadd.f32 0.0, %v8523
      %8525 = vmatmul.f32.gmra.mxu0 %v8402
      %v8526 = vpop.f32.mrf.mxu0
      %v8527 = vadd.f32 0.0, %v8526
      %8528 = vmatmul.f32.gmra.mxu0 %v8405
      %v8529 = vpop.f32.mrf.mxu0
      %v8530 = vadd.f32 0.0, %v8529
      %8531 = vmatmul.f32.gmra.mxu0 %v8408
      %v8532 = vpop.f32.mrf.mxu0
      %v8533 = vadd.f32 0.0, %v8532
      %8534 = vmatmul.f32.gmra.mxu0 %v8411
      %v8535 = vpop.f32.mrf.mxu0
      %v8536 = vadd.f32 0.0, %v8535
      %8537 = vmatmul.f32.gmra.mxu0 %v8414
      %v8538 = vpop.f32.mrf.mxu0
      %v8539 = vadd.f32 0.0, %v8538
      %8540 = vmatmul.f32.gmra.mxu0 %v8417
      %v8541 = vpop.f32.mrf.mxu0
      %v8542 = vadd.f32 0.0, %v8541
      %8543 = vmatmul.f32.gmra.mxu0 %v8420
      %v8544 = vpop.f32.mrf.mxu0
      %v8545 = vadd.f32 0.0, %v8544
      %8546 = vmatmul.f32.gmra.mxu0 %v8423
      %v8547 = vpop.f32.mrf.mxu0
      %v8548 = vadd.f32 0.0, %v8547
      %8549 = vmatmul.f32.gmra.mxu0 %v8426
      %v8550 = vpop.f32.mrf.mxu0
      %v8551 = vadd.f32 0.0, %v8550
      %8552 = vmatmul.f32.gmra.mxu0 %v8429
      %v8553 = vpop.f32.mrf.mxu0
      %v8554 = vadd.f32 0.0, %v8553
      %8555 = vmatmul.f32.gmra.mxu0 %v8432
      %v8556 = vpop.f32.mrf.mxu0
      %v8557 = vadd.f32 0.0, %v8556
      %8558 = vmatmul.f32.gmra.mxu0 %v8435
      %v8559 = vpop.f32.mrf.mxu0
      %v8560 = vadd.f32 0.0, %v8559
      %8561 = vmatmul.f32.gmra.mxu0 %v8438
      %v8562 = vpop.f32.mrf.mxu0
      %v8563 = vadd.f32 0.0, %v8562
      %8564 = vmatmul.f32.gmra.mxu0 %v8441
      %v8565 = vpop.f32.mrf.mxu0
      %v8566 = vadd.f32 0.0, %v8565
      %8567 = vmatmul.f32.gmra.mxu0 %v8444
      %v8568 = vpop.f32.mrf.mxu0
      %v8569 = vadd.f32 0.0, %v8568
      %8570 = vmatmul.f32.gmra.mxu0 %v8447
      %v8571 = vpop.f32.mrf.mxu0
      %v8572 = vadd.f32 0.0, %v8571
      %8573 = vmatmul.f32.gmra.mxu0 %v8450
      %v8574 = vpop.f32.mrf.mxu0
      %v8575 = vadd.f32 0.0, %v8574
      %8576 = vmatmul.f32.gmra.mxu0 %v8453
      %v8577 = vpop.f32.mrf.mxu0
      %v8578 = vadd.f32 0.0, %v8577
      %8579 = vmatmul.f32.gmra.mxu0 %v8456
      %v8580 = vpop.f32.mrf.mxu0
      %v8581 = vadd.f32 0.0, %v8580
      %8582 = vmatmul.f32.gmra.mxu0 %v8459
      %v8583 = vpop.f32.mrf.mxu0
      %v8584 = vadd.f32 0.0, %v8583
      %8585 = vmatmul.f32.gmra.mxu0 %v8462
      %v8586 = vpop.f32.mrf.mxu0
      %v8587 = vadd.f32 0.0, %v8586
      %8588 = vmatmul.f32.gmra.mxu0 %v8465
      %v8589 = vpop.f32.mrf.mxu0
      %v8590 = vadd.f32 0.0, %v8589
      %8591 = vmatmul.f32.gmra.mxu0 %v8468
      %v8592 = vpop.f32.mrf.mxu0
      %v8593 = vadd.f32 0.0, %v8592
      %8594 = vmatmul.f32.gmra.mxu0 %v8471
      %v8595 = vpop.f32.mrf.mxu0
      %v8596 = vadd.f32 0.0, %v8595
      %8597 = vmatmul.f32.gmra.mxu0 %v8474
      %v8598 = vpop.f32.mrf.mxu0
      %v8599 = vadd.f32 0.0, %v8598
      %8600 = vmatmul.f32.gmra.mxu0 %v8477
      %v8601 = vpop.f32.mrf.mxu0
      %v8602 = vadd.f32 0.0, %v8601
      %8603 = vmatmul.f32.gmra.mxu0 %v8480
      %v8604 = vpop.f32.mrf.mxu0
      %v8605 = vadd.f32 0.0, %v8604
      %8606 = vmatmul.f32.gmra.mxu0 %v8483
      %v8607 = vpop.f32.mrf.mxu0
      %v8608 = vadd.f32 0.0, %v8607
      %8609 = vdwg.mxu0
      %v8610 = vadd.f32 %v8300, %v8503
      %v8611 = vadd.f32 %v8301, %v8506
      %v8612 = vadd.f32 %v8302, %v8509
      %v8613 = vadd.f32 %v8303, %v8512
      %v8614 = vadd.f32 %v8304, %v8515
      %v8615 = vadd.f32 %v8305, %v8518
      %v8616 = vadd.f32 %v8306, %v8521
      %v8617 = vadd.f32 %v8307, %v8524
      %v8618 = vadd.f32 %v8308, %v8527
      %v8619 = vadd.f32 %v8309, %v8530
      %v8620 = vadd.f32 %v8310, %v8533
      %v8621 = vadd.f32 %v8311, %v8536
      %v8622 = vadd.f32 %v8312, %v8539
      %v8623 = vadd.f32 %v8313, %v8542
      %v8624 = vadd.f32 %v8314, %v8545
      %v8625 = vadd.f32 %v8315, %v8548
      %v8626 = vadd.f32 %v8316, %v8551
      %v8627 = vadd.f32 %v8317, %v8554
      %v8628 = vadd.f32 %v8318, %v8557
      %v8629 = vadd.f32 %v8319, %v8560
      %v8630 = vadd.f32 %v8320, %v8563
      %v8631 = vadd.f32 %v8321, %v8566
      %v8632 = vadd.f32 %v8322, %v8569
      %v8633 = vadd.f32 %v8323, %v8572
      %v8634 = vadd.f32 %v8324, %v8575
      %v8635 = vadd.f32 %v8325, %v8578
      %v8636 = vadd.f32 %v8326, %v8581
      %v8637 = vadd.f32 %v8327, %v8584
      %v8638 = vadd.f32 %v8328, %v8587
      %v8639 = vadd.f32 %v8329, %v8590
      %v8640 = vadd.f32 %v8330, %v8593
      %v8641 = vadd.f32 %v8331, %v8596
      %v8642 = vadd.f32 %v8332, %v8599
      %v8643 = vadd.f32 %v8333, %v8602
      %v8644 = vadd.f32 %v8334, %v8605
      %v8645 = vadd.f32 %v8335, %v8608
      %v8646 = vld [vmem:[#allocation2 + $0x25] sm:$0xff]
      %v8647 = vld [vmem:[#allocation2 + $0x2d] sm:$0xff]
      %v8648 = vld [vmem:[#allocation2 + $0x35] sm:$0xff]
      %v8649 = vld [vmem:[#allocation2 + $0x3d] sm:$0xff]
      %v8650 = vld [vmem:[#allocation2 + $0x45] sm:$0xff]
      %v8651 = vld [vmem:[#allocation2 + $0x4d] sm:$0xff]
      %v8652 = vld [vmem:[#allocation2 + $0x55] sm:$0xff]
      %v8653 = vld [vmem:[#allocation2 + $0x5d] sm:$0xff]
      %v8654 = vld [vmem:[#allocation2 + $0x65] sm:$0xff]
      %v8655 = vld [vmem:[#allocation2 + $0x6d] sm:$0xff]
      %v8656 = vld [vmem:[#allocation2 + $0x75] sm:$0xff]
      %v8657 = vld [vmem:[#allocation2 + $0x7d] sm:$0xff]
      %v8658 = vld [vmem:[#allocation2 + $0x85] sm:$0xff]
      %v8659 = vld [vmem:[#allocation2 + $0x8d] sm:$0xff]
      %v8660 = vld [vmem:[#allocation2 + $0x95] sm:$0xff]
      %v8661 = vld [vmem:[#allocation2 + $0x9d] sm:$0xff]
      %v8662 = vld [vmem:[#allocation2 + $0xa5] sm:$0xff]
      %v8663 = vld [vmem:[#allocation2 + $0xad] sm:$0xff]
      %v8664 = vld [vmem:[#allocation2 + $0xb5] sm:$0xff]
      %v8665 = vld [vmem:[#allocation2 + $0xbd] sm:$0xff]
      %v8666 = vld [vmem:[#allocation2 + $0xc5] sm:$0xff]
      %v8667 = vld [vmem:[#allocation2 + $0xcd] sm:$0xff]
      %v8668 = vld [vmem:[#allocation2 + $0xd5] sm:$0xff]
      %v8669 = vld [vmem:[#allocation2 + $0xdd] sm:$0xff]
      %v8670 = vld [vmem:[#allocation2 + $0xe5] sm:$0xff]
      %v8671 = vld [vmem:[#allocation2 + $0xed] sm:$0xff]
      %v8672 = vld [vmem:[#allocation2 + $0xf5] sm:$0xff]
      %v8673 = vld [vmem:[#allocation2 + $0xfd] sm:$0xff]
      %v8674 = vld [vmem:[#allocation2 + $0x105] sm:$0xff]
      %v8675 = vld [vmem:[#allocation2 + $0x10d] sm:$0xff]
      %v8676 = vld [vmem:[#allocation2 + $0x115] sm:$0xff]
      %v8677 = vld [vmem:[#allocation2 + $0x11d] sm:$0xff]
      %v8678 = vld [vmem:[#allocation2 + $0x125] sm:$0xff]
      %v8679 = vld [vmem:[#allocation2 + $0x12d] sm:$0xff]
      %v8680 = vld [vmem:[#allocation2 + $0x135] sm:$0xff]
      %v8681 = vld [vmem:[#allocation2 + $0x13d] sm:$0xff]
      %s8682 = scalar_lea.vmem %s6, 224
      %v8683 = vld [vmem:[%s8682] sm:$0xff]
      %v8684 = vld [vmem:[%s8682 + $0x8] sm:$0xff]
      %v8685 = vld [vmem:[%s8682 + $0x10] sm:$0xff]
      %v8686 = vld [vmem:[%s8682 + $0x18] sm:$0xff]
      %v8688 = vsel %vm439, %v8646, 0
      %v8691 = vsel %vm439, %v8647, 0
      %v8694 = vsel %vm439, %v8648, 0
      %v8697 = vsel %vm439, %v8649, 0
      %v8700 = vsel %vm439, %v8650, 0
      %v8703 = vsel %vm439, %v8651, 0
      %v8706 = vsel %vm439, %v8652, 0
      %v8709 = vsel %vm439, %v8653, 0
      %v8712 = vsel %vm439, %v8654, 0
      %v8715 = vsel %vm439, %v8655, 0
      %v8718 = vsel %vm439, %v8656, 0
      %v8721 = vsel %vm439, %v8657, 0
      %v8724 = vsel %vm439, %v8658, 0
      %v8727 = vsel %vm439, %v8659, 0
      %v8730 = vsel %vm439, %v8660, 0
      %v8733 = vsel %vm439, %v8661, 0
      %v8736 = vsel %vm439, %v8662, 0
      %v8739 = vsel %vm439, %v8663, 0
      %v8742 = vsel %vm439, %v8664, 0
      %v8745 = vsel %vm439, %v8665, 0
      %v8748 = vsel %vm439, %v8666, 0
      %v8751 = vsel %vm439, %v8667, 0
      %v8754 = vsel %vm439, %v8668, 0
      %v8757 = vsel %vm439, %v8669, 0
      %v8760 = vsel %vm439, %v8670, 0
      %v8763 = vsel %vm439, %v8671, 0
      %v8766 = vsel %vm439, %v8672, 0
      %v8769 = vsel %vm439, %v8673, 0
      %v8772 = vsel %vm439, %v8674, 0
      %v8775 = vsel %vm439, %v8675, 0
      %v8778 = vsel %vm439, %v8676, 0
      %v8781 = vsel %vm439, %v8677, 0
      %v8784 = vsel %vm439, %v8678, 0
      %v8787 = vsel %vm439, %v8679, 0
      %v8790 = vsel %vm439, %v8680, 0
      %v8793 = vsel %vm439, %v8681, 0
      %8795 = vmatpush.msra.mxu0 0.0
      %8796 = vmatpush.msra.mxu0 0.0
      %8797 = vmatpush.msra.mxu0 0.0
      %8798 = vmatpush.msra.mxu0 0.0
      %8799 = vmatpush.msra.mxu0 0.0
      %8800 = vmatpush.msra.mxu0 0.0
      %8801 = vmatpush.msra.mxu0 0.0
      %8802 = vmatpush.msra.mxu0 0.0
      %8803 = vmatpush.msra.mxu0 0.0
      %8804 = vmatpush.msra.mxu0 0.0
      %8805 = vmatpush.msra.mxu0 0.0
      %8806 = vmatpush.msra.mxu0 0.0
      %8807 = vmatpush.msra.mxu0 %v8686
      %8808 = vmatpush.msra.mxu0 %v8685
      %8809 = vmatpush.msra.mxu0 %v8684
      %8810 = vmatpush.msra.mxu0 %v8683
      %8811 = vmatmul.f32.gmra.mxu0 %v8688
      %v8812 = vpop.f32.mrf.mxu0
      %v8813 = vadd.f32 0.0, %v8812
      %8814 = vmatmul.f32.gmra.mxu0 %v8691
      %v8815 = vpop.f32.mrf.mxu0
      %v8816 = vadd.f32 0.0, %v8815
      %8817 = vmatmul.f32.gmra.mxu0 %v8694
      %v8818 = vpop.f32.mrf.mxu0
      %v8819 = vadd.f32 0.0, %v8818
      %8820 = vmatmul.f32.gmra.mxu0 %v8697
      %v8821 = vpop.f32.mrf.mxu0
      %v8822 = vadd.f32 0.0, %v8821
      %8823 = vmatmul.f32.gmra.mxu0 %v8700
      %v8824 = vpop.f32.mrf.mxu0
      %v8825 = vadd.f32 0.0, %v8824
      %8826 = vmatmul.f32.gmra.mxu0 %v8703
      %v8827 = vpop.f32.mrf.mxu0
      %v8828 = vadd.f32 0.0, %v8827
      %8829 = vmatmul.f32.gmra.mxu0 %v8706
      %v8830 = vpop.f32.mrf.mxu0
      %v8831 = vadd.f32 0.0, %v8830
      %8832 = vmatmul.f32.gmra.mxu0 %v8709
      %v8833 = vpop.f32.mrf.mxu0
      %v8834 = vadd.f32 0.0, %v8833
      %8835 = vmatmul.f32.gmra.mxu0 %v8712
      %v8836 = vpop.f32.mrf.mxu0
      %v8837 = vadd.f32 0.0, %v8836
      %8838 = vmatmul.f32.gmra.mxu0 %v8715
      %v8839 = vpop.f32.mrf.mxu0
      %v8840 = vadd.f32 0.0, %v8839
      %8841 = vmatmul.f32.gmra.mxu0 %v8718
      %v8842 = vpop.f32.mrf.mxu0
      %v8843 = vadd.f32 0.0, %v8842
      %8844 = vmatmul.f32.gmra.mxu0 %v8721
      %v8845 = vpop.f32.mrf.mxu0
      %v8846 = vadd.f32 0.0, %v8845
      %8847 = vmatmul.f32.gmra.mxu0 %v8724
      %v8848 = vpop.f32.mrf.mxu0
      %v8849 = vadd.f32 0.0, %v8848
      %8850 = vmatmul.f32.gmra.mxu0 %v8727
      %v8851 = vpop.f32.mrf.mxu0
      %v8852 = vadd.f32 0.0, %v8851
      %8853 = vmatmul.f32.gmra.mxu0 %v8730
      %v8854 = vpop.f32.mrf.mxu0
      %v8855 = vadd.f32 0.0, %v8854
      %8856 = vmatmul.f32.gmra.mxu0 %v8733
      %v8857 = vpop.f32.mrf.mxu0
      %v8858 = vadd.f32 0.0, %v8857
      %8859 = vmatmul.f32.gmra.mxu0 %v8736
      %v8860 = vpop.f32.mrf.mxu0
      %v8861 = vadd.f32 0.0, %v8860
      %8862 = vmatmul.f32.gmra.mxu0 %v8739
      %v8863 = vpop.f32.mrf.mxu0
      %v8864 = vadd.f32 0.0, %v8863
      %8865 = vmatmul.f32.gmra.mxu0 %v8742
      %v8866 = vpop.f32.mrf.mxu0
      %v8867 = vadd.f32 0.0, %v8866
      %8868 = vmatmul.f32.gmra.mxu0 %v8745
      %v8869 = vpop.f32.mrf.mxu0
      %v8870 = vadd.f32 0.0, %v8869
      %8871 = vmatmul.f32.gmra.mxu0 %v8748
      %v8872 = vpop.f32.mrf.mxu0
      %v8873 = vadd.f32 0.0, %v8872
      %8874 = vmatmul.f32.gmra.mxu0 %v8751
      %v8875 = vpop.f32.mrf.mxu0
      %v8876 = vadd.f32 0.0, %v8875
      %8877 = vmatmul.f32.gmra.mxu0 %v8754
      %v8878 = vpop.f32.mrf.mxu0
      %v8879 = vadd.f32 0.0, %v8878
      %8880 = vmatmul.f32.gmra.mxu0 %v8757
      %v8881 = vpop.f32.mrf.mxu0
      %v8882 = vadd.f32 0.0, %v8881
      %8883 = vmatmul.f32.gmra.mxu0 %v8760
      %v8884 = vpop.f32.mrf.mxu0
      %v8885 = vadd.f32 0.0, %v8884
      %8886 = vmatmul.f32.gmra.mxu0 %v8763
      %v8887 = vpop.f32.mrf.mxu0
      %v8888 = vadd.f32 0.0, %v8887
      %8889 = vmatmul.f32.gmra.mxu0 %v8766
      %v8890 = vpop.f32.mrf.mxu0
      %v8891 = vadd.f32 0.0, %v8890
      %8892 = vmatmul.f32.gmra.mxu0 %v8769
      %v8893 = vpop.f32.mrf.mxu0
      %v8894 = vadd.f32 0.0, %v8893
      %8895 = vmatmul.f32.gmra.mxu0 %v8772
      %v8896 = vpop.f32.mrf.mxu0
      %v8897 = vadd.f32 0.0, %v8896
      %8898 = vmatmul.f32.gmra.mxu0 %v8775
      %v8899 = vpop.f32.mrf.mxu0
      %v8900 = vadd.f32 0.0, %v8899
      %8901 = vmatmul.f32.gmra.mxu0 %v8778
      %v8902 = vpop.f32.mrf.mxu0
      %v8903 = vadd.f32 0.0, %v8902
      %8904 = vmatmul.f32.gmra.mxu0 %v8781
      %v8905 = vpop.f32.mrf.mxu0
      %v8906 = vadd.f32 0.0, %v8905
      %8907 = vmatmul.f32.gmra.mxu0 %v8784
      %v8908 = vpop.f32.mrf.mxu0
      %v8909 = vadd.f32 0.0, %v8908
      %8910 = vmatmul.f32.gmra.mxu0 %v8787
      %v8911 = vpop.f32.mrf.mxu0
      %v8912 = vadd.f32 0.0, %v8911
      %8913 = vmatmul.f32.gmra.mxu0 %v8790
      %v8914 = vpop.f32.mrf.mxu0
      %v8915 = vadd.f32 0.0, %v8914
      %8916 = vmatmul.f32.gmra.mxu0 %v8793
      %v8917 = vpop.f32.mrf.mxu0
      %v8918 = vadd.f32 0.0, %v8917
      %8919 = vdwg.mxu0
      %v8920 = vadd.f32 %v8610, %v8813
      %v8921 = vadd.f32 %v8611, %v8816
      %v8922 = vadd.f32 %v8612, %v8819
      %v8923 = vadd.f32 %v8613, %v8822
      %v8924 = vadd.f32 %v8614, %v8825
      %v8925 = vadd.f32 %v8615, %v8828
      %v8926 = vadd.f32 %v8616, %v8831
      %v8927 = vadd.f32 %v8617, %v8834
      %v8928 = vadd.f32 %v8618, %v8837
      %v8929 = vadd.f32 %v8619, %v8840
      %v8930 = vadd.f32 %v8620, %v8843
      %v8931 = vadd.f32 %v8621, %v8846
      %v8932 = vadd.f32 %v8622, %v8849
      %v8933 = vadd.f32 %v8623, %v8852
      %v8934 = vadd.f32 %v8624, %v8855
      %v8935 = vadd.f32 %v8625, %v8858
      %v8936 = vadd.f32 %v8626, %v8861
      %v8937 = vadd.f32 %v8627, %v8864
      %v8938 = vadd.f32 %v8628, %v8867
      %v8939 = vadd.f32 %v8629, %v8870
      %v8940 = vadd.f32 %v8630, %v8873
      %v8941 = vadd.f32 %v8631, %v8876
      %v8942 = vadd.f32 %v8632, %v8879
      %v8943 = vadd.f32 %v8633, %v8882
      %v8944 = vadd.f32 %v8634, %v8885
      %v8945 = vadd.f32 %v8635, %v8888
      %v8946 = vadd.f32 %v8636, %v8891
      %v8947 = vadd.f32 %v8637, %v8894
      %v8948 = vadd.f32 %v8638, %v8897
      %v8949 = vadd.f32 %v8639, %v8900
      %v8950 = vadd.f32 %v8640, %v8903
      %v8951 = vadd.f32 %v8641, %v8906
      %v8952 = vadd.f32 %v8642, %v8909
      %v8953 = vadd.f32 %v8643, %v8912
      %v8954 = vadd.f32 %v8644, %v8915
      %v8955 = vadd.f32 %v8645, %v8918
      %v8956 = vld [vmem:[#allocation2 + $0x26] sm:$0xff]
      %v8957 = vld [vmem:[#allocation2 + $0x2e] sm:$0xff]
      %v8958 = vld [vmem:[#allocation2 + $0x36] sm:$0xff]
      %v8959 = vld [vmem:[#allocation2 + $0x3e] sm:$0xff]
      %v8960 = vld [vmem:[#allocation2 + $0x46] sm:$0xff]
      %v8961 = vld [vmem:[#allocation2 + $0x4e] sm:$0xff]
      %v8962 = vld [vmem:[#allocation2 + $0x56] sm:$0xff]
      %v8963 = vld [vmem:[#allocation2 + $0x5e] sm:$0xff]
      %v8964 = vld [vmem:[#allocation2 + $0x66] sm:$0xff]
      %v8965 = vld [vmem:[#allocation2 + $0x6e] sm:$0xff]
      %v8966 = vld [vmem:[#allocation2 + $0x76] sm:$0xff]
      %v8967 = vld [vmem:[#allocation2 + $0x7e] sm:$0xff]
      %v8968 = vld [vmem:[#allocation2 + $0x86] sm:$0xff]
      %v8969 = vld [vmem:[#allocation2 + $0x8e] sm:$0xff]
      %v8970 = vld [vmem:[#allocation2 + $0x96] sm:$0xff]
      %v8971 = vld [vmem:[#allocation2 + $0x9e] sm:$0xff]
      %v8972 = vld [vmem:[#allocation2 + $0xa6] sm:$0xff]
      %v8973 = vld [vmem:[#allocation2 + $0xae] sm:$0xff]
      %v8974 = vld [vmem:[#allocation2 + $0xb6] sm:$0xff]
      %v8975 = vld [vmem:[#allocation2 + $0xbe] sm:$0xff]
      %v8976 = vld [vmem:[#allocation2 + $0xc6] sm:$0xff]
      %v8977 = vld [vmem:[#allocation2 + $0xce] sm:$0xff]
      %v8978 = vld [vmem:[#allocation2 + $0xd6] sm:$0xff]
      %v8979 = vld [vmem:[#allocation2 + $0xde] sm:$0xff]
      %v8980 = vld [vmem:[#allocation2 + $0xe6] sm:$0xff]
      %v8981 = vld [vmem:[#allocation2 + $0xee] sm:$0xff]
      %v8982 = vld [vmem:[#allocation2 + $0xf6] sm:$0xff]
      %v8983 = vld [vmem:[#allocation2 + $0xfe] sm:$0xff]
      %v8984 = vld [vmem:[#allocation2 + $0x106] sm:$0xff]
      %v8985 = vld [vmem:[#allocation2 + $0x10e] sm:$0xff]
      %v8986 = vld [vmem:[#allocation2 + $0x116] sm:$0xff]
      %v8987 = vld [vmem:[#allocation2 + $0x11e] sm:$0xff]
      %v8988 = vld [vmem:[#allocation2 + $0x126] sm:$0xff]
      %v8989 = vld [vmem:[#allocation2 + $0x12e] sm:$0xff]
      %v8990 = vld [vmem:[#allocation2 + $0x136] sm:$0xff]
      %v8991 = vld [vmem:[#allocation2 + $0x13e] sm:$0xff]
      %s8992 = scalar_lea.vmem %s6, 256
      %v8993 = vld [vmem:[%s8992] sm:$0xff]
      %v8994 = vld [vmem:[%s8992 + $0x8] sm:$0xff]
      %v8995 = vld [vmem:[%s8992 + $0x10] sm:$0xff]
      %v8996 = vld [vmem:[%s8992 + $0x18] sm:$0xff]
      %v8998 = vsel %vm439, %v8956, 0
      %v9001 = vsel %vm439, %v8957, 0
      %v9004 = vsel %vm439, %v8958, 0
      %v9007 = vsel %vm439, %v8959, 0
      %v9010 = vsel %vm439, %v8960, 0
      %v9013 = vsel %vm439, %v8961, 0
      %v9016 = vsel %vm439, %v8962, 0
      %v9019 = vsel %vm439, %v8963, 0
      %v9022 = vsel %vm439, %v8964, 0
      %v9025 = vsel %vm439, %v8965, 0
      %v9028 = vsel %vm439, %v8966, 0
      %v9031 = vsel %vm439, %v8967, 0
      %v9034 = vsel %vm439, %v8968, 0
      %v9037 = vsel %vm439, %v8969, 0
      %v9040 = vsel %vm439, %v8970, 0
      %v9043 = vsel %vm439, %v8971, 0
      %v9046 = vsel %vm439, %v8972, 0
      %v9049 = vsel %vm439, %v8973, 0
      %v9052 = vsel %vm439, %v8974, 0
      %v9055 = vsel %vm439, %v8975, 0
      %v9058 = vsel %vm439, %v8976, 0
      %v9061 = vsel %vm439, %v8977, 0
      %v9064 = vsel %vm439, %v8978, 0
      %v9067 = vsel %vm439, %v8979, 0
      %v9070 = vsel %vm439, %v8980, 0
      %v9073 = vsel %vm439, %v8981, 0
      %v9076 = vsel %vm439, %v8982, 0
      %v9079 = vsel %vm439, %v8983, 0
      %v9082 = vsel %vm439, %v8984, 0
      %v9085 = vsel %vm439, %v8985, 0
      %v9088 = vsel %vm439, %v8986, 0
      %v9091 = vsel %vm439, %v8987, 0
      %v9094 = vsel %vm439, %v8988, 0
      %v9097 = vsel %vm439, %v8989, 0
      %v9100 = vsel %vm439, %v8990, 0
      %v9103 = vsel %vm439, %v8991, 0
      %9105 = vmatpush.msra.mxu0 0.0
      %9106 = vmatpush.msra.mxu0 0.0
      %9107 = vmatpush.msra.mxu0 0.0
      %9108 = vmatpush.msra.mxu0 0.0
      %9109 = vmatpush.msra.mxu0 0.0
      %9110 = vmatpush.msra.mxu0 0.0
      %9111 = vmatpush.msra.mxu0 0.0
      %9112 = vmatpush.msra.mxu0 0.0
      %9113 = vmatpush.msra.mxu0 0.0
      %9114 = vmatpush.msra.mxu0 0.0
      %9115 = vmatpush.msra.mxu0 0.0
      %9116 = vmatpush.msra.mxu0 0.0
      %9117 = vmatpush.msra.mxu0 %v8996
      %9118 = vmatpush.msra.mxu0 %v8995
      %9119 = vmatpush.msra.mxu0 %v8994
      %9120 = vmatpush.msra.mxu0 %v8993
      %9121 = vmatmul.f32.gmra.mxu0 %v8998
      %v9122 = vpop.f32.mrf.mxu0
      %v9123 = vadd.f32 0.0, %v9122
      %9124 = vmatmul.f32.gmra.mxu0 %v9001
      %v9125 = vpop.f32.mrf.mxu0
      %v9126 = vadd.f32 0.0, %v9125
      %9127 = vmatmul.f32.gmra.mxu0 %v9004
      %v9128 = vpop.f32.mrf.mxu0
      %v9129 = vadd.f32 0.0, %v9128
      %9130 = vmatmul.f32.gmra.mxu0 %v9007
      %v9131 = vpop.f32.mrf.mxu0
      %v9132 = vadd.f32 0.0, %v9131
      %9133 = vmatmul.f32.gmra.mxu0 %v9010
      %v9134 = vpop.f32.mrf.mxu0
      %v9135 = vadd.f32 0.0, %v9134
      %9136 = vmatmul.f32.gmra.mxu0 %v9013
      %v9137 = vpop.f32.mrf.mxu0
      %v9138 = vadd.f32 0.0, %v9137
      %9139 = vmatmul.f32.gmra.mxu0 %v9016
      %v9140 = vpop.f32.mrf.mxu0
      %v9141 = vadd.f32 0.0, %v9140
      %9142 = vmatmul.f32.gmra.mxu0 %v9019
      %v9143 = vpop.f32.mrf.mxu0
      %v9144 = vadd.f32 0.0, %v9143
      %9145 = vmatmul.f32.gmra.mxu0 %v9022
      %v9146 = vpop.f32.mrf.mxu0
      %v9147 = vadd.f32 0.0, %v9146
      %9148 = vmatmul.f32.gmra.mxu0 %v9025
      %v9149 = vpop.f32.mrf.mxu0
      %v9150 = vadd.f32 0.0, %v9149
      %9151 = vmatmul.f32.gmra.mxu0 %v9028
      %v9152 = vpop.f32.mrf.mxu0
      %v9153 = vadd.f32 0.0, %v9152
      %9154 = vmatmul.f32.gmra.mxu0 %v9031
      %v9155 = vpop.f32.mrf.mxu0
      %v9156 = vadd.f32 0.0, %v9155
      %9157 = vmatmul.f32.gmra.mxu0 %v9034
      %v9158 = vpop.f32.mrf.mxu0
      %v9159 = vadd.f32 0.0, %v9158
      %9160 = vmatmul.f32.gmra.mxu0 %v9037
      %v9161 = vpop.f32.mrf.mxu0
      %v9162 = vadd.f32 0.0, %v9161
      %9163 = vmatmul.f32.gmra.mxu0 %v9040
      %v9164 = vpop.f32.mrf.mxu0
      %v9165 = vadd.f32 0.0, %v9164
      %9166 = vmatmul.f32.gmra.mxu0 %v9043
      %v9167 = vpop.f32.mrf.mxu0
      %v9168 = vadd.f32 0.0, %v9167
      %9169 = vmatmul.f32.gmra.mxu0 %v9046
      %v9170 = vpop.f32.mrf.mxu0
      %v9171 = vadd.f32 0.0, %v9170
      %9172 = vmatmul.f32.gmra.mxu0 %v9049
      %v9173 = vpop.f32.mrf.mxu0
      %v9174 = vadd.f32 0.0, %v9173
      %9175 = vmatmul.f32.gmra.mxu0 %v9052
      %v9176 = vpop.f32.mrf.mxu0
      %v9177 = vadd.f32 0.0, %v9176
      %9178 = vmatmul.f32.gmra.mxu0 %v9055
      %v9179 = vpop.f32.mrf.mxu0
      %v9180 = vadd.f32 0.0, %v9179
      %9181 = vmatmul.f32.gmra.mxu0 %v9058
      %v9182 = vpop.f32.mrf.mxu0
      %v9183 = vadd.f32 0.0, %v9182
      %9184 = vmatmul.f32.gmra.mxu0 %v9061
      %v9185 = vpop.f32.mrf.mxu0
      %v9186 = vadd.f32 0.0, %v9185
      %9187 = vmatmul.f32.gmra.mxu0 %v9064
      %v9188 = vpop.f32.mrf.mxu0
      %v9189 = vadd.f32 0.0, %v9188
      %9190 = vmatmul.f32.gmra.mxu0 %v9067
      %v9191 = vpop.f32.mrf.mxu0
      %v9192 = vadd.f32 0.0, %v9191
      %9193 = vmatmul.f32.gmra.mxu0 %v9070
      %v9194 = vpop.f32.mrf.mxu0
      %v9195 = vadd.f32 0.0, %v9194
      %9196 = vmatmul.f32.gmra.mxu0 %v9073
      %v9197 = vpop.f32.mrf.mxu0
      %v9198 = vadd.f32 0.0, %v9197
      %9199 = vmatmul.f32.gmra.mxu0 %v9076
      %v9200 = vpop.f32.mrf.mxu0
      %v9201 = vadd.f32 0.0, %v9200
      %9202 = vmatmul.f32.gmra.mxu0 %v9079
      %v9203 = vpop.f32.mrf.mxu0
      %v9204 = vadd.f32 0.0, %v9203
      %9205 = vmatmul.f32.gmra.mxu0 %v9082
      %v9206 = vpop.f32.mrf.mxu0
      %v9207 = vadd.f32 0.0, %v9206
      %9208 = vmatmul.f32.gmra.mxu0 %v9085
      %v9209 = vpop.f32.mrf.mxu0
      %v9210 = vadd.f32 0.0, %v9209
      %9211 = vmatmul.f32.gmra.mxu0 %v9088
      %v9212 = vpop.f32.mrf.mxu0
      %v9213 = vadd.f32 0.0, %v9212
      %9214 = vmatmul.f32.gmra.mxu0 %v9091
      %v9215 = vpop.f32.mrf.mxu0
      %v9216 = vadd.f32 0.0, %v9215
      %9217 = vmatmul.f32.gmra.mxu0 %v9094
      %v9218 = vpop.f32.mrf.mxu0
      %v9219 = vadd.f32 0.0, %v9218
      %9220 = vmatmul.f32.gmra.mxu0 %v9097
      %v9221 = vpop.f32.mrf.mxu0
      %v9222 = vadd.f32 0.0, %v9221
      %9223 = vmatmul.f32.gmra.mxu0 %v9100
      %v9224 = vpop.f32.mrf.mxu0
      %v9225 = vadd.f32 0.0, %v9224
      %9226 = vmatmul.f32.gmra.mxu0 %v9103
      %v9227 = vpop.f32.mrf.mxu0
      %v9228 = vadd.f32 0.0, %v9227
      %9229 = vdwg.mxu0
      %v9230 = vadd.f32 %v8920, %v9123
      %v9231 = vadd.f32 %v8921, %v9126
      %v9232 = vadd.f32 %v8922, %v9129
      %v9233 = vadd.f32 %v8923, %v9132
      %v9234 = vadd.f32 %v8924, %v9135
      %v9235 = vadd.f32 %v8925, %v9138
      %v9236 = vadd.f32 %v8926, %v9141
      %v9237 = vadd.f32 %v8927, %v9144
      %v9238 = vadd.f32 %v8928, %v9147
      %v9239 = vadd.f32 %v8929, %v9150
      %v9240 = vadd.f32 %v8930, %v9153
      %v9241 = vadd.f32 %v8931, %v9156
      %v9242 = vadd.f32 %v8932, %v9159
      %v9243 = vadd.f32 %v8933, %v9162
      %v9244 = vadd.f32 %v8934, %v9165
      %v9245 = vadd.f32 %v8935, %v9168
      %v9246 = vadd.f32 %v8936, %v9171
      %v9247 = vadd.f32 %v8937, %v9174
      %v9248 = vadd.f32 %v8938, %v9177
      %v9249 = vadd.f32 %v8939, %v9180
      %v9250 = vadd.f32 %v8940, %v9183
      %v9251 = vadd.f32 %v8941, %v9186
      %v9252 = vadd.f32 %v8942, %v9189
      %v9253 = vadd.f32 %v8943, %v9192
      %v9254 = vadd.f32 %v8944, %v9195
      %v9255 = vadd.f32 %v8945, %v9198
      %v9256 = vadd.f32 %v8946, %v9201
      %v9257 = vadd.f32 %v8947, %v9204
      %v9258 = vadd.f32 %v8948, %v9207
      %v9259 = vadd.f32 %v8949, %v9210
      %v9260 = vadd.f32 %v8950, %v9213
      %v9261 = vadd.f32 %v8951, %v9216
      %v9262 = vadd.f32 %v8952, %v9219
      %v9263 = vadd.f32 %v8953, %v9222
      %v9264 = vadd.f32 %v8954, %v9225
      %v9265 = vadd.f32 %v8955, %v9228
      %v9266 = vld [vmem:[%s7] sm:$0x1]
      %v9268 = vperm.slane %v9266, 0
      %v9270 = vadd.f32 %v9230, %v9268
      %v9271 = vadd.f32 %v9231, %v9268
      %v9272 = vadd.f32 %v9232, %v9268
      %v9273 = vadd.f32 %v9233, %v9268
      %v9274 = vadd.f32 %v9234, %v9268
      %v9275 = vadd.f32 %v9235, %v9268
      %v9276 = vadd.f32 %v9236, %v9268
      %v9277 = vadd.f32 %v9237, %v9268
      %v9278 = vadd.f32 %v9238, %v9268
      %v9279 = vadd.f32 %v9239, %v9268
      %v9280 = vadd.f32 %v9240, %v9268
      %v9281 = vadd.f32 %v9241, %v9268
      %v9282 = vadd.f32 %v9242, %v9268
      %v9283 = vadd.f32 %v9243, %v9268
      %v9284 = vadd.f32 %v9244, %v9268
      %v9285 = vadd.f32 %v9245, %v9268
      %v9286 = vadd.f32 %v9246, %v9268
      %v9287 = vadd.f32 %v9247, %v9268
      %v9288 = vadd.f32 %v9248, %v9268
      %v9289 = vadd.f32 %v9249, %v9268
      %v9290 = vadd.f32 %v9250, %v9268
      %v9291 = vadd.f32 %v9251, %v9268
      %v9292 = vadd.f32 %v9252, %v9268
      %v9293 = vadd.f32 %v9253, %v9268
      %v9294 = vadd.f32 %v9254, %v9268
      %v9295 = vadd.f32 %v9255, %v9268
      %v9296 = vadd.f32 %v9256, %v9268
      %v9297 = vadd.f32 %v9257, %v9268
      %v9298 = vadd.f32 %v9258, %v9268
      %v9299 = vadd.f32 %v9259, %v9268
      %v9300 = vadd.f32 %v9260, %v9268
      %v9301 = vadd.f32 %v9261, %v9268
      %v9302 = vadd.f32 %v9262, %v9268
      %v9303 = vadd.f32 %v9263, %v9268
      %v9304 = vadd.f32 %v9264, %v9268
      %v9305 = vadd.f32 %v9265, %v9268
      %v9306 = vmax.f32 %v9270, 0.0
      %v9307 = vmax.f32 %v9271, 0.0
      %v9308 = vmax.f32 %v9272, 0.0
      %v9309 = vmax.f32 %v9273, 0.0
      %v9310 = vmax.f32 %v9274, 0.0
      %v9311 = vmax.f32 %v9275, 0.0
      %v9312 = vmax.f32 %v9276, 0.0
      %v9313 = vmax.f32 %v9277, 0.0
      %v9314 = vmax.f32 %v9278, 0.0
      %v9315 = vmax.f32 %v9279, 0.0
      %v9316 = vmax.f32 %v9280, 0.0
      %v9317 = vmax.f32 %v9281, 0.0
      %v9318 = vmax.f32 %v9282, 0.0
      %v9319 = vmax.f32 %v9283, 0.0
      %v9320 = vmax.f32 %v9284, 0.0
      %v9321 = vmax.f32 %v9285, 0.0
      %v9322 = vmax.f32 %v9286, 0.0
      %v9323 = vmax.f32 %v9287, 0.0
      %v9324 = vmax.f32 %v9288, 0.0
      %v9325 = vmax.f32 %v9289, 0.0
      %v9326 = vmax.f32 %v9290, 0.0
      %v9327 = vmax.f32 %v9291, 0.0
      %v9328 = vmax.f32 %v9292, 0.0
      %v9329 = vmax.f32 %v9293, 0.0
      %v9330 = vmax.f32 %v9294, 0.0
      %v9331 = vmax.f32 %v9295, 0.0
      %v9332 = vmax.f32 %v9296, 0.0
      %v9333 = vmax.f32 %v9297, 0.0
      %v9334 = vmax.f32 %v9298, 0.0
      %v9335 = vmax.f32 %v9299, 0.0
      %v9336 = vmax.f32 %v9300, 0.0
      %v9337 = vmax.f32 %v9301, 0.0
      %v9338 = vmax.f32 %v9302, 0.0
      %v9339 = vmax.f32 %v9303, 0.0
      %v9340 = vmax.f32 %v9304, 0.0
      %v9341 = vmax.f32 %v9305, 0.0
      %v9342 = vmul.f32 %v9306, %v3398
      %v9343 = vmul.f32 %v9307, %v3403
      %v9344 = vmul.f32 %v9308, %v3408
      %v9345 = vmul.f32 %v9309, %v3413
      %v9346 = vmul.f32 %v9310, %v3418
      %v9347 = vmul.f32 %v9311, %v3423
      %v9348 = vmul.f32 %v9312, %v3428
      %v9349 = vmul.f32 %v9313, %v3433
      %v9350 = vmul.f32 %v9314, %v3438
      %v9351 = vmul.f32 %v9315, %v3443
      %v9352 = vmul.f32 %v9316, %v3448
      %v9353 = vmul.f32 %v9317, %v3453
      %v9354 = vmul.f32 %v9318, %v3458
      %v9355 = vmul.f32 %v9319, %v3463
      %v9356 = vmul.f32 %v9320, %v3468
      %v9357 = vmul.f32 %v9321, %v3473
      %v9358 = vmul.f32 %v9322, %v3478
      %v9359 = vmul.f32 %v9323, %v3483
      %v9360 = vmul.f32 %v9324, %v3488
      %v9361 = vmul.f32 %v9325, %v3493
      %v9362 = vmul.f32 %v9326, %v3498
      %v9363 = vmul.f32 %v9327, %v3503
      %v9364 = vmul.f32 %v9328, %v3508
      %v9365 = vmul.f32 %v9329, %v3513
      %v9366 = vmul.f32 %v9330, %v3518
      %v9367 = vmul.f32 %v9331, %v3523
      %v9368 = vmul.f32 %v9332, %v3528
      %v9369 = vmul.f32 %v9333, %v3533
      %v9370 = vmul.f32 %v9334, %v3538
      %v9371 = vmul.f32 %v9335, %v3543
      %v9372 = vmul.f32 %v9336, %v3548
      %v9373 = vmul.f32 %v9337, %v3553
      %v9374 = vmul.f32 %v9338, %v3558
      %v9375 = vmul.f32 %v9339, %v3563
      %v9376 = vmul.f32 %v9340, %v3568
      %v9377 = vmul.f32 %v9341, %v3573
      %9378 = vst.msk [vmem:[#allocation2 + $0x13] sm:$0xff] %vm439, %v9342
      %9379 = vst.msk [vmem:[#allocation2 + $0x1b] sm:$0xff] %vm439, %v9343
      %9380 = vst.msk [vmem:[#allocation2 + $0x23] sm:$0xff] %vm439, %v9344
      %9381 = vst.msk [vmem:[#allocation2 + $0x2b] sm:$0xff] %vm439, %v9345
      %9382 = vst.msk [vmem:[#allocation2 + $0x33] sm:$0xff] %vm439, %v9346
      %9383 = vst.msk [vmem:[#allocation2 + $0x3b] sm:$0xff] %vm439, %v9347
      %9384 = vst.msk [vmem:[#allocation2 + $0x43] sm:$0xff] %vm439, %v9348
      %9385 = vst.msk [vmem:[#allocation2 + $0x4b] sm:$0xff] %vm439, %v9349
      %9386 = vst.msk [vmem:[#allocation2 + $0x53] sm:$0xff] %vm439, %v9350
      %9387 = vst.msk [vmem:[#allocation2 + $0x5b] sm:$0xff] %vm439, %v9351
      %9388 = vst.msk [vmem:[#allocation2 + $0x63] sm:$0xff] %vm439, %v9352
      %9389 = vst.msk [vmem:[#allocation2 + $0x6b] sm:$0xff] %vm439, %v9353
      %9390 = vst.msk [vmem:[#allocation2 + $0x73] sm:$0xff] %vm439, %v9354
      %9391 = vst.msk [vmem:[#allocation2 + $0x7b] sm:$0xff] %vm439, %v9355
      %9392 = vst.msk [vmem:[#allocation2 + $0x83] sm:$0xff] %vm439, %v9356
      %9393 = vst.msk [vmem:[#allocation2 + $0x8b] sm:$0xff] %vm439, %v9357
      %9394 = vst.msk [vmem:[#allocation2 + $0x93] sm:$0xff] %vm439, %v9358
      %9395 = vst.msk [vmem:[#allocation2 + $0x9b] sm:$0xff] %vm439, %v9359
      %9396 = vst.msk [vmem:[#allocation2 + $0xa3] sm:$0xff] %vm439, %v9360
      %9397 = vst.msk [vmem:[#allocation2 + $0xab] sm:$0xff] %vm439, %v9361
      %9398 = vst.msk [vmem:[#allocation2 + $0xb3] sm:$0xff] %vm439, %v9362
      %9399 = vst.msk [vmem:[#allocation2 + $0xbb] sm:$0xff] %vm439, %v9363
      %9400 = vst.msk [vmem:[#allocation2 + $0xc3] sm:$0xff] %vm439, %v9364
      %9401 = vst.msk [vmem:[#allocation2 + $0xcb] sm:$0xff] %vm439, %v9365
      %9402 = vst.msk [vmem:[#allocation2 + $0xd3] sm:$0xff] %vm439, %v9366
      %9403 = vst.msk [vmem:[#allocation2 + $0xdb] sm:$0xff] %vm439, %v9367
      %9404 = vst.msk [vmem:[#allocation2 + $0xe3] sm:$0xff] %vm439, %v9368
      %9405 = vst.msk [vmem:[#allocation2 + $0xeb] sm:$0xff] %vm439, %v9369
      %9406 = vst.msk [vmem:[#allocation2 + $0xf3] sm:$0xff] %vm439, %v9370
      %9407 = vst.msk [vmem:[#allocation2 + $0xfb] sm:$0xff] %vm439, %v9371
      %9408 = vst.msk [vmem:[#allocation2 + $0x103] sm:$0xff] %vm439, %v9372
      %9409 = vst.msk [vmem:[#allocation2 + $0x10b] sm:$0xff] %vm439, %v9373
      %9410 = vst.msk [vmem:[#allocation2 + $0x113] sm:$0xff] %vm439, %v9374
      %9411 = vst.msk [vmem:[#allocation2 + $0x11b] sm:$0xff] %vm439, %v9375
      %9412 = vst.msk [vmem:[#allocation2 + $0x123] sm:$0xff] %vm439, %v9376
      %9413 = vst.msk [vmem:[#allocation2 + $0x12b] sm:$0xff] %vm439, %v9377
      %9414 = vst.msk [vmem:[%s433] sm:$0xff] %vm439, %v9342
      %9415 = vst.msk [vmem:[%s433 + $0x8] sm:$0xff] %vm439, %v9343
      %9416 = vst.msk [vmem:[%s433 + $0x10] sm:$0xff] %vm439, %v9344
      %9417 = vst.msk [vmem:[%s433 + $0x18] sm:$0xff] %vm439, %v9345
      %9418 = vst.msk [vmem:[%s433 + $0x20] sm:$0xff] %vm439, %v9346
      %9419 = vst.msk [vmem:[%s433 + $0x28] sm:$0xff] %vm439, %v9347
      %9420 = vst.msk [vmem:[%s433 + $0x30] sm:$0xff] %vm439, %v9348
      %9421 = vst.msk [vmem:[%s433 + $0x38] sm:$0xff] %vm439, %v9349
      %9422 = vst.msk [vmem:[%s433 + $0x40] sm:$0xff] %vm439, %v9350
      %9423 = vst.msk [vmem:[%s433 + $0x48] sm:$0xff] %vm439, %v9351
      %9424 = vst.msk [vmem:[%s433 + $0x50] sm:$0xff] %vm439, %v9352
      %9425 = vst.msk [vmem:[%s433 + $0x58] sm:$0xff] %vm439, %v9353
      %9426 = vst.msk [vmem:[%s433 + $0x60] sm:$0xff] %vm439, %v9354
      %9427 = vst.msk [vmem:[%s433 + $0x68] sm:$0xff] %vm439, %v9355
      %9428 = vst.msk [vmem:[%s433 + $0x70] sm:$0xff] %vm439, %v9356
      %9429 = vst.msk [vmem:[%s433 + $0x78] sm:$0xff] %vm439, %v9357
      %9430 = vst.msk [vmem:[%s433 + $0x80] sm:$0xff] %vm439, %v9358
      %9431 = vst.msk [vmem:[%s433 + $0x88] sm:$0xff] %vm439, %v9359
      %9432 = vst.msk [vmem:[%s433 + $0x90] sm:$0xff] %vm439, %v9360
      %9433 = vst.msk [vmem:[%s433 + $0x98] sm:$0xff] %vm439, %v9361
      %9434 = vst.msk [vmem:[%s433 + $0xa0] sm:$0xff] %vm439, %v9362
      %9435 = vst.msk [vmem:[%s433 + $0xa8] sm:$0xff] %vm439, %v9363
      %9436 = vst.msk [vmem:[%s433 + $0xb0] sm:$0xff] %vm439, %v9364
      %9437 = vst.msk [vmem:[%s433 + $0xb8] sm:$0xff] %vm439, %v9365
      %9438 = vst.msk [vmem:[%s433 + $0xc0] sm:$0xff] %vm439, %v9366
      %9439 = vst.msk [vmem:[%s433 + $0xc8] sm:$0xff] %vm439, %v9367
      %9440 = vst.msk [vmem:[%s433 + $0xd0] sm:$0xff] %vm439, %v9368
      %9441 = vst.msk [vmem:[%s433 + $0xd8] sm:$0xff] %vm439, %v9369
      %9442 = vst.msk [vmem:[%s433 + $0xe0] sm:$0xff] %vm439, %v9370
      %9443 = vst.msk [vmem:[%s433 + $0xe8] sm:$0xff] %vm439, %v9371
      %9444 = vst.msk [vmem:[%s433 + $0xf0] sm:$0xff] %vm439, %v9372
      %9445 = vst.msk [vmem:[%s433 + $0xf8] sm:$0xff] %vm439, %v9373
      %9446 = vst.msk [vmem:[%s433 + $0x100] sm:$0xff] %vm439, %v9374
      %9447 = vst.msk [vmem:[%s433 + $0x108] sm:$0xff] %vm439, %v9375
      %9448 = vst.msk [vmem:[%s433 + $0x110] sm:$0xff] %vm439, %v9376
      %9449 = vst.msk [vmem:[%s433 + $0x118] sm:$0xff] %vm439, %v9377
      %v9450 = vld [vmem:[#allocation2] sm:$0xff]
      %v9451 = vld [vmem:[#allocation2 + $0x8] sm:$0xff]
      %v9452 = vld [vmem:[#allocation2 + $0x10] sm:$0xff]
      %v9453 = vld [vmem:[#allocation2 + $0x18] sm:$0xff]
      %v9454 = vld [vmem:[#allocation2 + $0x20] sm:$0xff]
      %v9455 = vld [vmem:[#allocation2 + $0x28] sm:$0xff]
      %v9456 = vld [vmem:[#allocation2 + $0x30] sm:$0xff]
      %v9457 = vld [vmem:[#allocation2 + $0x38] sm:$0xff]
      %v9458 = vld [vmem:[#allocation2 + $0x40] sm:$0xff]
      %v9459 = vld [vmem:[#allocation2 + $0x48] sm:$0xff]
      %v9460 = vld [vmem:[#allocation2 + $0x50] sm:$0xff]
      %v9461 = vld [vmem:[#allocation2 + $0x58] sm:$0xff]
      %v9462 = vld [vmem:[#allocation2 + $0x60] sm:$0xff]
      %v9463 = vld [vmem:[#allocation2 + $0x68] sm:$0xff]
      %v9464 = vld [vmem:[#allocation2 + $0x70] sm:$0xff]
      %v9465 = vld [vmem:[#allocation2 + $0x78] sm:$0xff]
      %v9466 = vld [vmem:[#allocation2 + $0x80] sm:$0xff]
      %v9467 = vld [vmem:[#allocation2 + $0x88] sm:$0xff]
      %v9468 = vld [vmem:[#allocation2 + $0x90] sm:$0xff]
      %v9469 = vld [vmem:[#allocation2 + $0x98] sm:$0xff]
      %v9470 = vld [vmem:[#allocation2 + $0xa0] sm:$0xff]
      %v9471 = vld [vmem:[#allocation2 + $0xa8] sm:$0xff]
      %v9472 = vld [vmem:[#allocation2 + $0xb0] sm:$0xff]
      %v9473 = vld [vmem:[#allocation2 + $0xb8] sm:$0xff]
      %v9474 = vld [vmem:[#allocation2 + $0xc0] sm:$0xff]
      %v9475 = vld [vmem:[#allocation2 + $0xc8] sm:$0xff]
      %v9476 = vld [vmem:[#allocation2 + $0xd0] sm:$0xff]
      %v9477 = vld [vmem:[#allocation2 + $0xd8] sm:$0xff]
      %v9478 = vld [vmem:[#allocation2 + $0xe0] sm:$0xff]
      %v9479 = vld [vmem:[#allocation2 + $0xe8] sm:$0xff]
      %v9480 = vld [vmem:[#allocation2 + $0xf0] sm:$0xff]
      %v9481 = vld [vmem:[#allocation2 + $0xf8] sm:$0xff]
      %v9482 = vld [vmem:[#allocation2 + $0x100] sm:$0xff]
      %v9483 = vld [vmem:[#allocation2 + $0x108] sm:$0xff]
      %v9484 = vld [vmem:[#allocation2 + $0x110] sm:$0xff]
      %v9485 = vld [vmem:[#allocation2 + $0x118] sm:$0xff]
      %v9486 = vld [vmem:[%s8] sm:$0xff]
      %v9487 = vld [vmem:[%s8 + $0x8] sm:$0xff]
      %v9488 = vld [vmem:[%s8 + $0x10] sm:$0xff]
      %v9489 = vld [vmem:[%s8 + $0x18] sm:$0xff]
      %v9490 = vld [vmem:[#allocation2 + $0x1] sm:$0xff]
      %v9491 = vld [vmem:[#allocation2 + $0x9] sm:$0xff]
      %v9492 = vld [vmem:[#allocation2 + $0x11] sm:$0xff]
      %v9493 = vld [vmem:[#allocation2 + $0x19] sm:$0xff]
      %v9494 = vld [vmem:[#allocation2 + $0x21] sm:$0xff]
      %v9495 = vld [vmem:[#allocation2 + $0x29] sm:$0xff]
      %v9496 = vld [vmem:[#allocation2 + $0x31] sm:$0xff]
      %v9497 = vld [vmem:[#allocation2 + $0x39] sm:$0xff]
      %v9498 = vld [vmem:[#allocation2 + $0x41] sm:$0xff]
      %v9499 = vld [vmem:[#allocation2 + $0x49] sm:$0xff]
      %v9500 = vld [vmem:[#allocation2 + $0x51] sm:$0xff]
      %v9501 = vld [vmem:[#allocation2 + $0x59] sm:$0xff]
      %v9502 = vld [vmem:[#allocation2 + $0x61] sm:$0xff]
      %v9503 = vld [vmem:[#allocation2 + $0x69] sm:$0xff]
      %v9504 = vld [vmem:[#allocation2 + $0x71] sm:$0xff]
      %v9505 = vld [vmem:[#allocation2 + $0x79] sm:$0xff]
      %v9506 = vld [vmem:[#allocation2 + $0x81] sm:$0xff]
      %v9507 = vld [vmem:[#allocation2 + $0x89] sm:$0xff]
      %v9508 = vld [vmem:[#allocation2 + $0x91] sm:$0xff]
      %v9509 = vld [vmem:[#allocation2 + $0x99] sm:$0xff]
      %v9510 = vld [vmem:[#allocation2 + $0xa1] sm:$0xff]
      %v9511 = vld [vmem:[#allocation2 + $0xa9] sm:$0xff]
      %v9512 = vld [vmem:[#allocation2 + $0xb1] sm:$0xff]
      %v9513 = vld [vmem:[#allocation2 + $0xb9] sm:$0xff]
      %v9514 = vld [vmem:[#allocation2 + $0xc1] sm:$0xff]
      %v9515 = vld [vmem:[#allocation2 + $0xc9] sm:$0xff]
      %v9516 = vld [vmem:[#allocation2 + $0xd1] sm:$0xff]
      %v9517 = vld [vmem:[#allocation2 + $0xd9] sm:$0xff]
      %v9518 = vld [vmem:[#allocation2 + $0xe1] sm:$0xff]
      %v9519 = vld [vmem:[#allocation2 + $0xe9] sm:$0xff]
      %v9520 = vld [vmem:[#allocation2 + $0xf1] sm:$0xff]
      %v9521 = vld [vmem:[#allocation2 + $0xf9] sm:$0xff]
      %v9522 = vld [vmem:[#allocation2 + $0x101] sm:$0xff]
      %v9523 = vld [vmem:[#allocation2 + $0x109] sm:$0xff]
      %v9524 = vld [vmem:[#allocation2 + $0x111] sm:$0xff]
      %v9525 = vld [vmem:[#allocation2 + $0x119] sm:$0xff]
      %s9526 = scalar_lea.vmem %s8, 32
      %v9527 = vld [vmem:[%s9526] sm:$0xff]
      %v9528 = vld [vmem:[%s9526 + $0x8] sm:$0xff]
      %v9529 = vld [vmem:[%s9526 + $0x10] sm:$0xff]
      %v9530 = vld [vmem:[%s9526 + $0x18] sm:$0xff]
      %v9532 = vsel %vm439, %v9490, 0
      %v9535 = vsel %vm439, %v9491, 0
      %v9538 = vsel %vm439, %v9492, 0
      %v9541 = vsel %vm439, %v9493, 0
      %v9544 = vsel %vm439, %v9494, 0
      %v9547 = vsel %vm439, %v9495, 0
      %v9550 = vsel %vm439, %v9496, 0
      %v9553 = vsel %vm439, %v9497, 0
      %v9556 = vsel %vm439, %v9498, 0
      %v9559 = vsel %vm439, %v9499, 0
      %v9562 = vsel %vm439, %v9500, 0
      %v9565 = vsel %vm439, %v9501, 0
      %v9568 = vsel %vm439, %v9502, 0
      %v9571 = vsel %vm439, %v9503, 0
      %v9574 = vsel %vm439, %v9504, 0
      %v9577 = vsel %vm439, %v9505, 0
      %v9580 = vsel %vm439, %v9506, 0
      %v9583 = vsel %vm439, %v9507, 0
      %v9586 = vsel %vm439, %v9508, 0
      %v9589 = vsel %vm439, %v9509, 0
      %v9592 = vsel %vm439, %v9510, 0
      %v9595 = vsel %vm439, %v9511, 0
      %v9598 = vsel %vm439, %v9512, 0
      %v9601 = vsel %vm439, %v9513, 0
      %v9604 = vsel %vm439, %v9514, 0
      %v9607 = vsel %vm439, %v9515, 0
      %v9610 = vsel %vm439, %v9516, 0
      %v9613 = vsel %vm439, %v9517, 0
      %v9616 = vsel %vm439, %v9518, 0
      %v9619 = vsel %vm439, %v9519, 0
      %v9622 = vsel %vm439, %v9520, 0
      %v9625 = vsel %vm439, %v9521, 0
      %v9628 = vsel %vm439, %v9522, 0
      %v9631 = vsel %vm439, %v9523, 0
      %v9634 = vsel %vm439, %v9524, 0
      %v9637 = vsel %vm439, %v9525, 0
      %9639 = vmatpush.msra.mxu0 0.0
      %9640 = vmatpush.msra.mxu0 0.0
      %9641 = vmatpush.msra.mxu0 0.0
      %9642 = vmatpush.msra.mxu0 0.0
      %9643 = vmatpush.msra.mxu0 0.0
      %9644 = vmatpush.msra.mxu0 0.0
      %9645 = vmatpush.msra.mxu0 0.0
      %9646 = vmatpush.msra.mxu0 0.0
      %9647 = vmatpush.msra.mxu0 0.0
      %9648 = vmatpush.msra.mxu0 0.0
      %9649 = vmatpush.msra.mxu0 0.0
      %9650 = vmatpush.msra.mxu0 0.0
      %9651 = vmatpush.msra.mxu0 %v9530
      %9652 = vmatpush.msra.mxu0 %v9529
      %9653 = vmatpush.msra.mxu0 %v9528
      %9654 = vmatpush.msra.mxu0 %v9527
      %9655 = vmatmul.f32.gmra.mxu0 %v9532
      %v9656 = vpop.f32.mrf.mxu0
      %v9657 = vadd.f32 0.0, %v9656
      %9658 = vmatmul.f32.gmra.mxu0 %v9535
      %v9659 = vpop.f32.mrf.mxu0
      %v9660 = vadd.f32 0.0, %v9659
      %9661 = vmatmul.f32.gmra.mxu0 %v9538
      %v9662 = vpop.f32.mrf.mxu0
      %v9663 = vadd.f32 0.0, %v9662
      %9664 = vmatmul.f32.gmra.mxu0 %v9541
      %v9665 = vpop.f32.mrf.mxu0
      %v9666 = vadd.f32 0.0, %v9665
      %9667 = vmatmul.f32.gmra.mxu0 %v9544
      %v9668 = vpop.f32.mrf.mxu0
      %v9669 = vadd.f32 0.0, %v9668
      %9670 = vmatmul.f32.gmra.mxu0 %v9547
      %v9671 = vpop.f32.mrf.mxu0
      %v9672 = vadd.f32 0.0, %v9671
      %9673 = vmatmul.f32.gmra.mxu0 %v9550
      %v9674 = vpop.f32.mrf.mxu0
      %v9675 = vadd.f32 0.0, %v9674
      %9676 = vmatmul.f32.gmra.mxu0 %v9553
      %v9677 = vpop.f32.mrf.mxu0
      %v9678 = vadd.f32 0.0, %v9677
      %9679 = vmatmul.f32.gmra.mxu0 %v9556
      %v9680 = vpop.f32.mrf.mxu0
      %v9681 = vadd.f32 0.0, %v9680
      %9682 = vmatmul.f32.gmra.mxu0 %v9559
      %v9683 = vpop.f32.mrf.mxu0
      %v9684 = vadd.f32 0.0, %v9683
      %9685 = vmatmul.f32.gmra.mxu0 %v9562
      %v9686 = vpop.f32.mrf.mxu0
      %v9687 = vadd.f32 0.0, %v9686
      %9688 = vmatmul.f32.gmra.mxu0 %v9565
      %v9689 = vpop.f32.mrf.mxu0
      %v9690 = vadd.f32 0.0, %v9689
      %9691 = vmatmul.f32.gmra.mxu0 %v9568
      %v9692 = vpop.f32.mrf.mxu0
      %v9693 = vadd.f32 0.0, %v9692
      %9694 = vmatmul.f32.gmra.mxu0 %v9571
      %v9695 = vpop.f32.mrf.mxu0
      %v9696 = vadd.f32 0.0, %v9695
      %9697 = vmatmul.f32.gmra.mxu0 %v9574
      %v9698 = vpop.f32.mrf.mxu0
      %v9699 = vadd.f32 0.0, %v9698
      %9700 = vmatmul.f32.gmra.mxu0 %v9577
      %v9701 = vpop.f32.mrf.mxu0
      %v9702 = vadd.f32 0.0, %v9701
      %9703 = vmatmul.f32.gmra.mxu0 %v9580
      %v9704 = vpop.f32.mrf.mxu0
      %v9705 = vadd.f32 0.0, %v9704
      %9706 = vmatmul.f32.gmra.mxu0 %v9583
      %v9707 = vpop.f32.mrf.mxu0
      %v9708 = vadd.f32 0.0, %v9707
      %9709 = vmatmul.f32.gmra.mxu0 %v9586
      %v9710 = vpop.f32.mrf.mxu0
      %v9711 = vadd.f32 0.0, %v9710
      %9712 = vmatmul.f32.gmra.mxu0 %v9589
      %v9713 = vpop.f32.mrf.mxu0
      %v9714 = vadd.f32 0.0, %v9713
      %9715 = vmatmul.f32.gmra.mxu0 %v9592
      %v9716 = vpop.f32.mrf.mxu0
      %v9717 = vadd.f32 0.0, %v9716
      %9718 = vmatmul.f32.gmra.mxu0 %v9595
      %v9719 = vpop.f32.mrf.mxu0
      %v9720 = vadd.f32 0.0, %v9719
      %9721 = vmatmul.f32.gmra.mxu0 %v9598
      %v9722 = vpop.f32.mrf.mxu0
      %v9723 = vadd.f32 0.0, %v9722
      %9724 = vmatmul.f32.gmra.mxu0 %v9601
      %v9725 = vpop.f32.mrf.mxu0
      %v9726 = vadd.f32 0.0, %v9725
      %9727 = vmatmul.f32.gmra.mxu0 %v9604
      %v9728 = vpop.f32.mrf.mxu0
      %v9729 = vadd.f32 0.0, %v9728
      %9730 = vmatmul.f32.gmra.mxu0 %v9607
      %v9731 = vpop.f32.mrf.mxu0
      %v9732 = vadd.f32 0.0, %v9731
      %9733 = vmatmul.f32.gmra.mxu0 %v9610
      %v9734 = vpop.f32.mrf.mxu0
      %v9735 = vadd.f32 0.0, %v9734
      %9736 = vmatmul.f32.gmra.mxu0 %v9613
      %v9737 = vpop.f32.mrf.mxu0
      %v9738 = vadd.f32 0.0, %v9737
      %9739 = vmatmul.f32.gmra.mxu0 %v9616
      %v9740 = vpop.f32.mrf.mxu0
      %v9741 = vadd.f32 0.0, %v9740
      %9742 = vmatmul.f32.gmra.mxu0 %v9619
      %v9743 = vpop.f32.mrf.mxu0
      %v9744 = vadd.f32 0.0, %v9743
      %9745 = vmatmul.f32.gmra.mxu0 %v9622
      %v9746 = vpop.f32.mrf.mxu0
      %v9747 = vadd.f32 0.0, %v9746
      %9748 = vmatmul.f32.gmra.mxu0 %v9625
      %v9749 = vpop.f32.mrf.mxu0
      %v9750 = vadd.f32 0.0, %v9749
      %9751 = vmatmul.f32.gmra.mxu0 %v9628
      %v9752 = vpop.f32.mrf.mxu0
      %v9753 = vadd.f32 0.0, %v9752
      %9754 = vmatmul.f32.gmra.mxu0 %v9631
      %v9755 = vpop.f32.mrf.mxu0
      %v9756 = vadd.f32 0.0, %v9755
      %9757 = vmatmul.f32.gmra.mxu0 %v9634
      %v9758 = vpop.f32.mrf.mxu0
      %v9759 = vadd.f32 0.0, %v9758
      %9760 = vmatmul.f32.gmra.mxu0 %v9637
      %v9761 = vpop.f32.mrf.mxu0
      %v9762 = vadd.f32 0.0, %v9761
      %9763 = vdwg.mxu0
      %v9765 = vsel %vm439, %v9450, 0
      %v9768 = vsel %vm439, %v9451, 0
      %v9771 = vsel %vm439, %v9452, 0
      %v9774 = vsel %vm439, %v9453, 0
      %v9777 = vsel %vm439, %v9454, 0
      %v9780 = vsel %vm439, %v9455, 0
      %v9783 = vsel %vm439, %v9456, 0
      %v9786 = vsel %vm439, %v9457, 0
      %v9789 = vsel %vm439, %v9458, 0
      %v9792 = vsel %vm439, %v9459, 0
      %v9795 = vsel %vm439, %v9460, 0
      %v9798 = vsel %vm439, %v9461, 0
      %v9801 = vsel %vm439, %v9462, 0
      %v9804 = vsel %vm439, %v9463, 0
      %v9807 = vsel %vm439, %v9464, 0
      %v9810 = vsel %vm439, %v9465, 0
      %v9813 = vsel %vm439, %v9466, 0
      %v9816 = vsel %vm439, %v9467, 0
      %v9819 = vsel %vm439, %v9468, 0
      %v9822 = vsel %vm439, %v9469, 0
      %v9825 = vsel %vm439, %v9470, 0
      %v9828 = vsel %vm439, %v9471, 0
      %v9831 = vsel %vm439, %v9472, 0
      %v9834 = vsel %vm439, %v9473, 0
      %v9837 = vsel %vm439, %v9474, 0
      %v9840 = vsel %vm439, %v9475, 0
      %v9843 = vsel %vm439, %v9476, 0
      %v9846 = vsel %vm439, %v9477, 0
      %v9849 = vsel %vm439, %v9478, 0
      %v9852 = vsel %vm439, %v9479, 0
      %v9855 = vsel %vm439, %v9480, 0
      %v9858 = vsel %vm439, %v9481, 0
      %v9861 = vsel %vm439, %v9482, 0
      %v9864 = vsel %vm439, %v9483, 0
      %v9867 = vsel %vm439, %v9484, 0
      %v9870 = vsel %vm439, %v9485, 0
      %9872 = vmatpush.msra.mxu0 0.0
      %9873 = vmatpush.msra.mxu0 0.0
      %9874 = vmatpush.msra.mxu0 0.0
      %9875 = vmatpush.msra.mxu0 0.0
      %9876 = vmatpush.msra.mxu0 0.0
      %9877 = vmatpush.msra.mxu0 0.0
      %9878 = vmatpush.msra.mxu0 0.0
      %9879 = vmatpush.msra.mxu0 0.0
      %9880 = vmatpush.msra.mxu0 0.0
      %9881 = vmatpush.msra.mxu0 0.0
      %9882 = vmatpush.msra.mxu0 0.0
      %9883 = vmatpush.msra.mxu0 0.0
      %9884 = vmatpush.msra.mxu0 %v9489
      %9885 = vmatpush.msra.mxu0 %v9488
      %9886 = vmatpush.msra.mxu0 %v9487
      %9887 = vmatpush.msra.mxu0 %v9486
      %9888 = vmatmul.f32.gmra.mxu0 %v9765
      %v9889 = vpop.f32.mrf.mxu0
      %v9890 = vadd.f32 %v9657, %v9889
      %9891 = vmatmul.f32.gmra.mxu0 %v9768
      %v9892 = vpop.f32.mrf.mxu0
      %v9893 = vadd.f32 %v9660, %v9892
      %9894 = vmatmul.f32.gmra.mxu0 %v9771
      %v9895 = vpop.f32.mrf.mxu0
      %v9896 = vadd.f32 %v9663, %v9895
      %9897 = vmatmul.f32.gmra.mxu0 %v9774
      %v9898 = vpop.f32.mrf.mxu0
      %v9899 = vadd.f32 %v9666, %v9898
      %9900 = vmatmul.f32.gmra.mxu0 %v9777
      %v9901 = vpop.f32.mrf.mxu0
      %v9902 = vadd.f32 %v9669, %v9901
      %9903 = vmatmul.f32.gmra.mxu0 %v9780
      %v9904 = vpop.f32.mrf.mxu0
      %v9905 = vadd.f32 %v9672, %v9904
      %9906 = vmatmul.f32.gmra.mxu0 %v9783
      %v9907 = vpop.f32.mrf.mxu0
      %v9908 = vadd.f32 %v9675, %v9907
      %9909 = vmatmul.f32.gmra.mxu0 %v9786
      %v9910 = vpop.f32.mrf.mxu0
      %v9911 = vadd.f32 %v9678, %v9910
      %9912 = vmatmul.f32.gmra.mxu0 %v9789
      %v9913 = vpop.f32.mrf.mxu0
      %v9914 = vadd.f32 %v9681, %v9913
      %9915 = vmatmul.f32.gmra.mxu0 %v9792
      %v9916 = vpop.f32.mrf.mxu0
      %v9917 = vadd.f32 %v9684, %v9916
      %9918 = vmatmul.f32.gmra.mxu0 %v9795
      %v9919 = vpop.f32.mrf.mxu0
      %v9920 = vadd.f32 %v9687, %v9919
      %9921 = vmatmul.f32.gmra.mxu0 %v9798
      %v9922 = vpop.f32.mrf.mxu0
      %v9923 = vadd.f32 %v9690, %v9922
      %9924 = vmatmul.f32.gmra.mxu0 %v9801
      %v9925 = vpop.f32.mrf.mxu0
      %v9926 = vadd.f32 %v9693, %v9925
      %9927 = vmatmul.f32.gmra.mxu0 %v9804
      %v9928 = vpop.f32.mrf.mxu0
      %v9929 = vadd.f32 %v9696, %v9928
      %9930 = vmatmul.f32.gmra.mxu0 %v9807
      %v9931 = vpop.f32.mrf.mxu0
      %v9932 = vadd.f32 %v9699, %v9931
      %9933 = vmatmul.f32.gmra.mxu0 %v9810
      %v9934 = vpop.f32.mrf.mxu0
      %v9935 = vadd.f32 %v9702, %v9934
      %9936 = vmatmul.f32.gmra.mxu0 %v9813
      %v9937 = vpop.f32.mrf.mxu0
      %v9938 = vadd.f32 %v9705, %v9937
      %9939 = vmatmul.f32.gmra.mxu0 %v9816
      %v9940 = vpop.f32.mrf.mxu0
      %v9941 = vadd.f32 %v9708, %v9940
      %9942 = vmatmul.f32.gmra.mxu0 %v9819
      %v9943 = vpop.f32.mrf.mxu0
      %v9944 = vadd.f32 %v9711, %v9943
      %9945 = vmatmul.f32.gmra.mxu0 %v9822
      %v9946 = vpop.f32.mrf.mxu0
      %v9947 = vadd.f32 %v9714, %v9946
      %9948 = vmatmul.f32.gmra.mxu0 %v9825
      %v9949 = vpop.f32.mrf.mxu0
      %v9950 = vadd.f32 %v9717, %v9949
      %9951 = vmatmul.f32.gmra.mxu0 %v9828
      %v9952 = vpop.f32.mrf.mxu0
      %v9953 = vadd.f32 %v9720, %v9952
      %9954 = vmatmul.f32.gmra.mxu0 %v9831
      %v9955 = vpop.f32.mrf.mxu0
      %v9956 = vadd.f32 %v9723, %v9955
      %9957 = vmatmul.f32.gmra.mxu0 %v9834
      %v9958 = vpop.f32.mrf.mxu0
      %v9959 = vadd.f32 %v9726, %v9958
      %9960 = vmatmul.f32.gmra.mxu0 %v9837
      %v9961 = vpop.f32.mrf.mxu0
      %v9962 = vadd.f32 %v9729, %v9961
      %9963 = vmatmul.f32.gmra.mxu0 %v9840
      %v9964 = vpop.f32.mrf.mxu0
      %v9965 = vadd.f32 %v9732, %v9964
      %9966 = vmatmul.f32.gmra.mxu0 %v9843
      %v9967 = vpop.f32.mrf.mxu0
      %v9968 = vadd.f32 %v9735, %v9967
      %9969 = vmatmul.f32.gmra.mxu0 %v9846
      %v9970 = vpop.f32.mrf.mxu0
      %v9971 = vadd.f32 %v9738, %v9970
      %9972 = vmatmul.f32.gmra.mxu0 %v9849
      %v9973 = vpop.f32.mrf.mxu0
      %v9974 = vadd.f32 %v9741, %v9973
      %9975 = vmatmul.f32.gmra.mxu0 %v9852
      %v9976 = vpop.f32.mrf.mxu0
      %v9977 = vadd.f32 %v9744, %v9976
      %9978 = vmatmul.f32.gmra.mxu0 %v9855
      %v9979 = vpop.f32.mrf.mxu0
      %v9980 = vadd.f32 %v9747, %v9979
      %9981 = vmatmul.f32.gmra.mxu0 %v9858
      %v9982 = vpop.f32.mrf.mxu0
      %v9983 = vadd.f32 %v9750, %v9982
      %9984 = vmatmul.f32.gmra.mxu0 %v9861
      %v9985 = vpop.f32.mrf.mxu0
      %v9986 = vadd.f32 %v9753, %v9985
      %9987 = vmatmul.f32.gmra.mxu0 %v9864
      %v9988 = vpop.f32.mrf.mxu0
      %v9989 = vadd.f32 %v9756, %v9988
      %9990 = vmatmul.f32.gmra.mxu0 %v9867
      %v9991 = vpop.f32.mrf.mxu0
      %v9992 = vadd.f32 %v9759, %v9991
      %9993 = vmatmul.f32.gmra.mxu0 %v9870
      %v9994 = vpop.f32.mrf.mxu0
      %v9995 = vadd.f32 %v9762, %v9994
      %9996 = vdwg.mxu0
      %v9997 = vld [vmem:[#allocation2 + $0x2] sm:$0xff]
      %v9998 = vld [vmem:[#allocation2 + $0xa] sm:$0xff]
      %v9999 = vld [vmem:[#allocation2 + $0x12] sm:$0xff]
      %v10000 = vld [vmem:[#allocation2 + $0x1a] sm:$0xff]
      %v10001 = vld [vmem:[#allocation2 + $0x22] sm:$0xff]
      %v10002 = vld [vmem:[#allocation2 + $0x2a] sm:$0xff]
      %v10003 = vld [vmem:[#allocation2 + $0x32] sm:$0xff]
      %v10004 = vld [vmem:[#allocation2 + $0x3a] sm:$0xff]
      %v10005 = vld [vmem:[#allocation2 + $0x42] sm:$0xff]
      %v10006 = vld [vmem:[#allocation2 + $0x4a] sm:$0xff]
      %v10007 = vld [vmem:[#allocation2 + $0x52] sm:$0xff]
      %v10008 = vld [vmem:[#allocation2 + $0x5a] sm:$0xff]
      %v10009 = vld [vmem:[#allocation2 + $0x62] sm:$0xff]
      %v10010 = vld [vmem:[#allocation2 + $0x6a] sm:$0xff]
      %v10011 = vld [vmem:[#allocation2 + $0x72] sm:$0xff]
      %v10012 = vld [vmem:[#allocation2 + $0x7a] sm:$0xff]
      %v10013 = vld [vmem:[#allocation2 + $0x82] sm:$0xff]
      %v10014 = vld [vmem:[#allocation2 + $0x8a] sm:$0xff]
      %v10015 = vld [vmem:[#allocation2 + $0x92] sm:$0xff]
      %v10016 = vld [vmem:[#allocation2 + $0x9a] sm:$0xff]
      %v10017 = vld [vmem:[#allocation2 + $0xa2] sm:$0xff]
      %v10018 = vld [vmem:[#allocation2 + $0xaa] sm:$0xff]
      %v10019 = vld [vmem:[#allocation2 + $0xb2] sm:$0xff]
      %v10020 = vld [vmem:[#allocation2 + $0xba] sm:$0xff]
      %v10021 = vld [vmem:[#allocation2 + $0xc2] sm:$0xff]
      %v10022 = vld [vmem:[#allocation2 + $0xca] sm:$0xff]
      %v10023 = vld [vmem:[#allocation2 + $0xd2] sm:$0xff]
      %v10024 = vld [vmem:[#allocation2 + $0xda] sm:$0xff]
      %v10025 = vld [vmem:[#allocation2 + $0xe2] sm:$0xff]
      %v10026 = vld [vmem:[#allocation2 + $0xea] sm:$0xff]
      %v10027 = vld [vmem:[#allocation2 + $0xf2] sm:$0xff]
      %v10028 = vld [vmem:[#allocation2 + $0xfa] sm:$0xff]
      %v10029 = vld [vmem:[#allocation2 + $0x102] sm:$0xff]
      %v10030 = vld [vmem:[#allocation2 + $0x10a] sm:$0xff]
      %v10031 = vld [vmem:[#allocation2 + $0x112] sm:$0xff]
      %v10032 = vld [vmem:[#allocation2 + $0x11a] sm:$0xff]
      %s10033 = scalar_lea.vmem %s8, 64
      %v10034 = vld [vmem:[%s10033] sm:$0xff]
      %v10035 = vld [vmem:[%s10033 + $0x8] sm:$0xff]
      %v10036 = vld [vmem:[%s10033 + $0x10] sm:$0xff]
      %v10037 = vld [vmem:[%s10033 + $0x18] sm:$0xff]
      %v10039 = vsel %vm439, %v9997, 0
      %v10042 = vsel %vm439, %v9998, 0
      %v10045 = vsel %vm439, %v9999, 0
      %v10048 = vsel %vm439, %v10000, 0
      %v10051 = vsel %vm439, %v10001, 0
      %v10054 = vsel %vm439, %v10002, 0
      %v10057 = vsel %vm439, %v10003, 0
      %v10060 = vsel %vm439, %v10004, 0
      %v10063 = vsel %vm439, %v10005, 0
      %v10066 = vsel %vm439, %v10006, 0
      %v10069 = vsel %vm439, %v10007, 0
      %v10072 = vsel %vm439, %v10008, 0
      %v10075 = vsel %vm439, %v10009, 0
      %v10078 = vsel %vm439, %v10010, 0
      %v10081 = vsel %vm439, %v10011, 0
      %v10084 = vsel %vm439, %v10012, 0
      %v10087 = vsel %vm439, %v10013, 0
      %v10090 = vsel %vm439, %v10014, 0
      %v10093 = vsel %vm439, %v10015, 0
      %v10096 = vsel %vm439, %v10016, 0
      %v10099 = vsel %vm439, %v10017, 0
      %v10102 = vsel %vm439, %v10018, 0
      %v10105 = vsel %vm439, %v10019, 0
      %v10108 = vsel %vm439, %v10020, 0
      %v10111 = vsel %vm439, %v10021, 0
      %v10114 = vsel %vm439, %v10022, 0
      %v10117 = vsel %vm439, %v10023, 0
      %v10120 = vsel %vm439, %v10024, 0
      %v10123 = vsel %vm439, %v10025, 0
      %v10126 = vsel %vm439, %v10026, 0
      %v10129 = vsel %vm439, %v10027, 0
      %v10132 = vsel %vm439, %v10028, 0
      %v10135 = vsel %vm439, %v10029, 0
      %v10138 = vsel %vm439, %v10030, 0
      %v10141 = vsel %vm439, %v10031, 0
      %v10144 = vsel %vm439, %v10032, 0
      %10146 = vmatpush.msra.mxu0 0.0
      %10147 = vmatpush.msra.mxu0 0.0
      %10148 = vmatpush.msra.mxu0 0.0
      %10149 = vmatpush.msra.mxu0 0.0
      %10150 = vmatpush.msra.mxu0 0.0
      %10151 = vmatpush.msra.mxu0 0.0
      %10152 = vmatpush.msra.mxu0 0.0
      %10153 = vmatpush.msra.mxu0 0.0
      %10154 = vmatpush.msra.mxu0 0.0
      %10155 = vmatpush.msra.mxu0 0.0
      %10156 = vmatpush.msra.mxu0 0.0
      %10157 = vmatpush.msra.mxu0 0.0
      %10158 = vmatpush.msra.mxu0 %v10037
      %10159 = vmatpush.msra.mxu0 %v10036
      %10160 = vmatpush.msra.mxu0 %v10035
      %10161 = vmatpush.msra.mxu0 %v10034
      %10162 = vmatmul.f32.gmra.mxu0 %v10039
      %v10163 = vpop.f32.mrf.mxu0
      %v10164 = vadd.f32 0.0, %v10163
      %10165 = vmatmul.f32.gmra.mxu0 %v10042
      %v10166 = vpop.f32.mrf.mxu0
      %v10167 = vadd.f32 0.0, %v10166
      %10168 = vmatmul.f32.gmra.mxu0 %v10045
      %v10169 = vpop.f32.mrf.mxu0
      %v10170 = vadd.f32 0.0, %v10169
      %10171 = vmatmul.f32.gmra.mxu0 %v10048
      %v10172 = vpop.f32.mrf.mxu0
      %v10173 = vadd.f32 0.0, %v10172
      %10174 = vmatmul.f32.gmra.mxu0 %v10051
      %v10175 = vpop.f32.mrf.mxu0
      %v10176 = vadd.f32 0.0, %v10175
      %10177 = vmatmul.f32.gmra.mxu0 %v10054
      %v10178 = vpop.f32.mrf.mxu0
      %v10179 = vadd.f32 0.0, %v10178
      %10180 = vmatmul.f32.gmra.mxu0 %v10057
      %v10181 = vpop.f32.mrf.mxu0
      %v10182 = vadd.f32 0.0, %v10181
      %10183 = vmatmul.f32.gmra.mxu0 %v10060
      %v10184 = vpop.f32.mrf.mxu0
      %v10185 = vadd.f32 0.0, %v10184
      %10186 = vmatmul.f32.gmra.mxu0 %v10063
      %v10187 = vpop.f32.mrf.mxu0
      %v10188 = vadd.f32 0.0, %v10187
      %10189 = vmatmul.f32.gmra.mxu0 %v10066
      %v10190 = vpop.f32.mrf.mxu0
      %v10191 = vadd.f32 0.0, %v10190
      %10192 = vmatmul.f32.gmra.mxu0 %v10069
      %v10193 = vpop.f32.mrf.mxu0
      %v10194 = vadd.f32 0.0, %v10193
      %10195 = vmatmul.f32.gmra.mxu0 %v10072
      %v10196 = vpop.f32.mrf.mxu0
      %v10197 = vadd.f32 0.0, %v10196
      %10198 = vmatmul.f32.gmra.mxu0 %v10075
      %v10199 = vpop.f32.mrf.mxu0
      %v10200 = vadd.f32 0.0, %v10199
      %10201 = vmatmul.f32.gmra.mxu0 %v10078
      %v10202 = vpop.f32.mrf.mxu0
      %v10203 = vadd.f32 0.0, %v10202
      %10204 = vmatmul.f32.gmra.mxu0 %v10081
      %v10205 = vpop.f32.mrf.mxu0
      %v10206 = vadd.f32 0.0, %v10205
      %10207 = vmatmul.f32.gmra.mxu0 %v10084
      %v10208 = vpop.f32.mrf.mxu0
      %v10209 = vadd.f32 0.0, %v10208
      %10210 = vmatmul.f32.gmra.mxu0 %v10087
      %v10211 = vpop.f32.mrf.mxu0
      %v10212 = vadd.f32 0.0, %v10211
      %10213 = vmatmul.f32.gmra.mxu0 %v10090
      %v10214 = vpop.f32.mrf.mxu0
      %v10215 = vadd.f32 0.0, %v10214
      %10216 = vmatmul.f32.gmra.mxu0 %v10093
      %v10217 = vpop.f32.mrf.mxu0
      %v10218 = vadd.f32 0.0, %v10217
      %10219 = vmatmul.f32.gmra.mxu0 %v10096
      %v10220 = vpop.f32.mrf.mxu0
      %v10221 = vadd.f32 0.0, %v10220
      %10222 = vmatmul.f32.gmra.mxu0 %v10099
      %v10223 = vpop.f32.mrf.mxu0
      %v10224 = vadd.f32 0.0, %v10223
      %10225 = vmatmul.f32.gmra.mxu0 %v10102
      %v10226 = vpop.f32.mrf.mxu0
      %v10227 = vadd.f32 0.0, %v10226
      %10228 = vmatmul.f32.gmra.mxu0 %v10105
      %v10229 = vpop.f32.mrf.mxu0
      %v10230 = vadd.f32 0.0, %v10229
      %10231 = vmatmul.f32.gmra.mxu0 %v10108
      %v10232 = vpop.f32.mrf.mxu0
      %v10233 = vadd.f32 0.0, %v10232
      %10234 = vmatmul.f32.gmra.mxu0 %v10111
      %v10235 = vpop.f32.mrf.mxu0
      %v10236 = vadd.f32 0.0, %v10235
      %10237 = vmatmul.f32.gmra.mxu0 %v10114
      %v10238 = vpop.f32.mrf.mxu0
      %v10239 = vadd.f32 0.0, %v10238
      %10240 = vmatmul.f32.gmra.mxu0 %v10117
      %v10241 = vpop.f32.mrf.mxu0
      %v10242 = vadd.f32 0.0, %v10241
      %10243 = vmatmul.f32.gmra.mxu0 %v10120
      %v10244 = vpop.f32.mrf.mxu0
      %v10245 = vadd.f32 0.0, %v10244
      %10246 = vmatmul.f32.gmra.mxu0 %v10123
      %v10247 = vpop.f32.mrf.mxu0
      %v10248 = vadd.f32 0.0, %v10247
      %10249 = vmatmul.f32.gmra.mxu0 %v10126
      %v10250 = vpop.f32.mrf.mxu0
      %v10251 = vadd.f32 0.0, %v10250
      %10252 = vmatmul.f32.gmra.mxu0 %v10129
      %v10253 = vpop.f32.mrf.mxu0
      %v10254 = vadd.f32 0.0, %v10253
      %10255 = vmatmul.f32.gmra.mxu0 %v10132
      %v10256 = vpop.f32.mrf.mxu0
      %v10257 = vadd.f32 0.0, %v10256
      %10258 = vmatmul.f32.gmra.mxu0 %v10135
      %v10259 = vpop.f32.mrf.mxu0
      %v10260 = vadd.f32 0.0, %v10259
      %10261 = vmatmul.f32.gmra.mxu0 %v10138
      %v10262 = vpop.f32.mrf.mxu0
      %v10263 = vadd.f32 0.0, %v10262
      %10264 = vmatmul.f32.gmra.mxu0 %v10141
      %v10265 = vpop.f32.mrf.mxu0
      %v10266 = vadd.f32 0.0, %v10265
      %10267 = vmatmul.f32.gmra.mxu0 %v10144
      %v10268 = vpop.f32.mrf.mxu0
      %v10269 = vadd.f32 0.0, %v10268
      %10270 = vdwg.mxu0
      %v10271 = vadd.f32 %v9890, %v10164
      %v10272 = vadd.f32 %v9893, %v10167
      %v10273 = vadd.f32 %v9896, %v10170
      %v10274 = vadd.f32 %v9899, %v10173
      %v10275 = vadd.f32 %v9902, %v10176
      %v10276 = vadd.f32 %v9905, %v10179
      %v10277 = vadd.f32 %v9908, %v10182
      %v10278 = vadd.f32 %v9911, %v10185
      %v10279 = vadd.f32 %v9914, %v10188
      %v10280 = vadd.f32 %v9917, %v10191
      %v10281 = vadd.f32 %v9920, %v10194
      %v10282 = vadd.f32 %v9923, %v10197
      %v10283 = vadd.f32 %v9926, %v10200
      %v10284 = vadd.f32 %v9929, %v10203
      %v10285 = vadd.f32 %v9932, %v10206
      %v10286 = vadd.f32 %v9935, %v10209
      %v10287 = vadd.f32 %v9938, %v10212
      %v10288 = vadd.f32 %v9941, %v10215
      %v10289 = vadd.f32 %v9944, %v10218
      %v10290 = vadd.f32 %v9947, %v10221
      %v10291 = vadd.f32 %v9950, %v10224
      %v10292 = vadd.f32 %v9953, %v10227
      %v10293 = vadd.f32 %v9956, %v10230
      %v10294 = vadd.f32 %v9959, %v10233
      %v10295 = vadd.f32 %v9962, %v10236
      %v10296 = vadd.f32 %v9965, %v10239
      %v10297 = vadd.f32 %v9968, %v10242
      %v10298 = vadd.f32 %v9971, %v10245
      %v10299 = vadd.f32 %v9974, %v10248
      %v10300 = vadd.f32 %v9977, %v10251
      %v10301 = vadd.f32 %v9980, %v10254
      %v10302 = vadd.f32 %v9983, %v10257
      %v10303 = vadd.f32 %v9986, %v10260
      %v10304 = vadd.f32 %v9989, %v10263
      %v10305 = vadd.f32 %v9992, %v10266
      %v10306 = vadd.f32 %v9995, %v10269
      %v10307 = vld [vmem:[#allocation2 + $0x12] sm:$0xff]
      %v10308 = vld [vmem:[#allocation2 + $0x1a] sm:$0xff]
      %v10309 = vld [vmem:[#allocation2 + $0x22] sm:$0xff]
      %v10310 = vld [vmem:[#allocation2 + $0x2a] sm:$0xff]
      %v10311 = vld [vmem:[#allocation2 + $0x32] sm:$0xff]
      %v10312 = vld [vmem:[#allocation2 + $0x3a] sm:$0xff]
      %v10313 = vld [vmem:[#allocation2 + $0x42] sm:$0xff]
      %v10314 = vld [vmem:[#allocation2 + $0x4a] sm:$0xff]
      %v10315 = vld [vmem:[#allocation2 + $0x52] sm:$0xff]
      %v10316 = vld [vmem:[#allocation2 + $0x5a] sm:$0xff]
      %v10317 = vld [vmem:[#allocation2 + $0x62] sm:$0xff]
      %v10318 = vld [vmem:[#allocation2 + $0x6a] sm:$0xff]
      %v10319 = vld [vmem:[#allocation2 + $0x72] sm:$0xff]
      %v10320 = vld [vmem:[#allocation2 + $0x7a] sm:$0xff]
      %v10321 = vld [vmem:[#allocation2 + $0x82] sm:$0xff]
      %v10322 = vld [vmem:[#allocation2 + $0x8a] sm:$0xff]
      %v10323 = vld [vmem:[#allocation2 + $0x92] sm:$0xff]
      %v10324 = vld [vmem:[#allocation2 + $0x9a] sm:$0xff]
      %v10325 = vld [vmem:[#allocation2 + $0xa2] sm:$0xff]
      %v10326 = vld [vmem:[#allocation2 + $0xaa] sm:$0xff]
      %v10327 = vld [vmem:[#allocation2 + $0xb2] sm:$0xff]
      %v10328 = vld [vmem:[#allocation2 + $0xba] sm:$0xff]
      %v10329 = vld [vmem:[#allocation2 + $0xc2] sm:$0xff]
      %v10330 = vld [vmem:[#allocation2 + $0xca] sm:$0xff]
      %v10331 = vld [vmem:[#allocation2 + $0xd2] sm:$0xff]
      %v10332 = vld [vmem:[#allocation2 + $0xda] sm:$0xff]
      %v10333 = vld [vmem:[#allocation2 + $0xe2] sm:$0xff]
      %v10334 = vld [vmem:[#allocation2 + $0xea] sm:$0xff]
      %v10335 = vld [vmem:[#allocation2 + $0xf2] sm:$0xff]
      %v10336 = vld [vmem:[#allocation2 + $0xfa] sm:$0xff]
      %v10337 = vld [vmem:[#allocation2 + $0x102] sm:$0xff]
      %v10338 = vld [vmem:[#allocation2 + $0x10a] sm:$0xff]
      %v10339 = vld [vmem:[#allocation2 + $0x112] sm:$0xff]
      %v10340 = vld [vmem:[#allocation2 + $0x11a] sm:$0xff]
      %v10341 = vld [vmem:[#allocation2 + $0x122] sm:$0xff]
      %v10342 = vld [vmem:[#allocation2 + $0x12a] sm:$0xff]
      %s10343 = scalar_lea.vmem %s8, 96
      %v10344 = vld [vmem:[%s10343] sm:$0xff]
      %v10345 = vld [vmem:[%s10343 + $0x8] sm:$0xff]
      %v10346 = vld [vmem:[%s10343 + $0x10] sm:$0xff]
      %v10347 = vld [vmem:[%s10343 + $0x18] sm:$0xff]
      %v10349 = vsel %vm439, %v10307, 0
      %v10352 = vsel %vm439, %v10308, 0
      %v10355 = vsel %vm439, %v10309, 0
      %v10358 = vsel %vm439, %v10310, 0
      %v10361 = vsel %vm439, %v10311, 0
      %v10364 = vsel %vm439, %v10312, 0
      %v10367 = vsel %vm439, %v10313, 0
      %v10370 = vsel %vm439, %v10314, 0
      %v10373 = vsel %vm439, %v10315, 0
      %v10376 = vsel %vm439, %v10316, 0
      %v10379 = vsel %vm439, %v10317, 0
      %v10382 = vsel %vm439, %v10318, 0
      %v10385 = vsel %vm439, %v10319, 0
      %v10388 = vsel %vm439, %v10320, 0
      %v10391 = vsel %vm439, %v10321, 0
      %v10394 = vsel %vm439, %v10322, 0
      %v10397 = vsel %vm439, %v10323, 0
      %v10400 = vsel %vm439, %v10324, 0
      %v10403 = vsel %vm439, %v10325, 0
      %v10406 = vsel %vm439, %v10326, 0
      %v10409 = vsel %vm439, %v10327, 0
      %v10412 = vsel %vm439, %v10328, 0
      %v10415 = vsel %vm439, %v10329, 0
      %v10418 = vsel %vm439, %v10330, 0
      %v10421 = vsel %vm439, %v10331, 0
      %v10424 = vsel %vm439, %v10332, 0
      %v10427 = vsel %vm439, %v10333, 0
      %v10430 = vsel %vm439, %v10334, 0
      %v10433 = vsel %vm439, %v10335, 0
      %v10436 = vsel %vm439, %v10336, 0
      %v10439 = vsel %vm439, %v10337, 0
      %v10442 = vsel %vm439, %v10338, 0
      %v10445 = vsel %vm439, %v10339, 0
      %v10448 = vsel %vm439, %v10340, 0
      %v10451 = vsel %vm439, %v10341, 0
      %v10454 = vsel %vm439, %v10342, 0
      %10456 = vmatpush.msra.mxu0 0.0
      %10457 = vmatpush.msra.mxu0 0.0
      %10458 = vmatpush.msra.mxu0 0.0
      %10459 = vmatpush.msra.mxu0 0.0
      %10460 = vmatpush.msra.mxu0 0.0
      %10461 = vmatpush.msra.mxu0 0.0
      %10462 = vmatpush.msra.mxu0 0.0
      %10463 = vmatpush.msra.mxu0 0.0
      %10464 = vmatpush.msra.mxu0 0.0
      %10465 = vmatpush.msra.mxu0 0.0
      %10466 = vmatpush.msra.mxu0 0.0
      %10467 = vmatpush.msra.mxu0 0.0
      %10468 = vmatpush.msra.mxu0 %v10347
      %10469 = vmatpush.msra.mxu0 %v10346
      %10470 = vmatpush.msra.mxu0 %v10345
      %10471 = vmatpush.msra.mxu0 %v10344
      %10472 = vmatmul.f32.gmra.mxu0 %v10349
      %v10473 = vpop.f32.mrf.mxu0
      %v10474 = vadd.f32 0.0, %v10473
      %10475 = vmatmul.f32.gmra.mxu0 %v10352
      %v10476 = vpop.f32.mrf.mxu0
      %v10477 = vadd.f32 0.0, %v10476
      %10478 = vmatmul.f32.gmra.mxu0 %v10355
      %v10479 = vpop.f32.mrf.mxu0
      %v10480 = vadd.f32 0.0, %v10479
      %10481 = vmatmul.f32.gmra.mxu0 %v10358
      %v10482 = vpop.f32.mrf.mxu0
      %v10483 = vadd.f32 0.0, %v10482
      %10484 = vmatmul.f32.gmra.mxu0 %v10361
      %v10485 = vpop.f32.mrf.mxu0
      %v10486 = vadd.f32 0.0, %v10485
      %10487 = vmatmul.f32.gmra.mxu0 %v10364
      %v10488 = vpop.f32.mrf.mxu0
      %v10489 = vadd.f32 0.0, %v10488
      %10490 = vmatmul.f32.gmra.mxu0 %v10367
      %v10491 = vpop.f32.mrf.mxu0
      %v10492 = vadd.f32 0.0, %v10491
      %10493 = vmatmul.f32.gmra.mxu0 %v10370
      %v10494 = vpop.f32.mrf.mxu0
      %v10495 = vadd.f32 0.0, %v10494
      %10496 = vmatmul.f32.gmra.mxu0 %v10373
      %v10497 = vpop.f32.mrf.mxu0
      %v10498 = vadd.f32 0.0, %v10497
      %10499 = vmatmul.f32.gmra.mxu0 %v10376
      %v10500 = vpop.f32.mrf.mxu0
      %v10501 = vadd.f32 0.0, %v10500
      %10502 = vmatmul.f32.gmra.mxu0 %v10379
      %v10503 = vpop.f32.mrf.mxu0
      %v10504 = vadd.f32 0.0, %v10503
      %10505 = vmatmul.f32.gmra.mxu0 %v10382
      %v10506 = vpop.f32.mrf.mxu0
      %v10507 = vadd.f32 0.0, %v10506
      %10508 = vmatmul.f32.gmra.mxu0 %v10385
      %v10509 = vpop.f32.mrf.mxu0
      %v10510 = vadd.f32 0.0, %v10509
      %10511 = vmatmul.f32.gmra.mxu0 %v10388
      %v10512 = vpop.f32.mrf.mxu0
      %v10513 = vadd.f32 0.0, %v10512
      %10514 = vmatmul.f32.gmra.mxu0 %v10391
      %v10515 = vpop.f32.mrf.mxu0
      %v10516 = vadd.f32 0.0, %v10515
      %10517 = vmatmul.f32.gmra.mxu0 %v10394
      %v10518 = vpop.f32.mrf.mxu0
      %v10519 = vadd.f32 0.0, %v10518
      %10520 = vmatmul.f32.gmra.mxu0 %v10397
      %v10521 = vpop.f32.mrf.mxu0
      %v10522 = vadd.f32 0.0, %v10521
      %10523 = vmatmul.f32.gmra.mxu0 %v10400
      %v10524 = vpop.f32.mrf.mxu0
      %v10525 = vadd.f32 0.0, %v10524
      %10526 = vmatmul.f32.gmra.mxu0 %v10403
      %v10527 = vpop.f32.mrf.mxu0
      %v10528 = vadd.f32 0.0, %v10527
      %10529 = vmatmul.f32.gmra.mxu0 %v10406
      %v10530 = vpop.f32.mrf.mxu0
      %v10531 = vadd.f32 0.0, %v10530
      %10532 = vmatmul.f32.gmra.mxu0 %v10409
      %v10533 = vpop.f32.mrf.mxu0
      %v10534 = vadd.f32 0.0, %v10533
      %10535 = vmatmul.f32.gmra.mxu0 %v10412
      %v10536 = vpop.f32.mrf.mxu0
      %v10537 = vadd.f32 0.0, %v10536
      %10538 = vmatmul.f32.gmra.mxu0 %v10415
      %v10539 = vpop.f32.mrf.mxu0
      %v10540 = vadd.f32 0.0, %v10539
      %10541 = vmatmul.f32.gmra.mxu0 %v10418
      %v10542 = vpop.f32.mrf.mxu0
      %v10543 = vadd.f32 0.0, %v10542
      %10544 = vmatmul.f32.gmra.mxu0 %v10421
      %v10545 = vpop.f32.mrf.mxu0
      %v10546 = vadd.f32 0.0, %v10545
      %10547 = vmatmul.f32.gmra.mxu0 %v10424
      %v10548 = vpop.f32.mrf.mxu0
      %v10549 = vadd.f32 0.0, %v10548
      %10550 = vmatmul.f32.gmra.mxu0 %v10427
      %v10551 = vpop.f32.mrf.mxu0
      %v10552 = vadd.f32 0.0, %v10551
      %10553 = vmatmul.f32.gmra.mxu0 %v10430
      %v10554 = vpop.f32.mrf.mxu0
      %v10555 = vadd.f32 0.0, %v10554
      %10556 = vmatmul.f32.gmra.mxu0 %v10433
      %v10557 = vpop.f32.mrf.mxu0
      %v10558 = vadd.f32 0.0, %v10557
      %10559 = vmatmul.f32.gmra.mxu0 %v10436
      %v10560 = vpop.f32.mrf.mxu0
      %v10561 = vadd.f32 0.0, %v10560
      %10562 = vmatmul.f32.gmra.mxu0 %v10439
      %v10563 = vpop.f32.mrf.mxu0
      %v10564 = vadd.f32 0.0, %v10563
      %10565 = vmatmul.f32.gmra.mxu0 %v10442
      %v10566 = vpop.f32.mrf.mxu0
      %v10567 = vadd.f32 0.0, %v10566
      %10568 = vmatmul.f32.gmra.mxu0 %v10445
      %v10569 = vpop.f32.mrf.mxu0
      %v10570 = vadd.f32 0.0, %v10569
      %10571 = vmatmul.f32.gmra.mxu0 %v10448
      %v10572 = vpop.f32.mrf.mxu0
      %v10573 = vadd.f32 0.0, %v10572
      %10574 = vmatmul.f32.gmra.mxu0 %v10451
      %v10575 = vpop.f32.mrf.mxu0
      %v10576 = vadd.f32 0.0, %v10575
      %10577 = vmatmul.f32.gmra.mxu0 %v10454
      %v10578 = vpop.f32.mrf.mxu0
      %v10579 = vadd.f32 0.0, %v10578
      %10580 = vdwg.mxu0
      %v10581 = vadd.f32 %v10271, %v10474
      %v10582 = vadd.f32 %v10272, %v10477
      %v10583 = vadd.f32 %v10273, %v10480
      %v10584 = vadd.f32 %v10274, %v10483
      %v10585 = vadd.f32 %v10275, %v10486
      %v10586 = vadd.f32 %v10276, %v10489
      %v10587 = vadd.f32 %v10277, %v10492
      %v10588 = vadd.f32 %v10278, %v10495
      %v10589 = vadd.f32 %v10279, %v10498
      %v10590 = vadd.f32 %v10280, %v10501
      %v10591 = vadd.f32 %v10281, %v10504
      %v10592 = vadd.f32 %v10282, %v10507
      %v10593 = vadd.f32 %v10283, %v10510
      %v10594 = vadd.f32 %v10284, %v10513
      %v10595 = vadd.f32 %v10285, %v10516
      %v10596 = vadd.f32 %v10286, %v10519
      %v10597 = vadd.f32 %v10287, %v10522
      %v10598 = vadd.f32 %v10288, %v10525
      %v10599 = vadd.f32 %v10289, %v10528
      %v10600 = vadd.f32 %v10290, %v10531
      %v10601 = vadd.f32 %v10291, %v10534
      %v10602 = vadd.f32 %v10292, %v10537
      %v10603 = vadd.f32 %v10293, %v10540
      %v10604 = vadd.f32 %v10294, %v10543
      %v10605 = vadd.f32 %v10295, %v10546
      %v10606 = vadd.f32 %v10296, %v10549
      %v10607 = vadd.f32 %v10297, %v10552
      %v10608 = vadd.f32 %v10298, %v10555
      %v10609 = vadd.f32 %v10299, %v10558
      %v10610 = vadd.f32 %v10300, %v10561
      %v10611 = vadd.f32 %v10301, %v10564
      %v10612 = vadd.f32 %v10302, %v10567
      %v10613 = vadd.f32 %v10303, %v10570
      %v10614 = vadd.f32 %v10304, %v10573
      %v10615 = vadd.f32 %v10305, %v10576
      %v10616 = vadd.f32 %v10306, %v10579
      %v10617 = vld [vmem:[#allocation2 + $0x13] sm:$0xff]
      %v10618 = vld [vmem:[#allocation2 + $0x1b] sm:$0xff]
      %v10619 = vld [vmem:[#allocation2 + $0x23] sm:$0xff]
      %v10620 = vld [vmem:[#allocation2 + $0x2b] sm:$0xff]
      %v10621 = vld [vmem:[#allocation2 + $0x33] sm:$0xff]
      %v10622 = vld [vmem:[#allocation2 + $0x3b] sm:$0xff]
      %v10623 = vld [vmem:[#allocation2 + $0x43] sm:$0xff]
      %v10624 = vld [vmem:[#allocation2 + $0x4b] sm:$0xff]
      %v10625 = vld [vmem:[#allocation2 + $0x53] sm:$0xff]
      %v10626 = vld [vmem:[#allocation2 + $0x5b] sm:$0xff]
      %v10627 = vld [vmem:[#allocation2 + $0x63] sm:$0xff]
      %v10628 = vld [vmem:[#allocation2 + $0x6b] sm:$0xff]
      %v10629 = vld [vmem:[#allocation2 + $0x73] sm:$0xff]
      %v10630 = vld [vmem:[#allocation2 + $0x7b] sm:$0xff]
      %v10631 = vld [vmem:[#allocation2 + $0x83] sm:$0xff]
      %v10632 = vld [vmem:[#allocation2 + $0x8b] sm:$0xff]
      %v10633 = vld [vmem:[#allocation2 + $0x93] sm:$0xff]
      %v10634 = vld [vmem:[#allocation2 + $0x9b] sm:$0xff]
      %v10635 = vld [vmem:[#allocation2 + $0xa3] sm:$0xff]
      %v10636 = vld [vmem:[#allocation2 + $0xab] sm:$0xff]
      %v10637 = vld [vmem:[#allocation2 + $0xb3] sm:$0xff]
      %v10638 = vld [vmem:[#allocation2 + $0xbb] sm:$0xff]
      %v10639 = vld [vmem:[#allocation2 + $0xc3] sm:$0xff]
      %v10640 = vld [vmem:[#allocation2 + $0xcb] sm:$0xff]
      %v10641 = vld [vmem:[#allocation2 + $0xd3] sm:$0xff]
      %v10642 = vld [vmem:[#allocation2 + $0xdb] sm:$0xff]
      %v10643 = vld [vmem:[#allocation2 + $0xe3] sm:$0xff]
      %v10644 = vld [vmem:[#allocation2 + $0xeb] sm:$0xff]
      %v10645 = vld [vmem:[#allocation2 + $0xf3] sm:$0xff]
      %v10646 = vld [vmem:[#allocation2 + $0xfb] sm:$0xff]
      %v10647 = vld [vmem:[#allocation2 + $0x103] sm:$0xff]
      %v10648 = vld [vmem:[#allocation2 + $0x10b] sm:$0xff]
      %v10649 = vld [vmem:[#allocation2 + $0x113] sm:$0xff]
      %v10650 = vld [vmem:[#allocation2 + $0x11b] sm:$0xff]
      %v10651 = vld [vmem:[#allocation2 + $0x123] sm:$0xff]
      %v10652 = vld [vmem:[#allocation2 + $0x12b] sm:$0xff]
      %s10653 = scalar_lea.vmem %s8, 128
      %v10654 = vld [vmem:[%s10653] sm:$0xff]
      %v10655 = vld [vmem:[%s10653 + $0x8] sm:$0xff]
      %v10656 = vld [vmem:[%s10653 + $0x10] sm:$0xff]
      %v10657 = vld [vmem:[%s10653 + $0x18] sm:$0xff]
      %v10659 = vsel %vm439, %v10617, 0
      %v10662 = vsel %vm439, %v10618, 0
      %v10665 = vsel %vm439, %v10619, 0
      %v10668 = vsel %vm439, %v10620, 0
      %v10671 = vsel %vm439, %v10621, 0
      %v10674 = vsel %vm439, %v10622, 0
      %v10677 = vsel %vm439, %v10623, 0
      %v10680 = vsel %vm439, %v10624, 0
      %v10683 = vsel %vm439, %v10625, 0
      %v10686 = vsel %vm439, %v10626, 0
      %v10689 = vsel %vm439, %v10627, 0
      %v10692 = vsel %vm439, %v10628, 0
      %v10695 = vsel %vm439, %v10629, 0
      %v10698 = vsel %vm439, %v10630, 0
      %v10701 = vsel %vm439, %v10631, 0
      %v10704 = vsel %vm439, %v10632, 0
      %v10707 = vsel %vm439, %v10633, 0
      %v10710 = vsel %vm439, %v10634, 0
      %v10713 = vsel %vm439, %v10635, 0
      %v10716 = vsel %vm439, %v10636, 0
      %v10719 = vsel %vm439, %v10637, 0
      %v10722 = vsel %vm439, %v10638, 0
      %v10725 = vsel %vm439, %v10639, 0
      %v10728 = vsel %vm439, %v10640, 0
      %v10731 = vsel %vm439, %v10641, 0
      %v10734 = vsel %vm439, %v10642, 0
      %v10737 = vsel %vm439, %v10643, 0
      %v10740 = vsel %vm439, %v10644, 0
      %v10743 = vsel %vm439, %v10645, 0
      %v10746 = vsel %vm439, %v10646, 0
      %v10749 = vsel %vm439, %v10647, 0
      %v10752 = vsel %vm439, %v10648, 0
      %v10755 = vsel %vm439, %v10649, 0
      %v10758 = vsel %vm439, %v10650, 0
      %v10761 = vsel %vm439, %v10651, 0
      %v10764 = vsel %vm439, %v10652, 0
      %10766 = vmatpush.msra.mxu0 0.0
      %10767 = vmatpush.msra.mxu0 0.0
      %10768 = vmatpush.msra.mxu0 0.0
      %10769 = vmatpush.msra.mxu0 0.0
      %10770 = vmatpush.msra.mxu0 0.0
      %10771 = vmatpush.msra.mxu0 0.0
      %10772 = vmatpush.msra.mxu0 0.0
      %10773 = vmatpush.msra.mxu0 0.0
      %10774 = vmatpush.msra.mxu0 0.0
      %10775 = vmatpush.msra.mxu0 0.0
      %10776 = vmatpush.msra.mxu0 0.0
      %10777 = vmatpush.msra.mxu0 0.0
      %10778 = vmatpush.msra.mxu0 %v10657
      %10779 = vmatpush.msra.mxu0 %v10656
      %10780 = vmatpush.msra.mxu0 %v10655
      %10781 = vmatpush.msra.mxu0 %v10654
      %10782 = vmatmul.f32.gmra.mxu0 %v10659
      %v10783 = vpop.f32.mrf.mxu0
      %v10784 = vadd.f32 0.0, %v10783
      %10785 = vmatmul.f32.gmra.mxu0 %v10662
      %v10786 = vpop.f32.mrf.mxu0
      %v10787 = vadd.f32 0.0, %v10786
      %10788 = vmatmul.f32.gmra.mxu0 %v10665
      %v10789 = vpop.f32.mrf.mxu0
      %v10790 = vadd.f32 0.0, %v10789
      %10791 = vmatmul.f32.gmra.mxu0 %v10668
      %v10792 = vpop.f32.mrf.mxu0
      %v10793 = vadd.f32 0.0, %v10792
      %10794 = vmatmul.f32.gmra.mxu0 %v10671
      %v10795 = vpop.f32.mrf.mxu0
      %v10796 = vadd.f32 0.0, %v10795
      %10797 = vmatmul.f32.gmra.mxu0 %v10674
      %v10798 = vpop.f32.mrf.mxu0
      %v10799 = vadd.f32 0.0, %v10798
      %10800 = vmatmul.f32.gmra.mxu0 %v10677
      %v10801 = vpop.f32.mrf.mxu0
      %v10802 = vadd.f32 0.0, %v10801
      %10803 = vmatmul.f32.gmra.mxu0 %v10680
      %v10804 = vpop.f32.mrf.mxu0
      %v10805 = vadd.f32 0.0, %v10804
      %10806 = vmatmul.f32.gmra.mxu0 %v10683
      %v10807 = vpop.f32.mrf.mxu0
      %v10808 = vadd.f32 0.0, %v10807
      %10809 = vmatmul.f32.gmra.mxu0 %v10686
      %v10810 = vpop.f32.mrf.mxu0
      %v10811 = vadd.f32 0.0, %v10810
      %10812 = vmatmul.f32.gmra.mxu0 %v10689
      %v10813 = vpop.f32.mrf.mxu0
      %v10814 = vadd.f32 0.0, %v10813
      %10815 = vmatmul.f32.gmra.mxu0 %v10692
      %v10816 = vpop.f32.mrf.mxu0
      %v10817 = vadd.f32 0.0, %v10816
      %10818 = vmatmul.f32.gmra.mxu0 %v10695
      %v10819 = vpop.f32.mrf.mxu0
      %v10820 = vadd.f32 0.0, %v10819
      %10821 = vmatmul.f32.gmra.mxu0 %v10698
      %v10822 = vpop.f32.mrf.mxu0
      %v10823 = vadd.f32 0.0, %v10822
      %10824 = vmatmul.f32.gmra.mxu0 %v10701
      %v10825 = vpop.f32.mrf.mxu0
      %v10826 = vadd.f32 0.0, %v10825
      %10827 = vmatmul.f32.gmra.mxu0 %v10704
      %v10828 = vpop.f32.mrf.mxu0
      %v10829 = vadd.f32 0.0, %v10828
      %10830 = vmatmul.f32.gmra.mxu0 %v10707
      %v10831 = vpop.f32.mrf.mxu0
      %v10832 = vadd.f32 0.0, %v10831
      %10833 = vmatmul.f32.gmra.mxu0 %v10710
      %v10834 = vpop.f32.mrf.mxu0
      %v10835 = vadd.f32 0.0, %v10834
      %10836 = vmatmul.f32.gmra.mxu0 %v10713
      %v10837 = vpop.f32.mrf.mxu0
      %v10838 = vadd.f32 0.0, %v10837
      %10839 = vmatmul.f32.gmra.mxu0 %v10716
      %v10840 = vpop.f32.mrf.mxu0
      %v10841 = vadd.f32 0.0, %v10840
      %10842 = vmatmul.f32.gmra.mxu0 %v10719
      %v10843 = vpop.f32.mrf.mxu0
      %v10844 = vadd.f32 0.0, %v10843
      %10845 = vmatmul.f32.gmra.mxu0 %v10722
      %v10846 = vpop.f32.mrf.mxu0
      %v10847 = vadd.f32 0.0, %v10846
      %10848 = vmatmul.f32.gmra.mxu0 %v10725
      %v10849 = vpop.f32.mrf.mxu0
      %v10850 = vadd.f32 0.0, %v10849
      %10851 = vmatmul.f32.gmra.mxu0 %v10728
      %v10852 = vpop.f32.mrf.mxu0
      %v10853 = vadd.f32 0.0, %v10852
      %10854 = vmatmul.f32.gmra.mxu0 %v10731
      %v10855 = vpop.f32.mrf.mxu0
      %v10856 = vadd.f32 0.0, %v10855
      %10857 = vmatmul.f32.gmra.mxu0 %v10734
      %v10858 = vpop.f32.mrf.mxu0
      %v10859 = vadd.f32 0.0, %v10858
      %10860 = vmatmul.f32.gmra.mxu0 %v10737
      %v10861 = vpop.f32.mrf.mxu0
      %v10862 = vadd.f32 0.0, %v10861
      %10863 = vmatmul.f32.gmra.mxu0 %v10740
      %v10864 = vpop.f32.mrf.mxu0
      %v10865 = vadd.f32 0.0, %v10864
      %10866 = vmatmul.f32.gmra.mxu0 %v10743
      %v10867 = vpop.f32.mrf.mxu0
      %v10868 = vadd.f32 0.0, %v10867
      %10869 = vmatmul.f32.gmra.mxu0 %v10746
      %v10870 = vpop.f32.mrf.mxu0
      %v10871 = vadd.f32 0.0, %v10870
      %10872 = vmatmul.f32.gmra.mxu0 %v10749
      %v10873 = vpop.f32.mrf.mxu0
      %v10874 = vadd.f32 0.0, %v10873
      %10875 = vmatmul.f32.gmra.mxu0 %v10752
      %v10876 = vpop.f32.mrf.mxu0
      %v10877 = vadd.f32 0.0, %v10876
      %10878 = vmatmul.f32.gmra.mxu0 %v10755
      %v10879 = vpop.f32.mrf.mxu0
      %v10880 = vadd.f32 0.0, %v10879
      %10881 = vmatmul.f32.gmra.mxu0 %v10758
      %v10882 = vpop.f32.mrf.mxu0
      %v10883 = vadd.f32 0.0, %v10882
      %10884 = vmatmul.f32.gmra.mxu0 %v10761
      %v10885 = vpop.f32.mrf.mxu0
      %v10886 = vadd.f32 0.0, %v10885
      %10887 = vmatmul.f32.gmra.mxu0 %v10764
      %v10888 = vpop.f32.mrf.mxu0
      %v10889 = vadd.f32 0.0, %v10888
      %10890 = vdwg.mxu0
      %v10891 = vadd.f32 %v10581, %v10784
      %v10892 = vadd.f32 %v10582, %v10787
      %v10893 = vadd.f32 %v10583, %v10790
      %v10894 = vadd.f32 %v10584, %v10793
      %v10895 = vadd.f32 %v10585, %v10796
      %v10896 = vadd.f32 %v10586, %v10799
      %v10897 = vadd.f32 %v10587, %v10802
      %v10898 = vadd.f32 %v10588, %v10805
      %v10899 = vadd.f32 %v10589, %v10808
      %v10900 = vadd.f32 %v10590, %v10811
      %v10901 = vadd.f32 %v10591, %v10814
      %v10902 = vadd.f32 %v10592, %v10817
      %v10903 = vadd.f32 %v10593, %v10820
      %v10904 = vadd.f32 %v10594, %v10823
      %v10905 = vadd.f32 %v10595, %v10826
      %v10906 = vadd.f32 %v10596, %v10829
      %v10907 = vadd.f32 %v10597, %v10832
      %v10908 = vadd.f32 %v10598, %v10835
      %v10909 = vadd.f32 %v10599, %v10838
      %v10910 = vadd.f32 %v10600, %v10841
      %v10911 = vadd.f32 %v10601, %v10844
      %v10912 = vadd.f32 %v10602, %v10847
      %v10913 = vadd.f32 %v10603, %v10850
      %v10914 = vadd.f32 %v10604, %v10853
      %v10915 = vadd.f32 %v10605, %v10856
      %v10916 = vadd.f32 %v10606, %v10859
      %v10917 = vadd.f32 %v10607, %v10862
      %v10918 = vadd.f32 %v10608, %v10865
      %v10919 = vadd.f32 %v10609, %v10868
      %v10920 = vadd.f32 %v10610, %v10871
      %v10921 = vadd.f32 %v10611, %v10874
      %v10922 = vadd.f32 %v10612, %v10877
      %v10923 = vadd.f32 %v10613, %v10880
      %v10924 = vadd.f32 %v10614, %v10883
      %v10925 = vadd.f32 %v10615, %v10886
      %v10926 = vadd.f32 %v10616, %v10889
      %v10927 = vld [vmem:[#allocation2 + $0x14] sm:$0xff]
      %v10928 = vld [vmem:[#allocation2 + $0x1c] sm:$0xff]
      %v10929 = vld [vmem:[#allocation2 + $0x24] sm:$0xff]
      %v10930 = vld [vmem:[#allocation2 + $0x2c] sm:$0xff]
      %v10931 = vld [vmem:[#allocation2 + $0x34] sm:$0xff]
      %v10932 = vld [vmem:[#allocation2 + $0x3c] sm:$0xff]
      %v10933 = vld [vmem:[#allocation2 + $0x44] sm:$0xff]
      %v10934 = vld [vmem:[#allocation2 + $0x4c] sm:$0xff]
      %v10935 = vld [vmem:[#allocation2 + $0x54] sm:$0xff]
      %v10936 = vld [vmem:[#allocation2 + $0x5c] sm:$0xff]
      %v10937 = vld [vmem:[#allocation2 + $0x64] sm:$0xff]
      %v10938 = vld [vmem:[#allocation2 + $0x6c] sm:$0xff]
      %v10939 = vld [vmem:[#allocation2 + $0x74] sm:$0xff]
      %v10940 = vld [vmem:[#allocation2 + $0x7c] sm:$0xff]
      %v10941 = vld [vmem:[#allocation2 + $0x84] sm:$0xff]
      %v10942 = vld [vmem:[#allocation2 + $0x8c] sm:$0xff]
      %v10943 = vld [vmem:[#allocation2 + $0x94] sm:$0xff]
      %v10944 = vld [vmem:[#allocation2 + $0x9c] sm:$0xff]
      %v10945 = vld [vmem:[#allocation2 + $0xa4] sm:$0xff]
      %v10946 = vld [vmem:[#allocation2 + $0xac] sm:$0xff]
      %v10947 = vld [vmem:[#allocation2 + $0xb4] sm:$0xff]
      %v10948 = vld [vmem:[#allocation2 + $0xbc] sm:$0xff]
      %v10949 = vld [vmem:[#allocation2 + $0xc4] sm:$0xff]
      %v10950 = vld [vmem:[#allocation2 + $0xcc] sm:$0xff]
      %v10951 = vld [vmem:[#allocation2 + $0xd4] sm:$0xff]
      %v10952 = vld [vmem:[#allocation2 + $0xdc] sm:$0xff]
      %v10953 = vld [vmem:[#allocation2 + $0xe4] sm:$0xff]
      %v10954 = vld [vmem:[#allocation2 + $0xec] sm:$0xff]
      %v10955 = vld [vmem:[#allocation2 + $0xf4] sm:$0xff]
      %v10956 = vld [vmem:[#allocation2 + $0xfc] sm:$0xff]
      %v10957 = vld [vmem:[#allocation2 + $0x104] sm:$0xff]
      %v10958 = vld [vmem:[#allocation2 + $0x10c] sm:$0xff]
      %v10959 = vld [vmem:[#allocation2 + $0x114] sm:$0xff]
      %v10960 = vld [vmem:[#allocation2 + $0x11c] sm:$0xff]
      %v10961 = vld [vmem:[#allocation2 + $0x124] sm:$0xff]
      %v10962 = vld [vmem:[#allocation2 + $0x12c] sm:$0xff]
      %s10963 = scalar_lea.vmem %s8, 160
      %v10964 = vld [vmem:[%s10963] sm:$0xff]
      %v10965 = vld [vmem:[%s10963 + $0x8] sm:$0xff]
      %v10966 = vld [vmem:[%s10963 + $0x10] sm:$0xff]
      %v10967 = vld [vmem:[%s10963 + $0x18] sm:$0xff]
      %v10969 = vsel %vm439, %v10927, 0
      %v10972 = vsel %vm439, %v10928, 0
      %v10975 = vsel %vm439, %v10929, 0
      %v10978 = vsel %vm439, %v10930, 0
      %v10981 = vsel %vm439, %v10931, 0
      %v10984 = vsel %vm439, %v10932, 0
      %v10987 = vsel %vm439, %v10933, 0
      %v10990 = vsel %vm439, %v10934, 0
      %v10993 = vsel %vm439, %v10935, 0
      %v10996 = vsel %vm439, %v10936, 0
      %v10999 = vsel %vm439, %v10937, 0
      %v11002 = vsel %vm439, %v10938, 0
      %v11005 = vsel %vm439, %v10939, 0
      %v11008 = vsel %vm439, %v10940, 0
      %v11011 = vsel %vm439, %v10941, 0
      %v11014 = vsel %vm439, %v10942, 0
      %v11017 = vsel %vm439, %v10943, 0
      %v11020 = vsel %vm439, %v10944, 0
      %v11023 = vsel %vm439, %v10945, 0
      %v11026 = vsel %vm439, %v10946, 0
      %v11029 = vsel %vm439, %v10947, 0
      %v11032 = vsel %vm439, %v10948, 0
      %v11035 = vsel %vm439, %v10949, 0
      %v11038 = vsel %vm439, %v10950, 0
      %v11041 = vsel %vm439, %v10951, 0
      %v11044 = vsel %vm439, %v10952, 0
      %v11047 = vsel %vm439, %v10953, 0
      %v11050 = vsel %vm439, %v10954, 0
      %v11053 = vsel %vm439, %v10955, 0
      %v11056 = vsel %vm439, %v10956, 0
      %v11059 = vsel %vm439, %v10957, 0
      %v11062 = vsel %vm439, %v10958, 0
      %v11065 = vsel %vm439, %v10959, 0
      %v11068 = vsel %vm439, %v10960, 0
      %v11071 = vsel %vm439, %v10961, 0
      %v11074 = vsel %vm439, %v10962, 0
      %11076 = vmatpush.msra.mxu0 0.0
      %11077 = vmatpush.msra.mxu0 0.0
      %11078 = vmatpush.msra.mxu0 0.0
      %11079 = vmatpush.msra.mxu0 0.0
      %11080 = vmatpush.msra.mxu0 0.0
      %11081 = vmatpush.msra.mxu0 0.0
      %11082 = vmatpush.msra.mxu0 0.0
      %11083 = vmatpush.msra.mxu0 0.0
      %11084 = vmatpush.msra.mxu0 0.0
      %11085 = vmatpush.msra.mxu0 0.0
      %11086 = vmatpush.msra.mxu0 0.0
      %11087 = vmatpush.msra.mxu0 0.0
      %11088 = vmatpush.msra.mxu0 %v10967
      %11089 = vmatpush.msra.mxu0 %v10966
      %11090 = vmatpush.msra.mxu0 %v10965
      %11091 = vmatpush.msra.mxu0 %v10964
      %11092 = vmatmul.f32.gmra.mxu0 %v10969
      %v11093 = vpop.f32.mrf.mxu0
      %v11094 = vadd.f32 0.0, %v11093
      %11095 = vmatmul.f32.gmra.mxu0 %v10972
      %v11096 = vpop.f32.mrf.mxu0
      %v11097 = vadd.f32 0.0, %v11096
      %11098 = vmatmul.f32.gmra.mxu0 %v10975
      %v11099 = vpop.f32.mrf.mxu0
      %v11100 = vadd.f32 0.0, %v11099
      %11101 = vmatmul.f32.gmra.mxu0 %v10978
      %v11102 = vpop.f32.mrf.mxu0
      %v11103 = vadd.f32 0.0, %v11102
      %11104 = vmatmul.f32.gmra.mxu0 %v10981
      %v11105 = vpop.f32.mrf.mxu0
      %v11106 = vadd.f32 0.0, %v11105
      %11107 = vmatmul.f32.gmra.mxu0 %v10984
      %v11108 = vpop.f32.mrf.mxu0
      %v11109 = vadd.f32 0.0, %v11108
      %11110 = vmatmul.f32.gmra.mxu0 %v10987
      %v11111 = vpop.f32.mrf.mxu0
      %v11112 = vadd.f32 0.0, %v11111
      %11113 = vmatmul.f32.gmra.mxu0 %v10990
      %v11114 = vpop.f32.mrf.mxu0
      %v11115 = vadd.f32 0.0, %v11114
      %11116 = vmatmul.f32.gmra.mxu0 %v10993
      %v11117 = vpop.f32.mrf.mxu0
      %v11118 = vadd.f32 0.0, %v11117
      %11119 = vmatmul.f32.gmra.mxu0 %v10996
      %v11120 = vpop.f32.mrf.mxu0
      %v11121 = vadd.f32 0.0, %v11120
      %11122 = vmatmul.f32.gmra.mxu0 %v10999
      %v11123 = vpop.f32.mrf.mxu0
      %v11124 = vadd.f32 0.0, %v11123
      %11125 = vmatmul.f32.gmra.mxu0 %v11002
      %v11126 = vpop.f32.mrf.mxu0
      %v11127 = vadd.f32 0.0, %v11126
      %11128 = vmatmul.f32.gmra.mxu0 %v11005
      %v11129 = vpop.f32.mrf.mxu0
      %v11130 = vadd.f32 0.0, %v11129
      %11131 = vmatmul.f32.gmra.mxu0 %v11008
      %v11132 = vpop.f32.mrf.mxu0
      %v11133 = vadd.f32 0.0, %v11132
      %11134 = vmatmul.f32.gmra.mxu0 %v11011
      %v11135 = vpop.f32.mrf.mxu0
      %v11136 = vadd.f32 0.0, %v11135
      %11137 = vmatmul.f32.gmra.mxu0 %v11014
      %v11138 = vpop.f32.mrf.mxu0
      %v11139 = vadd.f32 0.0, %v11138
      %11140 = vmatmul.f32.gmra.mxu0 %v11017
      %v11141 = vpop.f32.mrf.mxu0
      %v11142 = vadd.f32 0.0, %v11141
      %11143 = vmatmul.f32.gmra.mxu0 %v11020
      %v11144 = vpop.f32.mrf.mxu0
      %v11145 = vadd.f32 0.0, %v11144
      %11146 = vmatmul.f32.gmra.mxu0 %v11023
      %v11147 = vpop.f32.mrf.mxu0
      %v11148 = vadd.f32 0.0, %v11147
      %11149 = vmatmul.f32.gmra.mxu0 %v11026
      %v11150 = vpop.f32.mrf.mxu0
      %v11151 = vadd.f32 0.0, %v11150
      %11152 = vmatmul.f32.gmra.mxu0 %v11029
      %v11153 = vpop.f32.mrf.mxu0
      %v11154 = vadd.f32 0.0, %v11153
      %11155 = vmatmul.f32.gmra.mxu0 %v11032
      %v11156 = vpop.f32.mrf.mxu0
      %v11157 = vadd.f32 0.0, %v11156
      %11158 = vmatmul.f32.gmra.mxu0 %v11035
      %v11159 = vpop.f32.mrf.mxu0
      %v11160 = vadd.f32 0.0, %v11159
      %11161 = vmatmul.f32.gmra.mxu0 %v11038
      %v11162 = vpop.f32.mrf.mxu0
      %v11163 = vadd.f32 0.0, %v11162
      %11164 = vmatmul.f32.gmra.mxu0 %v11041
      %v11165 = vpop.f32.mrf.mxu0
      %v11166 = vadd.f32 0.0, %v11165
      %11167 = vmatmul.f32.gmra.mxu0 %v11044
      %v11168 = vpop.f32.mrf.mxu0
      %v11169 = vadd.f32 0.0, %v11168
      %11170 = vmatmul.f32.gmra.mxu0 %v11047
      %v11171 = vpop.f32.mrf.mxu0
      %v11172 = vadd.f32 0.0, %v11171
      %11173 = vmatmul.f32.gmra.mxu0 %v11050
      %v11174 = vpop.f32.mrf.mxu0
      %v11175 = vadd.f32 0.0, %v11174
      %11176 = vmatmul.f32.gmra.mxu0 %v11053
      %v11177 = vpop.f32.mrf.mxu0
      %v11178 = vadd.f32 0.0, %v11177
      %11179 = vmatmul.f32.gmra.mxu0 %v11056
      %v11180 = vpop.f32.mrf.mxu0
      %v11181 = vadd.f32 0.0, %v11180
      %11182 = vmatmul.f32.gmra.mxu0 %v11059
      %v11183 = vpop.f32.mrf.mxu0
      %v11184 = vadd.f32 0.0, %v11183
      %11185 = vmatmul.f32.gmra.mxu0 %v11062
      %v11186 = vpop.f32.mrf.mxu0
      %v11187 = vadd.f32 0.0, %v11186
      %11188 = vmatmul.f32.gmra.mxu0 %v11065
      %v11189 = vpop.f32.mrf.mxu0
      %v11190 = vadd.f32 0.0, %v11189
      %11191 = vmatmul.f32.gmra.mxu0 %v11068
      %v11192 = vpop.f32.mrf.mxu0
      %v11193 = vadd.f32 0.0, %v11192
      %11194 = vmatmul.f32.gmra.mxu0 %v11071
      %v11195 = vpop.f32.mrf.mxu0
      %v11196 = vadd.f32 0.0, %v11195
      %11197 = vmatmul.f32.gmra.mxu0 %v11074
      %v11198 = vpop.f32.mrf.mxu0
      %v11199 = vadd.f32 0.0, %v11198
      %11200 = vdwg.mxu0
      %v11201 = vadd.f32 %v10891, %v11094
      %v11202 = vadd.f32 %v10892, %v11097
      %v11203 = vadd.f32 %v10893, %v11100
      %v11204 = vadd.f32 %v10894, %v11103
      %v11205 = vadd.f32 %v10895, %v11106
      %v11206 = vadd.f32 %v10896, %v11109
      %v11207 = vadd.f32 %v10897, %v11112
      %v11208 = vadd.f32 %v10898, %v11115
      %v11209 = vadd.f32 %v10899, %v11118
      %v11210 = vadd.f32 %v10900, %v11121
      %v11211 = vadd.f32 %v10901, %v11124
      %v11212 = vadd.f32 %v10902, %v11127
      %v11213 = vadd.f32 %v10903, %v11130
      %v11214 = vadd.f32 %v10904, %v11133
      %v11215 = vadd.f32 %v10905, %v11136
      %v11216 = vadd.f32 %v10906, %v11139
      %v11217 = vadd.f32 %v10907, %v11142
      %v11218 = vadd.f32 %v10908, %v11145
      %v11219 = vadd.f32 %v10909, %v11148
      %v11220 = vadd.f32 %v10910, %v11151
      %v11221 = vadd.f32 %v10911, %v11154
      %v11222 = vadd.f32 %v10912, %v11157
      %v11223 = vadd.f32 %v10913, %v11160
      %v11224 = vadd.f32 %v10914, %v11163
      %v11225 = vadd.f32 %v10915, %v11166
      %v11226 = vadd.f32 %v10916, %v11169
      %v11227 = vadd.f32 %v10917, %v11172
      %v11228 = vadd.f32 %v10918, %v11175
      %v11229 = vadd.f32 %v10919, %v11178
      %v11230 = vadd.f32 %v10920, %v11181
      %v11231 = vadd.f32 %v10921, %v11184
      %v11232 = vadd.f32 %v10922, %v11187
      %v11233 = vadd.f32 %v10923, %v11190
      %v11234 = vadd.f32 %v10924, %v11193
      %v11235 = vadd.f32 %v10925, %v11196
      %v11236 = vadd.f32 %v10926, %v11199
      %v11237 = vld [vmem:[#allocation2 + $0x24] sm:$0xff]
      %v11238 = vld [vmem:[#allocation2 + $0x2c] sm:$0xff]
      %v11239 = vld [vmem:[#allocation2 + $0x34] sm:$0xff]
      %v11240 = vld [vmem:[#allocation2 + $0x3c] sm:$0xff]
      %v11241 = vld [vmem:[#allocation2 + $0x44] sm:$0xff]
      %v11242 = vld [vmem:[#allocation2 + $0x4c] sm:$0xff]
      %v11243 = vld [vmem:[#allocation2 + $0x54] sm:$0xff]
      %v11244 = vld [vmem:[#allocation2 + $0x5c] sm:$0xff]
      %v11245 = vld [vmem:[#allocation2 + $0x64] sm:$0xff]
      %v11246 = vld [vmem:[#allocation2 + $0x6c] sm:$0xff]
      %v11247 = vld [vmem:[#allocation2 + $0x74] sm:$0xff]
      %v11248 = vld [vmem:[#allocation2 + $0x7c] sm:$0xff]
      %v11249 = vld [vmem:[#allocation2 + $0x84] sm:$0xff]
      %v11250 = vld [vmem:[#allocation2 + $0x8c] sm:$0xff]
      %v11251 = vld [vmem:[#allocation2 + $0x94] sm:$0xff]
      %v11252 = vld [vmem:[#allocation2 + $0x9c] sm:$0xff]
      %v11253 = vld [vmem:[#allocation2 + $0xa4] sm:$0xff]
      %v11254 = vld [vmem:[#allocation2 + $0xac] sm:$0xff]
      %v11255 = vld [vmem:[#allocation2 + $0xb4] sm:$0xff]
      %v11256 = vld [vmem:[#allocation2 + $0xbc] sm:$0xff]
      %v11257 = vld [vmem:[#allocation2 + $0xc4] sm:$0xff]
      %v11258 = vld [vmem:[#allocation2 + $0xcc] sm:$0xff]
      %v11259 = vld [vmem:[#allocation2 + $0xd4] sm:$0xff]
      %v11260 = vld [vmem:[#allocation2 + $0xdc] sm:$0xff]
      %v11261 = vld [vmem:[#allocation2 + $0xe4] sm:$0xff]
      %v11262 = vld [vmem:[#allocation2 + $0xec] sm:$0xff]
      %v11263 = vld [vmem:[#allocation2 + $0xf4] sm:$0xff]
      %v11264 = vld [vmem:[#allocation2 + $0xfc] sm:$0xff]
      %v11265 = vld [vmem:[#allocation2 + $0x104] sm:$0xff]
      %v11266 = vld [vmem:[#allocation2 + $0x10c] sm:$0xff]
      %v11267 = vld [vmem:[#allocation2 + $0x114] sm:$0xff]
      %v11268 = vld [vmem:[#allocation2 + $0x11c] sm:$0xff]
      %v11269 = vld [vmem:[#allocation2 + $0x124] sm:$0xff]
      %v11270 = vld [vmem:[#allocation2 + $0x12c] sm:$0xff]
      %v11271 = vld [vmem:[#allocation2 + $0x134] sm:$0xff]
      %v11272 = vld [vmem:[#allocation2 + $0x13c] sm:$0xff]
      %s11273 = scalar_lea.vmem %s8, 192
      %v11274 = vld [vmem:[%s11273] sm:$0xff]
      %v11275 = vld [vmem:[%s11273 + $0x8] sm:$0xff]
      %v11276 = vld [vmem:[%s11273 + $0x10] sm:$0xff]
      %v11277 = vld [vmem:[%s11273 + $0x18] sm:$0xff]
      %v11279 = vsel %vm439, %v11237, 0
      %v11282 = vsel %vm439, %v11238, 0
      %v11285 = vsel %vm439, %v11239, 0
      %v11288 = vsel %vm439, %v11240, 0
      %v11291 = vsel %vm439, %v11241, 0
      %v11294 = vsel %vm439, %v11242, 0
      %v11297 = vsel %vm439, %v11243, 0
      %v11300 = vsel %vm439, %v11244, 0
      %v11303 = vsel %vm439, %v11245, 0
      %v11306 = vsel %vm439, %v11246, 0
      %v11309 = vsel %vm439, %v11247, 0
      %v11312 = vsel %vm439, %v11248, 0
      %v11315 = vsel %vm439, %v11249, 0
      %v11318 = vsel %vm439, %v11250, 0
      %v11321 = vsel %vm439, %v11251, 0
      %v11324 = vsel %vm439, %v11252, 0
      %v11327 = vsel %vm439, %v11253, 0
      %v11330 = vsel %vm439, %v11254, 0
      %v11333 = vsel %vm439, %v11255, 0
      %v11336 = vsel %vm439, %v11256, 0
      %v11339 = vsel %vm439, %v11257, 0
      %v11342 = vsel %vm439, %v11258, 0
      %v11345 = vsel %vm439, %v11259, 0
      %v11348 = vsel %vm439, %v11260, 0
      %v11351 = vsel %vm439, %v11261, 0
      %v11354 = vsel %vm439, %v11262, 0
      %v11357 = vsel %vm439, %v11263, 0
      %v11360 = vsel %vm439, %v11264, 0
      %v11363 = vsel %vm439, %v11265, 0
      %v11366 = vsel %vm439, %v11266, 0
      %v11369 = vsel %vm439, %v11267, 0
      %v11372 = vsel %vm439, %v11268, 0
      %v11375 = vsel %vm439, %v11269, 0
      %v11378 = vsel %vm439, %v11270, 0
      %v11381 = vsel %vm439, %v11271, 0
      %v11384 = vsel %vm439, %v11272, 0
      %11386 = vmatpush.msra.mxu0 0.0
      %11387 = vmatpush.msra.mxu0 0.0
      %11388 = vmatpush.msra.mxu0 0.0
      %11389 = vmatpush.msra.mxu0 0.0
      %11390 = vmatpush.msra.mxu0 0.0
      %11391 = vmatpush.msra.mxu0 0.0
      %11392 = vmatpush.msra.mxu0 0.0
      %11393 = vmatpush.msra.mxu0 0.0
      %11394 = vmatpush.msra.mxu0 0.0
      %11395 = vmatpush.msra.mxu0 0.0
      %11396 = vmatpush.msra.mxu0 0.0
      %11397 = vmatpush.msra.mxu0 0.0
      %11398 = vmatpush.msra.mxu0 %v11277
      %11399 = vmatpush.msra.mxu0 %v11276
      %11400 = vmatpush.msra.mxu0 %v11275
      %11401 = vmatpush.msra.mxu0 %v11274
      %11402 = vmatmul.f32.gmra.mxu0 %v11279
      %v11403 = vpop.f32.mrf.mxu0
      %v11404 = vadd.f32 0.0, %v11403
      %11405 = vmatmul.f32.gmra.mxu0 %v11282
      %v11406 = vpop.f32.mrf.mxu0
      %v11407 = vadd.f32 0.0, %v11406
      %11408 = vmatmul.f32.gmra.mxu0 %v11285
      %v11409 = vpop.f32.mrf.mxu0
      %v11410 = vadd.f32 0.0, %v11409
      %11411 = vmatmul.f32.gmra.mxu0 %v11288
      %v11412 = vpop.f32.mrf.mxu0
      %v11413 = vadd.f32 0.0, %v11412
      %11414 = vmatmul.f32.gmra.mxu0 %v11291
      %v11415 = vpop.f32.mrf.mxu0
      %v11416 = vadd.f32 0.0, %v11415
      %11417 = vmatmul.f32.gmra.mxu0 %v11294
      %v11418 = vpop.f32.mrf.mxu0
      %v11419 = vadd.f32 0.0, %v11418
      %11420 = vmatmul.f32.gmra.mxu0 %v11297
      %v11421 = vpop.f32.mrf.mxu0
      %v11422 = vadd.f32 0.0, %v11421
      %11423 = vmatmul.f32.gmra.mxu0 %v11300
      %v11424 = vpop.f32.mrf.mxu0
      %v11425 = vadd.f32 0.0, %v11424
      %11426 = vmatmul.f32.gmra.mxu0 %v11303
      %v11427 = vpop.f32.mrf.mxu0
      %v11428 = vadd.f32 0.0, %v11427
      %11429 = vmatmul.f32.gmra.mxu0 %v11306
      %v11430 = vpop.f32.mrf.mxu0
      %v11431 = vadd.f32 0.0, %v11430
      %11432 = vmatmul.f32.gmra.mxu0 %v11309
      %v11433 = vpop.f32.mrf.mxu0
      %v11434 = vadd.f32 0.0, %v11433
      %11435 = vmatmul.f32.gmra.mxu0 %v11312
      %v11436 = vpop.f32.mrf.mxu0
      %v11437 = vadd.f32 0.0, %v11436
      %11438 = vmatmul.f32.gmra.mxu0 %v11315
      %v11439 = vpop.f32.mrf.mxu0
      %v11440 = vadd.f32 0.0, %v11439
      %11441 = vmatmul.f32.gmra.mxu0 %v11318
      %v11442 = vpop.f32.mrf.mxu0
      %v11443 = vadd.f32 0.0, %v11442
      %11444 = vmatmul.f32.gmra.mxu0 %v11321
      %v11445 = vpop.f32.mrf.mxu0
      %v11446 = vadd.f32 0.0, %v11445
      %11447 = vmatmul.f32.gmra.mxu0 %v11324
      %v11448 = vpop.f32.mrf.mxu0
      %v11449 = vadd.f32 0.0, %v11448
      %11450 = vmatmul.f32.gmra.mxu0 %v11327
      %v11451 = vpop.f32.mrf.mxu0
      %v11452 = vadd.f32 0.0, %v11451
      %11453 = vmatmul.f32.gmra.mxu0 %v11330
      %v11454 = vpop.f32.mrf.mxu0
      %v11455 = vadd.f32 0.0, %v11454
      %11456 = vmatmul.f32.gmra.mxu0 %v11333
      %v11457 = vpop.f32.mrf.mxu0
      %v11458 = vadd.f32 0.0, %v11457
      %11459 = vmatmul.f32.gmra.mxu0 %v11336
      %v11460 = vpop.f32.mrf.mxu0
      %v11461 = vadd.f32 0.0, %v11460
      %11462 = vmatmul.f32.gmra.mxu0 %v11339
      %v11463 = vpop.f32.mrf.mxu0
      %v11464 = vadd.f32 0.0, %v11463
      %11465 = vmatmul.f32.gmra.mxu0 %v11342
      %v11466 = vpop.f32.mrf.mxu0
      %v11467 = vadd.f32 0.0, %v11466
      %11468 = vmatmul.f32.gmra.mxu0 %v11345
      %v11469 = vpop.f32.mrf.mxu0
      %v11470 = vadd.f32 0.0, %v11469
      %11471 = vmatmul.f32.gmra.mxu0 %v11348
      %v11472 = vpop.f32.mrf.mxu0
      %v11473 = vadd.f32 0.0, %v11472
      %11474 = vmatmul.f32.gmra.mxu0 %v11351
      %v11475 = vpop.f32.mrf.mxu0
      %v11476 = vadd.f32 0.0, %v11475
      %11477 = vmatmul.f32.gmra.mxu0 %v11354
      %v11478 = vpop.f32.mrf.mxu0
      %v11479 = vadd.f32 0.0, %v11478
      %11480 = vmatmul.f32.gmra.mxu0 %v11357
      %v11481 = vpop.f32.mrf.mxu0
      %v11482 = vadd.f32 0.0, %v11481
      %11483 = vmatmul.f32.gmra.mxu0 %v11360
      %v11484 = vpop.f32.mrf.mxu0
      %v11485 = vadd.f32 0.0, %v11484
      %11486 = vmatmul.f32.gmra.mxu0 %v11363
      %v11487 = vpop.f32.mrf.mxu0
      %v11488 = vadd.f32 0.0, %v11487
      %11489 = vmatmul.f32.gmra.mxu0 %v11366
      %v11490 = vpop.f32.mrf.mxu0
      %v11491 = vadd.f32 0.0, %v11490
      %11492 = vmatmul.f32.gmra.mxu0 %v11369
      %v11493 = vpop.f32.mrf.mxu0
      %v11494 = vadd.f32 0.0, %v11493
      %11495 = vmatmul.f32.gmra.mxu0 %v11372
      %v11496 = vpop.f32.mrf.mxu0
      %v11497 = vadd.f32 0.0, %v11496
      %11498 = vmatmul.f32.gmra.mxu0 %v11375
      %v11499 = vpop.f32.mrf.mxu0
      %v11500 = vadd.f32 0.0, %v11499
      %11501 = vmatmul.f32.gmra.mxu0 %v11378
      %v11502 = vpop.f32.mrf.mxu0
      %v11503 = vadd.f32 0.0, %v11502
      %11504 = vmatmul.f32.gmra.mxu0 %v11381
      %v11505 = vpop.f32.mrf.mxu0
      %v11506 = vadd.f32 0.0, %v11505
      %11507 = vmatmul.f32.gmra.mxu0 %v11384
      %v11508 = vpop.f32.mrf.mxu0
      %v11509 = vadd.f32 0.0, %v11508
      %11510 = vdwg.mxu0
      %v11511 = vadd.f32 %v11201, %v11404
      %v11512 = vadd.f32 %v11202, %v11407
      %v11513 = vadd.f32 %v11203, %v11410
      %v11514 = vadd.f32 %v11204, %v11413
      %v11515 = vadd.f32 %v11205, %v11416
      %v11516 = vadd.f32 %v11206, %v11419
      %v11517 = vadd.f32 %v11207, %v11422
      %v11518 = vadd.f32 %v11208, %v11425
      %v11519 = vadd.f32 %v11209, %v11428
      %v11520 = vadd.f32 %v11210, %v11431
      %v11521 = vadd.f32 %v11211, %v11434
      %v11522 = vadd.f32 %v11212, %v11437
      %v11523 = vadd.f32 %v11213, %v11440
      %v11524 = vadd.f32 %v11214, %v11443
      %v11525 = vadd.f32 %v11215, %v11446
      %v11526 = vadd.f32 %v11216, %v11449
      %v11527 = vadd.f32 %v11217, %v11452
      %v11528 = vadd.f32 %v11218, %v11455
      %v11529 = vadd.f32 %v11219, %v11458
      %v11530 = vadd.f32 %v11220, %v11461
      %v11531 = vadd.f32 %v11221, %v11464
      %v11532 = vadd.f32 %v11222, %v11467
      %v11533 = vadd.f32 %v11223, %v11470
      %v11534 = vadd.f32 %v11224, %v11473
      %v11535 = vadd.f32 %v11225, %v11476
      %v11536 = vadd.f32 %v11226, %v11479
      %v11537 = vadd.f32 %v11227, %v11482
      %v11538 = vadd.f32 %v11228, %v11485
      %v11539 = vadd.f32 %v11229, %v11488
      %v11540 = vadd.f32 %v11230, %v11491
      %v11541 = vadd.f32 %v11231, %v11494
      %v11542 = vadd.f32 %v11232, %v11497
      %v11543 = vadd.f32 %v11233, %v11500
      %v11544 = vadd.f32 %v11234, %v11503
      %v11545 = vadd.f32 %v11235, %v11506
      %v11546 = vadd.f32 %v11236, %v11509
      %v11547 = vld [vmem:[#allocation2 + $0x25] sm:$0xff]
      %v11548 = vld [vmem:[#allocation2 + $0x2d] sm:$0xff]
      %v11549 = vld [vmem:[#allocation2 + $0x35] sm:$0xff]
      %v11550 = vld [vmem:[#allocation2 + $0x3d] sm:$0xff]
      %v11551 = vld [vmem:[#allocation2 + $0x45] sm:$0xff]
      %v11552 = vld [vmem:[#allocation2 + $0x4d] sm:$0xff]
      %v11553 = vld [vmem:[#allocation2 + $0x55] sm:$0xff]
      %v11554 = vld [vmem:[#allocation2 + $0x5d] sm:$0xff]
      %v11555 = vld [vmem:[#allocation2 + $0x65] sm:$0xff]
      %v11556 = vld [vmem:[#allocation2 + $0x6d] sm:$0xff]
      %v11557 = vld [vmem:[#allocation2 + $0x75] sm:$0xff]
      %v11558 = vld [vmem:[#allocation2 + $0x7d] sm:$0xff]
      %v11559 = vld [vmem:[#allocation2 + $0x85] sm:$0xff]
      %v11560 = vld [vmem:[#allocation2 + $0x8d] sm:$0xff]
      %v11561 = vld [vmem:[#allocation2 + $0x95] sm:$0xff]
      %v11562 = vld [vmem:[#allocation2 + $0x9d] sm:$0xff]
      %v11563 = vld [vmem:[#allocation2 + $0xa5] sm:$0xff]
      %v11564 = vld [vmem:[#allocation2 + $0xad] sm:$0xff]
      %v11565 = vld [vmem:[#allocation2 + $0xb5] sm:$0xff]
      %v11566 = vld [vmem:[#allocation2 + $0xbd] sm:$0xff]
      %v11567 = vld [vmem:[#allocation2 + $0xc5] sm:$0xff]
      %v11568 = vld [vmem:[#allocation2 + $0xcd] sm:$0xff]
      %v11569 = vld [vmem:[#allocation2 + $0xd5] sm:$0xff]
      %v11570 = vld [vmem:[#allocation2 + $0xdd] sm:$0xff]
      %v11571 = vld [vmem:[#allocation2 + $0xe5] sm:$0xff]
      %v11572 = vld [vmem:[#allocation2 + $0xed] sm:$0xff]
      %v11573 = vld [vmem:[#allocation2 + $0xf5] sm:$0xff]
      %v11574 = vld [vmem:[#allocation2 + $0xfd] sm:$0xff]
      %v11575 = vld [vmem:[#allocation2 + $0x105] sm:$0xff]
      %v11576 = vld [vmem:[#allocation2 + $0x10d] sm:$0xff]
      %v11577 = vld [vmem:[#allocation2 + $0x115] sm:$0xff]
      %v11578 = vld [vmem:[#allocation2 + $0x11d] sm:$0xff]
      %v11579 = vld [vmem:[#allocation2 + $0x125] sm:$0xff]
      %v11580 = vld [vmem:[#allocation2 + $0x12d] sm:$0xff]
      %v11581 = vld [vmem:[#allocation2 + $0x135] sm:$0xff]
      %v11582 = vld [vmem:[#allocation2 + $0x13d] sm:$0xff]
      %s11583 = scalar_lea.vmem %s8, 224
      %v11584 = vld [vmem:[%s11583] sm:$0xff]
      %v11585 = vld [vmem:[%s11583 + $0x8] sm:$0xff]
      %v11586 = vld [vmem:[%s11583 + $0x10] sm:$0xff]
      %v11587 = vld [vmem:[%s11583 + $0x18] sm:$0xff]
      %v11589 = vsel %vm439, %v11547, 0
      %v11592 = vsel %vm439, %v11548, 0
      %v11595 = vsel %vm439, %v11549, 0
      %v11598 = vsel %vm439, %v11550, 0
      %v11601 = vsel %vm439, %v11551, 0
      %v11604 = vsel %vm439, %v11552, 0
      %v11607 = vsel %vm439, %v11553, 0
      %v11610 = vsel %vm439, %v11554, 0
      %v11613 = vsel %vm439, %v11555, 0
      %v11616 = vsel %vm439, %v11556, 0
      %v11619 = vsel %vm439, %v11557, 0
      %v11622 = vsel %vm439, %v11558, 0
      %v11625 = vsel %vm439, %v11559, 0
      %v11628 = vsel %vm439, %v11560, 0
      %v11631 = vsel %vm439, %v11561, 0
      %v11634 = vsel %vm439, %v11562, 0
      %v11637 = vsel %vm439, %v11563, 0
      %v11640 = vsel %vm439, %v11564, 0
      %v11643 = vsel %vm439, %v11565, 0
      %v11646 = vsel %vm439, %v11566, 0
      %v11649 = vsel %vm439, %v11567, 0
      %v11652 = vsel %vm439, %v11568, 0
      %v11655 = vsel %vm439, %v11569, 0
      %v11658 = vsel %vm439, %v11570, 0
      %v11661 = vsel %vm439, %v11571, 0
      %v11664 = vsel %vm439, %v11572, 0
      %v11667 = vsel %vm439, %v11573, 0
      %v11670 = vsel %vm439, %v11574, 0
      %v11673 = vsel %vm439, %v11575, 0
      %v11676 = vsel %vm439, %v11576, 0
      %v11679 = vsel %vm439, %v11577, 0
      %v11682 = vsel %vm439, %v11578, 0
      %v11685 = vsel %vm439, %v11579, 0
      %v11688 = vsel %vm439, %v11580, 0
      %v11691 = vsel %vm439, %v11581, 0
      %v11694 = vsel %vm439, %v11582, 0
      %11696 = vmatpush.msra.mxu0 0.0
      %11697 = vmatpush.msra.mxu0 0.0
      %11698 = vmatpush.msra.mxu0 0.0
      %11699 = vmatpush.msra.mxu0 0.0
      %11700 = vmatpush.msra.mxu0 0.0
      %11701 = vmatpush.msra.mxu0 0.0
      %11702 = vmatpush.msra.mxu0 0.0
      %11703 = vmatpush.msra.mxu0 0.0
      %11704 = vmatpush.msra.mxu0 0.0
      %11705 = vmatpush.msra.mxu0 0.0
      %11706 = vmatpush.msra.mxu0 0.0
      %11707 = vmatpush.msra.mxu0 0.0
      %11708 = vmatpush.msra.mxu0 %v11587
      %11709 = vmatpush.msra.mxu0 %v11586
      %11710 = vmatpush.msra.mxu0 %v11585
      %11711 = vmatpush.msra.mxu0 %v11584
      %11712 = vmatmul.f32.gmra.mxu0 %v11589
      %v11713 = vpop.f32.mrf.mxu0
      %v11714 = vadd.f32 0.0, %v11713
      %11715 = vmatmul.f32.gmra.mxu0 %v11592
      %v11716 = vpop.f32.mrf.mxu0
      %v11717 = vadd.f32 0.0, %v11716
      %11718 = vmatmul.f32.gmra.mxu0 %v11595
      %v11719 = vpop.f32.mrf.mxu0
      %v11720 = vadd.f32 0.0, %v11719
      %11721 = vmatmul.f32.gmra.mxu0 %v11598
      %v11722 = vpop.f32.mrf.mxu0
      %v11723 = vadd.f32 0.0, %v11722
      %11724 = vmatmul.f32.gmra.mxu0 %v11601
      %v11725 = vpop.f32.mrf.mxu0
      %v11726 = vadd.f32 0.0, %v11725
      %11727 = vmatmul.f32.gmra.mxu0 %v11604
      %v11728 = vpop.f32.mrf.mxu0
      %v11729 = vadd.f32 0.0, %v11728
      %11730 = vmatmul.f32.gmra.mxu0 %v11607
      %v11731 = vpop.f32.mrf.mxu0
      %v11732 = vadd.f32 0.0, %v11731
      %11733 = vmatmul.f32.gmra.mxu0 %v11610
      %v11734 = vpop.f32.mrf.mxu0
      %v11735 = vadd.f32 0.0, %v11734
      %11736 = vmatmul.f32.gmra.mxu0 %v11613
      %v11737 = vpop.f32.mrf.mxu0
      %v11738 = vadd.f32 0.0, %v11737
      %11739 = vmatmul.f32.gmra.mxu0 %v11616
      %v11740 = vpop.f32.mrf.mxu0
      %v11741 = vadd.f32 0.0, %v11740
      %11742 = vmatmul.f32.gmra.mxu0 %v11619
      %v11743 = vpop.f32.mrf.mxu0
      %v11744 = vadd.f32 0.0, %v11743
      %11745 = vmatmul.f32.gmra.mxu0 %v11622
      %v11746 = vpop.f32.mrf.mxu0
      %v11747 = vadd.f32 0.0, %v11746
      %11748 = vmatmul.f32.gmra.mxu0 %v11625
      %v11749 = vpop.f32.mrf.mxu0
      %v11750 = vadd.f32 0.0, %v11749
      %11751 = vmatmul.f32.gmra.mxu0 %v11628
      %v11752 = vpop.f32.mrf.mxu0
      %v11753 = vadd.f32 0.0, %v11752
      %11754 = vmatmul.f32.gmra.mxu0 %v11631
      %v11755 = vpop.f32.mrf.mxu0
      %v11756 = vadd.f32 0.0, %v11755
      %11757 = vmatmul.f32.gmra.mxu0 %v11634
      %v11758 = vpop.f32.mrf.mxu0
      %v11759 = vadd.f32 0.0, %v11758
      %11760 = vmatmul.f32.gmra.mxu0 %v11637
      %v11761 = vpop.f32.mrf.mxu0
      %v11762 = vadd.f32 0.0, %v11761
      %11763 = vmatmul.f32.gmra.mxu0 %v11640
      %v11764 = vpop.f32.mrf.mxu0
      %v11765 = vadd.f32 0.0, %v11764
      %11766 = vmatmul.f32.gmra.mxu0 %v11643
      %v11767 = vpop.f32.mrf.mxu0
      %v11768 = vadd.f32 0.0, %v11767
      %11769 = vmatmul.f32.gmra.mxu0 %v11646
      %v11770 = vpop.f32.mrf.mxu0
      %v11771 = vadd.f32 0.0, %v11770
      %11772 = vmatmul.f32.gmra.mxu0 %v11649
      %v11773 = vpop.f32.mrf.mxu0
      %v11774 = vadd.f32 0.0, %v11773
      %11775 = vmatmul.f32.gmra.mxu0 %v11652
      %v11776 = vpop.f32.mrf.mxu0
      %v11777 = vadd.f32 0.0, %v11776
      %11778 = vmatmul.f32.gmra.mxu0 %v11655
      %v11779 = vpop.f32.mrf.mxu0
      %v11780 = vadd.f32 0.0, %v11779
      %11781 = vmatmul.f32.gmra.mxu0 %v11658
      %v11782 = vpop.f32.mrf.mxu0
      %v11783 = vadd.f32 0.0, %v11782
      %11784 = vmatmul.f32.gmra.mxu0 %v11661
      %v11785 = vpop.f32.mrf.mxu0
      %v11786 = vadd.f32 0.0, %v11785
      %11787 = vmatmul.f32.gmra.mxu0 %v11664
      %v11788 = vpop.f32.mrf.mxu0
      %v11789 = vadd.f32 0.0, %v11788
      %11790 = vmatmul.f32.gmra.mxu0 %v11667
      %v11791 = vpop.f32.mrf.mxu0
      %v11792 = vadd.f32 0.0, %v11791
      %11793 = vmatmul.f32.gmra.mxu0 %v11670
      %v11794 = vpop.f32.mrf.mxu0
      %v11795 = vadd.f32 0.0, %v11794
      %11796 = vmatmul.f32.gmra.mxu0 %v11673
      %v11797 = vpop.f32.mrf.mxu0
      %v11798 = vadd.f32 0.0, %v11797
      %11799 = vmatmul.f32.gmra.mxu0 %v11676
      %v11800 = vpop.f32.mrf.mxu0
      %v11801 = vadd.f32 0.0, %v11800
      %11802 = vmatmul.f32.gmra.mxu0 %v11679
      %v11803 = vpop.f32.mrf.mxu0
      %v11804 = vadd.f32 0.0, %v11803
      %11805 = vmatmul.f32.gmra.mxu0 %v11682
      %v11806 = vpop.f32.mrf.mxu0
      %v11807 = vadd.f32 0.0, %v11806
      %11808 = vmatmul.f32.gmra.mxu0 %v11685
      %v11809 = vpop.f32.mrf.mxu0
      %v11810 = vadd.f32 0.0, %v11809
      %11811 = vmatmul.f32.gmra.mxu0 %v11688
      %v11812 = vpop.f32.mrf.mxu0
      %v11813 = vadd.f32 0.0, %v11812
      %11814 = vmatmul.f32.gmra.mxu0 %v11691
      %v11815 = vpop.f32.mrf.mxu0
      %v11816 = vadd.f32 0.0, %v11815
      %11817 = vmatmul.f32.gmra.mxu0 %v11694
      %v11818 = vpop.f32.mrf.mxu0
      %v11819 = vadd.f32 0.0, %v11818
      %11820 = vdwg.mxu0
      %v11821 = vadd.f32 %v11511, %v11714
      %v11822 = vadd.f32 %v11512, %v11717
      %v11823 = vadd.f32 %v11513, %v11720
      %v11824 = vadd.f32 %v11514, %v11723
      %v11825 = vadd.f32 %v11515, %v11726
      %v11826 = vadd.f32 %v11516, %v11729
      %v11827 = vadd.f32 %v11517, %v11732
      %v11828 = vadd.f32 %v11518, %v11735
      %v11829 = vadd.f32 %v11519, %v11738
      %v11830 = vadd.f32 %v11520, %v11741
      %v11831 = vadd.f32 %v11521, %v11744
      %v11832 = vadd.f32 %v11522, %v11747
      %v11833 = vadd.f32 %v11523, %v11750
      %v11834 = vadd.f32 %v11524, %v11753
      %v11835 = vadd.f32 %v11525, %v11756
      %v11836 = vadd.f32 %v11526, %v11759
      %v11837 = vadd.f32 %v11527, %v11762
      %v11838 = vadd.f32 %v11528, %v11765
      %v11839 = vadd.f32 %v11529, %v11768
      %v11840 = vadd.f32 %v11530, %v11771
      %v11841 = vadd.f32 %v11531, %v11774
      %v11842 = vadd.f32 %v11532, %v11777
      %v11843 = vadd.f32 %v11533, %v11780
      %v11844 = vadd.f32 %v11534, %v11783
      %v11845 = vadd.f32 %v11535, %v11786
      %v11846 = vadd.f32 %v11536, %v11789
      %v11847 = vadd.f32 %v11537, %v11792
      %v11848 = vadd.f32 %v11538, %v11795
      %v11849 = vadd.f32 %v11539, %v11798
      %v11850 = vadd.f32 %v11540, %v11801
      %v11851 = vadd.f32 %v11541, %v11804
      %v11852 = vadd.f32 %v11542, %v11807
      %v11853 = vadd.f32 %v11543, %v11810
      %v11854 = vadd.f32 %v11544, %v11813
      %v11855 = vadd.f32 %v11545, %v11816
      %v11856 = vadd.f32 %v11546, %v11819
      %v11857 = vld [vmem:[#allocation2 + $0x26] sm:$0xff]
      %v11858 = vld [vmem:[#allocation2 + $0x2e] sm:$0xff]
      %v11859 = vld [vmem:[#allocation2 + $0x36] sm:$0xff]
      %v11860 = vld [vmem:[#allocation2 + $0x3e] sm:$0xff]
      %v11861 = vld [vmem:[#allocation2 + $0x46] sm:$0xff]
      %v11862 = vld [vmem:[#allocation2 + $0x4e] sm:$0xff]
      %v11863 = vld [vmem:[#allocation2 + $0x56] sm:$0xff]
      %v11864 = vld [vmem:[#allocation2 + $0x5e] sm:$0xff]
      %v11865 = vld [vmem:[#allocation2 + $0x66] sm:$0xff]
      %v11866 = vld [vmem:[#allocation2 + $0x6e] sm:$0xff]
      %v11867 = vld [vmem:[#allocation2 + $0x76] sm:$0xff]
      %v11868 = vld [vmem:[#allocation2 + $0x7e] sm:$0xff]
      %v11869 = vld [vmem:[#allocation2 + $0x86] sm:$0xff]
      %v11870 = vld [vmem:[#allocation2 + $0x8e] sm:$0xff]
      %v11871 = vld [vmem:[#allocation2 + $0x96] sm:$0xff]
      %v11872 = vld [vmem:[#allocation2 + $0x9e] sm:$0xff]
      %v11873 = vld [vmem:[#allocation2 + $0xa6] sm:$0xff]
      %v11874 = vld [vmem:[#allocation2 + $0xae] sm:$0xff]
      %v11875 = vld [vmem:[#allocation2 + $0xb6] sm:$0xff]
      %v11876 = vld [vmem:[#allocation2 + $0xbe] sm:$0xff]
      %v11877 = vld [vmem:[#allocation2 + $0xc6] sm:$0xff]
      %v11878 = vld [vmem:[#allocation2 + $0xce] sm:$0xff]
      %v11879 = vld [vmem:[#allocation2 + $0xd6] sm:$0xff]
      %v11880 = vld [vmem:[#allocation2 + $0xde] sm:$0xff]
      %v11881 = vld [vmem:[#allocation2 + $0xe6] sm:$0xff]
      %v11882 = vld [vmem:[#allocation2 + $0xee] sm:$0xff]
      %v11883 = vld [vmem:[#allocation2 + $0xf6] sm:$0xff]
      %v11884 = vld [vmem:[#allocation2 + $0xfe] sm:$0xff]
      %v11885 = vld [vmem:[#allocation2 + $0x106] sm:$0xff]
      %v11886 = vld [vmem:[#allocation2 + $0x10e] sm:$0xff]
      %v11887 = vld [vmem:[#allocation2 + $0x116] sm:$0xff]
      %v11888 = vld [vmem:[#allocation2 + $0x11e] sm:$0xff]
      %v11889 = vld [vmem:[#allocation2 + $0x126] sm:$0xff]
      %v11890 = vld [vmem:[#allocation2 + $0x12e] sm:$0xff]
      %v11891 = vld [vmem:[#allocation2 + $0x136] sm:$0xff]
      %v11892 = vld [vmem:[#allocation2 + $0x13e] sm:$0xff]
      %s11893 = scalar_lea.vmem %s8, 256
      %v11894 = vld [vmem:[%s11893] sm:$0xff]
      %v11895 = vld [vmem:[%s11893 + $0x8] sm:$0xff]
      %v11896 = vld [vmem:[%s11893 + $0x10] sm:$0xff]
      %v11897 = vld [vmem:[%s11893 + $0x18] sm:$0xff]
      %v11899 = vsel %vm439, %v11857, 0
      %v11902 = vsel %vm439, %v11858, 0
      %v11905 = vsel %vm439, %v11859, 0
      %v11908 = vsel %vm439, %v11860, 0
      %v11911 = vsel %vm439, %v11861, 0
      %v11914 = vsel %vm439, %v11862, 0
      %v11917 = vsel %vm439, %v11863, 0
      %v11920 = vsel %vm439, %v11864, 0
      %v11923 = vsel %vm439, %v11865, 0
      %v11926 = vsel %vm439, %v11866, 0
      %v11929 = vsel %vm439, %v11867, 0
      %v11932 = vsel %vm439, %v11868, 0
      %v11935 = vsel %vm439, %v11869, 0
      %v11938 = vsel %vm439, %v11870, 0
      %v11941 = vsel %vm439, %v11871, 0
      %v11944 = vsel %vm439, %v11872, 0
      %v11947 = vsel %vm439, %v11873, 0
      %v11950 = vsel %vm439, %v11874, 0
      %v11953 = vsel %vm439, %v11875, 0
      %v11956 = vsel %vm439, %v11876, 0
      %v11959 = vsel %vm439, %v11877, 0
      %v11962 = vsel %vm439, %v11878, 0
      %v11965 = vsel %vm439, %v11879, 0
      %v11968 = vsel %vm439, %v11880, 0
      %v11971 = vsel %vm439, %v11881, 0
      %v11974 = vsel %vm439, %v11882, 0
      %v11977 = vsel %vm439, %v11883, 0
      %v11980 = vsel %vm439, %v11884, 0
      %v11983 = vsel %vm439, %v11885, 0
      %v11986 = vsel %vm439, %v11886, 0
      %v11989 = vsel %vm439, %v11887, 0
      %v11992 = vsel %vm439, %v11888, 0
      %v11995 = vsel %vm439, %v11889, 0
      %v11998 = vsel %vm439, %v11890, 0
      %v12001 = vsel %vm439, %v11891, 0
      %v12004 = vsel %vm439, %v11892, 0
      %12006 = vmatpush.msra.mxu0 0.0
      %12007 = vmatpush.msra.mxu0 0.0
      %12008 = vmatpush.msra.mxu0 0.0
      %12009 = vmatpush.msra.mxu0 0.0
      %12010 = vmatpush.msra.mxu0 0.0
      %12011 = vmatpush.msra.mxu0 0.0
      %12012 = vmatpush.msra.mxu0 0.0
      %12013 = vmatpush.msra.mxu0 0.0
      %12014 = vmatpush.msra.mxu0 0.0
      %12015 = vmatpush.msra.mxu0 0.0
      %12016 = vmatpush.msra.mxu0 0.0
      %12017 = vmatpush.msra.mxu0 0.0
      %12018 = vmatpush.msra.mxu0 %v11897
      %12019 = vmatpush.msra.mxu0 %v11896
      %12020 = vmatpush.msra.mxu0 %v11895
      %12021 = vmatpush.msra.mxu0 %v11894
      %12022 = vmatmul.f32.gmra.mxu0 %v11899
      %v12023 = vpop.f32.mrf.mxu0
      %v12024 = vadd.f32 0.0, %v12023
      %12025 = vmatmul.f32.gmra.mxu0 %v11902
      %v12026 = vpop.f32.mrf.mxu0
      %v12027 = vadd.f32 0.0, %v12026
      %12028 = vmatmul.f32.gmra.mxu0 %v11905
      %v12029 = vpop.f32.mrf.mxu0
      %v12030 = vadd.f32 0.0, %v12029
      %12031 = vmatmul.f32.gmra.mxu0 %v11908
      %v12032 = vpop.f32.mrf.mxu0
      %v12033 = vadd.f32 0.0, %v12032
      %12034 = vmatmul.f32.gmra.mxu0 %v11911
      %v12035 = vpop.f32.mrf.mxu0
      %v12036 = vadd.f32 0.0, %v12035
      %12037 = vmatmul.f32.gmra.mxu0 %v11914
      %v12038 = vpop.f32.mrf.mxu0
      %v12039 = vadd.f32 0.0, %v12038
      %12040 = vmatmul.f32.gmra.mxu0 %v11917
      %v12041 = vpop.f32.mrf.mxu0
      %v12042 = vadd.f32 0.0, %v12041
      %12043 = vmatmul.f32.gmra.mxu0 %v11920
      %v12044 = vpop.f32.mrf.mxu0
      %v12045 = vadd.f32 0.0, %v12044
      %12046 = vmatmul.f32.gmra.mxu0 %v11923
      %v12047 = vpop.f32.mrf.mxu0
      %v12048 = vadd.f32 0.0, %v12047
      %12049 = vmatmul.f32.gmra.mxu0 %v11926
      %v12050 = vpop.f32.mrf.mxu0
      %v12051 = vadd.f32 0.0, %v12050
      %12052 = vmatmul.f32.gmra.mxu0 %v11929
      %v12053 = vpop.f32.mrf.mxu0
      %v12054 = vadd.f32 0.0, %v12053
      %12055 = vmatmul.f32.gmra.mxu0 %v11932
      %v12056 = vpop.f32.mrf.mxu0
      %v12057 = vadd.f32 0.0, %v12056
      %12058 = vmatmul.f32.gmra.mxu0 %v11935
      %v12059 = vpop.f32.mrf.mxu0
      %v12060 = vadd.f32 0.0, %v12059
      %12061 = vmatmul.f32.gmra.mxu0 %v11938
      %v12062 = vpop.f32.mrf.mxu0
      %v12063 = vadd.f32 0.0, %v12062
      %12064 = vmatmul.f32.gmra.mxu0 %v11941
      %v12065 = vpop.f32.mrf.mxu0
      %v12066 = vadd.f32 0.0, %v12065
      %12067 = vmatmul.f32.gmra.mxu0 %v11944
      %v12068 = vpop.f32.mrf.mxu0
      %v12069 = vadd.f32 0.0, %v12068
      %12070 = vmatmul.f32.gmra.mxu0 %v11947
      %v12071 = vpop.f32.mrf.mxu0
      %v12072 = vadd.f32 0.0, %v12071
      %12073 = vmatmul.f32.gmra.mxu0 %v11950
      %v12074 = vpop.f32.mrf.mxu0
      %v12075 = vadd.f32 0.0, %v12074
      %12076 = vmatmul.f32.gmra.mxu0 %v11953
      %v12077 = vpop.f32.mrf.mxu0
      %v12078 = vadd.f32 0.0, %v12077
      %12079 = vmatmul.f32.gmra.mxu0 %v11956
      %v12080 = vpop.f32.mrf.mxu0
      %v12081 = vadd.f32 0.0, %v12080
      %12082 = vmatmul.f32.gmra.mxu0 %v11959
      %v12083 = vpop.f32.mrf.mxu0
      %v12084 = vadd.f32 0.0, %v12083
      %12085 = vmatmul.f32.gmra.mxu0 %v11962
      %v12086 = vpop.f32.mrf.mxu0
      %v12087 = vadd.f32 0.0, %v12086
      %12088 = vmatmul.f32.gmra.mxu0 %v11965
      %v12089 = vpop.f32.mrf.mxu0
      %v12090 = vadd.f32 0.0, %v12089
      %12091 = vmatmul.f32.gmra.mxu0 %v11968
      %v12092 = vpop.f32.mrf.mxu0
      %v12093 = vadd.f32 0.0, %v12092
      %12094 = vmatmul.f32.gmra.mxu0 %v11971
      %v12095 = vpop.f32.mrf.mxu0
      %v12096 = vadd.f32 0.0, %v12095
      %12097 = vmatmul.f32.gmra.mxu0 %v11974
      %v12098 = vpop.f32.mrf.mxu0
      %v12099 = vadd.f32 0.0, %v12098
      %12100 = vmatmul.f32.gmra.mxu0 %v11977
      %v12101 = vpop.f32.mrf.mxu0
      %v12102 = vadd.f32 0.0, %v12101
      %12103 = vmatmul.f32.gmra.mxu0 %v11980
      %v12104 = vpop.f32.mrf.mxu0
      %v12105 = vadd.f32 0.0, %v12104
      %12106 = vmatmul.f32.gmra.mxu0 %v11983
      %v12107 = vpop.f32.mrf.mxu0
      %v12108 = vadd.f32 0.0, %v12107
      %12109 = vmatmul.f32.gmra.mxu0 %v11986
      %v12110 = vpop.f32.mrf.mxu0
      %v12111 = vadd.f32 0.0, %v12110
      %12112 = vmatmul.f32.gmra.mxu0 %v11989
      %v12113 = vpop.f32.mrf.mxu0
      %v12114 = vadd.f32 0.0, %v12113
      %12115 = vmatmul.f32.gmra.mxu0 %v11992
      %v12116 = vpop.f32.mrf.mxu0
      %v12117 = vadd.f32 0.0, %v12116
      %12118 = vmatmul.f32.gmra.mxu0 %v11995
      %v12119 = vpop.f32.mrf.mxu0
      %v12120 = vadd.f32 0.0, %v12119
      %12121 = vmatmul.f32.gmra.mxu0 %v11998
      %v12122 = vpop.f32.mrf.mxu0
      %v12123 = vadd.f32 0.0, %v12122
      %12124 = vmatmul.f32.gmra.mxu0 %v12001
      %v12125 = vpop.f32.mrf.mxu0
      %v12126 = vadd.f32 0.0, %v12125
      %12127 = vmatmul.f32.gmra.mxu0 %v12004
      %v12128 = vpop.f32.mrf.mxu0
      %v12129 = vadd.f32 0.0, %v12128
      %12130 = vdwg.mxu0
      %v12131 = vadd.f32 %v11821, %v12024
      %v12132 = vadd.f32 %v11822, %v12027
      %v12133 = vadd.f32 %v11823, %v12030
      %v12134 = vadd.f32 %v11824, %v12033
      %v12135 = vadd.f32 %v11825, %v12036
      %v12136 = vadd.f32 %v11826, %v12039
      %v12137 = vadd.f32 %v11827, %v12042
      %v12138 = vadd.f32 %v11828, %v12045
      %v12139 = vadd.f32 %v11829, %v12048
      %v12140 = vadd.f32 %v11830, %v12051
      %v12141 = vadd.f32 %v11831, %v12054
      %v12142 = vadd.f32 %v11832, %v12057
      %v12143 = vadd.f32 %v11833, %v12060
      %v12144 = vadd.f32 %v11834, %v12063
      %v12145 = vadd.f32 %v11835, %v12066
      %v12146 = vadd.f32 %v11836, %v12069
      %v12147 = vadd.f32 %v11837, %v12072
      %v12148 = vadd.f32 %v11838, %v12075
      %v12149 = vadd.f32 %v11839, %v12078
      %v12150 = vadd.f32 %v11840, %v12081
      %v12151 = vadd.f32 %v11841, %v12084
      %v12152 = vadd.f32 %v11842, %v12087
      %v12153 = vadd.f32 %v11843, %v12090
      %v12154 = vadd.f32 %v11844, %v12093
      %v12155 = vadd.f32 %v11845, %v12096
      %v12156 = vadd.f32 %v11846, %v12099
      %v12157 = vadd.f32 %v11847, %v12102
      %v12158 = vadd.f32 %v11848, %v12105
      %v12159 = vadd.f32 %v11849, %v12108
      %v12160 = vadd.f32 %v11850, %v12111
      %v12161 = vadd.f32 %v11851, %v12114
      %v12162 = vadd.f32 %v11852, %v12117
      %v12163 = vadd.f32 %v11853, %v12120
      %v12164 = vadd.f32 %v11854, %v12123
      %v12165 = vadd.f32 %v11855, %v12126
      %v12166 = vadd.f32 %v11856, %v12129
      %v12167 = vld [vmem:[%s9] sm:$0x1]
      %v12169 = vperm.slane %v12167, 0
      %v12171 = vadd.f32 %v12131, %v12169
      %v12172 = vadd.f32 %v12132, %v12169
      %v12173 = vadd.f32 %v12133, %v12169
      %v12174 = vadd.f32 %v12134, %v12169
      %v12175 = vadd.f32 %v12135, %v12169
      %v12176 = vadd.f32 %v12136, %v12169
      %v12177 = vadd.f32 %v12137, %v12169
      %v12178 = vadd.f32 %v12138, %v12169
      %v12179 = vadd.f32 %v12139, %v12169
      %v12180 = vadd.f32 %v12140, %v12169
      %v12181 = vadd.f32 %v12141, %v12169
      %v12182 = vadd.f32 %v12142, %v12169
      %v12183 = vadd.f32 %v12143, %v12169
      %v12184 = vadd.f32 %v12144, %v12169
      %v12185 = vadd.f32 %v12145, %v12169
      %v12186 = vadd.f32 %v12146, %v12169
      %v12187 = vadd.f32 %v12147, %v12169
      %v12188 = vadd.f32 %v12148, %v12169
      %v12189 = vadd.f32 %v12149, %v12169
      %v12190 = vadd.f32 %v12150, %v12169
      %v12191 = vadd.f32 %v12151, %v12169
      %v12192 = vadd.f32 %v12152, %v12169
      %v12193 = vadd.f32 %v12153, %v12169
      %v12194 = vadd.f32 %v12154, %v12169
      %v12195 = vadd.f32 %v12155, %v12169
      %v12196 = vadd.f32 %v12156, %v12169
      %v12197 = vadd.f32 %v12157, %v12169
      %v12198 = vadd.f32 %v12158, %v12169
      %v12199 = vadd.f32 %v12159, %v12169
      %v12200 = vadd.f32 %v12160, %v12169
      %v12201 = vadd.f32 %v12161, %v12169
      %v12202 = vadd.f32 %v12162, %v12169
      %v12203 = vadd.f32 %v12163, %v12169
      %v12204 = vadd.f32 %v12164, %v12169
      %v12205 = vadd.f32 %v12165, %v12169
      %v12206 = vadd.f32 %v12166, %v12169
      %v12207 = vmax.f32 %v12171, 0.0
      %v12208 = vmax.f32 %v12172, 0.0
      %v12209 = vmax.f32 %v12173, 0.0
      %v12210 = vmax.f32 %v12174, 0.0
      %v12211 = vmax.f32 %v12175, 0.0
      %v12212 = vmax.f32 %v12176, 0.0
      %v12213 = vmax.f32 %v12177, 0.0
      %v12214 = vmax.f32 %v12178, 0.0
      %v12215 = vmax.f32 %v12179, 0.0
      %v12216 = vmax.f32 %v12180, 0.0
      %v12217 = vmax.f32 %v12181, 0.0
      %v12218 = vmax.f32 %v12182, 0.0
      %v12219 = vmax.f32 %v12183, 0.0
      %v12220 = vmax.f32 %v12184, 0.0
      %v12221 = vmax.f32 %v12185, 0.0
      %v12222 = vmax.f32 %v12186, 0.0
      %v12223 = vmax.f32 %v12187, 0.0
      %v12224 = vmax.f32 %v12188, 0.0
      %v12225 = vmax.f32 %v12189, 0.0
      %v12226 = vmax.f32 %v12190, 0.0
      %v12227 = vmax.f32 %v12191, 0.0
      %v12228 = vmax.f32 %v12192, 0.0
      %v12229 = vmax.f32 %v12193, 0.0
      %v12230 = vmax.f32 %v12194, 0.0
      %v12231 = vmax.f32 %v12195, 0.0
      %v12232 = vmax.f32 %v12196, 0.0
      %v12233 = vmax.f32 %v12197, 0.0
      %v12234 = vmax.f32 %v12198, 0.0
      %v12235 = vmax.f32 %v12199, 0.0
      %v12236 = vmax.f32 %v12200, 0.0
      %v12237 = vmax.f32 %v12201, 0.0
      %v12238 = vmax.f32 %v12202, 0.0
      %v12239 = vmax.f32 %v12203, 0.0
      %v12240 = vmax.f32 %v12204, 0.0
      %v12241 = vmax.f32 %v12205, 0.0
      %v12242 = vmax.f32 %v12206, 0.0
      %v12243 = vmul.f32 %v12207, %v3398
      %v12244 = vmul.f32 %v12208, %v3403
      %v12245 = vmul.f32 %v12209, %v3408
      %v12246 = vmul.f32 %v12210, %v3413
      %v12247 = vmul.f32 %v12211, %v3418
      %v12248 = vmul.f32 %v12212, %v3423
      %v12249 = vmul.f32 %v12213, %v3428
      %v12250 = vmul.f32 %v12214, %v3433
      %v12251 = vmul.f32 %v12215, %v3438
      %v12252 = vmul.f32 %v12216, %v3443
      %v12253 = vmul.f32 %v12217, %v3448
      %v12254 = vmul.f32 %v12218, %v3453
      %v12255 = vmul.f32 %v12219, %v3458
      %v12256 = vmul.f32 %v12220, %v3463
      %v12257 = vmul.f32 %v12221, %v3468
      %v12258 = vmul.f32 %v12222, %v3473
      %v12259 = vmul.f32 %v12223, %v3478
      %v12260 = vmul.f32 %v12224, %v3483
      %v12261 = vmul.f32 %v12225, %v3488
      %v12262 = vmul.f32 %v12226, %v3493
      %v12263 = vmul.f32 %v12227, %v3498
      %v12264 = vmul.f32 %v12228, %v3503
      %v12265 = vmul.f32 %v12229, %v3508
      %v12266 = vmul.f32 %v12230, %v3513
      %v12267 = vmul.f32 %v12231, %v3518
      %v12268 = vmul.f32 %v12232, %v3523
      %v12269 = vmul.f32 %v12233, %v3528
      %v12270 = vmul.f32 %v12234, %v3533
      %v12271 = vmul.f32 %v12235, %v3538
      %v12272 = vmul.f32 %v12236, %v3543
      %v12273 = vmul.f32 %v12237, %v3548
      %v12274 = vmul.f32 %v12238, %v3553
      %v12275 = vmul.f32 %v12239, %v3558
      %v12276 = vmul.f32 %v12240, %v3563
      %v12277 = vmul.f32 %v12241, %v3568
      %v12278 = vmul.f32 %v12242, %v3573
      %12279 = vst.msk [vmem:[#allocation2 + $0x13] sm:$0xff] %vm439, %v12243
      %12280 = vst.msk [vmem:[#allocation2 + $0x1b] sm:$0xff] %vm439, %v12244
      %12281 = vst.msk [vmem:[#allocation2 + $0x23] sm:$0xff] %vm439, %v12245
      %12282 = vst.msk [vmem:[#allocation2 + $0x2b] sm:$0xff] %vm439, %v12246
      %12283 = vst.msk [vmem:[#allocation2 + $0x33] sm:$0xff] %vm439, %v12247
      %12284 = vst.msk [vmem:[#allocation2 + $0x3b] sm:$0xff] %vm439, %v12248
      %12285 = vst.msk [vmem:[#allocation2 + $0x43] sm:$0xff] %vm439, %v12249
      %12286 = vst.msk [vmem:[#allocation2 + $0x4b] sm:$0xff] %vm439, %v12250
      %12287 = vst.msk [vmem:[#allocation2 + $0x53] sm:$0xff] %vm439, %v12251
      %12288 = vst.msk [vmem:[#allocation2 + $0x5b] sm:$0xff] %vm439, %v12252
      %12289 = vst.msk [vmem:[#allocation2 + $0x63] sm:$0xff] %vm439, %v12253
      %12290 = vst.msk [vmem:[#allocation2 + $0x6b] sm:$0xff] %vm439, %v12254
      %12291 = vst.msk [vmem:[#allocation2 + $0x73] sm:$0xff] %vm439, %v12255
      %12292 = vst.msk [vmem:[#allocation2 + $0x7b] sm:$0xff] %vm439, %v12256
      %12293 = vst.msk [vmem:[#allocation2 + $0x83] sm:$0xff] %vm439, %v12257
      %12294 = vst.msk [vmem:[#allocation2 + $0x8b] sm:$0xff] %vm439, %v12258
      %12295 = vst.msk [vmem:[#allocation2 + $0x93] sm:$0xff] %vm439, %v12259
      %12296 = vst.msk [vmem:[#allocation2 + $0x9b] sm:$0xff] %vm439, %v12260
      %12297 = vst.msk [vmem:[#allocation2 + $0xa3] sm:$0xff] %vm439, %v12261
      %12298 = vst.msk [vmem:[#allocation2 + $0xab] sm:$0xff] %vm439, %v12262
      %12299 = vst.msk [vmem:[#allocation2 + $0xb3] sm:$0xff] %vm439, %v12263
      %12300 = vst.msk [vmem:[#allocation2 + $0xbb] sm:$0xff] %vm439, %v12264
      %12301 = vst.msk [vmem:[#allocation2 + $0xc3] sm:$0xff] %vm439, %v12265
      %12302 = vst.msk [vmem:[#allocation2 + $0xcb] sm:$0xff] %vm439, %v12266
      %12303 = vst.msk [vmem:[#allocation2 + $0xd3] sm:$0xff] %vm439, %v12267
      %12304 = vst.msk [vmem:[#allocation2 + $0xdb] sm:$0xff] %vm439, %v12268
      %12305 = vst.msk [vmem:[#allocation2 + $0xe3] sm:$0xff] %vm439, %v12269
      %12306 = vst.msk [vmem:[#allocation2 + $0xeb] sm:$0xff] %vm439, %v12270
      %12307 = vst.msk [vmem:[#allocation2 + $0xf3] sm:$0xff] %vm439, %v12271
      %12308 = vst.msk [vmem:[#allocation2 + $0xfb] sm:$0xff] %vm439, %v12272
      %12309 = vst.msk [vmem:[#allocation2 + $0x103] sm:$0xff] %vm439, %v12273
      %12310 = vst.msk [vmem:[#allocation2 + $0x10b] sm:$0xff] %vm439, %v12274
      %12311 = vst.msk [vmem:[#allocation2 + $0x113] sm:$0xff] %vm439, %v12275
      %12312 = vst.msk [vmem:[#allocation2 + $0x11b] sm:$0xff] %vm439, %v12276
      %12313 = vst.msk [vmem:[#allocation2 + $0x123] sm:$0xff] %vm439, %v12277
      %12314 = vst.msk [vmem:[#allocation2 + $0x12b] sm:$0xff] %vm439, %v12278
      %12315 = vst.msk [vmem:[%s438] sm:$0xff] %vm439, %v12243
      %12316 = vst.msk [vmem:[%s438 + $0x8] sm:$0xff] %vm439, %v12244
      %12317 = vst.msk [vmem:[%s438 + $0x10] sm:$0xff] %vm439, %v12245
      %12318 = vst.msk [vmem:[%s438 + $0x18] sm:$0xff] %vm439, %v12246
      %12319 = vst.msk [vmem:[%s438 + $0x20] sm:$0xff] %vm439, %v12247
      %12320 = vst.msk [vmem:[%s438 + $0x28] sm:$0xff] %vm439, %v12248
      %12321 = vst.msk [vmem:[%s438 + $0x30] sm:$0xff] %vm439, %v12249
      %12322 = vst.msk [vmem:[%s438 + $0x38] sm:$0xff] %vm439, %v12250
      %12323 = vst.msk [vmem:[%s438 + $0x40] sm:$0xff] %vm439, %v12251
      %12324 = vst.msk [vmem:[%s438 + $0x48] sm:$0xff] %vm439, %v12252
      %12325 = vst.msk [vmem:[%s438 + $0x50] sm:$0xff] %vm439, %v12253
      %12326 = vst.msk [vmem:[%s438 + $0x58] sm:$0xff] %vm439, %v12254
      %12327 = vst.msk [vmem:[%s438 + $0x60] sm:$0xff] %vm439, %v12255
      %12328 = vst.msk [vmem:[%s438 + $0x68] sm:$0xff] %vm439, %v12256
      %12329 = vst.msk [vmem:[%s438 + $0x70] sm:$0xff] %vm439, %v12257
      %12330 = vst.msk [vmem:[%s438 + $0x78] sm:$0xff] %vm439, %v12258
      %12331 = vst.msk [vmem:[%s438 + $0x80] sm:$0xff] %vm439, %v12259
      %12332 = vst.msk [vmem:[%s438 + $0x88] sm:$0xff] %vm439, %v12260
      %12333 = vst.msk [vmem:[%s438 + $0x90] sm:$0xff] %vm439, %v12261
      %12334 = vst.msk [vmem:[%s438 + $0x98] sm:$0xff] %vm439, %v12262
      %12335 = vst.msk [vmem:[%s438 + $0xa0] sm:$0xff] %vm439, %v12263
      %12336 = vst.msk [vmem:[%s438 + $0xa8] sm:$0xff] %vm439, %v12264
      %12337 = vst.msk [vmem:[%s438 + $0xb0] sm:$0xff] %vm439, %v12265
      %12338 = vst.msk [vmem:[%s438 + $0xb8] sm:$0xff] %vm439, %v12266
      %12339 = vst.msk [vmem:[%s438 + $0xc0] sm:$0xff] %vm439, %v12267
      %12340 = vst.msk [vmem:[%s438 + $0xc8] sm:$0xff] %vm439, %v12268
      %12341 = vst.msk [vmem:[%s438 + $0xd0] sm:$0xff] %vm439, %v12269
      %12342 = vst.msk [vmem:[%s438 + $0xd8] sm:$0xff] %vm439, %v12270
      %12343 = vst.msk [vmem:[%s438 + $0xe0] sm:$0xff] %vm439, %v12271
      %12344 = vst.msk [vmem:[%s438 + $0xe8] sm:$0xff] %vm439, %v12272
      %12345 = vst.msk [vmem:[%s438 + $0xf0] sm:$0xff] %vm439, %v12273
      %12346 = vst.msk [vmem:[%s438 + $0xf8] sm:$0xff] %vm439, %v12274
      %12347 = vst.msk [vmem:[%s438 + $0x100] sm:$0xff] %vm439, %v12275
      %12348 = vst.msk [vmem:[%s438 + $0x108] sm:$0xff] %vm439, %v12276
      %12349 = vst.msk [vmem:[%s438 + $0x110] sm:$0xff] %vm439, %v12277
      %12350 = vst.msk [vmem:[%s438 + $0x118] sm:$0xff] %vm439, %v12278
      %p12351 = scmp.lt.s32.totalorder %s24, 1
      %s12352 = scalar_select %p12351, %s24, 1
      %s12353 = smul.addr %s12352, 36
      %s12354 = smul.addr %s12353, 8
      %s12355 = scalar_lea.vmem %s10, %s12354
      %p12356 = scmp.lt.s32.totalorder %s24, 1
      %s12357 = scalar_select %p12356, %s24, 1
      %s12358 = smul.addr %s12357, 36
      %s12359 = smul.addr %s12358, 8
      %s12360 = scalar_lea.vmem %s11, %s12359
      %p12361 = scmp.lt.s32.totalorder %s24, 1
      %s12362 = scalar_select %p12361, %s24, 1
      %s12363 = smul.addr %s12362, 36
      %s12364 = smul.addr %s12363, 8
      %s12365 = scalar_lea.vmem %s12, %s12364
      // Predicated region
      $region61: #{_forward_impl.1} parent=59 // pred_check
        %p12366 = pneg %p257
      $region62: #{_forward_impl.1} parent=59 // pred_check_branch
        %12368 = sbr.rel (%p12366) target = $region64
      $region63: #{_forward_impl.1} parent=59 // pred_region
        _
      $region64: #{_forward_impl.1} parent=59 // pred_fallthru
        _
      // Predicated region
      $region65: #{_forward_impl.1} parent=59 // pred_check
        %p12369 = pneg %p283
      $region66: #{_forward_impl.1} parent=59 // pred_check_branch
        %12371 = sbr.rel (%p12369) target = $region68
      $region67: #{_forward_impl.1} parent=59 // pred_region
        _
      $region68: #{_forward_impl.1} parent=59 // pred_fallthru
        _
      // Predicated region
      $region69: #{_forward_impl.1} parent=59 // pred_check
        %p12372 = pneg %p309
      $region70: #{_forward_impl.1} parent=59 // pred_check_branch
        %12374 = sbr.rel (%p12372) target = $region72
      $region71: #{_forward_impl.1} parent=59 // pred_region
        _
      $region72: #{_forward_impl.1} parent=59 // pred_fallthru
        _
    $region60: #{_forward_impl.1} parent=5 // pred_fallthru
      _
    %p12375 = scmp.le.s32.totalorder 2, %s19
    // Predicated region
    $region73: #{_forward_impl.1} parent=5 // pred_check
      %p12376 = pneg %p12375
    $region74: #{_forward_impl.1} parent=5 // pred_check_branch
      %12378 = sbr.rel (%p12376) target = $region76
    $region75: #{_forward_impl.1} parent=5 // pred_region
      %s12379 = ssub.s32 %s19, 2
      // Predicated region
      $region77: #{_forward_impl.1} parent=75 // pred_check
        %p12380 = pneg %p263
      $region78: #{_forward_impl.1} parent=75 // pred_check_branch
        %12382 = sbr.rel (%p12380) target = $region80
      $region79: #{_forward_impl.1} parent=75 // pred_region
        %p12383 = scmp.lt.s32.totalorder %s25, 1
        %s12384 = scalar_select %p12383, %s25, 1
        %s12385 = smul.addr %s12384, 36
        %s12386 = smul.addr %s12385, 8
        %s12387 = scalar_lea.vmem %s10, %s12386
      $region80: #{_forward_impl.1} parent=75 // pred_fallthru
        _
      // Predicated region
      $region81: #{_forward_impl.1} parent=75 // pred_check
        %p12388 = pneg %p289
      $region82: #{_forward_impl.1} parent=75 // pred_check_branch
        %12390 = sbr.rel (%p12388) target = $region84
      $region83: #{_forward_impl.1} parent=75 // pred_region
        %p12391 = scmp.lt.s32.totalorder %s25, 1
        %s12392 = scalar_select %p12391, %s25, 1
        %s12393 = smul.addr %s12392, 36
        %s12394 = smul.addr %s12393, 8
        %s12395 = scalar_lea.vmem %s11, %s12394
      $region84: #{_forward_impl.1} parent=75 // pred_fallthru
        _
      // Predicated region
      $region85: #{_forward_impl.1} parent=75 // pred_check
        %p12396 = pneg %p315
      $region86: #{_forward_impl.1} parent=75 // pred_check_branch
        %12398 = sbr.rel (%p12396) target = $region88
      $region87: #{_forward_impl.1} parent=75 // pred_region
        %p12399 = scmp.lt.s32.totalorder %s25, 1
        %s12400 = scalar_select %p12399, %s25, 1
        %s12401 = smul.addr %s12400, 36
        %s12402 = smul.addr %s12401, 8
        %s12403 = scalar_lea.vmem %s12, %s12402
      $region88: #{_forward_impl.1} parent=75 // pred_fallthru
        _
    $region76: #{_forward_impl.1} parent=5 // pred_fallthru
      _
  $region6: #{_forward_impl.1} parent=0 // loop_footer
    %s23 = sadd.s32 1, %s19
  $region7: #{_forward_impl.1} parent=0 // loop_footer_branch
    %18 = sbr.rel target = $region3
  $region8: #{_forward_impl.1} parent=0 // loop_exit
    _

</llo_original>
